<compile_context>
chip_gen: v7x
topology: tpu7x:2x2x1
jax: 0.10.0
libtpu: 0.0.40
codegen_flags: <defaults>
</compile_context>

<pallas_src>
import functools

import jax
import jax.numpy as jnp
import numpy as np
from jax import lax
from jax.experimental import pallas as pl
from jax.experimental.pallas import tpu as pltpu


def _round_up(n, m):
    return ((n + m - 1) // m) * m


def _vmem_limit_bytes():
    # v5e/v6e: 128 MiB VMEM/TC, v7x: 64 MiB.  Budget = capacity - 16 MiB headroom,
    # capped at 100 MiB (bigger budget on 128 MiB parts, conservative on v7x).
    cap = 64 * 1024 * 1024
    try:
        info = pltpu.get_tpu_info()
        cap = int(getattr(info, "vmem_capacity_bytes", cap))
    except Exception:
        pass
    return int(min(100 * 1024 * 1024, max(32 * 1024 * 1024, cap - 16 * 1024 * 1024)))


_VMEM_LIMIT = _vmem_limit_bytes()


def _cparams(dims):
    return pltpu.CompilerParams(dimension_semantics=dims,
                                vmem_limit_bytes=_VMEM_LIMIT)


def _pick_tile(n, pref):
    """Largest divisor of n that is <= pref (channel dims only; HW uses padding)."""
    if n <= pref:
        return n
    if n % pref == 0:
        return pref
    for t in range(pref, 0, -1):
        if n % t == 0:
            return t
    return n


def _hw_tiling(HW, pref=512):
    """Streaming tile + padded extent for the HW axis so every grid divides exactly.
    (Replaces the old full-extent fallback that blew VMEM at e.g. 97x97.)"""
    thw = _round_up(HW, 8) if HW <= pref else pref
    return thw, _round_up(HW, thw)


# ----------------------------------------------------------------------------
# Kernel 1: 3x3 conv (no bias) + folded BatchNorm + ReLU
#   grid = (B, Cout tiles, Cin tiles); Cin is the reduction axis, accumulated
#   directly into a VMEM f32 scratch.  Output is bf16, HW-padded with zeros.
# ----------------------------------------------------------------------------
def _conv3x3_bn_relu_kernel(xp_ref, w_ref, scale_ref, bias_ref, out_ref, acc_ref):
    H = xp_ref.shape[1] - 2
    W = xp_ref.shape[2] - 2
    HW = H * W
    HWp = out_ref.shape[1]
    tcin = xp_ref.shape[3]
    ci = pl.program_id(2)

    xp = xp_ref[0]                                  # (H+2, W+2, TCin) bf16
    # 9-tap accumulate on the MXU.  The dx sublane shift is hoisted out of the
    # dy loop (3 shifted copies instead of 9); each dy tap is a sublane-aligned
    # row window of the flattened (H+2)*W buffer (W is a multiple of 8 in
    # practice).  Taps accumulate straight into acc_ref; the first tap
    # overwrites at ci == 0 (no zero-fill pass, no local f32 temp).
    for dx in range(3):
        xdx = xp[:, dx:dx + W, :].reshape((H + 2) * W, tcin)
        for dy in range(3):
            xs = xdx[dy * W:dy * W + HW]
            d = jnp.dot(xs, w_ref[dy, dx], preferred_element_type=jnp.float32)
            if dy == 0 and dx == 0:
                @pl.when(ci == 0)
                def _(dd=d):
                    acc_ref[...] = dd

                @pl.when(ci != 0)
                def _(dd=d):
                    acc_ref[...] += dd
            else:
                acc_ref[...] += d

    @pl.when(ci == pl.num_programs(2) - 1)
    def _():
        y = jnp.maximum(acc_ref[...] * scale_ref[0] + bias_ref[0], 0.0)
        y = y.astype(out_ref.dtype)
        if HWp != HW:
            # zero the HW padding so downstream CAM energy / PAM residuals stay exact
            y = jnp.concatenate(
                [y, jnp.zeros((HWp - HW, y.shape[-1]), y.dtype)], axis=0)
        out_ref[0] = y


def conv3x3_bn_relu(xpad_bf16, H, W, HWp, w, scale, bias):
    """xpad_bf16: (B, H+2, W+2, Cin) bf16 zero-padded input.
    Returns (B, HWp, Cout) bf16 with rows >= H*W zero-filled."""
    B, _, _, Cin = xpad_bf16.shape
    Cout = w.shape[-1]
    tcin = _pick_tile(Cin, 256)
    # TODO(synk): on v7x (64 MiB VMEM) at very large H*W, add an H-row grid axis
    # with a 1-row halo instead of keeping the full HW extent resident.
    tcout = _pick_tile(Cout, 256)
    return pl.pallas_call(
        _conv3x3_bn_relu_kernel,
        out_shape=jax.ShapeDtypeStruct((B, HWp, Cout), jnp.bfloat16),
        grid=(B, Cout // tcout, Cin // tcin),
        in_specs=[
            pl.BlockSpec((1, H + 2, W + 2, tcin), lambda b, co, ci: (b, 0, 0, ci)),
            pl.BlockSpec((3, 3, tcin, tcout), lambda b, co, ci: (0, 0, ci, co)),
            pl.BlockSpec((1, tcout), lambda b, co, ci: (0, co)),
            pl.BlockSpec((1, tcout), lambda b, co, ci: (0, co)),
        ],
        out_specs=pl.BlockSpec((1, HWp, tcout), lambda b, co, ci: (b, 0, co)),
        scratch_shapes=[pltpu.VMEM((H * W, tcout), jnp.float32)],
        compiler_params=_cparams(("parallel", "parallel", "arbitrary")),
    )(xpad_bf16, w.astype(jnp.bfloat16), scale, bias)


# ----------------------------------------------------------------------------
# Kernel 2: fused 1x1 q/k/v projection for PAM.  q|k are packed into one
#           lane-dense (2*Cq-wide) output, v is a separate lane-dense output.
# ----------------------------------------------------------------------------
def _qkv_proj_kernel(feat_ref, w_ref, b_ref, qk_ref, v_ref):
    c2 = qk_ref.shape[-1]
    qkv = jnp.dot(feat_ref[0], w_ref[...],
                  preferred_element_type=jnp.float32) + b_ref[0]
    qk_ref[0] = qkv[:, :c2].astype(qk_ref.dtype)
    v_ref[0] = qkv[:, c2:].astype(v_ref.dtype)


def qkv_project(feat, wq, bq, wk, bk, wv, bv, thw):
    B, HWp, C = feat.shape
    Cq = wq.shape[1]
    Ctot = 2 * Cq + C
    wqkv = jnp.concatenate([wq, wk, wv], axis=1).astype(jnp.bfloat16)   # (C, Ctot)
    bqkv = jnp.concatenate([bq, bk, bv], axis=1)                        # (1, Ctot) f32
    return pl.pallas_call(
        _qkv_proj_kernel,
        out_shape=(jax.ShapeDtypeStruct((B, HWp, 2 * Cq), jnp.bfloat16),
                   jax.ShapeDtypeStruct((B, HWp, C), jnp.bfloat16)),
        grid=(B, HWp // thw),
        in_specs=[
            pl.BlockSpec((1, thw, C), lambda b, i: (b, i, 0)),
            pl.BlockSpec((C, Ctot), lambda b, i: (0, 0)),
            pl.BlockSpec((1, Ctot), lambda b, i: (0, 0)),
        ],
        out_specs=(pl.BlockSpec((1, thw, 2 * Cq), lambda b, i: (b, i, 0)),
                   pl.BlockSpec((1, thw, C), lambda b, i: (b, i, 0))),
        compiler_params=_cparams(("parallel", "parallel")),
    )(feat, wqkv, bqkv)


# ----------------------------------------------------------------------------
# Kernel 3: PAM spatial attention — flash-attention style online softmax with
#           padded-key masking.  grid = (B, query tiles, KV tiles).
# ----------------------------------------------------------------------------
def _pam_flash_kernel(HW, qkq_ref, qkk_ref, v_ref, feat_ref, gamma_ref, o_ref,
                      m_sc, l_sc, acc_sc):
    ki = pl.program_id(2)
    tk = qkk_ref.shape[1]
    cq = qkq_ref.shape[-1] // 2

    @pl.when(ki == 0)
    def _():
        m_sc[...] = jnp.full(m_sc.shape, -jnp.inf, jnp.float32)
        l_sc[...] = jnp.zeros(l_sc.shape, jnp.float32)
        acc_sc[...] = jnp.zeros(acc_sc.shape, jnp.float32)

    q = qkq_ref[0][:, :cq]                        # (TQ, Cq) bf16
    k = qkk_ref[0][:, cq:]                        # (TK, Cq) bf16
    v = v_ref[0]                                  # (TK, C) bf16

    # s[i, j] = <q_i, k_j>; contracting the shared last dims keeps the
    # transposed RHS on the MXU (no separate XLU transpose of k).
    s = lax.dot_general(q, k, (((1,), (1,)), ((), ())),
                        preferred_element_type=jnp.float32)             # (TQ, TK)
    # mask keys that live in the HW padding region (their projections carry bias)
    kidx = ki * tk + lax.broadcasted_iota(jnp.int32, s.shape, 1)
    s = jnp.where(kidx < HW, s, -jnp.inf)

    m_prev = m_sc[...]
    m_new = jnp.maximum(m_prev, jnp.max(s, axis=-1, keepdims=True))
    alpha = jnp.exp(m_prev - m_new)
    p = jnp.exp(s - m_new)
    l_sc[...] = alpha * l_sc[...] + jnp.sum(p, axis=-1, keepdims=True)
    acc_sc[...] = alpha * acc_sc[...] + jnp.dot(p.astype(jnp.bfloat16), v,
                                                preferred_element_type=jnp.float32)
    m_sc[...] = m_new

    @pl.when(ki == pl.num_programs(2) - 1)
    def _():
        inv_l = pl.reciprocal(l_sc[...], approx=True)
        out = gamma_ref[0, 0] * (acc_sc[...] * inv_l) + feat_ref[0].astype(jnp.float32)
        o_ref[0] = out.astype(o_ref.dtype)


def pam_flash(qk, v, feat, gamma, HW, tq, tk):
    B, HWp, C2 = qk.shape
    C = v.shape[-1]
    return pl.pallas_call(
        functools.partial(_pam_flash_kernel, HW),
        out_shape=jax.ShapeDtypeStruct((B, HWp, C), jnp.bfloat16),
        grid=(B, HWp // tq, HWp // tk),
        in_specs=[
            pl.BlockSpec((1, tq, C2), lambda b, qi, ki: (b, qi, 0)),
            pl.BlockSpec((1, tk, C2), lambda b, qi, ki: (b, ki, 0)),
            pl.BlockSpec((1, tk, C), lambda b, qi, ki: (b, ki, 0)),
            pl.BlockSpec((1, tq, C), lambda b, qi, ki: (b, qi, 0)),
            pl.BlockSpec(memory_space=pltpu.MemorySpace.SMEM),           # gamma scalar
        ],
        out_specs=pl.BlockSpec((1, tq, C), lambda b, qi, ki: (b, qi, 0)),
        scratch_shapes=[pltpu.VMEM((tq, 1), jnp.float32),
                        pltpu.VMEM((tq, 1), jnp.float32),
                        pltpu.VMEM((tq, C), jnp.float32)],
        compiler_params=_cparams(("parallel", "parallel", "arbitrary")),
    )(qk, qk, v, feat, gamma)


# ----------------------------------------------------------------------------
# Kernel 4: CAM pass 1 — stream the (C, C) channel energy over HW tiles.
#           Padded HW rows are zero so they contribute nothing to the energy.
# ----------------------------------------------------------------------------
def _cam_energy_kernel(feat_ref, att_ref, e_sc):
    i = pl.program_id(1)

    @pl.when(i == 0)
    def _():
        e_sc[...] = jnp.zeros(e_sc.shape, jnp.float32)

    f = feat_ref[0]                                                     # (THW, C) bf16
    e_sc[...] += lax.dot_general(f, f, (((0,), (0,)), ((), ())),
                                 preferred_element_type=jnp.float32)    # (C, C)

    @pl.when(i == pl.num_programs(1) - 1)
    def _():
        e = e_sc[...]
        e_new = jnp.max(e, axis=-1, keepdims=True) - e
        e_new = e_new - jnp.max(e_new, axis=-1, keepdims=True)
        p = jnp.exp(e_new)
        att_ref[0] = p * pl.reciprocal(jnp.sum(p, axis=-1, keepdims=True),
                                       approx=True)


def cam_attention(feat, thw):
    B, HWp, C = feat.shape
    return pl.pallas_call(
        _cam_energy_kernel,
        out_shape=jax.ShapeDtypeStruct((B, C, C), jnp.float32),
        grid=(B, HWp // thw),
        in_specs=[pl.BlockSpec((1, thw, C), lambda b, i: (b, i, 0))],
        out_specs=pl.BlockSpec((1, C, C), lambda b, i: (b, 0, 0)),
        scratch_shapes=[pltpu.VMEM((C, C), jnp.float32)],
        compiler_params=_cparams(("parallel", "arbitrary")),
    )(feat)


# ----------------------------------------------------------------------------
# Kernel 5: CAM pass 2 — apply channel attention per HW tile + residual.
# ----------------------------------------------------------------------------
def _cam_apply_kernel(feat_ref, att_ref, gamma_ref, o_ref):
    feat = feat_ref[0]                                                  # (THW, C) bf16
    out = lax.dot_general(feat, att_ref[0].astype(jnp.bfloat16),
                          (((1,), (1,)), ((), ())),
                          preferred_element_type=jnp.float32)           # (THW, C)
    o_ref[0] = (gamma_ref[0, 0] * out + feat.astype(jnp.float32)).astype(o_ref.dtype)


def cam_apply(feat, att, gamma, thw):
    B, HWp, C = feat.shape
    return pl.pallas_call(
        _cam_apply_kernel,
        out_shape=jax.ShapeDtypeStruct((B, HWp, C), jnp.bfloat16),
        grid=(B, HWp // thw),
        in_specs=[
            pl.BlockSpec((1, thw, C), lambda b, i: (b, i, 0)),
            pl.BlockSpec((1, C, C), lambda b, i: (b, 0, 0)),
            pl.BlockSpec(memory_space=pltpu.MemorySpace.SMEM),           # gamma scalar
        ],
        out_specs=pl.BlockSpec((1, thw, C), lambda b, i: (b, i, 0)),
        compiler_params=_cparams(("parallel", "parallel")),
    )(feat, att, gamma)


# ----------------------------------------------------------------------------
# Kernel 6: feat_sum = sa_conv + sc_conv ; conv8 = Dropout2d(eval) + 1x1 conv.
#           conv8 output channels are lane-padded to a multiple of 128 so the
#           store is a dense vst; the wrapper's slice folds into the final
#           reshape/transpose.
# ----------------------------------------------------------------------------
def _fuse_conv8_kernel(sa_ref, sc_ref, w_ref, b_ref, out_ref, fsum_ref):
    fsum = sa_ref[0].astype(jnp.float32) + sc_ref[0].astype(jnp.float32)
    # TODO(synk): Dropout2d(0.1) is identity in eval mode; no stochastic drop.
    y = jnp.dot(fsum.astype(jnp.bfloat16), w_ref[...],
                preferred_element_type=jnp.float32) + b_ref[0]
    out_ref[0] = y
    fsum_ref[0] = fsum


def fuse_and_conv8(sa_conv, sc_conv, w8, b8, thw):
    B, HWp, C = sa_conv.shape
    Cout = w8.shape[1]
    Cpad = _round_up(Cout, 128)
    w8p = jnp.pad(w8, ((0, 0), (0, Cpad - Cout))).astype(jnp.bfloat16)
    b8p = jnp.pad(b8, ((0, 0), (0, Cpad - Cout)))
    return pl.pallas_call(
        _fuse_conv8_kernel,
        out_shape=(jax.ShapeDtypeStruct((B, HWp, Cpad), jnp.float32),
                   jax.ShapeDtypeStruct((B, HWp, C), jnp.float32)),
        grid=(B, HWp // thw),
        in_specs=[
            pl.BlockSpec((1, thw, C), lambda b, i: (b, i, 0)),
            pl.BlockSpec((1, thw, C), lambda b, i: (b, i, 0)),
            pl.BlockSpec((C, Cpad), lambda b, i: (0, 0)),
            pl.BlockSpec((1, Cpad), lambda b, i: (0, 0)),
        ],
        out_specs=(pl.BlockSpec((1, thw, Cpad), lambda b, i: (b, i, 0)),
                   pl.BlockSpec((1, thw, C), lambda b, i: (b, i, 0))),
        compiler_params=_cparams(("parallel", "parallel")),
    )(sa_conv, sc_conv, w8p, b8p)


# ----------------------------------------------------------------------------
# Full DANetHead forward (Pallas kernels for all hot paths)
# ----------------------------------------------------------------------------
def danet_head_forward(x_nchw, params):
    B, Cin, H, W = x_nchw.shape
    HW = H * W
    thw, HWp = _hw_tiling(HW, pref=512)
    x = jnp.transpose(x_nchw, (0, 2, 3, 1))                 # NCHW -> NHWC
    inter = params["w5a"].shape[-1]

    def pad_bf16(t_nhwc):
        # TODO(synk): halo could be handled inside the conv kernel to avoid
        # this extra HBM pass; kept in the wrapper (bf16, half traffic).
        return jnp.pad(t_nhwc.astype(jnp.bfloat16),
                       ((0, 0), (1, 1), (1, 1), (0, 0)))

    def unpad_hw(t_bhwc):
        return t_bhwc[:, :HW].reshape(B, H, W, t_bhwc.shape[-1])

    xpad = pad_bf16(x)                                       # shared by conv5a/conv5c

    # conv5a -> PAM -> conv51
    feat1 = conv3x3_bn_relu(xpad, H, W, HWp, params["w5a"], params["s5a"], params["b5a"])
    qk, v = qkv_project(feat1, params["wq"], params["bq"],
                        params["wk"], params["bk"], params["wv"], params["bv"], thw)
    sa_feat = pam_flash(qk, v, feat1, params["gamma_pa"], HW, tq=thw, tk=thw)
    sa_conv = conv3x3_bn_relu(pad_bf16(unpad_hw(sa_feat)),
                              H, W, HWp, params["w51"], params["s51"], params["b51"])

    # conv5c -> CAM -> conv52
    feat2 = conv3x3_bn_relu(xpad, H, W, HWp, params["w5c"], params["s5c"], params["b5c"])
    att = cam_attention(feat2, thw)
    sc_feat = cam_apply(feat2, att, params["gamma_ca"], thw)
    sc_conv = conv3x3_bn_relu(pad_bf16(unpad_hw(sc_feat)),
                              H, W, HWp, params["w52"], params["s52"], params["b52"])

    # feat_sum + conv8 (the HW / channel-pad slices fold into the final transpose)
    out8, fsum = fuse_and_conv8(sa_conv, sc_conv, params["w8"], params["b8"], thw)
    out_ch = params["w8"].shape[1]
    sasc_output = jnp.transpose(out8[:, :HW, :out_ch].reshape(B, H, W, out_ch),
                                (0, 3, 1, 2))
    feat_sum = jnp.transpose(fsum[:, :HW].reshape(B, H, W, inter), (0, 3, 1, 2))
    return sasc_output, feat_sum


# ----------------------------------------------------------------------------
# Pure-JAX reference (same bf16 MXU-operand casts and bf16 intermediate
# storage rounding as the kernels, for correctness check)
# ----------------------------------------------------------------------------
def _bf16(t):
    return t.astype(jnp.bfloat16)


def _r16(t):
    # mirror the kernels' bf16 intermediate storage
    return t.astype(jnp.bfloat16).astype(jnp.float32)


def _ref_conv3x3(x_nhwc, w, scale, bias):
    y = lax.conv_general_dilated(_bf16(x_nhwc), _bf16(w), (1, 1), 'SAME',
                                 dimension_numbers=('NHWC', 'HWIO', 'NHWC'),
                                 preferred_element_type=jnp.float32)
    return jnp.maximum(y * scale[0] + bias[0], 0.0)


def _ref_pam(feat, wq, bq, wk, bk, wv, bv, gamma):
    fb = _bf16(feat)
    q = jnp.einsum('bpc,cd->bpd', fb, _bf16(wq),
                   preferred_element_type=jnp.float32) + bq[0]
    k = jnp.einsum('bpc,cd->bpd', fb, _bf16(wk),
                   preferred_element_type=jnp.float32) + bk[0]
    v = jnp.einsum('bpc,cd->bpd', fb, _bf16(wv),
                   preferred_element_type=jnp.float32) + bv[0]
    energy = jnp.einsum('bic,bjc->bij', _bf16(q), _bf16(k),
                        preferred_element_type=jnp.float32)
    att = jax.nn.softmax(energy, axis=-1)
    out = jnp.einsum('bij,bjc->bic', _bf16(att), _bf16(v),
                     preferred_element_type=jnp.float32)
    return gamma[0, 0] * out + feat


def _ref_cam(feat, gamma):
    fb = _bf16(feat)
    energy = jnp.einsum('bpc,bpd->bcd', fb, fb,
                        preferred_element_type=jnp.float32)
    energy_new = jnp.max(energy, axis=-1, keepdims=True) - energy
    att = jax.nn.softmax(energy_new, axis=-1)
    out = jnp.einsum('bcd,bpd->bpc', _bf16(att), fb,
                     preferred_element_type=jnp.float32)
    return gamma[0, 0] * out + feat


def _ref_forward(x_nchw, p):
    B, Cin, H, W = x_nchw.shape
    x = jnp.transpose(x_nchw, (0, 2, 3, 1))
    inter = p["w5a"].shape[-1]

    feat1 = _r16(_ref_conv3x3(x, p["w5a"], p["s5a"], p["b5a"])).reshape(B, H * W, inter)
    sa_feat = _r16(_ref_pam(feat1, p["wq"], p["bq"], p["wk"], p["bk"],
                            p["wv"], p["bv"], p["gamma_pa"]))
    sa_conv = _r16(_ref_conv3x3(sa_feat.reshape(B, H, W, inter),
                                p["w51"], p["s51"], p["b51"])).reshape(B, H * W, inter)

    feat2 = _r16(_ref_conv3x3(x, p["w5c"], p["s5c"], p["b5c"])).reshape(B, H * W, inter)
    sc_feat = _r16(_ref_cam(feat2, p["gamma_ca"]))
    sc_conv = _r16(_ref_conv3x3(sc_feat.reshape(B, H, W, inter),
                                p["w52"], p["s52"], p["b52"])).reshape(B, H * W, inter)

    fsum = sa_conv + sc_conv
    y = jnp.einsum('bpc,cd->bpd', _bf16(fsum), _bf16(p["w8"]),
                   preferred_element_type=jnp.float32) + p["b8"][0]
    out_ch = p["w8"].shape[1]
    return (jnp.transpose(y.reshape(B, H, W, out_ch), (0, 3, 1, 2)),
            jnp.transpose(fsum.reshape(B, H, W, inter), (0, 3, 1, 2)))


# ----------------------------------------------------------------------------
# Deterministic parameter construction + run
# ----------------------------------------------------------------------------
def make_params(key, in_channels, out_channels):
    inter = in_channels // 4
    qch = max(inter // 8, 1)
    ks = jax.random.split(key, 16)

    def nrm(k, shape, s=0.05):
        return (s * jax.random.normal(k, shape)).astype(jnp.float32)

    return {
        "w5a": nrm(ks[0], (3, 3, in_channels, inter)),
        "s5a": jnp.ones((1, inter), jnp.float32) * 0.9,
        "b5a": nrm(ks[1], (1, inter), 0.02),
        "w5c": nrm(ks[2], (3, 3, in_channels, inter)),
        "s5c": jnp.ones((1, inter), jnp.float32) * 1.1,
        "b5c": nrm(ks[3], (1, inter), 0.02),
        "wq": nrm(ks[4], (inter, qch), 0.1),
        "bq": nrm(ks[5], (1, qch), 0.02),
        "wk": nrm(ks[6], (inter, qch), 0.1),
        "bk": nrm(ks[7], (1, qch), 0.02),
        "wv": nrm(ks[8], (inter, inter), 0.1),
        "bv": nrm(ks[9], (1, inter), 0.02),
        # PyTorch inits gamma = 0; non-zero here so the attention paths are exercised.
        "gamma_pa": jnp.full((1, 1), 0.3, jnp.float32),
        "gamma_ca": jnp.full((1, 1), 0.7, jnp.float32),
        "w51": nrm(ks[10], (3, 3, inter, inter)),
        "s51": jnp.ones((1, inter), jnp.float32),
        "b51": nrm(ks[11], (1, inter), 0.02),
        "w52": nrm(ks[12], (3, 3, inter, inter)),
        "s52": jnp.ones((1, inter), jnp.float32),
        "b52": nrm(ks[13], (1, inter), 0.02),
        # conv8: PyTorch hardcodes 512 in-channels (== inter when in_channels=2048)
        "w8": nrm(ks[14], (inter, out_channels), 0.1),
        "b8": nrm(ks[15], (1, out_channels), 0.02),
    }


if __name__ == "__main__":
    # H=W=24 -> HW=576: exercises the 512-row streaming tile, the padded-HW
    # remainder (HWp=1024) and the in-kernel padded-key masking.
    B, in_channels, out_channels, H, W = 2, 64, 8, 24, 24

    key = jax.random.PRNGKey(0)
    kx, kp = jax.random.split(key)
    x = jax.random.normal(kx, (B, in_channels, H, W), jnp.float32)  # NCHW like PyTorch
    params = make_params(kp, in_channels, out_channels)

    sasc_output, feat_sum = danet_head_forward(x, params)
    jax.block_until_ready((sasc_output, feat_sum))

    ref_out, ref_fsum = _ref_forward(x, params)
    np.testing.assert_allclose(np.asarray(sasc_output), np.asarray(ref_out),
                               rtol=1e-2, atol=1e-2)
    np.testing.assert_allclose(np.asarray(feat_sum), np.asarray(ref_fsum),
                               rtol=1e-2, atol=1e-2)

    print("KERNEL_OK")
</pallas_src>

<mosaic_0001>
module attributes {stable_mosaic.version = 11 : i64} {
  func.func @_conv3x3_bn_relu_kernel(%arg0: i32, %arg1: i32, %arg2: i32, %arg3: memref<1x26x26x64xbf16, #tpu.memory_space<vmem>>, %arg4: memref<3x3x64x16xbf16, #tpu.memory_space<vmem>>, %arg5: memref<1x16xf32, #tpu.memory_space<vmem>>, %arg6: memref<1x16xf32, #tpu.memory_space<vmem>>, %arg7: memref<1x1024x16xbf16, #tpu.memory_space<vmem>>, %arg8: memref<576x16xf32, #tpu.memory_space<vmem>>) attributes {dimension_semantics = [#tpu.dimension_semantics<parallel>, #tpu.dimension_semantics<parallel>, #tpu.dimension_semantics<arbitrary>], iteration_bounds = array<i64: 2, 1, 1>, scalar_prefetch = 0 : i64, scratch_operands = 1 : i64, tpu.core_type = #tpu.core_type<tc>, window_params = [{transform_indices = @transform_0, window_bounds = array<i64: 1, 26, 26, 64>}, {transform_indices = @transform_1, window_bounds = array<i64: 3, 3, 64, 16>}, {transform_indices = @transform_2, window_bounds = array<i64: 1, 16>}, {transform_indices = @transform_3, window_bounds = array<i64: 1, 16>}, {transform_indices = @transform_4, window_bounds = array<i64: 1, 1024, 16>}]} {
    %c0 = arith.constant 0 : index
    %c0_0 = arith.constant 0 : index
    %c0_1 = arith.constant 0 : index
    %c0_2 = arith.constant 0 : index
    %0 = vector.load %arg3[%c0, %c0_0, %c0_1, %c0_2] : memref<1x26x26x64xbf16, #tpu.memory_space<vmem>>, vector<1x26x26x64xbf16>
    %1 = vector.shape_cast %0 : vector<1x26x26x64xbf16> to vector<26x26x64xbf16>
    %2 = vector.extract_strided_slice %1 {offsets = [0, 0, 0], sizes = [26, 24, 64], strides = [1, 1, 1]} : vector<26x26x64xbf16> to vector<26x24x64xbf16>
    %3 = vector.shape_cast %2 : vector<26x24x64xbf16> to vector<624x64xbf16>
    %4 = vector.extract_strided_slice %3 {offsets = [0, 0], sizes = [576, 64], strides = [1, 1]} : vector<624x64xbf16> to vector<576x64xbf16>
    %c0_3 = arith.constant 0 : index
    %c0_4 = arith.constant 0 : index
    %c0_5 = arith.constant 0 : index
    %c0_6 = arith.constant 0 : index
    %5 = vector.load %arg4[%c0_3, %c0_4, %c0_5, %c0_6] : memref<3x3x64x16xbf16, #tpu.memory_space<vmem>>, vector<1x1x64x16xbf16>
    %6 = vector.shape_cast %5 : vector<1x1x64x16xbf16> to vector<64x16xbf16>
    %cst = arith.constant dense<0.000000e+00> : vector<576x16xf32>
    %7 = tpu.matmul %4, %6, %cst {dimension_numbers = #tpu.dot_dimension_numbers<[1], [0], [0], [1], [0, 0, 1, 1], [], []>} : vector<576x64xbf16>, vector<64x16xbf16>, vector<576x16xf32> -> vector<576x16xf32>
    %c0_i32 = arith.constant 0 : i32
    %8 = arith.cmpi eq, %arg2, %c0_i32 : i32
    %9 = arith.extui %8 : i1 to i32
    %c0_i32_7 = arith.constant 0 : i32
    %10 = arith.cmpi ne, %9, %c0_i32_7 : i32
    scf.if %10 {
      %c0_82 = arith.constant 0 : index
      %c0_83 = arith.constant 0 : index
      %77 = vector.load %arg8[%c0_82, %c0_83] : memref<576x16xf32, #tpu.memory_space<vmem>>, vector<576x16xf32>
      tpu.vector_store %arg8[%c0_82, %c0_83], %7 {strides = array<i32>} : memref<576x16xf32, #tpu.memory_space<vmem>>, vector<576x16xf32>,
    } else {
    }
    %c0_i32_8 = arith.constant 0 : i32
    %11 = arith.cmpi ne, %arg2, %c0_i32_8 : i32
    %12 = arith.extui %11 : i1 to i32
    %c0_i32_9 = arith.constant 0 : i32
    %13 = arith.cmpi ne, %12, %c0_i32_9 : i32
    scf.if %13 {
      %c0_82 = arith.constant 0 : index
      %c0_83 = arith.constant 0 : index
      %77 = vector.load %arg8[%c0_82, %c0_83] : memref<576x16xf32, #tpu.memory_space<vmem>>, vector<576x16xf32>
      %78 = arith.addf %77, %7 : vector<576x16xf32>
      %c0_84 = arith.constant 0 : index
      %c0_85 = arith.constant 0 : index
      %79 = vector.load %arg8[%c0_84, %c0_85] : memref<576x16xf32, #tpu.memory_space<vmem>>, vector<576x16xf32>
      tpu.vector_store %arg8[%c0_84, %c0_85], %78 {strides = array<i32>} : memref<576x16xf32, #tpu.memory_space<vmem>>, vector<576x16xf32>,
    } else {
    }
    %14 = vector.extract_strided_slice %3 {offsets = [24, 0], sizes = [576, 64], strides = [1, 1]} : vector<624x64xbf16> to vector<576x64xbf16>
    %c1 = arith.constant 1 : index
    %c0_10 = arith.constant 0 : index
    %c0_11 = arith.constant 0 : index
    %c0_12 = arith.constant 0 : index
    %15 = vector.load %arg4[%c1, %c0_10, %c0_11, %c0_12] : memref<3x3x64x16xbf16, #tpu.memory_space<vmem>>, vector<1x1x64x16xbf16>
    %16 = vector.shape_cast %15 : vector<1x1x64x16xbf16> to vector<64x16xbf16>
    %cst_13 = arith.constant dense<0.000000e+00> : vector<576x16xf32>
    %17 = tpu.matmul %14, %16, %cst_13 {dimension_numbers = #tpu.dot_dimension_numbers<[1], [0], [0], [1], [0, 0, 1, 1], [], []>} : vector<576x64xbf16>, vector<64x16xbf16>, vector<576x16xf32> -> vector<576x16xf32>
    %c0_14 = arith.constant 0 : index
    %c0_15 = arith.constant 0 : index
    %18 = vector.load %arg8[%c0_14, %c0_15] : memref<576x16xf32, #tpu.memory_space<vmem>>, vector<576x16xf32>
    %19 = arith.addf %18, %17 : vector<576x16xf32>
    %c0_16 = arith.constant 0 : index
    %c0_17 = arith.constant 0 : index
    %20 = vector.load %arg8[%c0_16, %c0_17] : memref<576x16xf32, #tpu.memory_space<vmem>>, vector<576x16xf32>
    tpu.vector_store %arg8[%c0_16, %c0_17], %19 {strides = array<i32>} : memref<576x16xf32, #tpu.memory_space<vmem>>, vector<576x16xf32>,
    %21 = vector.extract_strided_slice %3 {offsets = [48, 0], sizes = [576, 64], strides = [1, 1]} : vector<624x64xbf16> to vector<576x64xbf16>
    %c2 = arith.constant 2 : index
    %c0_18 = arith.constant 0 : index
    %c0_19 = arith.constant 0 : index
    %c0_20 = arith.constant 0 : index
    %22 = vector.load %arg4[%c2, %c0_18, %c0_19, %c0_20] : memref<3x3x64x16xbf16, #tpu.memory_space<vmem>>, vector<1x1x64x16xbf16>
    %23 = vector.shape_cast %22 : vector<1x1x64x16xbf16> to vector<64x16xbf16>
    %cst_21 = arith.constant dense<0.000000e+00> : vector<576x16xf32>
    %24 = tpu.matmul %21, %23, %cst_21 {dimension_numbers = #tpu.dot_dimension_numbers<[1], [0], [0], [1], [0, 0, 1, 1], [], []>} : vector<576x64xbf16>, vector<64x16xbf16>, vector<576x16xf32> -> vector<576x16xf32>
    %c0_22 = arith.constant 0 : index
    %c0_23 = arith.constant 0 : index
    %25 = vector.load %arg8[%c0_22, %c0_23] : memref<576x16xf32, #tpu.memory_space<vmem>>, vector<576x16xf32>
    %26 = arith.addf %25, %24 : vector<576x16xf32>
    %c0_24 = arith.constant 0 : index
    %c0_25 = arith.constant 0 : index
    %27 = vector.load %arg8[%c0_24, %c0_25] : memref<576x16xf32, #tpu.memory_space<vmem>>, vector<576x16xf32>
    tpu.vector_store %arg8[%c0_24, %c0_25], %26 {strides = array<i32>} : memref<576x16xf32, #tpu.memory_space<vmem>>, vector<576x16xf32>,
    %28 = vector.extract_strided_slice %1 {offsets = [0, 1, 0], sizes = [26, 24, 64], strides = [1, 1, 1]} : vector<26x26x64xbf16> to vector<26x24x64xbf16>
    %29 = vector.shape_cast %28 : vector<26x24x64xbf16> to vector<624x64xbf16>
    %30 = vector.extract_strided_slice %29 {offsets = [0, 0], sizes = [576, 64], strides = [1, 1]} : vector<624x64xbf16> to vector<576x64xbf16>
    %c0_26 = arith.constant 0 : index
    %c1_27 = arith.constant 1 : index
    %c0_28 = arith.constant 0 : index
    %c0_29 = arith.constant 0 : index
    %31 = vector.load %arg4[%c0_26, %c1_27, %c0_28, %c0_29] : memref<3x3x64x16xbf16, #tpu.memory_space<vmem>>, vector<1x1x64x16xbf16>
    %32 = vector.shape_cast %31 : vector<1x1x64x16xbf16> to vector<64x16xbf16>
    %cst_30 = arith.constant dense<0.000000e+00> : vector<576x16xf32>
    %33 = tpu.matmul %30, %32, %cst_30 {dimension_numbers = #tpu.dot_dimension_numbers<[1], [0], [0], [1], [0, 0, 1, 1], [], []>} : vector<576x64xbf16>, vector<64x16xbf16>, vector<576x16xf32> -> vector<576x16xf32>
    %c0_31 = arith.constant 0 : index
    %c0_32 = arith.constant 0 : index
    %34 = vector.load %arg8[%c0_31, %c0_32] : memref<576x16xf32, #tpu.memory_space<vmem>>, vector<576x16xf32>
    %35 = arith.addf %34, %33 : vector<576x16xf32>
    %c0_33 = arith.constant 0 : index
    %c0_34 = arith.constant 0 : index
    %36 = vector.load %arg8[%c0_33, %c0_34] : memref<576x16xf32, #tpu.memory_space<vmem>>, vector<576x16xf32>
    tpu.vector_store %arg8[%c0_33, %c0_34], %35 {strides = array<i32>} : memref<576x16xf32, #tpu.memory_space<vmem>>, vector<576x16xf32>,
    %37 = vector.extract_strided_slice %29 {offsets = [24, 0], sizes = [576, 64], strides = [1, 1]} : vector<624x64xbf16> to vector<576x64xbf16>
    %c1_35 = arith.constant 1 : index
    %c1_36 = arith.constant 1 : index
    %c0_37 = arith.constant 0 : index
    %c0_38 = arith.constant 0 : index
    %38 = vector.load %arg4[%c1_35, %c1_36, %c0_37, %c0_38] : memref<3x3x64x16xbf16, #tpu.memory_space<vmem>>, vector<1x1x64x16xbf16>
    %39 = vector.shape_cast %38 : vector<1x1x64x16xbf16> to vector<64x16xbf16>
    %cst_39 = arith.constant dense<0.000000e+00> : vector<576x16xf32>
    %40 = tpu.matmul %37, %39, %cst_39 {dimension_numbers = #tpu.dot_dimension_numbers<[1], [0], [0], [1], [0, 0, 1, 1], [], []>} : vector<576x64xbf16>, vector<64x16xbf16>, vector<576x16xf32> -> vector<576x16xf32>
    %c0_40 = arith.constant 0 : index
    %c0_41 = arith.constant 0 : index
    %41 = vector.load %arg8[%c0_40, %c0_41] : memref<576x16xf32, #tpu.memory_space<vmem>>, vector<576x16xf32>
    %42 = arith.addf %41, %40 : vector<576x16xf32>
    %c0_42 = arith.constant 0 : index
    %c0_43 = arith.constant 0 : index
    %43 = vector.load %arg8[%c0_42, %c0_43] : memref<576x16xf32, #tpu.memory_space<vmem>>, vector<576x16xf32>
    tpu.vector_store %arg8[%c0_42, %c0_43], %42 {strides = array<i32>} : memref<576x16xf32, #tpu.memory_space<vmem>>, vector<576x16xf32>,
    %44 = vector.extract_strided_slice %29 {offsets = [48, 0], sizes = [576, 64], strides = [1, 1]} : vector<624x64xbf16> to vector<576x64xbf16>
    %c2_44 = arith.constant 2 : index
    %c1_45 = arith.constant 1 : index
    %c0_46 = arith.constant 0 : index
    %c0_47 = arith.constant 0 : index
    %45 = vector.load %arg4[%c2_44, %c1_45, %c0_46, %c0_47] : memref<3x3x64x16xbf16, #tpu.memory_space<vmem>>, vector<1x1x64x16xbf16>
    %46 = vector.shape_cast %45 : vector<1x1x64x16xbf16> to vector<64x16xbf16>
    %cst_48 = arith.constant dense<0.000000e+00> : vector<576x16xf32>
    %47 = tpu.matmul %44, %46, %cst_48 {dimension_numbers = #tpu.dot_dimension_numbers<[1], [0], [0], [1], [0, 0, 1, 1], [], []>} : vector<576x64xbf16>, vector<64x16xbf16>, vector<576x16xf32> -> vector<576x16xf32>
    %c0_49 = arith.constant 0 : index
    %c0_50 = arith.constant 0 : index
    %48 = vector.load %arg8[%c0_49, %c0_50] : memref<576x16xf32, #tpu.memory_space<vmem>>, vector<576x16xf32>
    %49 = arith.addf %48, %47 : vector<576x16xf32>
    %c0_51 = arith.constant 0 : index
    %c0_52 = arith.constant 0 : index
    %50 = vector.load %arg8[%c0_51, %c0_52] : memref<576x16xf32, #tpu.memory_space<vmem>>, vector<576x16xf32>
    tpu.vector_store %arg8[%c0_51, %c0_52], %49 {strides = array<i32>} : memref<576x16xf32, #tpu.memory_space<vmem>>, vector<576x16xf32>,
    %51 = vector.extract_strided_slice %1 {offsets = [0, 2, 0], sizes = [26, 24, 64], strides = [1, 1, 1]} : vector<26x26x64xbf16> to vector<26x24x64xbf16>
    %52 = vector.shape_cast %51 : vector<26x24x64xbf16> to vector<624x64xbf16>
    %53 = vector.extract_strided_slice %52 {offsets = [0, 0], sizes = [576, 64], strides = [1, 1]} : vector<624x64xbf16> to vector<576x64xbf16>
    %c0_53 = arith.constant 0 : index
    %c2_54 = arith.constant 2 : index
    %c0_55 = arith.constant 0 : index
    %c0_56 = arith.constant 0 : index
    %54 = vector.load %arg4[%c0_53, %c2_54, %c0_55, %c0_56] : memref<3x3x64x16xbf16, #tpu.memory_space<vmem>>, vector<1x1x64x16xbf16>
    %55 = vector.shape_cast %54 : vector<1x1x64x16xbf16> to vector<64x16xbf16>
    %cst_57 = arith.constant dense<0.000000e+00> : vector<576x16xf32>
    %56 = tpu.matmul %53, %55, %cst_57 {dimension_numbers = #tpu.dot_dimension_numbers<[1], [0], [0], [1], [0, 0, 1, 1], [], []>} : vector<576x64xbf16>, vector<64x16xbf16>, vector<576x16xf32> -> vector<576x16xf32>
    %c0_58 = arith.constant 0 : index
    %c0_59 = arith.constant 0 : index
    %57 = vector.load %arg8[%c0_58, %c0_59] : memref<576x16xf32, #tpu.memory_space<vmem>>, vector<576x16xf32>
    %58 = arith.addf %57, %56 : vector<576x16xf32>
    %c0_60 = arith.constant 0 : index
    %c0_61 = arith.constant 0 : index
    %59 = vector.load %arg8[%c0_60, %c0_61] : memref<576x16xf32, #tpu.memory_space<vmem>>, vector<576x16xf32>
    tpu.vector_store %arg8[%c0_60, %c0_61], %58 {strides = array<i32>} : memref<576x16xf32, #tpu.memory_space<vmem>>, vector<576x16xf32>,
    %60 = vector.extract_strided_slice %52 {offsets = [24, 0], sizes = [576, 64], strides = [1, 1]} : vector<624x64xbf16> to vector<576x64xbf16>
    %c1_62 = arith.constant 1 : index
    %c2_63 = arith.constant 2 : index
    %c0_64 = arith.constant 0 : index
    %c0_65 = arith.constant 0 : index
    %61 = vector.load %arg4[%c1_62, %c2_63, %c0_64, %c0_65] : memref<3x3x64x16xbf16, #tpu.memory_space<vmem>>, vector<1x1x64x16xbf16>
    %62 = vector.shape_cast %61 : vector<1x1x64x16xbf16> to vector<64x16xbf16>
    %cst_66 = arith.constant dense<0.000000e+00> : vector<576x16xf32>
    %63 = tpu.matmul %60, %62, %cst_66 {dimension_numbers = #tpu.dot_dimension_numbers<[1], [0], [0], [1], [0, 0, 1, 1], [], []>} : vector<576x64xbf16>, vector<64x16xbf16>, vector<576x16xf32> -> vector<576x16xf32>
    %c0_67 = arith.constant 0 : index
    %c0_68 = arith.constant 0 : index
    %64 = vector.load %arg8[%c0_67, %c0_68] : memref<576x16xf32, #tpu.memory_space<vmem>>, vector<576x16xf32>
    %65 = arith.addf %64, %63 : vector<576x16xf32>
    %c0_69 = arith.constant 0 : index
    %c0_70 = arith.constant 0 : index
    %66 = vector.load %arg8[%c0_69, %c0_70] : memref<576x16xf32, #tpu.memory_space<vmem>>, vector<576x16xf32>
    tpu.vector_store %arg8[%c0_69, %c0_70], %65 {strides = array<i32>} : memref<576x16xf32, #tpu.memory_space<vmem>>, vector<576x16xf32>,
    %67 = vector.extract_strided_slice %52 {offsets = [48, 0], sizes = [576, 64], strides = [1, 1]} : vector<624x64xbf16> to vector<576x64xbf16>
    %c2_71 = arith.constant 2 : index
    %c2_72 = arith.constant 2 : index
    %c0_73 = arith.constant 0 : index
    %c0_74 = arith.constant 0 : index
    %68 = vector.load %arg4[%c2_71, %c2_72, %c0_73, %c0_74] : memref<3x3x64x16xbf16, #tpu.memory_space<vmem>>, vector<1x1x64x16xbf16>
    %69 = vector.shape_cast %68 : vector<1x1x64x16xbf16> to vector<64x16xbf16>
    %cst_75 = arith.constant dense<0.000000e+00> : vector<576x16xf32>
    %70 = tpu.matmul %67, %69, %cst_75 {dimension_numbers = #tpu.dot_dimension_numbers<[1], [0], [0], [1], [0, 0, 1, 1], [], []>} : vector<576x64xbf16>, vector<64x16xbf16>, vector<576x16xf32> -> vector<576x16xf32>
    %c0_76 = arith.constant 0 : index
    %c0_77 = arith.constant 0 : index
    %71 = vector.load %arg8[%c0_76, %c0_77] : memref<576x16xf32, #tpu.memory_space<vmem>>, vector<576x16xf32>
    %72 = arith.addf %71, %70 : vector<576x16xf32>
    %c0_78 = arith.constant 0 : index
    %c0_79 = arith.constant 0 : index
    %73 = vector.load %arg8[%c0_78, %c0_79] : memref<576x16xf32, #tpu.memory_space<vmem>>, vector<576x16xf32>
    tpu.vector_store %arg8[%c0_78, %c0_79], %72 {strides = array<i32>} : memref<576x16xf32, #tpu.memory_space<vmem>>, vector<576x16xf32>,
    %c0_i32_80 = arith.constant 0 : i32
    %74 = arith.cmpi eq, %arg2, %c0_i32_80 : i32
    %75 = arith.extui %74 : i1 to i32
    %c0_i32_81 = arith.constant 0 : i32
    %76 = arith.cmpi ne, %75, %c0_i32_81 : i32
    scf.if %76 {
      %c0_82 = arith.constant 0 : index
      %c0_83 = arith.constant 0 : index
      %77 = vector.load %arg8[%c0_82, %c0_83] : memref<576x16xf32, #tpu.memory_space<vmem>>, vector<576x16xf32>
      %c0_84 = arith.constant 0 : index
      %c0_85 = arith.constant 0 : index
      %78 = vector.load %arg5[%c0_84, %c0_85] : memref<1x16xf32, #tpu.memory_space<vmem>>, vector<1x16xf32>
      %79 = vector.shape_cast %78 : vector<1x16xf32> to vector<16xf32>
      %80 = vector.shape_cast %79 : vector<16xf32> to vector<1x16xf32>
      %81 = vector.broadcast %80 : vector<1x16xf32> to vector<576x16xf32>
      %82 = arith.mulf %77, %81 : vector<576x16xf32>
      %c0_86 = arith.constant 0 : index
      %c0_87 = arith.constant 0 : index
      %83 = vector.load %arg6[%c0_86, %c0_87] : memref<1x16xf32, #tpu.memory_space<vmem>>, vector<1x16xf32>
      %84 = vector.shape_cast %83 : vector<1x16xf32> to vector<16xf32>
      %85 = vector.shape_cast %84 : vector<16xf32> to vector<1x16xf32>
      %86 = vector.broadcast %85 : vector<1x16xf32> to vector<576x16xf32>
      %87 = arith.addf %82, %86 : vector<576x16xf32>
      %cst_88 = arith.constant 0.000000e+00 : f32
      %88 = vector.broadcast %cst_88 : f32 to vector<576x16xf32>
      %89 = arith.maximumf %87, %88 : vector<576x16xf32>
      %90 = arith.truncf %89 : vector<576x16xf32> to vector<576x16xbf16>
      %cst_89 = arith.constant 0.000000e+00 : bf16
      %91 = vector.broadcast %cst_89 : bf16 to vector<448x16xbf16>
      %92 = tpu.concatenate %90, %91 in 0 : vector<576x16xbf16>, vector<448x16xbf16> -> vector<1024x16xbf16>
      %c0_90 = arith.constant 0 : index
      %c0_91 = arith.constant 0 : index
      %c0_92 = arith.constant 0 : index
      %93 = vector.load %arg7[%c0_90, %c0_91, %c0_92] : memref<1x1024x16xbf16, #tpu.memory_space<vmem>>, vector<1x1024x16xbf16>
      %94 = vector.shape_cast %93 : vector<1x1024x16xbf16> to vector<1024x16xbf16>
      %95 = vector.shape_cast %92 : vector<1024x16xbf16> to vector<1x1024x16xbf16>
      tpu.vector_store %arg7[%c0_90, %c0_91, %c0_92], %95 {strides = array<i32>} : memref<1x1024x16xbf16, #tpu.memory_space<vmem>>, vector<1x1024x16xbf16>,
    } else {
    }
    return
  }
  func.func @transform_0(%arg0: i32, %arg1: i32, %arg2: i32) -> (i32, i32, i32, i32) {
    %c0_i32 = arith.constant 0 : i32
    %c0_i32_0 = arith.constant 0 : i32
    %c0_i32_1 = arith.constant 0 : i32
    return %arg0, %c0_i32, %c0_i32_0, %arg2 : i32, i32, i32, i32
  }
  func.func @transform_1(%arg0: i32, %arg1: i32, %arg2: i32) -> (i32, i32, i32, i32) {
    %c0_i32 = arith.constant 0 : i32
    %c0_i32_0 = arith.constant 0 : i32
    %c0_i32_1 = arith.constant 0 : i32
    return %c0_i32, %c0_i32_0, %arg2, %arg1 : i32, i32, i32, i32
  }
  func.func @transform_2(%arg0: i32, %arg1: i32, %arg2: i32) -> (i32, i32) {
    %c0_i32 = arith.constant 0 : i32
    %c0_i32_0 = arith.constant 0 : i32
    return %c0_i32, %arg1 : i32, i32
  }
  func.func @transform_3(%arg0: i32, %arg1: i32, %arg2: i32) -> (i32, i32) {
    %c0_i32 = arith.constant 0 : i32
    %c0_i32_0 = arith.constant 0 : i32
    return %c0_i32, %arg1 : i32, i32
  }
  func.func @transform_4(%arg0: i32, %arg1: i32, %arg2: i32) -> (i32, i32, i32) {
    %c0_i32 = arith.constant 0 : i32
    %c0_i32_0 = arith.constant 0 : i32
    return %arg0, %c0_i32, %arg1 : i32, i32, i32
  }
}

</mosaic_0001>

<llo_original>
// kernel: tpu_custom_call.1
$region0: #{tpu_custom_call.1}
  #allocation0 [shape = 'u32[]', space=smem, size = 0x4, offset = 0x4, fixed_abs, tag = 'smem constant byte address 0x4 - core index']
  #allocation1 [shape = 'u32[144,128]{1,0:T(1,128)}', space=vmem, size = 0x12000, scoped, tag = 'internal scratch']
  #allocation2 [shape = 'f32[576,16]{1,0:T(8,128)}', space=vmem, size = 0x48000, scoped, tag = 'scratch operand']
  %s0 = inlined_call_operand.vmem [shape: bf16[2,26,26,64], index: 0, kind: input, shape index: {}]
  %s1 = inlined_call_operand.vmem [shape: bf16[3,3,64,16], index: 1, kind: input, shape index: {}]
  %s2 = inlined_call_operand.vmem [shape: f32[1,16], index: 2, kind: input, shape index: {}]
  %s3 = inlined_call_operand.vmem [shape: f32[1,16], index: 3, kind: input, shape index: {}]
  %s4 = inlined_call_operand.vmem [shape: bf16[2,1024,16], index: 4, kind: output, shape index: {}]
  %s5 = sld [smem:[#allocation0]]
  $region61: #{tpu_custom_call.1} parent=0
    _
  %s7 = ssub.s32 1, %s5
  %s8 = scalar_select 0, %s7, %s5
  loop: start=0, step=1, limit=4
  $region2: #{tpu_custom_call.1} parent=0 // loop_pre_header
    _
  $region3: #{tpu_custom_call.1} parent=0 // loop_header
    %s10 = sphi 0, %s14
    %p11 = scmp.ge.s32.totalorder %s10, 4
    %s17 = sphi 0, %s36
    %s18 = sphi 0, %s32
    %s19 = sphi 0, %s28
    %s20 = sphi 0, %s17
    %s21 = sphi 0, %s18
    %s22 = sphi 0, %s19
    %s23 = sphi 0, %s20
    %s24 = sphi 0, %s21
    %s25 = sphi 0, %s22
    %s41 = sphi 0, %s43
    %s44 = sphi 0, %s41
    %s45 = sphi 0, %s44
    %s61 = sphi 0, %s45
    %s69 = sphi 0, %s71
    %s72 = sphi 0, %s69
    %s73 = sphi 0, %s72
    %s89 = sphi 0, %s73
    %s95 = sphi 0, %s97
    %s98 = sphi 0, %s95
    %s99 = sphi 0, %s98
    %s115 = sphi 0, %s99
    %s121 = sphi 0, %s123
    %s124 = sphi 0, %s121
    %s125 = sphi 0, %s124
    %s141 = sphi 0, %s125
    %s149 = sphi 0, %s151
    %s152 = sphi 0, %s149
    %s153 = sphi 0, %s152
    %s169 = sphi 0, %s153
  $region4: #{tpu_custom_call.1} parent=0 // loop_header_branch
    %13 = sbr.rel (%p11) target = $region8
  $region5: #{tpu_custom_call.1} parent=0 // loop_body
    %s15 = ssub.s32 %s10, 1
    %s16 = ssub.s32 %s10, 2
    %s26 = sadd.s32 1, %s19
    %p27 = scmp.ge.s32.totalorder %s26, 1
    %s28 = scalar_select %p27, 0, %s26
    %s29 = sadd.s32 1, %s18
    %s30 = scalar_select %p27, %s29, %s18
    %p31 = scmp.ge.s32.totalorder %s30, 1
    %s32 = scalar_select %p31, 0, %s30
    %s33 = sadd.s32 1, %s17
    %s34 = scalar_select %p31, %s33, %s17
    %p35 = scmp.ge.s32.totalorder %s34, 2
    %s36 = scalar_select %p35, 0, %s34
    %s37 = ssub.s32 %s17, %s36
    %s38 = ssub.s32 %s19, %s28
    %s39 = sor.u32 %s37, %s38
    %p40 = scmp.eq.s32.totalorder %s39, 0
    %s42 = sadd.s32 %s41, 1
    %s43 = scalar_select %p40, %s41, %s42
    %p46 = pneg %p40
    %p47 = scmp.eq.s32.totalorder %s10, 1
    %p48 = por %p46, %p47
    %p49 = scmp.ne.s32.totalorder %s41, %s44
    %p50 = scmp.eq.s32.totalorder %s10, 0
    %p51 = por %p49, %p50
    %p52 = scmp.ne.s32.totalorder %s41, %s44
    %p53 = scmp.eq.s32.totalorder %s15, 1
    %p54 = por %p52, %p53
    %p55 = scmp.ne.s32.totalorder %s44, %s45
    %p56 = scmp.eq.s32.totalorder %s15, 0
    %p57 = por %p55, %p56
    %p58 = scmp.ne.s32.totalorder %s44, %s45
    %p59 = scmp.eq.s32.totalorder %s16, 1
    %p60 = por %p58, %p59
    %p62 = scmp.ne.s32.totalorder %s45, %s61
    %p63 = scmp.eq.s32.totalorder %s16, 0
    %p64 = por %p62, %p63
    %s65 = ssub.s32 %s19, %s28
    %s66 = ssub.s32 %s18, %s32
    %s67 = sor.u32 %s65, %s66
    %p68 = scmp.eq.s32.totalorder %s67, 0
    %s70 = sadd.s32 %s69, 1
    %s71 = scalar_select %p68, %s69, %s70
    %p74 = pneg %p68
    %p75 = scmp.eq.s32.totalorder %s10, 1
    %p76 = por %p74, %p75
    %p77 = scmp.ne.s32.totalorder %s69, %s72
    %p78 = scmp.eq.s32.totalorder %s10, 0
    %p79 = por %p77, %p78
    %p80 = scmp.ne.s32.totalorder %s69, %s72
    %p81 = scmp.eq.s32.totalorder %s15, 1
    %p82 = por %p80, %p81
    %p83 = scmp.ne.s32.totalorder %s72, %s73
    %p84 = scmp.eq.s32.totalorder %s15, 0
    %p85 = por %p83, %p84
    %p86 = scmp.ne.s32.totalorder %s72, %s73
    %p87 = scmp.eq.s32.totalorder %s16, 1
    %p88 = por %p86, %p87
    %p90 = scmp.ne.s32.totalorder %s73, %s89
    %p91 = scmp.eq.s32.totalorder %s16, 0
    %p92 = por %p90, %p91
    %s93 = ssub.s32 %s18, %s32
    %p94 = scmp.eq.s32.totalorder %s93, 0
    %s96 = sadd.s32 %s95, 1
    %s97 = scalar_select %p94, %s95, %s96
    %p100 = pneg %p94
    %p101 = scmp.eq.s32.totalorder %s10, 1
    %p102 = por %p100, %p101
    %p103 = scmp.ne.s32.totalorder %s95, %s98
    %p104 = scmp.eq.s32.totalorder %s10, 0
    %p105 = por %p103, %p104
    %p106 = scmp.ne.s32.totalorder %s95, %s98
    %p107 = scmp.eq.s32.totalorder %s15, 1
    %p108 = por %p106, %p107
    %p109 = scmp.ne.s32.totalorder %s98, %s99
    %p110 = scmp.eq.s32.totalorder %s15, 0
    %p111 = por %p109, %p110
    %p112 = scmp.ne.s32.totalorder %s98, %s99
    %p113 = scmp.eq.s32.totalorder %s16, 1
    %p114 = por %p112, %p113
    %p116 = scmp.ne.s32.totalorder %s99, %s115
    %p117 = scmp.eq.s32.totalorder %s16, 0
    %p118 = por %p116, %p117
    %s119 = ssub.s32 %s18, %s32
    %p120 = scmp.eq.s32.totalorder %s119, 0
    %s122 = sadd.s32 %s121, 1
    %s123 = scalar_select %p120, %s121, %s122
    %p126 = pneg %p120
    %p127 = scmp.eq.s32.totalorder %s10, 1
    %p128 = por %p126, %p127
    %p129 = scmp.ne.s32.totalorder %s121, %s124
    %p130 = scmp.eq.s32.totalorder %s10, 0
    %p131 = por %p129, %p130
    %p132 = scmp.ne.s32.totalorder %s121, %s124
    %p133 = scmp.eq.s32.totalorder %s15, 1
    %p134 = por %p132, %p133
    %p135 = scmp.ne.s32.totalorder %s124, %s125
    %p136 = scmp.eq.s32.totalorder %s15, 0
    %p137 = por %p135, %p136
    %p138 = scmp.ne.s32.totalorder %s124, %s125
    %p139 = scmp.eq.s32.totalorder %s16, 1
    %p140 = por %p138, %p139
    %p142 = scmp.ne.s32.totalorder %s125, %s141
    %p143 = scmp.eq.s32.totalorder %s16, 0
    %p144 = por %p142, %p143
    %s145 = ssub.s32 %s17, %s36
    %s146 = ssub.s32 %s18, %s32
    %s147 = sor.u32 %s145, %s146
    %p148 = scmp.eq.s32.totalorder %s147, 0
    %s150 = sadd.s32 %s149, 1
    %s151 = scalar_select %p148, %s149, %s150
    %p154 = pneg %p148
    %p155 = scmp.eq.s32.totalorder %s10, 1
    %p156 = por %p154, %p155
    %p157 = scmp.ne.s32.totalorder %s149, %s152
    %p158 = scmp.eq.s32.totalorder %s10, 0
    %p159 = por %p157, %p158
    %p160 = scmp.ne.s32.totalorder %s149, %s152
    %p161 = scmp.eq.s32.totalorder %s15, 1
    %p162 = por %p160, %p161
    %p163 = scmp.ne.s32.totalorder %s152, %s153
    %p164 = scmp.eq.s32.totalorder %s15, 0
    %p165 = por %p163, %p164
    %p166 = scmp.ne.s32.totalorder %s152, %s153
    %p167 = scmp.eq.s32.totalorder %s16, 1
    %p168 = por %p166, %p167
    %p170 = scmp.ne.s32.totalorder %s153, %s169
    %p171 = scmp.eq.s32.totalorder %s16, 0
    %p172 = por %p170, %p171
    %p173 = scmp.le.s32.totalorder 1, %s10
    %p174 = scmp.lt.s32.totalorder %s10, 3
    %p175 = pnand %p173, %p174
    %p176 = pneg %p175
    // Predicated region
    $region9: #{tpu_custom_call.1} parent=5 // pred_check
      _
    $region10: #{tpu_custom_call.1} parent=5 // pred_check_branch
      %178 = sbr.rel (%p175) target = $region12
    $region11: #{tpu_custom_call.1} parent=5 // pred_region
      %s179 = ssub.s32 %s10, 1
      // Predicated region
      $region13: #{tpu_custom_call.1} parent=11 // pred_check
        %p180 = pneg %p85
      $region14: #{tpu_custom_call.1} parent=11 // pred_check_branch
        %182 = sbr.rel (%p180) target = $region16
      $region15: #{tpu_custom_call.1} parent=11 // pred_region
        %s183 = smul.u32 8, %s22
        %p184 = scmp.lt.s32.totalorder %s183, 7
        %s185 = scalar_select %p184, %s183, 7
        %p186 = scmp.lt.s32.totalorder %s21, 0
        %s187 = scalar_select %p186, %s21, 0
        %s188 = sadd.s32 %s187, %s185
        %s189 = smul.addr %s188, 4
        %s190 = scalar_lea.vmem %s1, %s189
        %s191 = smul.u32 8, %s22
      $region16: #{tpu_custom_call.1} parent=11 // pred_fallthru
        _
      // Predicated region
      $region17: #{tpu_custom_call.1} parent=11 // pred_check
        %p192 = pneg %p111
      $region18: #{tpu_custom_call.1} parent=11 // pred_check_branch
        %194 = sbr.rel (%p192) target = $region20
      $region19: #{tpu_custom_call.1} parent=11 // pred_region
        %p195 = scmp.lt.s32.totalorder %s21, 0
        %s196 = scalar_select %p195, %s21, 0
        %s197 = scalar_lea.vmem %s2, %s196
      $region20: #{tpu_custom_call.1} parent=11 // pred_fallthru
        _
      // Predicated region
      $region21: #{tpu_custom_call.1} parent=11 // pred_check
        %p198 = pneg %p137
      $region22: #{tpu_custom_call.1} parent=11 // pred_check_branch
        %200 = sbr.rel (%p198) target = $region24
      $region23: #{tpu_custom_call.1} parent=11 // pred_region
        %p201 = scmp.lt.s32.totalorder %s21, 0
        %s202 = scalar_select %p201, %s21, 0
        %s203 = scalar_lea.vmem %s3, %s202
      $region24: #{tpu_custom_call.1} parent=11 // pred_fallthru
        _
    $region12: #{tpu_custom_call.1} parent=5 // pred_fallthru
      _
    %p204 = scmp.lt.s32.totalorder %s10, 2
    // Predicated region
    $region25: #{tpu_custom_call.1} parent=5 // pred_check
      %p205 = pneg %p204
    $region26: #{tpu_custom_call.1} parent=5 // pred_check_branch
      %207 = sbr.rel (%p205) target = $region28
    $region27: #{tpu_custom_call.1} parent=5 // pred_region
      // Predicated region
      $region29: #{tpu_custom_call.1} parent=27 // pred_check
        %p208 = pneg %p51
      $region30: #{tpu_custom_call.1} parent=27 // pred_check_branch
        %210 = sbr.rel (%p208) target = $region32
      $region31: #{tpu_custom_call.1} parent=27 // pred_region
        %p211 = scmp.lt.s32.totalorder %s17, 1
        %s212 = scalar_select %p211, %s17, 1
        %p213 = scmp.lt.s32.totalorder %s19, 0
        %s214 = scalar_select %p213, %s19, 0
        %s215 = smul.addr %s212, 104
        %s216 = sadd.s32 %s214, %s215
        %s217 = smul.addr %s216, 4
        %s218 = scalar_lea.vmem %s0, %s217
      $region32: #{tpu_custom_call.1} parent=27 // pred_fallthru
        _
    $region28: #{tpu_custom_call.1} parent=5 // pred_fallthru
      _
    %p219 = scmp.le.s32.totalorder 1, %s10
    %p220 = scmp.lt.s32.totalorder %s10, 3
    %p221 = pnand %p219, %p220
    %p222 = pneg %p221
    // Predicated region
    $region33: #{tpu_custom_call.1} parent=5 // pred_check
      _
    $region34: #{tpu_custom_call.1} parent=5 // pred_check_branch
      %224 = sbr.rel (%p221) target = $region36
    $region35: #{tpu_custom_call.1} parent=5 // pred_region
      %s225 = ssub.s32 %s10, 1
      %p226 = scmp.lt.s32.totalorder %s20, 1
      %s227 = scalar_select %p226, %s20, 1
      %p228 = scmp.lt.s32.totalorder %s22, 0
      %s229 = scalar_select %p228, %s22, 0
      %s230 = smul.addr %s227, 104
      %s231 = sadd.s32 %s229, %s230
      %s232 = smul.addr %s231, 4
      %s233 = scalar_lea.vmem %s0, %s232
      %p234 = pneg %p57
      %p235 = pneg %p54
      %s236 = smul.u32 8, %s22
      %p237 = scmp.lt.s32.totalorder %s236, 7
      %s238 = scalar_select %p237, %s236, 7
      %p239 = scmp.lt.s32.totalorder %s21, 0
      %s240 = scalar_select %p239, %s21, 0
      %s241 = sadd.s32 %s240, %s238
      %s242 = smul.addr %s241, 4
      %s243 = scalar_lea.vmem %s1, %s242
      %p244 = pneg %p85
      %p245 = pneg %p82
      %p246 = scmp.lt.s32.totalorder %s21, 0
      %s247 = scalar_select %p246, %s21, 0
      %s248 = scalar_lea.vmem %s2, %s247
      %p249 = pneg %p111
      %p250 = pneg %p108
      %p251 = scmp.lt.s32.totalorder %s21, 0
      %s252 = scalar_select %p251, %s21, 0
      %s253 = scalar_lea.vmem %s3, %s252
      %p254 = pneg %p137
      %p255 = pneg %p134
      %p256 = pneg %p165
      %p257 = pneg %p162
      %p258 = scmp.lt.s32.totalorder %s20, 1
      %s259 = scalar_select %p258, %s20, 1
      %p260 = scmp.lt.s32.totalorder %s21, 0
      %s261 = scalar_select %p260, %s21, 0
      %s262 = smul.addr %s259, 128
      %s263 = sadd.s32 %s261, %s262
      %s264 = smul.addr %s263, 4
      %s265 = scalar_lea.vmem %s4, %s264
      %p266 = scmp.lt.s32.totalorder %s20, 1
      %s267 = scalar_select %p266, %s20, 1
      %p268 = scmp.lt.s32.totalorder %s22, 0
      %s269 = scalar_select %p268, %s22, 0
      %s270 = smul.addr %s267, 104
      %s271 = sadd.s32 %s269, %s270
      %s272 = smul.addr %s271, 4
      %s273 = scalar_lea.vmem %s0, %s272
      %s274 = smul.u32 8, %s22
      %p275 = scmp.lt.s32.totalorder %s274, 7
      %s276 = scalar_select %p275, %s274, 7
      %p277 = scmp.lt.s32.totalorder %s21, 0
      %s278 = scalar_select %p277, %s21, 0
      %s279 = sadd.s32 %s278, %s276
      %s280 = smul.addr %s279, 4
      %s281 = scalar_lea.vmem %s1, %s280
      %s282 = smul.u32 8, %s22
      %p283 = scmp.lt.s32.totalorder %s21, 0
      %s284 = scalar_select %p283, %s21, 0
      %s285 = scalar_lea.vmem %s2, %s284
      %p286 = scmp.lt.s32.totalorder %s21, 0
      %s287 = scalar_select %p286, %s21, 0
      %s288 = scalar_lea.vmem %s3, %s287
      %p289 = scmp.lt.s32.totalorder %s20, 1
      %s290 = scalar_select %p289, %s20, 1
      %p291 = scmp.lt.s32.totalorder %s21, 0
      %s292 = scalar_select %p291, %s21, 0
      %s293 = smul.addr %s290, 128
      %s294 = sadd.s32 %s292, %s293
      %s295 = smul.addr %s294, 4
      %s296 = scalar_lea.vmem %s4, %s295
      %v298 = vld [vmem:[%s273] sm:$0xf]
      %v299 = vld [vmem:[%s273 + $0x4] sm:$0xf]
      %v300 = vld [vmem:[%s273 + $0x8] sm:$0xf]
      %v301 = vld [vmem:[%s273 + $0xc] sm:$0x1]
      %v302 = vld [vmem:[%s273 + $0x10] sm:$0xf]
      %v303 = vld [vmem:[%s273 + $0x14] sm:$0xf]
      %v304 = vld [vmem:[%s273 + $0x18] sm:$0xf]
      %v305 = vld [vmem:[%s273 + $0x1c] sm:$0x1]
      %v306 = vld [vmem:[%s273 + $0x20] sm:$0xf]
      %v307 = vld [vmem:[%s273 + $0x24] sm:$0xf]
      %v308 = vld [vmem:[%s273 + $0x28] sm:$0xf]
      %v309 = vld [vmem:[%s273 + $0x2c] sm:$0x1]
      %v310 = vld [vmem:[%s273 + $0x30] sm:$0xf]
      %v311 = vld [vmem:[%s273 + $0x34] sm:$0xf]
      %v312 = vld [vmem:[%s273 + $0x38] sm:$0xf]
      %v313 = vld [vmem:[%s273 + $0x3c] sm:$0x1]
      %v314 = vld [vmem:[%s273 + $0x40] sm:$0xf]
      %v315 = vld [vmem:[%s273 + $0x44] sm:$0xf]
      %v316 = vld [vmem:[%s273 + $0x48] sm:$0xf]
      %v317 = vld [vmem:[%s273 + $0x4c] sm:$0x1]
      %v318 = vld [vmem:[%s273 + $0x50] sm:$0xf]
      %v319 = vld [vmem:[%s273 + $0x54] sm:$0xf]
      %v320 = vld [vmem:[%s273 + $0x58] sm:$0xf]
      %v321 = vld [vmem:[%s273 + $0x5c] sm:$0x1]
      %v322 = vld [vmem:[%s273 + $0x60] sm:$0xf]
      %v323 = vld [vmem:[%s273 + $0x64] sm:$0xf]
      %v324 = vld [vmem:[%s273 + $0x68] sm:$0xf]
      %v325 = vld [vmem:[%s273 + $0x6c] sm:$0x1]
      %v326 = vld [vmem:[%s273 + $0x70] sm:$0xf]
      %v327 = vld [vmem:[%s273 + $0x74] sm:$0xf]
      %v328 = vld [vmem:[%s273 + $0x78] sm:$0xf]
      %v329 = vld [vmem:[%s273 + $0x7c] sm:$0x1]
      %v330 = vld [vmem:[%s273 + $0x80] sm:$0xf]
      %v331 = vld [vmem:[%s273 + $0x84] sm:$0xf]
      %v332 = vld [vmem:[%s273 + $0x88] sm:$0xf]
      %v333 = vld [vmem:[%s273 + $0x8c] sm:$0x1]
      %v334 = vld [vmem:[%s273 + $0x90] sm:$0xf]
      %v335 = vld [vmem:[%s273 + $0x94] sm:$0xf]
      %v336 = vld [vmem:[%s273 + $0x98] sm:$0xf]
      %v337 = vld [vmem:[%s273 + $0x9c] sm:$0x1]
      %v338 = vld [vmem:[%s273 + $0xa0] sm:$0xf]
      %v339 = vld [vmem:[%s273 + $0xa4] sm:$0xf]
      %v340 = vld [vmem:[%s273 + $0xa8] sm:$0xf]
      %v341 = vld [vmem:[%s273 + $0xac] sm:$0x1]
      %v342 = vld [vmem:[%s273 + $0xb0] sm:$0xf]
      %v343 = vld [vmem:[%s273 + $0xb4] sm:$0xf]
      %v344 = vld [vmem:[%s273 + $0xb8] sm:$0xf]
      %v345 = vld [vmem:[%s273 + $0xbc] sm:$0x1]
      %v346 = vld [vmem:[%s273 + $0xc0] sm:$0xf]
      %v347 = vld [vmem:[%s273 + $0xc4] sm:$0xf]
      %v348 = vld [vmem:[%s273 + $0xc8] sm:$0xf]
      %v349 = vld [vmem:[%s273 + $0xcc] sm:$0x1]
      %v350 = vld [vmem:[%s273 + $0xd0] sm:$0xf]
      %v351 = vld [vmem:[%s273 + $0xd4] sm:$0xf]
      %v352 = vld [vmem:[%s273 + $0xd8] sm:$0xf]
      %v353 = vld [vmem:[%s273 + $0xdc] sm:$0x1]
      %v354 = vld [vmem:[%s273 + $0xe0] sm:$0xf]
      %v355 = vld [vmem:[%s273 + $0xe4] sm:$0xf]
      %v356 = vld [vmem:[%s273 + $0xe8] sm:$0xf]
      %v357 = vld [vmem:[%s273 + $0xec] sm:$0x1]
      %v358 = vld [vmem:[%s273 + $0xf0] sm:$0xf]
      %v359 = vld [vmem:[%s273 + $0xf4] sm:$0xf]
      %v360 = vld [vmem:[%s273 + $0xf8] sm:$0xf]
      %v361 = vld [vmem:[%s273 + $0xfc] sm:$0x1]
      %v362 = vld [vmem:[%s273 + $0x100] sm:$0xf]
      %v363 = vld [vmem:[%s273 + $0x104] sm:$0xf]
      %v364 = vld [vmem:[%s273 + $0x108] sm:$0xf]
      %v365 = vld [vmem:[%s273 + $0x10c] sm:$0x1]
      %v366 = vld [vmem:[%s273 + $0x110] sm:$0xf]
      %v367 = vld [vmem:[%s273 + $0x114] sm:$0xf]
      %v368 = vld [vmem:[%s273 + $0x118] sm:$0xf]
      %v369 = vld [vmem:[%s273 + $0x11c] sm:$0x1]
      %v370 = vld [vmem:[%s273 + $0x120] sm:$0xf]
      %v371 = vld [vmem:[%s273 + $0x124] sm:$0xf]
      %v372 = vld [vmem:[%s273 + $0x128] sm:$0xf]
      %v373 = vld [vmem:[%s273 + $0x12c] sm:$0x1]
      %v374 = vld [vmem:[%s273 + $0x130] sm:$0xf]
      %v375 = vld [vmem:[%s273 + $0x134] sm:$0xf]
      %v376 = vld [vmem:[%s273 + $0x138] sm:$0xf]
      %v377 = vld [vmem:[%s273 + $0x13c] sm:$0x1]
      %v378 = vld [vmem:[%s273 + $0x140] sm:$0xf]
      %v379 = vld [vmem:[%s273 + $0x144] sm:$0xf]
      %v380 = vld [vmem:[%s273 + $0x148] sm:$0xf]
      %v381 = vld [vmem:[%s273 + $0x14c] sm:$0x1]
      %v382 = vld [vmem:[%s273 + $0x150] sm:$0xf]
      %v383 = vld [vmem:[%s273 + $0x154] sm:$0xf]
      %v384 = vld [vmem:[%s273 + $0x158] sm:$0xf]
      %v385 = vld [vmem:[%s273 + $0x15c] sm:$0x1]
      %v386 = vld [vmem:[%s273 + $0x160] sm:$0xf]
      %v387 = vld [vmem:[%s273 + $0x164] sm:$0xf]
      %v388 = vld [vmem:[%s273 + $0x168] sm:$0xf]
      %v389 = vld [vmem:[%s273 + $0x16c] sm:$0x1]
      %v390 = vld [vmem:[%s273 + $0x170] sm:$0xf]
      %v391 = vld [vmem:[%s273 + $0x174] sm:$0xf]
      %v392 = vld [vmem:[%s273 + $0x178] sm:$0xf]
      %v393 = vld [vmem:[%s273 + $0x17c] sm:$0x1]
      %v394 = vld [vmem:[%s273 + $0x180] sm:$0xf]
      %v395 = vld [vmem:[%s273 + $0x184] sm:$0xf]
      %v396 = vld [vmem:[%s273 + $0x188] sm:$0xf]
      %v397 = vld [vmem:[%s273 + $0x18c] sm:$0x1]
      %v398 = vld [vmem:[%s273 + $0x190] sm:$0xf]
      %v399 = vld [vmem:[%s273 + $0x194] sm:$0xf]
      %v400 = vld [vmem:[%s273 + $0x198] sm:$0xf]
      %v401 = vld [vmem:[%s273 + $0x19c] sm:$0x1]
      %v402 = vld [vmem:[%s281] sm:$0xf]
      %v403 = vld [vmem:[%s281 + $0x4] sm:$0xf]
      %v404 = vld [vmem:[%s281 + $0x8] sm:$0xf]
      %v405 = vld [vmem:[%s281 + $0xc] sm:$0xf]
      %v406 = vld [vmem:[%s281 + $0x10] sm:$0xf]
      %v407 = vld [vmem:[%s281 + $0x14] sm:$0xf]
      %v408 = vld [vmem:[%s281 + $0x18] sm:$0xf]
      %v409 = vld [vmem:[%s281 + $0x1c] sm:$0xf]
      %v482 = vunpack.c.l.b16 %v298
      %v483 = vunpack.c.l.b16 %v299
      %v484 = vunpack.c.l.b16 %v300
      %v485 = vunpack.c.l.b16 %v302
      %v486 = vunpack.c.l.b16 %v303
      %v487 = vunpack.c.l.b16 %v304
      %v488 = vunpack.c.l.b16 %v306
      %v489 = vunpack.c.l.b16 %v307
      %v490 = vunpack.c.l.b16 %v308
      %v491 = vunpack.c.l.b16 %v310
      %v492 = vunpack.c.l.b16 %v311
      %v493 = vunpack.c.l.b16 %v312
      %v494 = vunpack.c.l.b16 %v314
      %v495 = vunpack.c.l.b16 %v315
      %v496 = vunpack.c.l.b16 %v316
      %v497 = vunpack.c.l.b16 %v318
      %v498 = vunpack.c.l.b16 %v319
      %v499 = vunpack.c.l.b16 %v320
      %v500 = vunpack.c.l.b16 %v322
      %v501 = vunpack.c.l.b16 %v323
      %v502 = vunpack.c.l.b16 %v324
      %v503 = vunpack.c.l.b16 %v326
      %v504 = vunpack.c.l.b16 %v327
      %v505 = vunpack.c.l.b16 %v328
      %v506 = vunpack.c.l.b16 %v330
      %v507 = vunpack.c.l.b16 %v331
      %v508 = vunpack.c.l.b16 %v332
      %v509 = vunpack.c.l.b16 %v334
      %v510 = vunpack.c.l.b16 %v335
      %v511 = vunpack.c.l.b16 %v336
      %v512 = vunpack.c.l.b16 %v338
      %v513 = vunpack.c.l.b16 %v339
      %v514 = vunpack.c.l.b16 %v340
      %v515 = vunpack.c.l.b16 %v342
      %v516 = vunpack.c.l.b16 %v343
      %v517 = vunpack.c.l.b16 %v344
      %v518 = vunpack.c.l.b16 %v346
      %v519 = vunpack.c.l.b16 %v347
      %v520 = vunpack.c.l.b16 %v348
      %v521 = vunpack.c.l.b16 %v350
      %v522 = vunpack.c.l.b16 %v351
      %v523 = vunpack.c.l.b16 %v352
      %v524 = vunpack.c.l.b16 %v354
      %v525 = vunpack.c.l.b16 %v355
      %v526 = vunpack.c.l.b16 %v356
      %v527 = vunpack.c.l.b16 %v358
      %v528 = vunpack.c.l.b16 %v359
      %v529 = vunpack.c.l.b16 %v360
      %v530 = vunpack.c.l.b16 %v362
      %v531 = vunpack.c.l.b16 %v363
      %v532 = vunpack.c.l.b16 %v364
      %v533 = vunpack.c.l.b16 %v366
      %v534 = vunpack.c.l.b16 %v367
      %v535 = vunpack.c.l.b16 %v368
      %v536 = vunpack.c.l.b16 %v370
      %v537 = vunpack.c.l.b16 %v371
      %v538 = vunpack.c.l.b16 %v372
      %v539 = vunpack.c.l.b16 %v374
      %v540 = vunpack.c.l.b16 %v375
      %v541 = vunpack.c.l.b16 %v376
      %v542 = vunpack.c.l.b16 %v378
      %v543 = vunpack.c.l.b16 %v379
      %v544 = vunpack.c.l.b16 %v380
      %v545 = vunpack.c.l.b16 %v382
      %v546 = vunpack.c.l.b16 %v383
      %v547 = vunpack.c.l.b16 %v384
      %v548 = vunpack.c.l.b16 %v386
      %v549 = vunpack.c.l.b16 %v387
      %v550 = vunpack.c.l.b16 %v388
      %v551 = vunpack.c.l.b16 %v390
      %v552 = vunpack.c.l.b16 %v391
      %v553 = vunpack.c.l.b16 %v392
      %v554 = vpack.c.b16 %v483, %v482
      %v555 = vpack.c.b16 %v485, %v484
      %v556 = vpack.c.b16 %v487, %v486
      %v557 = vpack.c.b16 %v489, %v488
      %v558 = vpack.c.b16 %v491, %v490
      %v559 = vpack.c.b16 %v493, %v492
      %v560 = vpack.c.b16 %v495, %v494
      %v561 = vpack.c.b16 %v497, %v496
      %v562 = vpack.c.b16 %v499, %v498
      %v563 = vpack.c.b16 %v501, %v500
      %v564 = vpack.c.b16 %v503, %v502
      %v565 = vpack.c.b16 %v505, %v504
      %v566 = vpack.c.b16 %v507, %v506
      %v567 = vpack.c.b16 %v509, %v508
      %v568 = vpack.c.b16 %v511, %v510
      %v569 = vpack.c.b16 %v513, %v512
      %v570 = vpack.c.b16 %v515, %v514
      %v571 = vpack.c.b16 %v517, %v516
      %v572 = vpack.c.b16 %v519, %v518
      %v573 = vpack.c.b16 %v521, %v520
      %v574 = vpack.c.b16 %v523, %v522
      %v575 = vpack.c.b16 %v525, %v524
      %v576 = vpack.c.b16 %v527, %v526
      %v577 = vpack.c.b16 %v529, %v528
      %v578 = vpack.c.b16 %v531, %v530
      %v579 = vpack.c.b16 %v533, %v532
      %v580 = vpack.c.b16 %v535, %v534
      %v581 = vpack.c.b16 %v537, %v536
      %v582 = vpack.c.b16 %v539, %v538
      %v583 = vpack.c.b16 %v541, %v540
      %v584 = vpack.c.b16 %v543, %v542
      %v585 = vpack.c.b16 %v545, %v544
      %v586 = vpack.c.b16 %v547, %v546
      %v587 = vpack.c.b16 %v549, %v548
      %v588 = vpack.c.b16 %v551, %v550
      %v589 = vpack.c.b16 %v553, %v552
      %v598 = vunpack.c.l.b16 %v402
      %v599 = vunpack.c.l.b16 %v403
      %v600 = vunpack.c.l.b16 %v404
      %v601 = vunpack.c.l.b16 %v405
      %v602 = vunpack.c.l.b16 %v406
      %v603 = vunpack.c.l.b16 %v407
      %v604 = vunpack.c.l.b16 %v408
      %v605 = vunpack.c.l.b16 %v409
      %v606 = vpack.c.b16 %v599, %v598
      %v607 = vpack.c.b16 %v601, %v600
      %v608 = vpack.c.b16 %v603, %v602
      %v609 = vpack.c.b16 %v605, %v604
      %vm614 = vcmask 523264
      %v616 = vsel %vm614, %v554, 0
      %v619 = vsel %vm614, %v555, 0
      %v622 = vsel %vm614, %v556, 0
      %v625 = vsel %vm614, %v557, 0
      %v628 = vsel %vm614, %v558, 0
      %v631 = vsel %vm614, %v559, 0
      %v634 = vsel %vm614, %v560, 0
      %v637 = vsel %vm614, %v561, 0
      %v640 = vsel %vm614, %v562, 0
      %v643 = vsel %vm614, %v563, 0
      %v646 = vsel %vm614, %v564, 0
      %v649 = vsel %vm614, %v565, 0
      %v652 = vsel %vm614, %v566, 0
      %v655 = vsel %vm614, %v567, 0
      %v658 = vsel %vm614, %v568, 0
      %v661 = vsel %vm614, %v569, 0
      %v664 = vsel %vm614, %v570, 0
      %v667 = vsel %vm614, %v571, 0
      %v670 = vsel %vm614, %v572, 0
      %v673 = vsel %vm614, %v573, 0
      %v676 = vsel %vm614, %v574, 0
      %v679 = vsel %vm614, %v575, 0
      %v682 = vsel %vm614, %v576, 0
      %v685 = vsel %vm614, %v577, 0
      %v688 = vsel %vm614, %v578, 0
      %v691 = vsel %vm614, %v579, 0
      %v694 = vsel %vm614, %v580, 0
      %v697 = vsel %vm614, %v581, 0
      %v700 = vsel %vm614, %v582, 0
      %v703 = vsel %vm614, %v583, 0
      %v706 = vsel %vm614, %v584, 0
      %v709 = vsel %vm614, %v585, 0
      %v712 = vsel %vm614, %v586, 0
      %v715 = vsel %vm614, %v587, 0
      %v718 = vsel %vm614, %v588, 0
      %v721 = vsel %vm614, %v589, 0
      %723 = vmatprep.subr.bf16.mxu0 0
      %724 = vmatpush1.bf16.msra.mxu0 %v606
      %725 = vmatprep.subr.bf16.mxu0 0
      %726 = vmatpush1.bf16.msra.mxu0 %v607
      %727 = vmatprep.subr.bf16.mxu0 0
      %728 = vmatpush1.bf16.msra.mxu0 %v608
      %729 = vmatprep.subr.bf16.mxu0 0
      %730 = vmatpush1.bf16.msra.mxu0 %v609
      %731 = vmatprep.subr.bf16.mxu0 0
      %732 = vmatpush1.bf16.msra.mxu0 0
      %733 = vmatprep.subr.bf16.mxu0 0
      %734 = vmatpush1.bf16.msra.mxu0 0
      %735 = vmatprep.subr.bf16.mxu0 0
      %736 = vmatpush1.bf16.msra.mxu0 0
      %737 = vmatprep.subr.bf16.mxu0 0
      %738 = vmatpush1.bf16.msra.mxu0 0
      %739 = vmatprep.subr.bf16.mxu0 0
      %740 = vmatpush1.bf16.msra.mxu0 0
      %741 = vmatprep.subr.bf16.mxu0 0
      %742 = vmatpush1.bf16.msra.mxu0 0
      %743 = vmatprep.subr.bf16.mxu0 0
      %744 = vmatpush1.bf16.msra.mxu0 0
      %745 = vmatprep.subr.bf16.mxu0 0
      %746 = vmatpush1.bf16.msra.mxu0 0
      %747 = vmatprep.subr.bf16.mxu0 0
      %748 = vmatpush1.bf16.msra.mxu0 0
      %749 = vmatprep.subr.bf16.mxu0 0
      %750 = vmatpush1.bf16.msra.mxu0 0
      %751 = vmatprep.subr.bf16.mxu0 0
      %752 = vmatpush1.bf16.msra.mxu0 0
      %753 = vmatprep.subr.bf16.mxu0 0
      %754 = vmatpush1.bf16.msra.mxu0 0
      %755 = vmatprep.mubr.bf16.mxu0 0
      %756 = vmatmul.mubr.bf16.gmra.mrb[0].mxu0 %v616
      %v757 = vpop.f32.mrb[0].mxu0
      %v758 = vadd.f32 0.0, %v757
      %v759 = vpop.f32.mrb[0].mxu0
      %v760 = vpop.f32.mrb[0].mxu0
      %v761 = vadd.f32 0.0, %v760
      %v762 = vpop.f32.mrb[0].mxu0
      %763 = vmatprep.mubr.bf16.mxu0 0
      %764 = vmatmul.mubr.bf16.gmra.mrb[0].mxu0 %v619
      %v765 = vpop.f32.mrb[0].mxu0
      %v766 = vadd.f32 0.0, %v765
      %v767 = vpop.f32.mrb[0].mxu0
      %v768 = vpop.f32.mrb[0].mxu0
      %v769 = vadd.f32 0.0, %v768
      %v770 = vpop.f32.mrb[0].mxu0
      %771 = vmatprep.mubr.bf16.mxu0 0
      %772 = vmatmul.mubr.bf16.gmra.mrb[0].mxu0 %v622
      %v773 = vpop.f32.mrb[0].mxu0
      %v774 = vadd.f32 0.0, %v773
      %v775 = vpop.f32.mrb[0].mxu0
      %v776 = vpop.f32.mrb[0].mxu0
      %v777 = vadd.f32 0.0, %v776
      %v778 = vpop.f32.mrb[0].mxu0
      %779 = vmatprep.mubr.bf16.mxu0 0
      %780 = vmatmul.mubr.bf16.gmra.mrb[0].mxu0 %v625
      %v781 = vpop.f32.mrb[0].mxu0
      %v782 = vadd.f32 0.0, %v781
      %v783 = vpop.f32.mrb[0].mxu0
      %v784 = vpop.f32.mrb[0].mxu0
      %v785 = vadd.f32 0.0, %v784
      %v786 = vpop.f32.mrb[0].mxu0
      %787 = vmatprep.mubr.bf16.mxu0 0
      %788 = vmatmul.mubr.bf16.gmra.mrb[0].mxu0 %v628
      %v789 = vpop.f32.mrb[0].mxu0
      %v790 = vadd.f32 0.0, %v789
      %v791 = vpop.f32.mrb[0].mxu0
      %v792 = vpop.f32.mrb[0].mxu0
      %v793 = vadd.f32 0.0, %v792
      %v794 = vpop.f32.mrb[0].mxu0
      %795 = vmatprep.mubr.bf16.mxu0 0
      %796 = vmatmul.mubr.bf16.gmra.mrb[0].mxu0 %v631
      %v797 = vpop.f32.mrb[0].mxu0
      %v798 = vadd.f32 0.0, %v797
      %v799 = vpop.f32.mrb[0].mxu0
      %v800 = vpop.f32.mrb[0].mxu0
      %v801 = vadd.f32 0.0, %v800
      %v802 = vpop.f32.mrb[0].mxu0
      %803 = vmatprep.mubr.bf16.mxu0 0
      %804 = vmatmul.mubr.bf16.gmra.mrb[0].mxu0 %v634
      %v805 = vpop.f32.mrb[0].mxu0
      %v806 = vadd.f32 0.0, %v805
      %v807 = vpop.f32.mrb[0].mxu0
      %v808 = vpop.f32.mrb[0].mxu0
      %v809 = vadd.f32 0.0, %v808
      %v810 = vpop.f32.mrb[0].mxu0
      %811 = vmatprep.mubr.bf16.mxu0 0
      %812 = vmatmul.mubr.bf16.gmra.mrb[0].mxu0 %v637
      %v813 = vpop.f32.mrb[0].mxu0
      %v814 = vadd.f32 0.0, %v813
      %v815 = vpop.f32.mrb[0].mxu0
      %v816 = vpop.f32.mrb[0].mxu0
      %v817 = vadd.f32 0.0, %v816
      %v818 = vpop.f32.mrb[0].mxu0
      %819 = vmatprep.mubr.bf16.mxu0 0
      %820 = vmatmul.mubr.bf16.gmra.mrb[0].mxu0 %v640
      %v821 = vpop.f32.mrb[0].mxu0
      %v822 = vadd.f32 0.0, %v821
      %v823 = vpop.f32.mrb[0].mxu0
      %v824 = vpop.f32.mrb[0].mxu0
      %v825 = vadd.f32 0.0, %v824
      %v826 = vpop.f32.mrb[0].mxu0
      %827 = vmatprep.mubr.bf16.mxu0 0
      %828 = vmatmul.mubr.bf16.gmra.mrb[0].mxu0 %v643
      %v829 = vpop.f32.mrb[0].mxu0
      %v830 = vadd.f32 0.0, %v829
      %v831 = vpop.f32.mrb[0].mxu0
      %v832 = vpop.f32.mrb[0].mxu0
      %v833 = vadd.f32 0.0, %v832
      %v834 = vpop.f32.mrb[0].mxu0
      %835 = vmatprep.mubr.bf16.mxu0 0
      %836 = vmatmul.mubr.bf16.gmra.mrb[0].mxu0 %v646
      %v837 = vpop.f32.mrb[0].mxu0
      %v838 = vadd.f32 0.0, %v837
      %v839 = vpop.f32.mrb[0].mxu0
      %v840 = vpop.f32.mrb[0].mxu0
      %v841 = vadd.f32 0.0, %v840
      %v842 = vpop.f32.mrb[0].mxu0
      %843 = vmatprep.mubr.bf16.mxu0 0
      %844 = vmatmul.mubr.bf16.gmra.mrb[0].mxu0 %v649
      %v845 = vpop.f32.mrb[0].mxu0
      %v846 = vadd.f32 0.0, %v845
      %v847 = vpop.f32.mrb[0].mxu0
      %v848 = vpop.f32.mrb[0].mxu0
      %v849 = vadd.f32 0.0, %v848
      %v850 = vpop.f32.mrb[0].mxu0
      %851 = vmatprep.mubr.bf16.mxu0 0
      %852 = vmatmul.mubr.bf16.gmra.mrb[0].mxu0 %v652
      %v853 = vpop.f32.mrb[0].mxu0
      %v854 = vadd.f32 0.0, %v853
      %v855 = vpop.f32.mrb[0].mxu0
      %v856 = vpop.f32.mrb[0].mxu0
      %v857 = vadd.f32 0.0, %v856
      %v858 = vpop.f32.mrb[0].mxu0
      %859 = vmatprep.mubr.bf16.mxu0 0
      %860 = vmatmul.mubr.bf16.gmra.mrb[0].mxu0 %v655
      %v861 = vpop.f32.mrb[0].mxu0
      %v862 = vadd.f32 0.0, %v861
      %v863 = vpop.f32.mrb[0].mxu0
      %v864 = vpop.f32.mrb[0].mxu0
      %v865 = vadd.f32 0.0, %v864
      %v866 = vpop.f32.mrb[0].mxu0
      %867 = vmatprep.mubr.bf16.mxu0 0
      %868 = vmatmul.mubr.bf16.gmra.mrb[0].mxu0 %v658
      %v869 = vpop.f32.mrb[0].mxu0
      %v870 = vadd.f32 0.0, %v869
      %v871 = vpop.f32.mrb[0].mxu0
      %v872 = vpop.f32.mrb[0].mxu0
      %v873 = vadd.f32 0.0, %v872
      %v874 = vpop.f32.mrb[0].mxu0
      %875 = vmatprep.mubr.bf16.mxu0 0
      %876 = vmatmul.mubr.bf16.gmra.mrb[0].mxu0 %v661
      %v877 = vpop.f32.mrb[0].mxu0
      %v878 = vadd.f32 0.0, %v877
      %v879 = vpop.f32.mrb[0].mxu0
      %v880 = vpop.f32.mrb[0].mxu0
      %v881 = vadd.f32 0.0, %v880
      %v882 = vpop.f32.mrb[0].mxu0
      %883 = vmatprep.mubr.bf16.mxu0 0
      %884 = vmatmul.mubr.bf16.gmra.mrb[0].mxu0 %v664
      %v885 = vpop.f32.mrb[0].mxu0
      %v886 = vadd.f32 0.0, %v885
      %v887 = vpop.f32.mrb[0].mxu0
      %v888 = vpop.f32.mrb[0].mxu0
      %v889 = vadd.f32 0.0, %v888
      %v890 = vpop.f32.mrb[0].mxu0
      %891 = vmatprep.mubr.bf16.mxu0 0
      %892 = vmatmul.mubr.bf16.gmra.mrb[0].mxu0 %v667
      %v893 = vpop.f32.mrb[0].mxu0
      %v894 = vadd.f32 0.0, %v893
      %v895 = vpop.f32.mrb[0].mxu0
      %v896 = vpop.f32.mrb[0].mxu0
      %v897 = vadd.f32 0.0, %v896
      %v898 = vpop.f32.mrb[0].mxu0
      %899 = vmatprep.mubr.bf16.mxu0 0
      %900 = vmatmul.mubr.bf16.gmra.mrb[0].mxu0 %v670
      %v901 = vpop.f32.mrb[0].mxu0
      %v902 = vadd.f32 0.0, %v901
      %v903 = vpop.f32.mrb[0].mxu0
      %v904 = vpop.f32.mrb[0].mxu0
      %v905 = vadd.f32 0.0, %v904
      %v906 = vpop.f32.mrb[0].mxu0
      %907 = vmatprep.mubr.bf16.mxu0 0
      %908 = vmatmul.mubr.bf16.gmra.mrb[0].mxu0 %v673
      %v909 = vpop.f32.mrb[0].mxu0
      %v910 = vadd.f32 0.0, %v909
      %v911 = vpop.f32.mrb[0].mxu0
      %v912 = vpop.f32.mrb[0].mxu0
      %v913 = vadd.f32 0.0, %v912
      %v914 = vpop.f32.mrb[0].mxu0
      %915 = vmatprep.mubr.bf16.mxu0 0
      %916 = vmatmul.mubr.bf16.gmra.mrb[0].mxu0 %v676
      %v917 = vpop.f32.mrb[0].mxu0
      %v918 = vadd.f32 0.0, %v917
      %v919 = vpop.f32.mrb[0].mxu0
      %v920 = vpop.f32.mrb[0].mxu0
      %v921 = vadd.f32 0.0, %v920
      %v922 = vpop.f32.mrb[0].mxu0
      %923 = vmatprep.mubr.bf16.mxu0 0
      %924 = vmatmul.mubr.bf16.gmra.mrb[0].mxu0 %v679
      %v925 = vpop.f32.mrb[0].mxu0
      %v926 = vadd.f32 0.0, %v925
      %v927 = vpop.f32.mrb[0].mxu0
      %v928 = vpop.f32.mrb[0].mxu0
      %v929 = vadd.f32 0.0, %v928
      %v930 = vpop.f32.mrb[0].mxu0
      %931 = vmatprep.mubr.bf16.mxu0 0
      %932 = vmatmul.mubr.bf16.gmra.mrb[0].mxu0 %v682
      %v933 = vpop.f32.mrb[0].mxu0
      %v934 = vadd.f32 0.0, %v933
      %v935 = vpop.f32.mrb[0].mxu0
      %v936 = vpop.f32.mrb[0].mxu0
      %v937 = vadd.f32 0.0, %v936
      %v938 = vpop.f32.mrb[0].mxu0
      %939 = vmatprep.mubr.bf16.mxu0 0
      %940 = vmatmul.mubr.bf16.gmra.mrb[0].mxu0 %v685
      %v941 = vpop.f32.mrb[0].mxu0
      %v942 = vadd.f32 0.0, %v941
      %v943 = vpop.f32.mrb[0].mxu0
      %v944 = vpop.f32.mrb[0].mxu0
      %v945 = vadd.f32 0.0, %v944
      %v946 = vpop.f32.mrb[0].mxu0
      %947 = vmatprep.mubr.bf16.mxu0 0
      %948 = vmatmul.mubr.bf16.gmra.mrb[0].mxu0 %v688
      %v949 = vpop.f32.mrb[0].mxu0
      %v950 = vadd.f32 0.0, %v949
      %v951 = vpop.f32.mrb[0].mxu0
      %v952 = vpop.f32.mrb[0].mxu0
      %v953 = vadd.f32 0.0, %v952
      %v954 = vpop.f32.mrb[0].mxu0
      %955 = vmatprep.mubr.bf16.mxu0 0
      %956 = vmatmul.mubr.bf16.gmra.mrb[0].mxu0 %v691
      %v957 = vpop.f32.mrb[0].mxu0
      %v958 = vadd.f32 0.0, %v957
      %v959 = vpop.f32.mrb[0].mxu0
      %v960 = vpop.f32.mrb[0].mxu0
      %v961 = vadd.f32 0.0, %v960
      %v962 = vpop.f32.mrb[0].mxu0
      %963 = vmatprep.mubr.bf16.mxu0 0
      %964 = vmatmul.mubr.bf16.gmra.mrb[0].mxu0 %v694
      %v965 = vpop.f32.mrb[0].mxu0
      %v966 = vadd.f32 0.0, %v965
      %v967 = vpop.f32.mrb[0].mxu0
      %v968 = vpop.f32.mrb[0].mxu0
      %v969 = vadd.f32 0.0, %v968
      %v970 = vpop.f32.mrb[0].mxu0
      %971 = vmatprep.mubr.bf16.mxu0 0
      %972 = vmatmul.mubr.bf16.gmra.mrb[0].mxu0 %v697
      %v973 = vpop.f32.mrb[0].mxu0
      %v974 = vadd.f32 0.0, %v973
      %v975 = vpop.f32.mrb[0].mxu0
      %v976 = vpop.f32.mrb[0].mxu0
      %v977 = vadd.f32 0.0, %v976
      %v978 = vpop.f32.mrb[0].mxu0
      %979 = vmatprep.mubr.bf16.mxu0 0
      %980 = vmatmul.mubr.bf16.gmra.mrb[0].mxu0 %v700
      %v981 = vpop.f32.mrb[0].mxu0
      %v982 = vadd.f32 0.0, %v981
      %v983 = vpop.f32.mrb[0].mxu0
      %v984 = vpop.f32.mrb[0].mxu0
      %v985 = vadd.f32 0.0, %v984
      %v986 = vpop.f32.mrb[0].mxu0
      %987 = vmatprep.mubr.bf16.mxu0 0
      %988 = vmatmul.mubr.bf16.gmra.mrb[0].mxu0 %v703
      %v989 = vpop.f32.mrb[0].mxu0
      %v990 = vadd.f32 0.0, %v989
      %v991 = vpop.f32.mrb[0].mxu0
      %v992 = vpop.f32.mrb[0].mxu0
      %v993 = vadd.f32 0.0, %v992
      %v994 = vpop.f32.mrb[0].mxu0
      %995 = vmatprep.mubr.bf16.mxu0 0
      %996 = vmatmul.mubr.bf16.gmra.mrb[0].mxu0 %v706
      %v997 = vpop.f32.mrb[0].mxu0
      %v998 = vadd.f32 0.0, %v997
      %v999 = vpop.f32.mrb[0].mxu0
      %v1000 = vpop.f32.mrb[0].mxu0
      %v1001 = vadd.f32 0.0, %v1000
      %v1002 = vpop.f32.mrb[0].mxu0
      %1003 = vmatprep.mubr.bf16.mxu0 0
      %1004 = vmatmul.mubr.bf16.gmra.mrb[0].mxu0 %v709
      %v1005 = vpop.f32.mrb[0].mxu0
      %v1006 = vadd.f32 0.0, %v1005
      %v1007 = vpop.f32.mrb[0].mxu0
      %v1008 = vpop.f32.mrb[0].mxu0
      %v1009 = vadd.f32 0.0, %v1008
      %v1010 = vpop.f32.mrb[0].mxu0
      %1011 = vmatprep.mubr.bf16.mxu0 0
      %1012 = vmatmul.mubr.bf16.gmra.mrb[0].mxu0 %v712
      %v1013 = vpop.f32.mrb[0].mxu0
      %v1014 = vadd.f32 0.0, %v1013
      %v1015 = vpop.f32.mrb[0].mxu0
      %v1016 = vpop.f32.mrb[0].mxu0
      %v1017 = vadd.f32 0.0, %v1016
      %v1018 = vpop.f32.mrb[0].mxu0
      %1019 = vmatprep.mubr.bf16.mxu0 0
      %1020 = vmatmul.mubr.bf16.gmra.mrb[0].mxu0 %v715
      %v1021 = vpop.f32.mrb[0].mxu0
      %v1022 = vadd.f32 0.0, %v1021
      %v1023 = vpop.f32.mrb[0].mxu0
      %v1024 = vpop.f32.mrb[0].mxu0
      %v1025 = vadd.f32 0.0, %v1024
      %v1026 = vpop.f32.mrb[0].mxu0
      %1027 = vmatprep.mubr.bf16.mxu0 0
      %1028 = vmatmul.mubr.bf16.gmra.mrb[0].mxu0 %v718
      %v1029 = vpop.f32.mrb[0].mxu0
      %v1030 = vadd.f32 0.0, %v1029
      %v1031 = vpop.f32.mrb[0].mxu0
      %v1032 = vpop.f32.mrb[0].mxu0
      %v1033 = vadd.f32 0.0, %v1032
      %v1034 = vpop.f32.mrb[0].mxu0
      %1035 = vmatprep.mubr.bf16.mxu0 0
      %1036 = vmatmul.mubr.bf16.gmra.mrb[0].mxu0 %v721
      %v1037 = vpop.f32.mrb[0].mxu0
      %v1038 = vadd.f32 0.0, %v1037
      %v1039 = vpop.f32.mrb[0].mxu0
      %v1040 = vpop.f32.mrb[0].mxu0
      %v1041 = vadd.f32 0.0, %v1040
      %v1042 = vpop.f32.mrb[0].mxu0
      %1043 = vdwg.mxu0
      %p1044 = scmp.eq.s32.totalorder %s22, 0
      // Predicated region
      $region37: #{tpu_custom_call.1} parent=35 // pred_check
        %p1045 = pneg %p1044
      $region38: #{tpu_custom_call.1} parent=35 // pred_check_branch
        %1047 = sbr.rel (%p1045) target = $region40
      $region39: #{tpu_custom_call.1} parent=35 // pred_region
        %vm1048 = vcmask 130048
        %1049 = vst.msk [vmem:[#allocation2] sm:$0xff] %vm1048, %v758
        %1050 = vst.msk [vmem:[#allocation2 + $0x8] sm:$0xff] %vm1048, %v761
        %1051 = vst.msk [vmem:[#allocation2 + $0x10] sm:$0xff] %vm1048, %v766
        %1052 = vst.msk [vmem:[#allocation2 + $0x18] sm:$0xff] %vm1048, %v769
        %1053 = vst.msk [vmem:[#allocation2 + $0x20] sm:$0xff] %vm1048, %v774
        %1054 = vst.msk [vmem:[#allocation2 + $0x28] sm:$0xff] %vm1048, %v777
        %1055 = vst.msk [vmem:[#allocation2 + $0x30] sm:$0xff] %vm1048, %v782
        %1056 = vst.msk [vmem:[#allocation2 + $0x38] sm:$0xff] %vm1048, %v785
        %1057 = vst.msk [vmem:[#allocation2 + $0x40] sm:$0xff] %vm1048, %v790
        %1058 = vst.msk [vmem:[#allocation2 + $0x48] sm:$0xff] %vm1048, %v793
        %1059 = vst.msk [vmem:[#allocation2 + $0x50] sm:$0xff] %vm1048, %v798
        %1060 = vst.msk [vmem:[#allocation2 + $0x58] sm:$0xff] %vm1048, %v801
        %1061 = vst.msk [vmem:[#allocation2 + $0x60] sm:$0xff] %vm1048, %v806
        %1062 = vst.msk [vmem:[#allocation2 + $0x68] sm:$0xff] %vm1048, %v809
        %1063 = vst.msk [vmem:[#allocation2 + $0x70] sm:$0xff] %vm1048, %v814
        %1064 = vst.msk [vmem:[#allocation2 + $0x78] sm:$0xff] %vm1048, %v817
        %1065 = vst.msk [vmem:[#allocation2 + $0x80] sm:$0xff] %vm1048, %v822
        %1066 = vst.msk [vmem:[#allocation2 + $0x88] sm:$0xff] %vm1048, %v825
        %1067 = vst.msk [vmem:[#allocation2 + $0x90] sm:$0xff] %vm1048, %v830
        %1068 = vst.msk [vmem:[#allocation2 + $0x98] sm:$0xff] %vm1048, %v833
        %1069 = vst.msk [vmem:[#allocation2 + $0xa0] sm:$0xff] %vm1048, %v838
        %1070 = vst.msk [vmem:[#allocation2 + $0xa8] sm:$0xff] %vm1048, %v841
        %1071 = vst.msk [vmem:[#allocation2 + $0xb0] sm:$0xff] %vm1048, %v846
        %1072 = vst.msk [vmem:[#allocation2 + $0xb8] sm:$0xff] %vm1048, %v849
        %1073 = vst.msk [vmem:[#allocation2 + $0xc0] sm:$0xff] %vm1048, %v854
        %1074 = vst.msk [vmem:[#allocation2 + $0xc8] sm:$0xff] %vm1048, %v857
        %1075 = vst.msk [vmem:[#allocation2 + $0xd0] sm:$0xff] %vm1048, %v862
        %1076 = vst.msk [vmem:[#allocation2 + $0xd8] sm:$0xff] %vm1048, %v865
        %1077 = vst.msk [vmem:[#allocation2 + $0xe0] sm:$0xff] %vm1048, %v870
        %1078 = vst.msk [vmem:[#allocation2 + $0xe8] sm:$0xff] %vm1048, %v873
        %1079 = vst.msk [vmem:[#allocation2 + $0xf0] sm:$0xff] %vm1048, %v878
        %1080 = vst.msk [vmem:[#allocation2 + $0xf8] sm:$0xff] %vm1048, %v881
        %1081 = vst.msk [vmem:[#allocation2 + $0x100] sm:$0xff] %vm1048, %v886
        %1082 = vst.msk [vmem:[#allocation2 + $0x108] sm:$0xff] %vm1048, %v889
        %1083 = vst.msk [vmem:[#allocation2 + $0x110] sm:$0xff] %vm1048, %v894
        %1084 = vst.msk [vmem:[#allocation2 + $0x118] sm:$0xff] %vm1048, %v897
        %1085 = vst.msk [vmem:[#allocation2 + $0x120] sm:$0xff] %vm1048, %v902
        %1086 = vst.msk [vmem:[#allocation2 + $0x128] sm:$0xff] %vm1048, %v905
        %1087 = vst.msk [vmem:[#allocation2 + $0x130] sm:$0xff] %vm1048, %v910
        %1088 = vst.msk [vmem:[#allocation2 + $0x138] sm:$0xff] %vm1048, %v913
        %1089 = vst.msk [vmem:[#allocation2 + $0x140] sm:$0xff] %vm1048, %v918
        %1090 = vst.msk [vmem:[#allocation2 + $0x148] sm:$0xff] %vm1048, %v921
        %1091 = vst.msk [vmem:[#allocation2 + $0x150] sm:$0xff] %vm1048, %v926
        %1092 = vst.msk [vmem:[#allocation2 + $0x158] sm:$0xff] %vm1048, %v929
        %1093 = vst.msk [vmem:[#allocation2 + $0x160] sm:$0xff] %vm1048, %v934
        %1094 = vst.msk [vmem:[#allocation2 + $0x168] sm:$0xff] %vm1048, %v937
        %1095 = vst.msk [vmem:[#allocation2 + $0x170] sm:$0xff] %vm1048, %v942
        %1096 = vst.msk [vmem:[#allocation2 + $0x178] sm:$0xff] %vm1048, %v945
        %1097 = vst.msk [vmem:[#allocation2 + $0x180] sm:$0xff] %vm1048, %v950
        %1098 = vst.msk [vmem:[#allocation2 + $0x188] sm:$0xff] %vm1048, %v953
        %1099 = vst.msk [vmem:[#allocation2 + $0x190] sm:$0xff] %vm1048, %v958
        %1100 = vst.msk [vmem:[#allocation2 + $0x198] sm:$0xff] %vm1048, %v961
        %1101 = vst.msk [vmem:[#allocation2 + $0x1a0] sm:$0xff] %vm1048, %v966
        %1102 = vst.msk [vmem:[#allocation2 + $0x1a8] sm:$0xff] %vm1048, %v969
        %1103 = vst.msk [vmem:[#allocation2 + $0x1b0] sm:$0xff] %vm1048, %v974
        %1104 = vst.msk [vmem:[#allocation2 + $0x1b8] sm:$0xff] %vm1048, %v977
        %1105 = vst.msk [vmem:[#allocation2 + $0x1c0] sm:$0xff] %vm1048, %v982
        %1106 = vst.msk [vmem:[#allocation2 + $0x1c8] sm:$0xff] %vm1048, %v985
        %1107 = vst.msk [vmem:[#allocation2 + $0x1d0] sm:$0xff] %vm1048, %v990
        %1108 = vst.msk [vmem:[#allocation2 + $0x1d8] sm:$0xff] %vm1048, %v993
        %1109 = vst.msk [vmem:[#allocation2 + $0x1e0] sm:$0xff] %vm1048, %v998
        %1110 = vst.msk [vmem:[#allocation2 + $0x1e8] sm:$0xff] %vm1048, %v1001
        %1111 = vst.msk [vmem:[#allocation2 + $0x1f0] sm:$0xff] %vm1048, %v1006
        %1112 = vst.msk [vmem:[#allocation2 + $0x1f8] sm:$0xff] %vm1048, %v1009
        %1113 = vst.msk [vmem:[#allocation2 + $0x200] sm:$0xff] %vm1048, %v1014
        %1114 = vst.msk [vmem:[#allocation2 + $0x208] sm:$0xff] %vm1048, %v1017
        %1115 = vst.msk [vmem:[#allocation2 + $0x210] sm:$0xff] %vm1048, %v1022
        %1116 = vst.msk [vmem:[#allocation2 + $0x218] sm:$0xff] %vm1048, %v1025
        %1117 = vst.msk [vmem:[#allocation2 + $0x220] sm:$0xff] %vm1048, %v1030
        %1118 = vst.msk [vmem:[#allocation2 + $0x228] sm:$0xff] %vm1048, %v1033
        %1119 = vst.msk [vmem:[#allocation2 + $0x230] sm:$0xff] %vm1048, %v1038
        %1120 = vst.msk [vmem:[#allocation2 + $0x238] sm:$0xff] %vm1048, %v1041
      $region40: #{tpu_custom_call.1} parent=35 // pred_fallthru
        _
      %p1121 = scmp.ne.s32.totalorder %s22, 0
      // Predicated region
      $region41: #{tpu_custom_call.1} parent=35 // pred_check
        %p1122 = pneg %p1121
      $region42: #{tpu_custom_call.1} parent=35 // pred_check_branch
        %1124 = sbr.rel (%p1122) target = $region44
      $region43: #{tpu_custom_call.1} parent=35 // pred_region
        %v1125 = vld [vmem:[#allocation2] sm:$0xff]
        %v1126 = vld [vmem:[#allocation2 + $0x8] sm:$0xff]
        %v1127 = vld [vmem:[#allocation2 + $0x10] sm:$0xff]
        %v1128 = vld [vmem:[#allocation2 + $0x18] sm:$0xff]
        %v1129 = vld [vmem:[#allocation2 + $0x20] sm:$0xff]
        %v1130 = vld [vmem:[#allocation2 + $0x28] sm:$0xff]
        %v1131 = vld [vmem:[#allocation2 + $0x30] sm:$0xff]
        %v1132 = vld [vmem:[#allocation2 + $0x38] sm:$0xff]
        %v1133 = vld [vmem:[#allocation2 + $0x40] sm:$0xff]
        %v1134 = vld [vmem:[#allocation2 + $0x48] sm:$0xff]
        %v1135 = vld [vmem:[#allocation2 + $0x50] sm:$0xff]
        %v1136 = vld [vmem:[#allocation2 + $0x58] sm:$0xff]
        %v1137 = vld [vmem:[#allocation2 + $0x60] sm:$0xff]
        %v1138 = vld [vmem:[#allocation2 + $0x68] sm:$0xff]
        %v1139 = vld [vmem:[#allocation2 + $0x70] sm:$0xff]
        %v1140 = vld [vmem:[#allocation2 + $0x78] sm:$0xff]
        %v1141 = vld [vmem:[#allocation2 + $0x80] sm:$0xff]
        %v1142 = vld [vmem:[#allocation2 + $0x88] sm:$0xff]
        %v1143 = vld [vmem:[#allocation2 + $0x90] sm:$0xff]
        %v1144 = vld [vmem:[#allocation2 + $0x98] sm:$0xff]
        %v1145 = vld [vmem:[#allocation2 + $0xa0] sm:$0xff]
        %v1146 = vld [vmem:[#allocation2 + $0xa8] sm:$0xff]
        %v1147 = vld [vmem:[#allocation2 + $0xb0] sm:$0xff]
        %v1148 = vld [vmem:[#allocation2 + $0xb8] sm:$0xff]
        %v1149 = vld [vmem:[#allocation2 + $0xc0] sm:$0xff]
        %v1150 = vld [vmem:[#allocation2 + $0xc8] sm:$0xff]
        %v1151 = vld [vmem:[#allocation2 + $0xd0] sm:$0xff]
        %v1152 = vld [vmem:[#allocation2 + $0xd8] sm:$0xff]
        %v1153 = vld [vmem:[#allocation2 + $0xe0] sm:$0xff]
        %v1154 = vld [vmem:[#allocation2 + $0xe8] sm:$0xff]
        %v1155 = vld [vmem:[#allocation2 + $0xf0] sm:$0xff]
        %v1156 = vld [vmem:[#allocation2 + $0xf8] sm:$0xff]
        %v1157 = vld [vmem:[#allocation2 + $0x100] sm:$0xff]
        %v1158 = vld [vmem:[#allocation2 + $0x108] sm:$0xff]
        %v1159 = vld [vmem:[#allocation2 + $0x110] sm:$0xff]
        %v1160 = vld [vmem:[#allocation2 + $0x118] sm:$0xff]
        %v1161 = vld [vmem:[#allocation2 + $0x120] sm:$0xff]
        %v1162 = vld [vmem:[#allocation2 + $0x128] sm:$0xff]
        %v1163 = vld [vmem:[#allocation2 + $0x130] sm:$0xff]
        %v1164 = vld [vmem:[#allocation2 + $0x138] sm:$0xff]
        %v1165 = vld [vmem:[#allocation2 + $0x140] sm:$0xff]
        %v1166 = vld [vmem:[#allocation2 + $0x148] sm:$0xff]
        %v1167 = vld [vmem:[#allocation2 + $0x150] sm:$0xff]
        %v1168 = vld [vmem:[#allocation2 + $0x158] sm:$0xff]
        %v1169 = vld [vmem:[#allocation2 + $0x160] sm:$0xff]
        %v1170 = vld [vmem:[#allocation2 + $0x168] sm:$0xff]
        %v1171 = vld [vmem:[#allocation2 + $0x170] sm:$0xff]
        %v1172 = vld [vmem:[#allocation2 + $0x178] sm:$0xff]
        %v1173 = vld [vmem:[#allocation2 + $0x180] sm:$0xff]
        %v1174 = vld [vmem:[#allocation2 + $0x188] sm:$0xff]
        %v1175 = vld [vmem:[#allocation2 + $0x190] sm:$0xff]
        %v1176 = vld [vmem:[#allocation2 + $0x198] sm:$0xff]
        %v1177 = vld [vmem:[#allocation2 + $0x1a0] sm:$0xff]
        %v1178 = vld [vmem:[#allocation2 + $0x1a8] sm:$0xff]
        %v1179 = vld [vmem:[#allocation2 + $0x1b0] sm:$0xff]
        %v1180 = vld [vmem:[#allocation2 + $0x1b8] sm:$0xff]
        %v1181 = vld [vmem:[#allocation2 + $0x1c0] sm:$0xff]
        %v1182 = vld [vmem:[#allocation2 + $0x1c8] sm:$0xff]
        %v1183 = vld [vmem:[#allocation2 + $0x1d0] sm:$0xff]
        %v1184 = vld [vmem:[#allocation2 + $0x1d8] sm:$0xff]
        %v1185 = vld [vmem:[#allocation2 + $0x1e0] sm:$0xff]
        %v1186 = vld [vmem:[#allocation2 + $0x1e8] sm:$0xff]
        %v1187 = vld [vmem:[#allocation2 + $0x1f0] sm:$0xff]
        %v1188 = vld [vmem:[#allocation2 + $0x1f8] sm:$0xff]
        %v1189 = vld [vmem:[#allocation2 + $0x200] sm:$0xff]
        %v1190 = vld [vmem:[#allocation2 + $0x208] sm:$0xff]
        %v1191 = vld [vmem:[#allocation2 + $0x210] sm:$0xff]
        %v1192 = vld [vmem:[#allocation2 + $0x218] sm:$0xff]
        %v1193 = vld [vmem:[#allocation2 + $0x220] sm:$0xff]
        %v1194 = vld [vmem:[#allocation2 + $0x228] sm:$0xff]
        %v1195 = vld [vmem:[#allocation2 + $0x230] sm:$0xff]
        %v1196 = vld [vmem:[#allocation2 + $0x238] sm:$0xff]
        %v1197 = vadd.f32 %v1125, %v758
        %v1198 = vadd.f32 %v1126, %v761
        %v1199 = vadd.f32 %v1127, %v766
        %v1200 = vadd.f32 %v1128, %v769
        %v1201 = vadd.f32 %v1129, %v774
        %v1202 = vadd.f32 %v1130, %v777
        %v1203 = vadd.f32 %v1131, %v782
        %v1204 = vadd.f32 %v1132, %v785
        %v1205 = vadd.f32 %v1133, %v790
        %v1206 = vadd.f32 %v1134, %v793
        %v1207 = vadd.f32 %v1135, %v798
        %v1208 = vadd.f32 %v1136, %v801
        %v1209 = vadd.f32 %v1137, %v806
        %v1210 = vadd.f32 %v1138, %v809
        %v1211 = vadd.f32 %v1139, %v814
        %v1212 = vadd.f32 %v1140, %v817
        %v1213 = vadd.f32 %v1141, %v822
        %v1214 = vadd.f32 %v1142, %v825
        %v1215 = vadd.f32 %v1143, %v830
        %v1216 = vadd.f32 %v1144, %v833
        %v1217 = vadd.f32 %v1145, %v838
        %v1218 = vadd.f32 %v1146, %v841
        %v1219 = vadd.f32 %v1147, %v846
        %v1220 = vadd.f32 %v1148, %v849
        %v1221 = vadd.f32 %v1149, %v854
        %v1222 = vadd.f32 %v1150, %v857
        %v1223 = vadd.f32 %v1151, %v862
        %v1224 = vadd.f32 %v1152, %v865
        %v1225 = vadd.f32 %v1153, %v870
        %v1226 = vadd.f32 %v1154, %v873
        %v1227 = vadd.f32 %v1155, %v878
        %v1228 = vadd.f32 %v1156, %v881
        %v1229 = vadd.f32 %v1157, %v886
        %v1230 = vadd.f32 %v1158, %v889
        %v1231 = vadd.f32 %v1159, %v894
        %v1232 = vadd.f32 %v1160, %v897
        %v1233 = vadd.f32 %v1161, %v902
        %v1234 = vadd.f32 %v1162, %v905
        %v1235 = vadd.f32 %v1163, %v910
        %v1236 = vadd.f32 %v1164, %v913
        %v1237 = vadd.f32 %v1165, %v918
        %v1238 = vadd.f32 %v1166, %v921
        %v1239 = vadd.f32 %v1167, %v926
        %v1240 = vadd.f32 %v1168, %v929
        %v1241 = vadd.f32 %v1169, %v934
        %v1242 = vadd.f32 %v1170, %v937
        %v1243 = vadd.f32 %v1171, %v942
        %v1244 = vadd.f32 %v1172, %v945
        %v1245 = vadd.f32 %v1173, %v950
        %v1246 = vadd.f32 %v1174, %v953
        %v1247 = vadd.f32 %v1175, %v958
        %v1248 = vadd.f32 %v1176, %v961
        %v1249 = vadd.f32 %v1177, %v966
        %v1250 = vadd.f32 %v1178, %v969
        %v1251 = vadd.f32 %v1179, %v974
        %v1252 = vadd.f32 %v1180, %v977
        %v1253 = vadd.f32 %v1181, %v982
        %v1254 = vadd.f32 %v1182, %v985
        %v1255 = vadd.f32 %v1183, %v990
        %v1256 = vadd.f32 %v1184, %v993
        %v1257 = vadd.f32 %v1185, %v998
        %v1258 = vadd.f32 %v1186, %v1001
        %v1259 = vadd.f32 %v1187, %v1006
        %v1260 = vadd.f32 %v1188, %v1009
        %v1261 = vadd.f32 %v1189, %v1014
        %v1262 = vadd.f32 %v1190, %v1017
        %v1263 = vadd.f32 %v1191, %v1022
        %v1264 = vadd.f32 %v1192, %v1025
        %v1265 = vadd.f32 %v1193, %v1030
        %v1266 = vadd.f32 %v1194, %v1033
        %v1267 = vadd.f32 %v1195, %v1038
        %v1268 = vadd.f32 %v1196, %v1041
        %vm1269 = vcmask 130048
        %1270 = vst.msk [vmem:[#allocation2] sm:$0xff] %vm1269, %v1197
        %1271 = vst.msk [vmem:[#allocation2 + $0x8] sm:$0xff] %vm1269, %v1198
        %1272 = vst.msk [vmem:[#allocation2 + $0x10] sm:$0xff] %vm1269, %v1199
        %1273 = vst.msk [vmem:[#allocation2 + $0x18] sm:$0xff] %vm1269, %v1200
        %1274 = vst.msk [vmem:[#allocation2 + $0x20] sm:$0xff] %vm1269, %v1201
        %1275 = vst.msk [vmem:[#allocation2 + $0x28] sm:$0xff] %vm1269, %v1202
        %1276 = vst.msk [vmem:[#allocation2 + $0x30] sm:$0xff] %vm1269, %v1203
        %1277 = vst.msk [vmem:[#allocation2 + $0x38] sm:$0xff] %vm1269, %v1204
        %1278 = vst.msk [vmem:[#allocation2 + $0x40] sm:$0xff] %vm1269, %v1205
        %1279 = vst.msk [vmem:[#allocation2 + $0x48] sm:$0xff] %vm1269, %v1206
        %1280 = vst.msk [vmem:[#allocation2 + $0x50] sm:$0xff] %vm1269, %v1207
        %1281 = vst.msk [vmem:[#allocation2 + $0x58] sm:$0xff] %vm1269, %v1208
        %1282 = vst.msk [vmem:[#allocation2 + $0x60] sm:$0xff] %vm1269, %v1209
        %1283 = vst.msk [vmem:[#allocation2 + $0x68] sm:$0xff] %vm1269, %v1210
        %1284 = vst.msk [vmem:[#allocation2 + $0x70] sm:$0xff] %vm1269, %v1211
        %1285 = vst.msk [vmem:[#allocation2 + $0x78] sm:$0xff] %vm1269, %v1212
        %1286 = vst.msk [vmem:[#allocation2 + $0x80] sm:$0xff] %vm1269, %v1213
        %1287 = vst.msk [vmem:[#allocation2 + $0x88] sm:$0xff] %vm1269, %v1214
        %1288 = vst.msk [vmem:[#allocation2 + $0x90] sm:$0xff] %vm1269, %v1215
        %1289 = vst.msk [vmem:[#allocation2 + $0x98] sm:$0xff] %vm1269, %v1216
        %1290 = vst.msk [vmem:[#allocation2 + $0xa0] sm:$0xff] %vm1269, %v1217
        %1291 = vst.msk [vmem:[#allocation2 + $0xa8] sm:$0xff] %vm1269, %v1218
        %1292 = vst.msk [vmem:[#allocation2 + $0xb0] sm:$0xff] %vm1269, %v1219
        %1293 = vst.msk [vmem:[#allocation2 + $0xb8] sm:$0xff] %vm1269, %v1220
        %1294 = vst.msk [vmem:[#allocation2 + $0xc0] sm:$0xff] %vm1269, %v1221
        %1295 = vst.msk [vmem:[#allocation2 + $0xc8] sm:$0xff] %vm1269, %v1222
        %1296 = vst.msk [vmem:[#allocation2 + $0xd0] sm:$0xff] %vm1269, %v1223
        %1297 = vst.msk [vmem:[#allocation2 + $0xd8] sm:$0xff] %vm1269, %v1224
        %1298 = vst.msk [vmem:[#allocation2 + $0xe0] sm:$0xff] %vm1269, %v1225
        %1299 = vst.msk [vmem:[#allocation2 + $0xe8] sm:$0xff] %vm1269, %v1226
        %1300 = vst.msk [vmem:[#allocation2 + $0xf0] sm:$0xff] %vm1269, %v1227
        %1301 = vst.msk [vmem:[#allocation2 + $0xf8] sm:$0xff] %vm1269, %v1228
        %1302 = vst.msk [vmem:[#allocation2 + $0x100] sm:$0xff] %vm1269, %v1229
        %1303 = vst.msk [vmem:[#allocation2 + $0x108] sm:$0xff] %vm1269, %v1230
        %1304 = vst.msk [vmem:[#allocation2 + $0x110] sm:$0xff] %vm1269, %v1231
        %1305 = vst.msk [vmem:[#allocation2 + $0x118] sm:$0xff] %vm1269, %v1232
        %1306 = vst.msk [vmem:[#allocation2 + $0x120] sm:$0xff] %vm1269, %v1233
        %1307 = vst.msk [vmem:[#allocation2 + $0x128] sm:$0xff] %vm1269, %v1234
        %1308 = vst.msk [vmem:[#allocation2 + $0x130] sm:$0xff] %vm1269, %v1235
        %1309 = vst.msk [vmem:[#allocation2 + $0x138] sm:$0xff] %vm1269, %v1236
        %1310 = vst.msk [vmem:[#allocation2 + $0x140] sm:$0xff] %vm1269, %v1237
        %1311 = vst.msk [vmem:[#allocation2 + $0x148] sm:$0xff] %vm1269, %v1238
        %1312 = vst.msk [vmem:[#allocation2 + $0x150] sm:$0xff] %vm1269, %v1239
        %1313 = vst.msk [vmem:[#allocation2 + $0x158] sm:$0xff] %vm1269, %v1240
        %1314 = vst.msk [vmem:[#allocation2 + $0x160] sm:$0xff] %vm1269, %v1241
        %1315 = vst.msk [vmem:[#allocation2 + $0x168] sm:$0xff] %vm1269, %v1242
        %1316 = vst.msk [vmem:[#allocation2 + $0x170] sm:$0xff] %vm1269, %v1243
        %1317 = vst.msk [vmem:[#allocation2 + $0x178] sm:$0xff] %vm1269, %v1244
        %1318 = vst.msk [vmem:[#allocation2 + $0x180] sm:$0xff] %vm1269, %v1245
        %1319 = vst.msk [vmem:[#allocation2 + $0x188] sm:$0xff] %vm1269, %v1246
        %1320 = vst.msk [vmem:[#allocation2 + $0x190] sm:$0xff] %vm1269, %v1247
        %1321 = vst.msk [vmem:[#allocation2 + $0x198] sm:$0xff] %vm1269, %v1248
        %1322 = vst.msk [vmem:[#allocation2 + $0x1a0] sm:$0xff] %vm1269, %v1249
        %1323 = vst.msk [vmem:[#allocation2 + $0x1a8] sm:$0xff] %vm1269, %v1250
        %1324 = vst.msk [vmem:[#allocation2 + $0x1b0] sm:$0xff] %vm1269, %v1251
        %1325 = vst.msk [vmem:[#allocation2 + $0x1b8] sm:$0xff] %vm1269, %v1252
        %1326 = vst.msk [vmem:[#allocation2 + $0x1c0] sm:$0xff] %vm1269, %v1253
        %1327 = vst.msk [vmem:[#allocation2 + $0x1c8] sm:$0xff] %vm1269, %v1254
        %1328 = vst.msk [vmem:[#allocation2 + $0x1d0] sm:$0xff] %vm1269, %v1255
        %1329 = vst.msk [vmem:[#allocation2 + $0x1d8] sm:$0xff] %vm1269, %v1256
        %1330 = vst.msk [vmem:[#allocation2 + $0x1e0] sm:$0xff] %vm1269, %v1257
        %1331 = vst.msk [vmem:[#allocation2 + $0x1e8] sm:$0xff] %vm1269, %v1258
        %1332 = vst.msk [vmem:[#allocation2 + $0x1f0] sm:$0xff] %vm1269, %v1259
        %1333 = vst.msk [vmem:[#allocation2 + $0x1f8] sm:$0xff] %vm1269, %v1260
        %1334 = vst.msk [vmem:[#allocation2 + $0x200] sm:$0xff] %vm1269, %v1261
        %1335 = vst.msk [vmem:[#allocation2 + $0x208] sm:$0xff] %vm1269, %v1262
        %1336 = vst.msk [vmem:[#allocation2 + $0x210] sm:$0xff] %vm1269, %v1263
        %1337 = vst.msk [vmem:[#allocation2 + $0x218] sm:$0xff] %vm1269, %v1264
        %1338 = vst.msk [vmem:[#allocation2 + $0x220] sm:$0xff] %vm1269, %v1265
        %1339 = vst.msk [vmem:[#allocation2 + $0x228] sm:$0xff] %vm1269, %v1266
        %1340 = vst.msk [vmem:[#allocation2 + $0x230] sm:$0xff] %vm1269, %v1267
        %1341 = vst.msk [vmem:[#allocation2 + $0x238] sm:$0xff] %vm1269, %v1268
      $region44: #{tpu_custom_call.1} parent=35 // pred_fallthru
        _
      %s1342 = scalar_lea.vmem %s281, 96
      %v1343 = vld [vmem:[%s1342] sm:$0xf]
      %v1344 = vld [vmem:[%s1342 + $0x4] sm:$0xf]
      %v1345 = vld [vmem:[%s1342 + $0x8] sm:$0xf]
      %v1346 = vld [vmem:[%s1342 + $0xc] sm:$0xf]
      %v1347 = vld [vmem:[%s1342 + $0x10] sm:$0xf]
      %v1348 = vld [vmem:[%s1342 + $0x14] sm:$0xf]
      %v1349 = vld [vmem:[%s1342 + $0x18] sm:$0xf]
      %v1350 = vld [vmem:[%s1342 + $0x1c] sm:$0xf]
      %v1354 = vunpack.c.l.b16 %v394
      %v1355 = vunpack.c.l.b16 %v395
      %v1356 = vunpack.c.l.b16 %v396
      %v1357 = vpack.c.b16 %v486, %v485
      %v1358 = vpack.c.b16 %v488, %v487
      %v1359 = vpack.c.b16 %v490, %v489
      %v1360 = vpack.c.b16 %v492, %v491
      %v1361 = vpack.c.b16 %v494, %v493
      %v1362 = vpack.c.b16 %v496, %v495
      %v1363 = vpack.c.b16 %v498, %v497
      %v1364 = vpack.c.b16 %v500, %v499
      %v1365 = vpack.c.b16 %v502, %v501
      %v1366 = vpack.c.b16 %v504, %v503
      %v1367 = vpack.c.b16 %v506, %v505
      %v1368 = vpack.c.b16 %v508, %v507
      %v1369 = vpack.c.b16 %v510, %v509
      %v1370 = vpack.c.b16 %v512, %v511
      %v1371 = vpack.c.b16 %v514, %v513
      %v1372 = vpack.c.b16 %v516, %v515
      %v1373 = vpack.c.b16 %v518, %v517
      %v1374 = vpack.c.b16 %v520, %v519
      %v1375 = vpack.c.b16 %v522, %v521
      %v1376 = vpack.c.b16 %v524, %v523
      %v1377 = vpack.c.b16 %v526, %v525
      %v1378 = vpack.c.b16 %v528, %v527
      %v1379 = vpack.c.b16 %v530, %v529
      %v1380 = vpack.c.b16 %v532, %v531
      %v1381 = vpack.c.b16 %v534, %v533
      %v1382 = vpack.c.b16 %v536, %v535
      %v1383 = vpack.c.b16 %v538, %v537
      %v1384 = vpack.c.b16 %v540, %v539
      %v1385 = vpack.c.b16 %v542, %v541
      %v1386 = vpack.c.b16 %v544, %v543
      %v1387 = vpack.c.b16 %v546, %v545
      %v1388 = vpack.c.b16 %v548, %v547
      %v1389 = vpack.c.b16 %v550, %v549
      %v1390 = vpack.c.b16 %v552, %v551
      %v1391 = vpack.c.b16 %v1354, %v553
      %v1392 = vpack.c.b16 %v1356, %v1355
      %v1401 = vunpack.c.l.b16 %v1343
      %v1402 = vunpack.c.l.b16 %v1344
      %v1403 = vunpack.c.l.b16 %v1345
      %v1404 = vunpack.c.l.b16 %v1346
      %v1405 = vunpack.c.l.b16 %v1347
      %v1406 = vunpack.c.l.b16 %v1348
      %v1407 = vunpack.c.l.b16 %v1349
      %v1408 = vunpack.c.l.b16 %v1350
      %v1409 = vpack.c.b16 %v1402, %v1401
      %v1410 = vpack.c.b16 %v1404, %v1403
      %v1411 = vpack.c.b16 %v1406, %v1405
      %v1412 = vpack.c.b16 %v1408, %v1407
      %v1418 = vsel %vm614, %v1357, 0
      %v1421 = vsel %vm614, %v1358, 0
      %v1424 = vsel %vm614, %v1359, 0
      %v1427 = vsel %vm614, %v1360, 0
      %v1430 = vsel %vm614, %v1361, 0
      %v1433 = vsel %vm614, %v1362, 0
      %v1436 = vsel %vm614, %v1363, 0
      %v1439 = vsel %vm614, %v1364, 0
      %v1442 = vsel %vm614, %v1365, 0
      %v1445 = vsel %vm614, %v1366, 0
      %v1448 = vsel %vm614, %v1367, 0
      %v1451 = vsel %vm614, %v1368, 0
      %v1454 = vsel %vm614, %v1369, 0
      %v1457 = vsel %vm614, %v1370, 0
      %v1460 = vsel %vm614, %v1371, 0
      %v1463 = vsel %vm614, %v1372, 0
      %v1466 = vsel %vm614, %v1373, 0
      %v1469 = vsel %vm614, %v1374, 0
      %v1472 = vsel %vm614, %v1375, 0
      %v1475 = vsel %vm614, %v1376, 0
      %v1478 = vsel %vm614, %v1377, 0
      %v1481 = vsel %vm614, %v1378, 0
      %v1484 = vsel %vm614, %v1379, 0
      %v1487 = vsel %vm614, %v1380, 0
      %v1490 = vsel %vm614, %v1381, 0
      %v1493 = vsel %vm614, %v1382, 0
      %v1496 = vsel %vm614, %v1383, 0
      %v1499 = vsel %vm614, %v1384, 0
      %v1502 = vsel %vm614, %v1385, 0
      %v1505 = vsel %vm614, %v1386, 0
      %v1508 = vsel %vm614, %v1387, 0
      %v1511 = vsel %vm614, %v1388, 0
      %v1514 = vsel %vm614, %v1389, 0
      %v1517 = vsel %vm614, %v1390, 0
      %v1520 = vsel %vm614, %v1391, 0
      %v1523 = vsel %vm614, %v1392, 0
      %1525 = vmatprep.subr.bf16.mxu0 0
      %1526 = vmatpush1.bf16.msra.mxu0 %v1409
      %1527 = vmatprep.subr.bf16.mxu0 0
      %1528 = vmatpush1.bf16.msra.mxu0 %v1410
      %1529 = vmatprep.subr.bf16.mxu0 0
      %1530 = vmatpush1.bf16.msra.mxu0 %v1411
      %1531 = vmatprep.subr.bf16.mxu0 0
      %1532 = vmatpush1.bf16.msra.mxu0 %v1412
      %1533 = vmatprep.subr.bf16.mxu0 0
      %1534 = vmatpush1.bf16.msra.mxu0 0
      %1535 = vmatprep.subr.bf16.mxu0 0
      %1536 = vmatpush1.bf16.msra.mxu0 0
      %1537 = vmatprep.subr.bf16.mxu0 0
      %1538 = vmatpush1.bf16.msra.mxu0 0
      %1539 = vmatprep.subr.bf16.mxu0 0
      %1540 = vmatpush1.bf16.msra.mxu0 0
      %1541 = vmatprep.subr.bf16.mxu0 0
      %1542 = vmatpush1.bf16.msra.mxu0 0
      %1543 = vmatprep.subr.bf16.mxu0 0
      %1544 = vmatpush1.bf16.msra.mxu0 0
      %1545 = vmatprep.subr.bf16.mxu0 0
      %1546 = vmatpush1.bf16.msra.mxu0 0
      %1547 = vmatprep.subr.bf16.mxu0 0
      %1548 = vmatpush1.bf16.msra.mxu0 0
      %1549 = vmatprep.subr.bf16.mxu0 0
      %1550 = vmatpush1.bf16.msra.mxu0 0
      %1551 = vmatprep.subr.bf16.mxu0 0
      %1552 = vmatpush1.bf16.msra.mxu0 0
      %1553 = vmatprep.subr.bf16.mxu0 0
      %1554 = vmatpush1.bf16.msra.mxu0 0
      %1555 = vmatprep.subr.bf16.mxu0 0
      %1556 = vmatpush1.bf16.msra.mxu0 0
      %1557 = vmatprep.mubr.bf16.mxu0 0
      %1558 = vmatmul.mubr.bf16.gmra.mrb[0].mxu0 %v1418
      %v1559 = vpop.f32.mrb[0].mxu0
      %v1560 = vadd.f32 0.0, %v1559
      %v1561 = vpop.f32.mrb[0].mxu0
      %v1562 = vpop.f32.mrb[0].mxu0
      %v1563 = vadd.f32 0.0, %v1562
      %v1564 = vpop.f32.mrb[0].mxu0
      %1565 = vmatprep.mubr.bf16.mxu0 0
      %1566 = vmatmul.mubr.bf16.gmra.mrb[0].mxu0 %v1421
      %v1567 = vpop.f32.mrb[0].mxu0
      %v1568 = vadd.f32 0.0, %v1567
      %v1569 = vpop.f32.mrb[0].mxu0
      %v1570 = vpop.f32.mrb[0].mxu0
      %v1571 = vadd.f32 0.0, %v1570
      %v1572 = vpop.f32.mrb[0].mxu0
      %1573 = vmatprep.mubr.bf16.mxu0 0
      %1574 = vmatmul.mubr.bf16.gmra.mrb[0].mxu0 %v1424
      %v1575 = vpop.f32.mrb[0].mxu0
      %v1576 = vadd.f32 0.0, %v1575
      %v1577 = vpop.f32.mrb[0].mxu0
      %v1578 = vpop.f32.mrb[0].mxu0
      %v1579 = vadd.f32 0.0, %v1578
      %v1580 = vpop.f32.mrb[0].mxu0
      %1581 = vmatprep.mubr.bf16.mxu0 0
      %1582 = vmatmul.mubr.bf16.gmra.mrb[0].mxu0 %v1427
      %v1583 = vpop.f32.mrb[0].mxu0
      %v1584 = vadd.f32 0.0, %v1583
      %v1585 = vpop.f32.mrb[0].mxu0
      %v1586 = vpop.f32.mrb[0].mxu0
      %v1587 = vadd.f32 0.0, %v1586
      %v1588 = vpop.f32.mrb[0].mxu0
      %1589 = vmatprep.mubr.bf16.mxu0 0
      %1590 = vmatmul.mubr.bf16.gmra.mrb[0].mxu0 %v1430
      %v1591 = vpop.f32.mrb[0].mxu0
      %v1592 = vadd.f32 0.0, %v1591
      %v1593 = vpop.f32.mrb[0].mxu0
      %v1594 = vpop.f32.mrb[0].mxu0
      %v1595 = vadd.f32 0.0, %v1594
      %v1596 = vpop.f32.mrb[0].mxu0
      %1597 = vmatprep.mubr.bf16.mxu0 0
      %1598 = vmatmul.mubr.bf16.gmra.mrb[0].mxu0 %v1433
      %v1599 = vpop.f32.mrb[0].mxu0
      %v1600 = vadd.f32 0.0, %v1599
      %v1601 = vpop.f32.mrb[0].mxu0
      %v1602 = vpop.f32.mrb[0].mxu0
      %v1603 = vadd.f32 0.0, %v1602
      %v1604 = vpop.f32.mrb[0].mxu0
      %1605 = vmatprep.mubr.bf16.mxu0 0
      %1606 = vmatmul.mubr.bf16.gmra.mrb[0].mxu0 %v1436
      %v1607 = vpop.f32.mrb[0].mxu0
      %v1608 = vadd.f32 0.0, %v1607
      %v1609 = vpop.f32.mrb[0].mxu0
      %v1610 = vpop.f32.mrb[0].mxu0
      %v1611 = vadd.f32 0.0, %v1610
      %v1612 = vpop.f32.mrb[0].mxu0
      %1613 = vmatprep.mubr.bf16.mxu0 0
      %1614 = vmatmul.mubr.bf16.gmra.mrb[0].mxu0 %v1439
      %v1615 = vpop.f32.mrb[0].mxu0
      %v1616 = vadd.f32 0.0, %v1615
      %v1617 = vpop.f32.mrb[0].mxu0
      %v1618 = vpop.f32.mrb[0].mxu0
      %v1619 = vadd.f32 0.0, %v1618
      %v1620 = vpop.f32.mrb[0].mxu0
      %1621 = vmatprep.mubr.bf16.mxu0 0
      %1622 = vmatmul.mubr.bf16.gmra.mrb[0].mxu0 %v1442
      %v1623 = vpop.f32.mrb[0].mxu0
      %v1624 = vadd.f32 0.0, %v1623
      %v1625 = vpop.f32.mrb[0].mxu0
      %v1626 = vpop.f32.mrb[0].mxu0
      %v1627 = vadd.f32 0.0, %v1626
      %v1628 = vpop.f32.mrb[0].mxu0
      %1629 = vmatprep.mubr.bf16.mxu0 0
      %1630 = vmatmul.mubr.bf16.gmra.mrb[0].mxu0 %v1445
      %v1631 = vpop.f32.mrb[0].mxu0
      %v1632 = vadd.f32 0.0, %v1631
      %v1633 = vpop.f32.mrb[0].mxu0
      %v1634 = vpop.f32.mrb[0].mxu0
      %v1635 = vadd.f32 0.0, %v1634
      %v1636 = vpop.f32.mrb[0].mxu0
      %1637 = vmatprep.mubr.bf16.mxu0 0
      %1638 = vmatmul.mubr.bf16.gmra.mrb[0].mxu0 %v1448
      %v1639 = vpop.f32.mrb[0].mxu0
      %v1640 = vadd.f32 0.0, %v1639
      %v1641 = vpop.f32.mrb[0].mxu0
      %v1642 = vpop.f32.mrb[0].mxu0
      %v1643 = vadd.f32 0.0, %v1642
      %v1644 = vpop.f32.mrb[0].mxu0
      %1645 = vmatprep.mubr.bf16.mxu0 0
      %1646 = vmatmul.mubr.bf16.gmra.mrb[0].mxu0 %v1451
      %v1647 = vpop.f32.mrb[0].mxu0
      %v1648 = vadd.f32 0.0, %v1647
      %v1649 = vpop.f32.mrb[0].mxu0
      %v1650 = vpop.f32.mrb[0].mxu0
      %v1651 = vadd.f32 0.0, %v1650
      %v1652 = vpop.f32.mrb[0].mxu0
      %1653 = vmatprep.mubr.bf16.mxu0 0
      %1654 = vmatmul.mubr.bf16.gmra.mrb[0].mxu0 %v1454
      %v1655 = vpop.f32.mrb[0].mxu0
      %v1656 = vadd.f32 0.0, %v1655
      %v1657 = vpop.f32.mrb[0].mxu0
      %v1658 = vpop.f32.mrb[0].mxu0
      %v1659 = vadd.f32 0.0, %v1658
      %v1660 = vpop.f32.mrb[0].mxu0
      %1661 = vmatprep.mubr.bf16.mxu0 0
      %1662 = vmatmul.mubr.bf16.gmra.mrb[0].mxu0 %v1457
      %v1663 = vpop.f32.mrb[0].mxu0
      %v1664 = vadd.f32 0.0, %v1663
      %v1665 = vpop.f32.mrb[0].mxu0
      %v1666 = vpop.f32.mrb[0].mxu0
      %v1667 = vadd.f32 0.0, %v1666
      %v1668 = vpop.f32.mrb[0].mxu0
      %1669 = vmatprep.mubr.bf16.mxu0 0
      %1670 = vmatmul.mubr.bf16.gmra.mrb[0].mxu0 %v1460
      %v1671 = vpop.f32.mrb[0].mxu0
      %v1672 = vadd.f32 0.0, %v1671
      %v1673 = vpop.f32.mrb[0].mxu0
      %v1674 = vpop.f32.mrb[0].mxu0
      %v1675 = vadd.f32 0.0, %v1674
      %v1676 = vpop.f32.mrb[0].mxu0
      %1677 = vmatprep.mubr.bf16.mxu0 0
      %1678 = vmatmul.mubr.bf16.gmra.mrb[0].mxu0 %v1463
      %v1679 = vpop.f32.mrb[0].mxu0
      %v1680 = vadd.f32 0.0, %v1679
      %v1681 = vpop.f32.mrb[0].mxu0
      %v1682 = vpop.f32.mrb[0].mxu0
      %v1683 = vadd.f32 0.0, %v1682
      %v1684 = vpop.f32.mrb[0].mxu0
      %1685 = vmatprep.mubr.bf16.mxu0 0
      %1686 = vmatmul.mubr.bf16.gmra.mrb[0].mxu0 %v1466
      %v1687 = vpop.f32.mrb[0].mxu0
      %v1688 = vadd.f32 0.0, %v1687
      %v1689 = vpop.f32.mrb[0].mxu0
      %v1690 = vpop.f32.mrb[0].mxu0
      %v1691 = vadd.f32 0.0, %v1690
      %v1692 = vpop.f32.mrb[0].mxu0
      %1693 = vmatprep.mubr.bf16.mxu0 0
      %1694 = vmatmul.mubr.bf16.gmra.mrb[0].mxu0 %v1469
      %v1695 = vpop.f32.mrb[0].mxu0
      %v1696 = vadd.f32 0.0, %v1695
      %v1697 = vpop.f32.mrb[0].mxu0
      %v1698 = vpop.f32.mrb[0].mxu0
      %v1699 = vadd.f32 0.0, %v1698
      %v1700 = vpop.f32.mrb[0].mxu0
      %1701 = vmatprep.mubr.bf16.mxu0 0
      %1702 = vmatmul.mubr.bf16.gmra.mrb[0].mxu0 %v1472
      %v1703 = vpop.f32.mrb[0].mxu0
      %v1704 = vadd.f32 0.0, %v1703
      %v1705 = vpop.f32.mrb[0].mxu0
      %v1706 = vpop.f32.mrb[0].mxu0
      %v1707 = vadd.f32 0.0, %v1706
      %v1708 = vpop.f32.mrb[0].mxu0
      %1709 = vmatprep.mubr.bf16.mxu0 0
      %1710 = vmatmul.mubr.bf16.gmra.mrb[0].mxu0 %v1475
      %v1711 = vpop.f32.mrb[0].mxu0
      %v1712 = vadd.f32 0.0, %v1711
      %v1713 = vpop.f32.mrb[0].mxu0
      %v1714 = vpop.f32.mrb[0].mxu0
      %v1715 = vadd.f32 0.0, %v1714
      %v1716 = vpop.f32.mrb[0].mxu0
      %1717 = vmatprep.mubr.bf16.mxu0 0
      %1718 = vmatmul.mubr.bf16.gmra.mrb[0].mxu0 %v1478
      %v1719 = vpop.f32.mrb[0].mxu0
      %v1720 = vadd.f32 0.0, %v1719
      %v1721 = vpop.f32.mrb[0].mxu0
      %v1722 = vpop.f32.mrb[0].mxu0
      %v1723 = vadd.f32 0.0, %v1722
      %v1724 = vpop.f32.mrb[0].mxu0
      %1725 = vmatprep.mubr.bf16.mxu0 0
      %1726 = vmatmul.mubr.bf16.gmra.mrb[0].mxu0 %v1481
      %v1727 = vpop.f32.mrb[0].mxu0
      %v1728 = vadd.f32 0.0, %v1727
      %v1729 = vpop.f32.mrb[0].mxu0
      %v1730 = vpop.f32.mrb[0].mxu0
      %v1731 = vadd.f32 0.0, %v1730
      %v1732 = vpop.f32.mrb[0].mxu0
      %1733 = vmatprep.mubr.bf16.mxu0 0
      %1734 = vmatmul.mubr.bf16.gmra.mrb[0].mxu0 %v1484
      %v1735 = vpop.f32.mrb[0].mxu0
      %v1736 = vadd.f32 0.0, %v1735
      %v1737 = vpop.f32.mrb[0].mxu0
      %v1738 = vpop.f32.mrb[0].mxu0
      %v1739 = vadd.f32 0.0, %v1738
      %v1740 = vpop.f32.mrb[0].mxu0
      %1741 = vmatprep.mubr.bf16.mxu0 0
      %1742 = vmatmul.mubr.bf16.gmra.mrb[0].mxu0 %v1487
      %v1743 = vpop.f32.mrb[0].mxu0
      %v1744 = vadd.f32 0.0, %v1743
      %v1745 = vpop.f32.mrb[0].mxu0
      %v1746 = vpop.f32.mrb[0].mxu0
      %v1747 = vadd.f32 0.0, %v1746
      %v1748 = vpop.f32.mrb[0].mxu0
      %1749 = vmatprep.mubr.bf16.mxu0 0
      %1750 = vmatmul.mubr.bf16.gmra.mrb[0].mxu0 %v1490
      %v1751 = vpop.f32.mrb[0].mxu0
      %v1752 = vadd.f32 0.0, %v1751
      %v1753 = vpop.f32.mrb[0].mxu0
      %v1754 = vpop.f32.mrb[0].mxu0
      %v1755 = vadd.f32 0.0, %v1754
      %v1756 = vpop.f32.mrb[0].mxu0
      %1757 = vmatprep.mubr.bf16.mxu0 0
      %1758 = vmatmul.mubr.bf16.gmra.mrb[0].mxu0 %v1493
      %v1759 = vpop.f32.mrb[0].mxu0
      %v1760 = vadd.f32 0.0, %v1759
      %v1761 = vpop.f32.mrb[0].mxu0
      %v1762 = vpop.f32.mrb[0].mxu0
      %v1763 = vadd.f32 0.0, %v1762
      %v1764 = vpop.f32.mrb[0].mxu0
      %1765 = vmatprep.mubr.bf16.mxu0 0
      %1766 = vmatmul.mubr.bf16.gmra.mrb[0].mxu0 %v1496
      %v1767 = vpop.f32.mrb[0].mxu0
      %v1768 = vadd.f32 0.0, %v1767
      %v1769 = vpop.f32.mrb[0].mxu0
      %v1770 = vpop.f32.mrb[0].mxu0
      %v1771 = vadd.f32 0.0, %v1770
      %v1772 = vpop.f32.mrb[0].mxu0
      %1773 = vmatprep.mubr.bf16.mxu0 0
      %1774 = vmatmul.mubr.bf16.gmra.mrb[0].mxu0 %v1499
      %v1775 = vpop.f32.mrb[0].mxu0
      %v1776 = vadd.f32 0.0, %v1775
      %v1777 = vpop.f32.mrb[0].mxu0
      %v1778 = vpop.f32.mrb[0].mxu0
      %v1779 = vadd.f32 0.0, %v1778
      %v1780 = vpop.f32.mrb[0].mxu0
      %1781 = vmatprep.mubr.bf16.mxu0 0
      %1782 = vmatmul.mubr.bf16.gmra.mrb[0].mxu0 %v1502
      %v1783 = vpop.f32.mrb[0].mxu0
      %v1784 = vadd.f32 0.0, %v1783
      %v1785 = vpop.f32.mrb[0].mxu0
      %v1786 = vpop.f32.mrb[0].mxu0
      %v1787 = vadd.f32 0.0, %v1786
      %v1788 = vpop.f32.mrb[0].mxu0
      %1789 = vmatprep.mubr.bf16.mxu0 0
      %1790 = vmatmul.mubr.bf16.gmra.mrb[0].mxu0 %v1505
      %v1791 = vpop.f32.mrb[0].mxu0
      %v1792 = vadd.f32 0.0, %v1791
      %v1793 = vpop.f32.mrb[0].mxu0
      %v1794 = vpop.f32.mrb[0].mxu0
      %v1795 = vadd.f32 0.0, %v1794
      %v1796 = vpop.f32.mrb[0].mxu0
      %1797 = vmatprep.mubr.bf16.mxu0 0
      %1798 = vmatmul.mubr.bf16.gmra.mrb[0].mxu0 %v1508
      %v1799 = vpop.f32.mrb[0].mxu0
      %v1800 = vadd.f32 0.0, %v1799
      %v1801 = vpop.f32.mrb[0].mxu0
      %v1802 = vpop.f32.mrb[0].mxu0
      %v1803 = vadd.f32 0.0, %v1802
      %v1804 = vpop.f32.mrb[0].mxu0
      %1805 = vmatprep.mubr.bf16.mxu0 0
      %1806 = vmatmul.mubr.bf16.gmra.mrb[0].mxu0 %v1511
      %v1807 = vpop.f32.mrb[0].mxu0
      %v1808 = vadd.f32 0.0, %v1807
      %v1809 = vpop.f32.mrb[0].mxu0
      %v1810 = vpop.f32.mrb[0].mxu0
      %v1811 = vadd.f32 0.0, %v1810
      %v1812 = vpop.f32.mrb[0].mxu0
      %1813 = vmatprep.mubr.bf16.mxu0 0
      %1814 = vmatmul.mubr.bf16.gmra.mrb[0].mxu0 %v1514
      %v1815 = vpop.f32.mrb[0].mxu0
      %v1816 = vadd.f32 0.0, %v1815
      %v1817 = vpop.f32.mrb[0].mxu0
      %v1818 = vpop.f32.mrb[0].mxu0
      %v1819 = vadd.f32 0.0, %v1818
      %v1820 = vpop.f32.mrb[0].mxu0
      %1821 = vmatprep.mubr.bf16.mxu0 0
      %1822 = vmatmul.mubr.bf16.gmra.mrb[0].mxu0 %v1517
      %v1823 = vpop.f32.mrb[0].mxu0
      %v1824 = vadd.f32 0.0, %v1823
      %v1825 = vpop.f32.mrb[0].mxu0
      %v1826 = vpop.f32.mrb[0].mxu0
      %v1827 = vadd.f32 0.0, %v1826
      %v1828 = vpop.f32.mrb[0].mxu0
      %1829 = vmatprep.mubr.bf16.mxu0 0
      %1830 = vmatmul.mubr.bf16.gmra.mrb[0].mxu0 %v1520
      %v1831 = vpop.f32.mrb[0].mxu0
      %v1832 = vadd.f32 0.0, %v1831
      %v1833 = vpop.f32.mrb[0].mxu0
      %v1834 = vpop.f32.mrb[0].mxu0
      %v1835 = vadd.f32 0.0, %v1834
      %v1836 = vpop.f32.mrb[0].mxu0
      %1837 = vmatprep.mubr.bf16.mxu0 0
      %1838 = vmatmul.mubr.bf16.gmra.mrb[0].mxu0 %v1523
      %v1839 = vpop.f32.mrb[0].mxu0
      %v1840 = vadd.f32 0.0, %v1839
      %v1841 = vpop.f32.mrb[0].mxu0
      %v1842 = vpop.f32.mrb[0].mxu0
      %v1843 = vadd.f32 0.0, %v1842
      %v1844 = vpop.f32.mrb[0].mxu0
      %1845 = vdwg.mxu0
      %v1846 = vld [vmem:[#allocation2] sm:$0xff]
      %v1847 = vld [vmem:[#allocation2 + $0x8] sm:$0xff]
      %v1848 = vld [vmem:[#allocation2 + $0x10] sm:$0xff]
      %v1849 = vld [vmem:[#allocation2 + $0x18] sm:$0xff]
      %v1850 = vld [vmem:[#allocation2 + $0x20] sm:$0xff]
      %v1851 = vld [vmem:[#allocation2 + $0x28] sm:$0xff]
      %v1852 = vld [vmem:[#allocation2 + $0x30] sm:$0xff]
      %v1853 = vld [vmem:[#allocation2 + $0x38] sm:$0xff]
      %v1854 = vld [vmem:[#allocation2 + $0x40] sm:$0xff]
      %v1855 = vld [vmem:[#allocation2 + $0x48] sm:$0xff]
      %v1856 = vld [vmem:[#allocation2 + $0x50] sm:$0xff]
      %v1857 = vld [vmem:[#allocation2 + $0x58] sm:$0xff]
      %v1858 = vld [vmem:[#allocation2 + $0x60] sm:$0xff]
      %v1859 = vld [vmem:[#allocation2 + $0x68] sm:$0xff]
      %v1860 = vld [vmem:[#allocation2 + $0x70] sm:$0xff]
      %v1861 = vld [vmem:[#allocation2 + $0x78] sm:$0xff]
      %v1862 = vld [vmem:[#allocation2 + $0x80] sm:$0xff]
      %v1863 = vld [vmem:[#allocation2 + $0x88] sm:$0xff]
      %v1864 = vld [vmem:[#allocation2 + $0x90] sm:$0xff]
      %v1865 = vld [vmem:[#allocation2 + $0x98] sm:$0xff]
      %v1866 = vld [vmem:[#allocation2 + $0xa0] sm:$0xff]
      %v1867 = vld [vmem:[#allocation2 + $0xa8] sm:$0xff]
      %v1868 = vld [vmem:[#allocation2 + $0xb0] sm:$0xff]
      %v1869 = vld [vmem:[#allocation2 + $0xb8] sm:$0xff]
      %v1870 = vld [vmem:[#allocation2 + $0xc0] sm:$0xff]
      %v1871 = vld [vmem:[#allocation2 + $0xc8] sm:$0xff]
      %v1872 = vld [vmem:[#allocation2 + $0xd0] sm:$0xff]
      %v1873 = vld [vmem:[#allocation2 + $0xd8] sm:$0xff]
      %v1874 = vld [vmem:[#allocation2 + $0xe0] sm:$0xff]
      %v1875 = vld [vmem:[#allocation2 + $0xe8] sm:$0xff]
      %v1876 = vld [vmem:[#allocation2 + $0xf0] sm:$0xff]
      %v1877 = vld [vmem:[#allocation2 + $0xf8] sm:$0xff]
      %v1878 = vld [vmem:[#allocation2 + $0x100] sm:$0xff]
      %v1879 = vld [vmem:[#allocation2 + $0x108] sm:$0xff]
      %v1880 = vld [vmem:[#allocation2 + $0x110] sm:$0xff]
      %v1881 = vld [vmem:[#allocation2 + $0x118] sm:$0xff]
      %v1882 = vld [vmem:[#allocation2 + $0x120] sm:$0xff]
      %v1883 = vld [vmem:[#allocation2 + $0x128] sm:$0xff]
      %v1884 = vld [vmem:[#allocation2 + $0x130] sm:$0xff]
      %v1885 = vld [vmem:[#allocation2 + $0x138] sm:$0xff]
      %v1886 = vld [vmem:[#allocation2 + $0x140] sm:$0xff]
      %v1887 = vld [vmem:[#allocation2 + $0x148] sm:$0xff]
      %v1888 = vld [vmem:[#allocation2 + $0x150] sm:$0xff]
      %v1889 = vld [vmem:[#allocation2 + $0x158] sm:$0xff]
      %v1890 = vld [vmem:[#allocation2 + $0x160] sm:$0xff]
      %v1891 = vld [vmem:[#allocation2 + $0x168] sm:$0xff]
      %v1892 = vld [vmem:[#allocation2 + $0x170] sm:$0xff]
      %v1893 = vld [vmem:[#allocation2 + $0x178] sm:$0xff]
      %v1894 = vld [vmem:[#allocation2 + $0x180] sm:$0xff]
      %v1895 = vld [vmem:[#allocation2 + $0x188] sm:$0xff]
      %v1896 = vld [vmem:[#allocation2 + $0x190] sm:$0xff]
      %v1897 = vld [vmem:[#allocation2 + $0x198] sm:$0xff]
      %v1898 = vld [vmem:[#allocation2 + $0x1a0] sm:$0xff]
      %v1899 = vld [vmem:[#allocation2 + $0x1a8] sm:$0xff]
      %v1900 = vld [vmem:[#allocation2 + $0x1b0] sm:$0xff]
      %v1901 = vld [vmem:[#allocation2 + $0x1b8] sm:$0xff]
      %v1902 = vld [vmem:[#allocation2 + $0x1c0] sm:$0xff]
      %v1903 = vld [vmem:[#allocation2 + $0x1c8] sm:$0xff]
      %v1904 = vld [vmem:[#allocation2 + $0x1d0] sm:$0xff]
      %v1905 = vld [vmem:[#allocation2 + $0x1d8] sm:$0xff]
      %v1906 = vld [vmem:[#allocation2 + $0x1e0] sm:$0xff]
      %v1907 = vld [vmem:[#allocation2 + $0x1e8] sm:$0xff]
      %v1908 = vld [vmem:[#allocation2 + $0x1f0] sm:$0xff]
      %v1909 = vld [vmem:[#allocation2 + $0x1f8] sm:$0xff]
      %v1910 = vld [vmem:[#allocation2 + $0x200] sm:$0xff]
      %v1911 = vld [vmem:[#allocation2 + $0x208] sm:$0xff]
      %v1912 = vld [vmem:[#allocation2 + $0x210] sm:$0xff]
      %v1913 = vld [vmem:[#allocation2 + $0x218] sm:$0xff]
      %v1914 = vld [vmem:[#allocation2 + $0x220] sm:$0xff]
      %v1915 = vld [vmem:[#allocation2 + $0x228] sm:$0xff]
      %v1916 = vld [vmem:[#allocation2 + $0x230] sm:$0xff]
      %v1917 = vld [vmem:[#allocation2 + $0x238] sm:$0xff]
      %v1918 = vadd.f32 %v1846, %v1560
      %v1919 = vadd.f32 %v1847, %v1563
      %v1920 = vadd.f32 %v1848, %v1568
      %v1921 = vadd.f32 %v1849, %v1571
      %v1922 = vadd.f32 %v1850, %v1576
      %v1923 = vadd.f32 %v1851, %v1579
      %v1924 = vadd.f32 %v1852, %v1584
      %v1925 = vadd.f32 %v1853, %v1587
      %v1926 = vadd.f32 %v1854, %v1592
      %v1927 = vadd.f32 %v1855, %v1595
      %v1928 = vadd.f32 %v1856, %v1600
      %v1929 = vadd.f32 %v1857, %v1603
      %v1930 = vadd.f32 %v1858, %v1608
      %v1931 = vadd.f32 %v1859, %v1611
      %v1932 = vadd.f32 %v1860, %v1616
      %v1933 = vadd.f32 %v1861, %v1619
      %v1934 = vadd.f32 %v1862, %v1624
      %v1935 = vadd.f32 %v1863, %v1627
      %v1936 = vadd.f32 %v1864, %v1632
      %v1937 = vadd.f32 %v1865, %v1635
      %v1938 = vadd.f32 %v1866, %v1640
      %v1939 = vadd.f32 %v1867, %v1643
      %v1940 = vadd.f32 %v1868, %v1648
      %v1941 = vadd.f32 %v1869, %v1651
      %v1942 = vadd.f32 %v1870, %v1656
      %v1943 = vadd.f32 %v1871, %v1659
      %v1944 = vadd.f32 %v1872, %v1664
      %v1945 = vadd.f32 %v1873, %v1667
      %v1946 = vadd.f32 %v1874, %v1672
      %v1947 = vadd.f32 %v1875, %v1675
      %v1948 = vadd.f32 %v1876, %v1680
      %v1949 = vadd.f32 %v1877, %v1683
      %v1950 = vadd.f32 %v1878, %v1688
      %v1951 = vadd.f32 %v1879, %v1691
      %v1952 = vadd.f32 %v1880, %v1696
      %v1953 = vadd.f32 %v1881, %v1699
      %v1954 = vadd.f32 %v1882, %v1704
      %v1955 = vadd.f32 %v1883, %v1707
      %v1956 = vadd.f32 %v1884, %v1712
      %v1957 = vadd.f32 %v1885, %v1715
      %v1958 = vadd.f32 %v1886, %v1720
      %v1959 = vadd.f32 %v1887, %v1723
      %v1960 = vadd.f32 %v1888, %v1728
      %v1961 = vadd.f32 %v1889, %v1731
      %v1962 = vadd.f32 %v1890, %v1736
      %v1963 = vadd.f32 %v1891, %v1739
      %v1964 = vadd.f32 %v1892, %v1744
      %v1965 = vadd.f32 %v1893, %v1747
      %v1966 = vadd.f32 %v1894, %v1752
      %v1967 = vadd.f32 %v1895, %v1755
      %v1968 = vadd.f32 %v1896, %v1760
      %v1969 = vadd.f32 %v1897, %v1763
      %v1970 = vadd.f32 %v1898, %v1768
      %v1971 = vadd.f32 %v1899, %v1771
      %v1972 = vadd.f32 %v1900, %v1776
      %v1973 = vadd.f32 %v1901, %v1779
      %v1974 = vadd.f32 %v1902, %v1784
      %v1975 = vadd.f32 %v1903, %v1787
      %v1976 = vadd.f32 %v1904, %v1792
      %v1977 = vadd.f32 %v1905, %v1795
      %v1978 = vadd.f32 %v1906, %v1800
      %v1979 = vadd.f32 %v1907, %v1803
      %v1980 = vadd.f32 %v1908, %v1808
      %v1981 = vadd.f32 %v1909, %v1811
      %v1982 = vadd.f32 %v1910, %v1816
      %v1983 = vadd.f32 %v1911, %v1819
      %v1984 = vadd.f32 %v1912, %v1824
      %v1985 = vadd.f32 %v1913, %v1827
      %v1986 = vadd.f32 %v1914, %v1832
      %v1987 = vadd.f32 %v1915, %v1835
      %v1988 = vadd.f32 %v1916, %v1840
      %v1989 = vadd.f32 %v1917, %v1843
      %vm1990 = vcmask 130048
      %1991 = vst.msk [vmem:[#allocation2] sm:$0xff] %vm1990, %v1918
      %1992 = vst.msk [vmem:[#allocation2 + $0x8] sm:$0xff] %vm1990, %v1919
      %1993 = vst.msk [vmem:[#allocation2 + $0x10] sm:$0xff] %vm1990, %v1920
      %1994 = vst.msk [vmem:[#allocation2 + $0x18] sm:$0xff] %vm1990, %v1921
      %1995 = vst.msk [vmem:[#allocation2 + $0x20] sm:$0xff] %vm1990, %v1922
      %1996 = vst.msk [vmem:[#allocation2 + $0x28] sm:$0xff] %vm1990, %v1923
      %1997 = vst.msk [vmem:[#allocation2 + $0x30] sm:$0xff] %vm1990, %v1924
      %1998 = vst.msk [vmem:[#allocation2 + $0x38] sm:$0xff] %vm1990, %v1925
      %1999 = vst.msk [vmem:[#allocation2 + $0x40] sm:$0xff] %vm1990, %v1926
      %2000 = vst.msk [vmem:[#allocation2 + $0x48] sm:$0xff] %vm1990, %v1927
      %2001 = vst.msk [vmem:[#allocation2 + $0x50] sm:$0xff] %vm1990, %v1928
      %2002 = vst.msk [vmem:[#allocation2 + $0x58] sm:$0xff] %vm1990, %v1929
      %2003 = vst.msk [vmem:[#allocation2 + $0x60] sm:$0xff] %vm1990, %v1930
      %2004 = vst.msk [vmem:[#allocation2 + $0x68] sm:$0xff] %vm1990, %v1931
      %2005 = vst.msk [vmem:[#allocation2 + $0x70] sm:$0xff] %vm1990, %v1932
      %2006 = vst.msk [vmem:[#allocation2 + $0x78] sm:$0xff] %vm1990, %v1933
      %2007 = vst.msk [vmem:[#allocation2 + $0x80] sm:$0xff] %vm1990, %v1934
      %2008 = vst.msk [vmem:[#allocation2 + $0x88] sm:$0xff] %vm1990, %v1935
      %2009 = vst.msk [vmem:[#allocation2 + $0x90] sm:$0xff] %vm1990, %v1936
      %2010 = vst.msk [vmem:[#allocation2 + $0x98] sm:$0xff] %vm1990, %v1937
      %2011 = vst.msk [vmem:[#allocation2 + $0xa0] sm:$0xff] %vm1990, %v1938
      %2012 = vst.msk [vmem:[#allocation2 + $0xa8] sm:$0xff] %vm1990, %v1939
      %2013 = vst.msk [vmem:[#allocation2 + $0xb0] sm:$0xff] %vm1990, %v1940
      %2014 = vst.msk [vmem:[#allocation2 + $0xb8] sm:$0xff] %vm1990, %v1941
      %2015 = vst.msk [vmem:[#allocation2 + $0xc0] sm:$0xff] %vm1990, %v1942
      %2016 = vst.msk [vmem:[#allocation2 + $0xc8] sm:$0xff] %vm1990, %v1943
      %2017 = vst.msk [vmem:[#allocation2 + $0xd0] sm:$0xff] %vm1990, %v1944
      %2018 = vst.msk [vmem:[#allocation2 + $0xd8] sm:$0xff] %vm1990, %v1945
      %2019 = vst.msk [vmem:[#allocation2 + $0xe0] sm:$0xff] %vm1990, %v1946
      %2020 = vst.msk [vmem:[#allocation2 + $0xe8] sm:$0xff] %vm1990, %v1947
      %2021 = vst.msk [vmem:[#allocation2 + $0xf0] sm:$0xff] %vm1990, %v1948
      %2022 = vst.msk [vmem:[#allocation2 + $0xf8] sm:$0xff] %vm1990, %v1949
      %2023 = vst.msk [vmem:[#allocation2 + $0x100] sm:$0xff] %vm1990, %v1950
      %2024 = vst.msk [vmem:[#allocation2 + $0x108] sm:$0xff] %vm1990, %v1951
      %2025 = vst.msk [vmem:[#allocation2 + $0x110] sm:$0xff] %vm1990, %v1952
      %2026 = vst.msk [vmem:[#allocation2 + $0x118] sm:$0xff] %vm1990, %v1953
      %2027 = vst.msk [vmem:[#allocation2 + $0x120] sm:$0xff] %vm1990, %v1954
      %2028 = vst.msk [vmem:[#allocation2 + $0x128] sm:$0xff] %vm1990, %v1955
      %2029 = vst.msk [vmem:[#allocation2 + $0x130] sm:$0xff] %vm1990, %v1956
      %2030 = vst.msk [vmem:[#allocation2 + $0x138] sm:$0xff] %vm1990, %v1957
      %2031 = vst.msk [vmem:[#allocation2 + $0x140] sm:$0xff] %vm1990, %v1958
      %2032 = vst.msk [vmem:[#allocation2 + $0x148] sm:$0xff] %vm1990, %v1959
      %2033 = vst.msk [vmem:[#allocation2 + $0x150] sm:$0xff] %vm1990, %v1960
      %2034 = vst.msk [vmem:[#allocation2 + $0x158] sm:$0xff] %vm1990, %v1961
      %2035 = vst.msk [vmem:[#allocation2 + $0x160] sm:$0xff] %vm1990, %v1962
      %2036 = vst.msk [vmem:[#allocation2 + $0x168] sm:$0xff] %vm1990, %v1963
      %2037 = vst.msk [vmem:[#allocation2 + $0x170] sm:$0xff] %vm1990, %v1964
      %2038 = vst.msk [vmem:[#allocation2 + $0x178] sm:$0xff] %vm1990, %v1965
      %2039 = vst.msk [vmem:[#allocation2 + $0x180] sm:$0xff] %vm1990, %v1966
      %2040 = vst.msk [vmem:[#allocation2 + $0x188] sm:$0xff] %vm1990, %v1967
      %2041 = vst.msk [vmem:[#allocation2 + $0x190] sm:$0xff] %vm1990, %v1968
      %2042 = vst.msk [vmem:[#allocation2 + $0x198] sm:$0xff] %vm1990, %v1969
      %2043 = vst.msk [vmem:[#allocation2 + $0x1a0] sm:$0xff] %vm1990, %v1970
      %2044 = vst.msk [vmem:[#allocation2 + $0x1a8] sm:$0xff] %vm1990, %v1971
      %2045 = vst.msk [vmem:[#allocation2 + $0x1b0] sm:$0xff] %vm1990, %v1972
      %2046 = vst.msk [vmem:[#allocation2 + $0x1b8] sm:$0xff] %vm1990, %v1973
      %2047 = vst.msk [vmem:[#allocation2 + $0x1c0] sm:$0xff] %vm1990, %v1974
      %2048 = vst.msk [vmem:[#allocation2 + $0x1c8] sm:$0xff] %vm1990, %v1975
      %2049 = vst.msk [vmem:[#allocation2 + $0x1d0] sm:$0xff] %vm1990, %v1976
      %2050 = vst.msk [vmem:[#allocation2 + $0x1d8] sm:$0xff] %vm1990, %v1977
      %2051 = vst.msk [vmem:[#allocation2 + $0x1e0] sm:$0xff] %vm1990, %v1978
      %2052 = vst.msk [vmem:[#allocation2 + $0x1e8] sm:$0xff] %vm1990, %v1979
      %2053 = vst.msk [vmem:[#allocation2 + $0x1f0] sm:$0xff] %vm1990, %v1980
      %2054 = vst.msk [vmem:[#allocation2 + $0x1f8] sm:$0xff] %vm1990, %v1981
      %2055 = vst.msk [vmem:[#allocation2 + $0x200] sm:$0xff] %vm1990, %v1982
      %2056 = vst.msk [vmem:[#allocation2 + $0x208] sm:$0xff] %vm1990, %v1983
      %2057 = vst.msk [vmem:[#allocation2 + $0x210] sm:$0xff] %vm1990, %v1984
      %2058 = vst.msk [vmem:[#allocation2 + $0x218] sm:$0xff] %vm1990, %v1985
      %2059 = vst.msk [vmem:[#allocation2 + $0x220] sm:$0xff] %vm1990, %v1986
      %2060 = vst.msk [vmem:[#allocation2 + $0x228] sm:$0xff] %vm1990, %v1987
      %2061 = vst.msk [vmem:[#allocation2 + $0x230] sm:$0xff] %vm1990, %v1988
      %2062 = vst.msk [vmem:[#allocation2 + $0x238] sm:$0xff] %vm1990, %v1989
      %s2063 = scalar_lea.vmem %s281, 192
      %v2064 = vld [vmem:[%s2063] sm:$0xf]
      %v2065 = vld [vmem:[%s2063 + $0x4] sm:$0xf]
      %v2066 = vld [vmem:[%s2063 + $0x8] sm:$0xf]
      %v2067 = vld [vmem:[%s2063 + $0xc] sm:$0xf]
      %v2068 = vld [vmem:[%s2063 + $0x10] sm:$0xf]
      %v2069 = vld [vmem:[%s2063 + $0x14] sm:$0xf]
      %v2070 = vld [vmem:[%s2063 + $0x18] sm:$0xf]
      %v2071 = vld [vmem:[%s2063 + $0x1c] sm:$0xf]
      %v2075 = vunpack.c.l.b16 %v398
      %v2076 = vunpack.c.l.b16 %v399
      %v2077 = vunpack.c.l.b16 %v400
      %v2078 = vpack.c.b16 %v1355, %v1354
      %v2079 = vpack.c.b16 %v2075, %v1356
      %v2080 = vpack.c.b16 %v2077, %v2076
      %v2089 = vunpack.c.l.b16 %v2064
      %v2090 = vunpack.c.l.b16 %v2065
      %v2091 = vunpack.c.l.b16 %v2066
      %v2092 = vunpack.c.l.b16 %v2067
      %v2093 = vunpack.c.l.b16 %v2068
      %v2094 = vunpack.c.l.b16 %v2069
      %v2095 = vunpack.c.l.b16 %v2070
      %v2096 = vunpack.c.l.b16 %v2071
      %v2097 = vpack.c.b16 %v2090, %v2089
      %v2098 = vpack.c.b16 %v2092, %v2091
      %v2099 = vpack.c.b16 %v2094, %v2093
      %v2100 = vpack.c.b16 %v2096, %v2095
      %v2106 = vsel %vm614, %v2078, 0
      %v2109 = vsel %vm614, %v2079, 0
      %v2112 = vsel %vm614, %v2080, 0
      %2114 = vmatprep.subr.bf16.mxu0 0
      %2115 = vmatpush1.bf16.msra.mxu0 %v2097
      %2116 = vmatprep.subr.bf16.mxu0 0
      %2117 = vmatpush1.bf16.msra.mxu0 %v2098
      %2118 = vmatprep.subr.bf16.mxu0 0
      %2119 = vmatpush1.bf16.msra.mxu0 %v2099
      %2120 = vmatprep.subr.bf16.mxu0 0
      %2121 = vmatpush1.bf16.msra.mxu0 %v2100
      %2122 = vmatprep.subr.bf16.mxu0 0
      %2123 = vmatpush1.bf16.msra.mxu0 0
      %2124 = vmatprep.subr.bf16.mxu0 0
      %2125 = vmatpush1.bf16.msra.mxu0 0
      %2126 = vmatprep.subr.bf16.mxu0 0
      %2127 = vmatpush1.bf16.msra.mxu0 0
      %2128 = vmatprep.subr.bf16.mxu0 0
      %2129 = vmatpush1.bf16.msra.mxu0 0
      %2130 = vmatprep.subr.bf16.mxu0 0
      %2131 = vmatpush1.bf16.msra.mxu0 0
      %2132 = vmatprep.subr.bf16.mxu0 0
      %2133 = vmatpush1.bf16.msra.mxu0 0
      %2134 = vmatprep.subr.bf16.mxu0 0
      %2135 = vmatpush1.bf16.msra.mxu0 0
      %2136 = vmatprep.subr.bf16.mxu0 0
      %2137 = vmatpush1.bf16.msra.mxu0 0
      %2138 = vmatprep.subr.bf16.mxu0 0
      %2139 = vmatpush1.bf16.msra.mxu0 0
      %2140 = vmatprep.subr.bf16.mxu0 0
      %2141 = vmatpush1.bf16.msra.mxu0 0
      %2142 = vmatprep.subr.bf16.mxu0 0
      %2143 = vmatpush1.bf16.msra.mxu0 0
      %2144 = vmatprep.subr.bf16.mxu0 0
      %2145 = vmatpush1.bf16.msra.mxu0 0
      %2146 = vmatprep.mubr.bf16.mxu0 0
      %2147 = vmatmul.mubr.bf16.gmra.mrb[0].mxu0 %v625
      %v2148 = vpop.f32.mrb[0].mxu0
      %v2149 = vadd.f32 0.0, %v2148
      %v2150 = vpop.f32.mrb[0].mxu0
      %v2151 = vpop.f32.mrb[0].mxu0
      %v2152 = vadd.f32 0.0, %v2151
      %v2153 = vpop.f32.mrb[0].mxu0
      %2154 = vmatprep.mubr.bf16.mxu0 0
      %2155 = vmatmul.mubr.bf16.gmra.mrb[0].mxu0 %v628
      %v2156 = vpop.f32.mrb[0].mxu0
      %v2157 = vadd.f32 0.0, %v2156
      %v2158 = vpop.f32.mrb[0].mxu0
      %v2159 = vpop.f32.mrb[0].mxu0
      %v2160 = vadd.f32 0.0, %v2159
      %v2161 = vpop.f32.mrb[0].mxu0
      %2162 = vmatprep.mubr.bf16.mxu0 0
      %2163 = vmatmul.mubr.bf16.gmra.mrb[0].mxu0 %v631
      %v2164 = vpop.f32.mrb[0].mxu0
      %v2165 = vadd.f32 0.0, %v2164
      %v2166 = vpop.f32.mrb[0].mxu0
      %v2167 = vpop.f32.mrb[0].mxu0
      %v2168 = vadd.f32 0.0, %v2167
      %v2169 = vpop.f32.mrb[0].mxu0
      %2170 = vmatprep.mubr.bf16.mxu0 0
      %2171 = vmatmul.mubr.bf16.gmra.mrb[0].mxu0 %v634
      %v2172 = vpop.f32.mrb[0].mxu0
      %v2173 = vadd.f32 0.0, %v2172
      %v2174 = vpop.f32.mrb[0].mxu0
      %v2175 = vpop.f32.mrb[0].mxu0
      %v2176 = vadd.f32 0.0, %v2175
      %v2177 = vpop.f32.mrb[0].mxu0
      %2178 = vmatprep.mubr.bf16.mxu0 0
      %2179 = vmatmul.mubr.bf16.gmra.mrb[0].mxu0 %v637
      %v2180 = vpop.f32.mrb[0].mxu0
      %v2181 = vadd.f32 0.0, %v2180
      %v2182 = vpop.f32.mrb[0].mxu0
      %v2183 = vpop.f32.mrb[0].mxu0
      %v2184 = vadd.f32 0.0, %v2183
      %v2185 = vpop.f32.mrb[0].mxu0
      %2186 = vmatprep.mubr.bf16.mxu0 0
      %2187 = vmatmul.mubr.bf16.gmra.mrb[0].mxu0 %v640
      %v2188 = vpop.f32.mrb[0].mxu0
      %v2189 = vadd.f32 0.0, %v2188
      %v2190 = vpop.f32.mrb[0].mxu0
      %v2191 = vpop.f32.mrb[0].mxu0
      %v2192 = vadd.f32 0.0, %v2191
      %v2193 = vpop.f32.mrb[0].mxu0
      %2194 = vmatprep.mubr.bf16.mxu0 0
      %2195 = vmatmul.mubr.bf16.gmra.mrb[0].mxu0 %v643
      %v2196 = vpop.f32.mrb[0].mxu0
      %v2197 = vadd.f32 0.0, %v2196
      %v2198 = vpop.f32.mrb[0].mxu0
      %v2199 = vpop.f32.mrb[0].mxu0
      %v2200 = vadd.f32 0.0, %v2199
      %v2201 = vpop.f32.mrb[0].mxu0
      %2202 = vmatprep.mubr.bf16.mxu0 0
      %2203 = vmatmul.mubr.bf16.gmra.mrb[0].mxu0 %v646
      %v2204 = vpop.f32.mrb[0].mxu0
      %v2205 = vadd.f32 0.0, %v2204
      %v2206 = vpop.f32.mrb[0].mxu0
      %v2207 = vpop.f32.mrb[0].mxu0
      %v2208 = vadd.f32 0.0, %v2207
      %v2209 = vpop.f32.mrb[0].mxu0
      %2210 = vmatprep.mubr.bf16.mxu0 0
      %2211 = vmatmul.mubr.bf16.gmra.mrb[0].mxu0 %v649
      %v2212 = vpop.f32.mrb[0].mxu0
      %v2213 = vadd.f32 0.0, %v2212
      %v2214 = vpop.f32.mrb[0].mxu0
      %v2215 = vpop.f32.mrb[0].mxu0
      %v2216 = vadd.f32 0.0, %v2215
      %v2217 = vpop.f32.mrb[0].mxu0
      %2218 = vmatprep.mubr.bf16.mxu0 0
      %2219 = vmatmul.mubr.bf16.gmra.mrb[0].mxu0 %v652
      %v2220 = vpop.f32.mrb[0].mxu0
      %v2221 = vadd.f32 0.0, %v2220
      %v2222 = vpop.f32.mrb[0].mxu0
      %v2223 = vpop.f32.mrb[0].mxu0
      %v2224 = vadd.f32 0.0, %v2223
      %v2225 = vpop.f32.mrb[0].mxu0
      %2226 = vmatprep.mubr.bf16.mxu0 0
      %2227 = vmatmul.mubr.bf16.gmra.mrb[0].mxu0 %v655
      %v2228 = vpop.f32.mrb[0].mxu0
      %v2229 = vadd.f32 0.0, %v2228
      %v2230 = vpop.f32.mrb[0].mxu0
      %v2231 = vpop.f32.mrb[0].mxu0
      %v2232 = vadd.f32 0.0, %v2231
      %v2233 = vpop.f32.mrb[0].mxu0
      %2234 = vmatprep.mubr.bf16.mxu0 0
      %2235 = vmatmul.mubr.bf16.gmra.mrb[0].mxu0 %v658
      %v2236 = vpop.f32.mrb[0].mxu0
      %v2237 = vadd.f32 0.0, %v2236
      %v2238 = vpop.f32.mrb[0].mxu0
      %v2239 = vpop.f32.mrb[0].mxu0
      %v2240 = vadd.f32 0.0, %v2239
      %v2241 = vpop.f32.mrb[0].mxu0
      %2242 = vmatprep.mubr.bf16.mxu0 0
      %2243 = vmatmul.mubr.bf16.gmra.mrb[0].mxu0 %v661
      %v2244 = vpop.f32.mrb[0].mxu0
      %v2245 = vadd.f32 0.0, %v2244
      %v2246 = vpop.f32.mrb[0].mxu0
      %v2247 = vpop.f32.mrb[0].mxu0
      %v2248 = vadd.f32 0.0, %v2247
      %v2249 = vpop.f32.mrb[0].mxu0
      %2250 = vmatprep.mubr.bf16.mxu0 0
      %2251 = vmatmul.mubr.bf16.gmra.mrb[0].mxu0 %v664
      %v2252 = vpop.f32.mrb[0].mxu0
      %v2253 = vadd.f32 0.0, %v2252
      %v2254 = vpop.f32.mrb[0].mxu0
      %v2255 = vpop.f32.mrb[0].mxu0
      %v2256 = vadd.f32 0.0, %v2255
      %v2257 = vpop.f32.mrb[0].mxu0
      %2258 = vmatprep.mubr.bf16.mxu0 0
      %2259 = vmatmul.mubr.bf16.gmra.mrb[0].mxu0 %v667
      %v2260 = vpop.f32.mrb[0].mxu0
      %v2261 = vadd.f32 0.0, %v2260
      %v2262 = vpop.f32.mrb[0].mxu0
      %v2263 = vpop.f32.mrb[0].mxu0
      %v2264 = vadd.f32 0.0, %v2263
      %v2265 = vpop.f32.mrb[0].mxu0
      %2266 = vmatprep.mubr.bf16.mxu0 0
      %2267 = vmatmul.mubr.bf16.gmra.mrb[0].mxu0 %v670
      %v2268 = vpop.f32.mrb[0].mxu0
      %v2269 = vadd.f32 0.0, %v2268
      %v2270 = vpop.f32.mrb[0].mxu0
      %v2271 = vpop.f32.mrb[0].mxu0
      %v2272 = vadd.f32 0.0, %v2271
      %v2273 = vpop.f32.mrb[0].mxu0
      %2274 = vmatprep.mubr.bf16.mxu0 0
      %2275 = vmatmul.mubr.bf16.gmra.mrb[0].mxu0 %v673
      %v2276 = vpop.f32.mrb[0].mxu0
      %v2277 = vadd.f32 0.0, %v2276
      %v2278 = vpop.f32.mrb[0].mxu0
      %v2279 = vpop.f32.mrb[0].mxu0
      %v2280 = vadd.f32 0.0, %v2279
      %v2281 = vpop.f32.mrb[0].mxu0
      %2282 = vmatprep.mubr.bf16.mxu0 0
      %2283 = vmatmul.mubr.bf16.gmra.mrb[0].mxu0 %v676
      %v2284 = vpop.f32.mrb[0].mxu0
      %v2285 = vadd.f32 0.0, %v2284
      %v2286 = vpop.f32.mrb[0].mxu0
      %v2287 = vpop.f32.mrb[0].mxu0
      %v2288 = vadd.f32 0.0, %v2287
      %v2289 = vpop.f32.mrb[0].mxu0
      %2290 = vmatprep.mubr.bf16.mxu0 0
      %2291 = vmatmul.mubr.bf16.gmra.mrb[0].mxu0 %v679
      %v2292 = vpop.f32.mrb[0].mxu0
      %v2293 = vadd.f32 0.0, %v2292
      %v2294 = vpop.f32.mrb[0].mxu0
      %v2295 = vpop.f32.mrb[0].mxu0
      %v2296 = vadd.f32 0.0, %v2295
      %v2297 = vpop.f32.mrb[0].mxu0
      %2298 = vmatprep.mubr.bf16.mxu0 0
      %2299 = vmatmul.mubr.bf16.gmra.mrb[0].mxu0 %v682
      %v2300 = vpop.f32.mrb[0].mxu0
      %v2301 = vadd.f32 0.0, %v2300
      %v2302 = vpop.f32.mrb[0].mxu0
      %v2303 = vpop.f32.mrb[0].mxu0
      %v2304 = vadd.f32 0.0, %v2303
      %v2305 = vpop.f32.mrb[0].mxu0
      %2306 = vmatprep.mubr.bf16.mxu0 0
      %2307 = vmatmul.mubr.bf16.gmra.mrb[0].mxu0 %v685
      %v2308 = vpop.f32.mrb[0].mxu0
      %v2309 = vadd.f32 0.0, %v2308
      %v2310 = vpop.f32.mrb[0].mxu0
      %v2311 = vpop.f32.mrb[0].mxu0
      %v2312 = vadd.f32 0.0, %v2311
      %v2313 = vpop.f32.mrb[0].mxu0
      %2314 = vmatprep.mubr.bf16.mxu0 0
      %2315 = vmatmul.mubr.bf16.gmra.mrb[0].mxu0 %v688
      %v2316 = vpop.f32.mrb[0].mxu0
      %v2317 = vadd.f32 0.0, %v2316
      %v2318 = vpop.f32.mrb[0].mxu0
      %v2319 = vpop.f32.mrb[0].mxu0
      %v2320 = vadd.f32 0.0, %v2319
      %v2321 = vpop.f32.mrb[0].mxu0
      %2322 = vmatprep.mubr.bf16.mxu0 0
      %2323 = vmatmul.mubr.bf16.gmra.mrb[0].mxu0 %v691
      %v2324 = vpop.f32.mrb[0].mxu0
      %v2325 = vadd.f32 0.0, %v2324
      %v2326 = vpop.f32.mrb[0].mxu0
      %v2327 = vpop.f32.mrb[0].mxu0
      %v2328 = vadd.f32 0.0, %v2327
      %v2329 = vpop.f32.mrb[0].mxu0
      %2330 = vmatprep.mubr.bf16.mxu0 0
      %2331 = vmatmul.mubr.bf16.gmra.mrb[0].mxu0 %v694
      %v2332 = vpop.f32.mrb[0].mxu0
      %v2333 = vadd.f32 0.0, %v2332
      %v2334 = vpop.f32.mrb[0].mxu0
      %v2335 = vpop.f32.mrb[0].mxu0
      %v2336 = vadd.f32 0.0, %v2335
      %v2337 = vpop.f32.mrb[0].mxu0
      %2338 = vmatprep.mubr.bf16.mxu0 0
      %2339 = vmatmul.mubr.bf16.gmra.mrb[0].mxu0 %v697
      %v2340 = vpop.f32.mrb[0].mxu0
      %v2341 = vadd.f32 0.0, %v2340
      %v2342 = vpop.f32.mrb[0].mxu0
      %v2343 = vpop.f32.mrb[0].mxu0
      %v2344 = vadd.f32 0.0, %v2343
      %v2345 = vpop.f32.mrb[0].mxu0
      %2346 = vmatprep.mubr.bf16.mxu0 0
      %2347 = vmatmul.mubr.bf16.gmra.mrb[0].mxu0 %v700
      %v2348 = vpop.f32.mrb[0].mxu0
      %v2349 = vadd.f32 0.0, %v2348
      %v2350 = vpop.f32.mrb[0].mxu0
      %v2351 = vpop.f32.mrb[0].mxu0
      %v2352 = vadd.f32 0.0, %v2351
      %v2353 = vpop.f32.mrb[0].mxu0
      %2354 = vmatprep.mubr.bf16.mxu0 0
      %2355 = vmatmul.mubr.bf16.gmra.mrb[0].mxu0 %v703
      %v2356 = vpop.f32.mrb[0].mxu0
      %v2357 = vadd.f32 0.0, %v2356
      %v2358 = vpop.f32.mrb[0].mxu0
      %v2359 = vpop.f32.mrb[0].mxu0
      %v2360 = vadd.f32 0.0, %v2359
      %v2361 = vpop.f32.mrb[0].mxu0
      %2362 = vmatprep.mubr.bf16.mxu0 0
      %2363 = vmatmul.mubr.bf16.gmra.mrb[0].mxu0 %v706
      %v2364 = vpop.f32.mrb[0].mxu0
      %v2365 = vadd.f32 0.0, %v2364
      %v2366 = vpop.f32.mrb[0].mxu0
      %v2367 = vpop.f32.mrb[0].mxu0
      %v2368 = vadd.f32 0.0, %v2367
      %v2369 = vpop.f32.mrb[0].mxu0
      %2370 = vmatprep.mubr.bf16.mxu0 0
      %2371 = vmatmul.mubr.bf16.gmra.mrb[0].mxu0 %v709
      %v2372 = vpop.f32.mrb[0].mxu0
      %v2373 = vadd.f32 0.0, %v2372
      %v2374 = vpop.f32.mrb[0].mxu0
      %v2375 = vpop.f32.mrb[0].mxu0
      %v2376 = vadd.f32 0.0, %v2375
      %v2377 = vpop.f32.mrb[0].mxu0
      %2378 = vmatprep.mubr.bf16.mxu0 0
      %2379 = vmatmul.mubr.bf16.gmra.mrb[0].mxu0 %v712
      %v2380 = vpop.f32.mrb[0].mxu0
      %v2381 = vadd.f32 0.0, %v2380
      %v2382 = vpop.f32.mrb[0].mxu0
      %v2383 = vpop.f32.mrb[0].mxu0
      %v2384 = vadd.f32 0.0, %v2383
      %v2385 = vpop.f32.mrb[0].mxu0
      %2386 = vmatprep.mubr.bf16.mxu0 0
      %2387 = vmatmul.mubr.bf16.gmra.mrb[0].mxu0 %v715
      %v2388 = vpop.f32.mrb[0].mxu0
      %v2389 = vadd.f32 0.0, %v2388
      %v2390 = vpop.f32.mrb[0].mxu0
      %v2391 = vpop.f32.mrb[0].mxu0
      %v2392 = vadd.f32 0.0, %v2391
      %v2393 = vpop.f32.mrb[0].mxu0
      %2394 = vmatprep.mubr.bf16.mxu0 0
      %2395 = vmatmul.mubr.bf16.gmra.mrb[0].mxu0 %v718
      %v2396 = vpop.f32.mrb[0].mxu0
      %v2397 = vadd.f32 0.0, %v2396
      %v2398 = vpop.f32.mrb[0].mxu0
      %v2399 = vpop.f32.mrb[0].mxu0
      %v2400 = vadd.f32 0.0, %v2399
      %v2401 = vpop.f32.mrb[0].mxu0
      %2402 = vmatprep.mubr.bf16.mxu0 0
      %2403 = vmatmul.mubr.bf16.gmra.mrb[0].mxu0 %v721
      %v2404 = vpop.f32.mrb[0].mxu0
      %v2405 = vadd.f32 0.0, %v2404
      %v2406 = vpop.f32.mrb[0].mxu0
      %v2407 = vpop.f32.mrb[0].mxu0
      %v2408 = vadd.f32 0.0, %v2407
      %v2409 = vpop.f32.mrb[0].mxu0
      %2410 = vmatprep.mubr.bf16.mxu0 0
      %2411 = vmatmul.mubr.bf16.gmra.mrb[0].mxu0 %v2106
      %v2412 = vpop.f32.mrb[0].mxu0
      %v2413 = vadd.f32 0.0, %v2412
      %v2414 = vpop.f32.mrb[0].mxu0
      %v2415 = vpop.f32.mrb[0].mxu0
      %v2416 = vadd.f32 0.0, %v2415
      %v2417 = vpop.f32.mrb[0].mxu0
      %2418 = vmatprep.mubr.bf16.mxu0 0
      %2419 = vmatmul.mubr.bf16.gmra.mrb[0].mxu0 %v2109
      %v2420 = vpop.f32.mrb[0].mxu0
      %v2421 = vadd.f32 0.0, %v2420
      %v2422 = vpop.f32.mrb[0].mxu0
      %v2423 = vpop.f32.mrb[0].mxu0
      %v2424 = vadd.f32 0.0, %v2423
      %v2425 = vpop.f32.mrb[0].mxu0
      %2426 = vmatprep.mubr.bf16.mxu0 0
      %2427 = vmatmul.mubr.bf16.gmra.mrb[0].mxu0 %v2112
      %v2428 = vpop.f32.mrb[0].mxu0
      %v2429 = vadd.f32 0.0, %v2428
      %v2430 = vpop.f32.mrb[0].mxu0
      %v2431 = vpop.f32.mrb[0].mxu0
      %v2432 = vadd.f32 0.0, %v2431
      %v2433 = vpop.f32.mrb[0].mxu0
      %2434 = vdwg.mxu0
      %v2435 = vld [vmem:[#allocation2] sm:$0xff]
      %v2436 = vld [vmem:[#allocation2 + $0x8] sm:$0xff]
      %v2437 = vld [vmem:[#allocation2 + $0x10] sm:$0xff]
      %v2438 = vld [vmem:[#allocation2 + $0x18] sm:$0xff]
      %v2439 = vld [vmem:[#allocation2 + $0x20] sm:$0xff]
      %v2440 = vld [vmem:[#allocation2 + $0x28] sm:$0xff]
      %v2441 = vld [vmem:[#allocation2 + $0x30] sm:$0xff]
      %v2442 = vld [vmem:[#allocation2 + $0x38] sm:$0xff]
      %v2443 = vld [vmem:[#allocation2 + $0x40] sm:$0xff]
      %v2444 = vld [vmem:[#allocation2 + $0x48] sm:$0xff]
      %v2445 = vld [vmem:[#allocation2 + $0x50] sm:$0xff]
      %v2446 = vld [vmem:[#allocation2 + $0x58] sm:$0xff]
      %v2447 = vld [vmem:[#allocation2 + $0x60] sm:$0xff]
      %v2448 = vld [vmem:[#allocation2 + $0x68] sm:$0xff]
      %v2449 = vld [vmem:[#allocation2 + $0x70] sm:$0xff]
      %v2450 = vld [vmem:[#allocation2 + $0x78] sm:$0xff]
      %v2451 = vld [vmem:[#allocation2 + $0x80] sm:$0xff]
      %v2452 = vld [vmem:[#allocation2 + $0x88] sm:$0xff]
      %v2453 = vld [vmem:[#allocation2 + $0x90] sm:$0xff]
      %v2454 = vld [vmem:[#allocation2 + $0x98] sm:$0xff]
      %v2455 = vld [vmem:[#allocation2 + $0xa0] sm:$0xff]
      %v2456 = vld [vmem:[#allocation2 + $0xa8] sm:$0xff]
      %v2457 = vld [vmem:[#allocation2 + $0xb0] sm:$0xff]
      %v2458 = vld [vmem:[#allocation2 + $0xb8] sm:$0xff]
      %v2459 = vld [vmem:[#allocation2 + $0xc0] sm:$0xff]
      %v2460 = vld [vmem:[#allocation2 + $0xc8] sm:$0xff]
      %v2461 = vld [vmem:[#allocation2 + $0xd0] sm:$0xff]
      %v2462 = vld [vmem:[#allocation2 + $0xd8] sm:$0xff]
      %v2463 = vld [vmem:[#allocation2 + $0xe0] sm:$0xff]
      %v2464 = vld [vmem:[#allocation2 + $0xe8] sm:$0xff]
      %v2465 = vld [vmem:[#allocation2 + $0xf0] sm:$0xff]
      %v2466 = vld [vmem:[#allocation2 + $0xf8] sm:$0xff]
      %v2467 = vld [vmem:[#allocation2 + $0x100] sm:$0xff]
      %v2468 = vld [vmem:[#allocation2 + $0x108] sm:$0xff]
      %v2469 = vld [vmem:[#allocation2 + $0x110] sm:$0xff]
      %v2470 = vld [vmem:[#allocation2 + $0x118] sm:$0xff]
      %v2471 = vld [vmem:[#allocation2 + $0x120] sm:$0xff]
      %v2472 = vld [vmem:[#allocation2 + $0x128] sm:$0xff]
      %v2473 = vld [vmem:[#allocation2 + $0x130] sm:$0xff]
      %v2474 = vld [vmem:[#allocation2 + $0x138] sm:$0xff]
      %v2475 = vld [vmem:[#allocation2 + $0x140] sm:$0xff]
      %v2476 = vld [vmem:[#allocation2 + $0x148] sm:$0xff]
      %v2477 = vld [vmem:[#allocation2 + $0x150] sm:$0xff]
      %v2478 = vld [vmem:[#allocation2 + $0x158] sm:$0xff]
      %v2479 = vld [vmem:[#allocation2 + $0x160] sm:$0xff]
      %v2480 = vld [vmem:[#allocation2 + $0x168] sm:$0xff]
      %v2481 = vld [vmem:[#allocation2 + $0x170] sm:$0xff]
      %v2482 = vld [vmem:[#allocation2 + $0x178] sm:$0xff]
      %v2483 = vld [vmem:[#allocation2 + $0x180] sm:$0xff]
      %v2484 = vld [vmem:[#allocation2 + $0x188] sm:$0xff]
      %v2485 = vld [vmem:[#allocation2 + $0x190] sm:$0xff]
      %v2486 = vld [vmem:[#allocation2 + $0x198] sm:$0xff]
      %v2487 = vld [vmem:[#allocation2 + $0x1a0] sm:$0xff]
      %v2488 = vld [vmem:[#allocation2 + $0x1a8] sm:$0xff]
      %v2489 = vld [vmem:[#allocation2 + $0x1b0] sm:$0xff]
      %v2490 = vld [vmem:[#allocation2 + $0x1b8] sm:$0xff]
      %v2491 = vld [vmem:[#allocation2 + $0x1c0] sm:$0xff]
      %v2492 = vld [vmem:[#allocation2 + $0x1c8] sm:$0xff]
      %v2493 = vld [vmem:[#allocation2 + $0x1d0] sm:$0xff]
      %v2494 = vld [vmem:[#allocation2 + $0x1d8] sm:$0xff]
      %v2495 = vld [vmem:[#allocation2 + $0x1e0] sm:$0xff]
      %v2496 = vld [vmem:[#allocation2 + $0x1e8] sm:$0xff]
      %v2497 = vld [vmem:[#allocation2 + $0x1f0] sm:$0xff]
      %v2498 = vld [vmem:[#allocation2 + $0x1f8] sm:$0xff]
      %v2499 = vld [vmem:[#allocation2 + $0x200] sm:$0xff]
      %v2500 = vld [vmem:[#allocation2 + $0x208] sm:$0xff]
      %v2501 = vld [vmem:[#allocation2 + $0x210] sm:$0xff]
      %v2502 = vld [vmem:[#allocation2 + $0x218] sm:$0xff]
      %v2503 = vld [vmem:[#allocation2 + $0x220] sm:$0xff]
      %v2504 = vld [vmem:[#allocation2 + $0x228] sm:$0xff]
      %v2505 = vld [vmem:[#allocation2 + $0x230] sm:$0xff]
      %v2506 = vld [vmem:[#allocation2 + $0x238] sm:$0xff]
      %v2507 = vadd.f32 %v2435, %v2149
      %v2508 = vadd.f32 %v2436, %v2152
      %v2509 = vadd.f32 %v2437, %v2157
      %v2510 = vadd.f32 %v2438, %v2160
      %v2511 = vadd.f32 %v2439, %v2165
      %v2512 = vadd.f32 %v2440, %v2168
      %v2513 = vadd.f32 %v2441, %v2173
      %v2514 = vadd.f32 %v2442, %v2176
      %v2515 = vadd.f32 %v2443, %v2181
      %v2516 = vadd.f32 %v2444, %v2184
      %v2517 = vadd.f32 %v2445, %v2189
      %v2518 = vadd.f32 %v2446, %v2192
      %v2519 = vadd.f32 %v2447, %v2197
      %v2520 = vadd.f32 %v2448, %v2200
      %v2521 = vadd.f32 %v2449, %v2205
      %v2522 = vadd.f32 %v2450, %v2208
      %v2523 = vadd.f32 %v2451, %v2213
      %v2524 = vadd.f32 %v2452, %v2216
      %v2525 = vadd.f32 %v2453, %v2221
      %v2526 = vadd.f32 %v2454, %v2224
      %v2527 = vadd.f32 %v2455, %v2229
      %v2528 = vadd.f32 %v2456, %v2232
      %v2529 = vadd.f32 %v2457, %v2237
      %v2530 = vadd.f32 %v2458, %v2240
      %v2531 = vadd.f32 %v2459, %v2245
      %v2532 = vadd.f32 %v2460, %v2248
      %v2533 = vadd.f32 %v2461, %v2253
      %v2534 = vadd.f32 %v2462, %v2256
      %v2535 = vadd.f32 %v2463, %v2261
      %v2536 = vadd.f32 %v2464, %v2264
      %v2537 = vadd.f32 %v2465, %v2269
      %v2538 = vadd.f32 %v2466, %v2272
      %v2539 = vadd.f32 %v2467, %v2277
      %v2540 = vadd.f32 %v2468, %v2280
      %v2541 = vadd.f32 %v2469, %v2285
      %v2542 = vadd.f32 %v2470, %v2288
      %v2543 = vadd.f32 %v2471, %v2293
      %v2544 = vadd.f32 %v2472, %v2296
      %v2545 = vadd.f32 %v2473, %v2301
      %v2546 = vadd.f32 %v2474, %v2304
      %v2547 = vadd.f32 %v2475, %v2309
      %v2548 = vadd.f32 %v2476, %v2312
      %v2549 = vadd.f32 %v2477, %v2317
      %v2550 = vadd.f32 %v2478, %v2320
      %v2551 = vadd.f32 %v2479, %v2325
      %v2552 = vadd.f32 %v2480, %v2328
      %v2553 = vadd.f32 %v2481, %v2333
      %v2554 = vadd.f32 %v2482, %v2336
      %v2555 = vadd.f32 %v2483, %v2341
      %v2556 = vadd.f32 %v2484, %v2344
      %v2557 = vadd.f32 %v2485, %v2349
      %v2558 = vadd.f32 %v2486, %v2352
      %v2559 = vadd.f32 %v2487, %v2357
      %v2560 = vadd.f32 %v2488, %v2360
      %v2561 = vadd.f32 %v2489, %v2365
      %v2562 = vadd.f32 %v2490, %v2368
      %v2563 = vadd.f32 %v2491, %v2373
      %v2564 = vadd.f32 %v2492, %v2376
      %v2565 = vadd.f32 %v2493, %v2381
      %v2566 = vadd.f32 %v2494, %v2384
      %v2567 = vadd.f32 %v2495, %v2389
      %v2568 = vadd.f32 %v2496, %v2392
      %v2569 = vadd.f32 %v2497, %v2397
      %v2570 = vadd.f32 %v2498, %v2400
      %v2571 = vadd.f32 %v2499, %v2405
      %v2572 = vadd.f32 %v2500, %v2408
      %v2573 = vadd.f32 %v2501, %v2413
      %v2574 = vadd.f32 %v2502, %v2416
      %v2575 = vadd.f32 %v2503, %v2421
      %v2576 = vadd.f32 %v2504, %v2424
      %v2577 = vadd.f32 %v2505, %v2429
      %v2578 = vadd.f32 %v2506, %v2432
      %2579 = vst.msk [vmem:[#allocation2] sm:$0xff] %vm1990, %v2507
      %2580 = vst.msk [vmem:[#allocation2 + $0x8] sm:$0xff] %vm1990, %v2508
      %2581 = vst.msk [vmem:[#allocation2 + $0x10] sm:$0xff] %vm1990, %v2509
      %2582 = vst.msk [vmem:[#allocation2 + $0x18] sm:$0xff] %vm1990, %v2510
      %2583 = vst.msk [vmem:[#allocation2 + $0x20] sm:$0xff] %vm1990, %v2511
      %2584 = vst.msk [vmem:[#allocation2 + $0x28] sm:$0xff] %vm1990, %v2512
      %2585 = vst.msk [vmem:[#allocation2 + $0x30] sm:$0xff] %vm1990, %v2513
      %2586 = vst.msk [vmem:[#allocation2 + $0x38] sm:$0xff] %vm1990, %v2514
      %2587 = vst.msk [vmem:[#allocation2 + $0x40] sm:$0xff] %vm1990, %v2515
      %2588 = vst.msk [vmem:[#allocation2 + $0x48] sm:$0xff] %vm1990, %v2516
      %2589 = vst.msk [vmem:[#allocation2 + $0x50] sm:$0xff] %vm1990, %v2517
      %2590 = vst.msk [vmem:[#allocation2 + $0x58] sm:$0xff] %vm1990, %v2518
      %2591 = vst.msk [vmem:[#allocation2 + $0x60] sm:$0xff] %vm1990, %v2519
      %2592 = vst.msk [vmem:[#allocation2 + $0x68] sm:$0xff] %vm1990, %v2520
      %2593 = vst.msk [vmem:[#allocation2 + $0x70] sm:$0xff] %vm1990, %v2521
      %2594 = vst.msk [vmem:[#allocation2 + $0x78] sm:$0xff] %vm1990, %v2522
      %2595 = vst.msk [vmem:[#allocation2 + $0x80] sm:$0xff] %vm1990, %v2523
      %2596 = vst.msk [vmem:[#allocation2 + $0x88] sm:$0xff] %vm1990, %v2524
      %2597 = vst.msk [vmem:[#allocation2 + $0x90] sm:$0xff] %vm1990, %v2525
      %2598 = vst.msk [vmem:[#allocation2 + $0x98] sm:$0xff] %vm1990, %v2526
      %2599 = vst.msk [vmem:[#allocation2 + $0xa0] sm:$0xff] %vm1990, %v2527
      %2600 = vst.msk [vmem:[#allocation2 + $0xa8] sm:$0xff] %vm1990, %v2528
      %2601 = vst.msk [vmem:[#allocation2 + $0xb0] sm:$0xff] %vm1990, %v2529
      %2602 = vst.msk [vmem:[#allocation2 + $0xb8] sm:$0xff] %vm1990, %v2530
      %2603 = vst.msk [vmem:[#allocation2 + $0xc0] sm:$0xff] %vm1990, %v2531
      %2604 = vst.msk [vmem:[#allocation2 + $0xc8] sm:$0xff] %vm1990, %v2532
      %2605 = vst.msk [vmem:[#allocation2 + $0xd0] sm:$0xff] %vm1990, %v2533
      %2606 = vst.msk [vmem:[#allocation2 + $0xd8] sm:$0xff] %vm1990, %v2534
      %2607 = vst.msk [vmem:[#allocation2 + $0xe0] sm:$0xff] %vm1990, %v2535
      %2608 = vst.msk [vmem:[#allocation2 + $0xe8] sm:$0xff] %vm1990, %v2536
      %2609 = vst.msk [vmem:[#allocation2 + $0xf0] sm:$0xff] %vm1990, %v2537
      %2610 = vst.msk [vmem:[#allocation2 + $0xf8] sm:$0xff] %vm1990, %v2538
      %2611 = vst.msk [vmem:[#allocation2 + $0x100] sm:$0xff] %vm1990, %v2539
      %2612 = vst.msk [vmem:[#allocation2 + $0x108] sm:$0xff] %vm1990, %v2540
      %2613 = vst.msk [vmem:[#allocation2 + $0x110] sm:$0xff] %vm1990, %v2541
      %2614 = vst.msk [vmem:[#allocation2 + $0x118] sm:$0xff] %vm1990, %v2542
      %2615 = vst.msk [vmem:[#allocation2 + $0x120] sm:$0xff] %vm1990, %v2543
      %2616 = vst.msk [vmem:[#allocation2 + $0x128] sm:$0xff] %vm1990, %v2544
      %2617 = vst.msk [vmem:[#allocation2 + $0x130] sm:$0xff] %vm1990, %v2545
      %2618 = vst.msk [vmem:[#allocation2 + $0x138] sm:$0xff] %vm1990, %v2546
      %2619 = vst.msk [vmem:[#allocation2 + $0x140] sm:$0xff] %vm1990, %v2547
      %2620 = vst.msk [vmem:[#allocation2 + $0x148] sm:$0xff] %vm1990, %v2548
      %2621 = vst.msk [vmem:[#allocation2 + $0x150] sm:$0xff] %vm1990, %v2549
      %2622 = vst.msk [vmem:[#allocation2 + $0x158] sm:$0xff] %vm1990, %v2550
      %2623 = vst.msk [vmem:[#allocation2 + $0x160] sm:$0xff] %vm1990, %v2551
      %2624 = vst.msk [vmem:[#allocation2 + $0x168] sm:$0xff] %vm1990, %v2552
      %2625 = vst.msk [vmem:[#allocation2 + $0x170] sm:$0xff] %vm1990, %v2553
      %2626 = vst.msk [vmem:[#allocation2 + $0x178] sm:$0xff] %vm1990, %v2554
      %2627 = vst.msk [vmem:[#allocation2 + $0x180] sm:$0xff] %vm1990, %v2555
      %2628 = vst.msk [vmem:[#allocation2 + $0x188] sm:$0xff] %vm1990, %v2556
      %2629 = vst.msk [vmem:[#allocation2 + $0x190] sm:$0xff] %vm1990, %v2557
      %2630 = vst.msk [vmem:[#allocation2 + $0x198] sm:$0xff] %vm1990, %v2558
      %2631 = vst.msk [vmem:[#allocation2 + $0x1a0] sm:$0xff] %vm1990, %v2559
      %2632 = vst.msk [vmem:[#allocation2 + $0x1a8] sm:$0xff] %vm1990, %v2560
      %2633 = vst.msk [vmem:[#allocation2 + $0x1b0] sm:$0xff] %vm1990, %v2561
      %2634 = vst.msk [vmem:[#allocation2 + $0x1b8] sm:$0xff] %vm1990, %v2562
      %2635 = vst.msk [vmem:[#allocation2 + $0x1c0] sm:$0xff] %vm1990, %v2563
      %2636 = vst.msk [vmem:[#allocation2 + $0x1c8] sm:$0xff] %vm1990, %v2564
      %2637 = vst.msk [vmem:[#allocation2 + $0x1d0] sm:$0xff] %vm1990, %v2565
      %2638 = vst.msk [vmem:[#allocation2 + $0x1d8] sm:$0xff] %vm1990, %v2566
      %2639 = vst.msk [vmem:[#allocation2 + $0x1e0] sm:$0xff] %vm1990, %v2567
      %2640 = vst.msk [vmem:[#allocation2 + $0x1e8] sm:$0xff] %vm1990, %v2568
      %2641 = vst.msk [vmem:[#allocation2 + $0x1f0] sm:$0xff] %vm1990, %v2569
      %2642 = vst.msk [vmem:[#allocation2 + $0x1f8] sm:$0xff] %vm1990, %v2570
      %2643 = vst.msk [vmem:[#allocation2 + $0x200] sm:$0xff] %vm1990, %v2571
      %2644 = vst.msk [vmem:[#allocation2 + $0x208] sm:$0xff] %vm1990, %v2572
      %2645 = vst.msk [vmem:[#allocation2 + $0x210] sm:$0xff] %vm1990, %v2573
      %2646 = vst.msk [vmem:[#allocation2 + $0x218] sm:$0xff] %vm1990, %v2574
      %2647 = vst.msk [vmem:[#allocation2 + $0x220] sm:$0xff] %vm1990, %v2575
      %2648 = vst.msk [vmem:[#allocation2 + $0x228] sm:$0xff] %vm1990, %v2576
      %2649 = vst.msk [vmem:[#allocation2 + $0x230] sm:$0xff] %vm1990, %v2577
      %2650 = vst.msk [vmem:[#allocation2 + $0x238] sm:$0xff] %vm1990, %v2578
      %vm2651 = vsmask.f32 3328
      %vm2652 = vsmask.f32 7440
      %vm2653 = vmor %vm2651, %vm2652
      %v2655 = vshrl.u32 %v298, 16
      %v2657 = vrot.slane %v2655, 4
      %v2658 = vshll.u32 %v298, 16
      %v2660 = vrot.slane %v2658, 5
      %v2661 = vor.u32 %v2657, %v2660
      %v2662 = vrot.slane %v2661, 4
      %v2664 = vshll.u32 %v299, 16
      %v2666 = vrot.slane %v2664, 5
      %v2667 = vsel %vm2653, %v2662, %v2666
      %v2668 = vshrl.u32 %v299, 16
      %v2670 = vrot.slane %v2668, 4
      %v2671 = vor.u32 %v2670, %v2666
      %v2672 = vrot.slane %v2671, 4
      %v2674 = vshll.u32 %v300, 16
      %v2676 = vrot.slane %v2674, 5
      %v2677 = vsel %vm2653, %v2672, %v2676
      %v2678 = vshrl.u32 %v300, 16
      %v2680 = vrot.slane %v2678, 4
      %v2681 = vor.u32 %v2680, %v2676
      %v2682 = vrot.slane %v2681, 4
      %v2684 = vshll.u32 %v301, 16
      %v2686 = vrot.slane %v2684, 5
      %v2687 = vsel %vm2653, %v2682, %v2686
      %v2689 = vshrl.u32 %v302, 16
      %v2691 = vrot.slane %v2689, 4
      %v2692 = vshll.u32 %v302, 16
      %v2694 = vrot.slane %v2692, 5
      %v2695 = vor.u32 %v2691, %v2694
      %v2696 = vrot.slane %v2695, 4
      %v2698 = vshll.u32 %v303, 16
      %v2700 = vrot.slane %v2698, 5
      %v2701 = vsel %vm2653, %v2696, %v2700
      %v2702 = vshrl.u32 %v303, 16
      %v2704 = vrot.slane %v2702, 4
      %v2705 = vor.u32 %v2704, %v2700
      %v2706 = vrot.slane %v2705, 4
      %v2708 = vshll.u32 %v304, 16
      %v2710 = vrot.slane %v2708, 5
      %v2711 = vsel %vm2653, %v2706, %v2710
      %v2712 = vshrl.u32 %v304, 16
      %v2714 = vrot.slane %v2712, 4
      %v2715 = vor.u32 %v2714, %v2710
      %v2716 = vrot.slane %v2715, 4
      %v2718 = vshll.u32 %v305, 16
      %v2720 = vrot.slane %v2718, 5
      %v2721 = vsel %vm2653, %v2716, %v2720
      %v2723 = vshrl.u32 %v306, 16
      %v2725 = vrot.slane %v2723, 4
      %v2726 = vshll.u32 %v306, 16
      %v2728 = vrot.slane %v2726, 5
      %v2729 = vor.u32 %v2725, %v2728
      %v2730 = vrot.slane %v2729, 4
      %v2732 = vshll.u32 %v307, 16
      %v2734 = vrot.slane %v2732, 5
      %v2735 = vsel %vm2653, %v2730, %v2734
      %v2736 = vshrl.u32 %v307, 16
      %v2738 = vrot.slane %v2736, 4
      %v2739 = vor.u32 %v2738, %v2734
      %v2740 = vrot.slane %v2739, 4
      %v2742 = vshll.u32 %v308, 16
      %v2744 = vrot.slane %v2742, 5
      %v2745 = vsel %vm2653, %v2740, %v2744
      %v2746 = vshrl.u32 %v308, 16
      %v2748 = vrot.slane %v2746, 4
      %v2749 = vor.u32 %v2748, %v2744
      %v2750 = vrot.slane %v2749, 4
      %v2752 = vshll.u32 %v309, 16
      %v2754 = vrot.slane %v2752, 5
      %v2755 = vsel %vm2653, %v2750, %v2754
      %v2757 = vshrl.u32 %v310, 16
      %v2759 = vrot.slane %v2757, 4
      %v2760 = vshll.u32 %v310, 16
      %v2762 = vrot.slane %v2760, 5
      %v2763 = vor.u32 %v2759, %v2762
      %v2764 = vrot.slane %v2763, 4
      %v2766 = vshll.u32 %v311, 16
      %v2768 = vrot.slane %v2766, 5
      %v2769 = vsel %vm2653, %v2764, %v2768
      %v2770 = vshrl.u32 %v311, 16
      %v2772 = vrot.slane %v2770, 4
      %v2773 = vor.u32 %v2772, %v2768
      %v2774 = vrot.slane %v2773, 4
      %v2776 = vshll.u32 %v312, 16
      %v2778 = vrot.slane %v2776, 5
      %v2779 = vsel %vm2653, %v2774, %v2778
      %v2780 = vshrl.u32 %v312, 16
      %v2782 = vrot.slane %v2780, 4
      %v2783 = vor.u32 %v2782, %v2778
      %v2784 = vrot.slane %v2783, 4
      %v2786 = vshll.u32 %v313, 16
      %v2788 = vrot.slane %v2786, 5
      %v2789 = vsel %vm2653, %v2784, %v2788
      %v2791 = vshrl.u32 %v314, 16
      %v2793 = vrot.slane %v2791, 4
      %v2794 = vshll.u32 %v314, 16
      %v2796 = vrot.slane %v2794, 5
      %v2797 = vor.u32 %v2793, %v2796
      %v2798 = vrot.slane %v2797, 4
      %v2800 = vshll.u32 %v315, 16
      %v2802 = vrot.slane %v2800, 5
      %v2803 = vsel %vm2653, %v2798, %v2802
      %v2804 = vshrl.u32 %v315, 16
      %v2806 = vrot.slane %v2804, 4
      %v2807 = vor.u32 %v2806, %v2802
      %v2808 = vrot.slane %v2807, 4
      %v2810 = vshll.u32 %v316, 16
      %v2812 = vrot.slane %v2810, 5
      %v2813 = vsel %vm2653, %v2808, %v2812
      %v2814 = vshrl.u32 %v316, 16
      %v2816 = vrot.slane %v2814, 4
      %v2817 = vor.u32 %v2816, %v2812
      %v2818 = vrot.slane %v2817, 4
      %v2820 = vshll.u32 %v317, 16
      %v2822 = vrot.slane %v2820, 5
      %v2823 = vsel %vm2653, %v2818, %v2822
      %v2825 = vshrl.u32 %v318, 16
      %v2827 = vrot.slane %v2825, 4
      %v2828 = vshll.u32 %v318, 16
      %v2830 = vrot.slane %v2828, 5
      %v2831 = vor.u32 %v2827, %v2830
      %v2832 = vrot.slane %v2831, 4
      %v2834 = vshll.u32 %v319, 16
      %v2836 = vrot.slane %v2834, 5
      %v2837 = vsel %vm2653, %v2832, %v2836
      %v2838 = vshrl.u32 %v319, 16
      %v2840 = vrot.slane %v2838, 4
      %v2841 = vor.u32 %v2840, %v2836
      %v2842 = vrot.slane %v2841, 4
      %v2844 = vshll.u32 %v320, 16
      %v2846 = vrot.slane %v2844, 5
      %v2847 = vsel %vm2653, %v2842, %v2846
      %v2848 = vshrl.u32 %v320, 16
      %v2850 = vrot.slane %v2848, 4
      %v2851 = vor.u32 %v2850, %v2846
      %v2852 = vrot.slane %v2851, 4
      %v2854 = vshll.u32 %v321, 16
      %v2856 = vrot.slane %v2854, 5
      %v2857 = vsel %vm2653, %v2852, %v2856
      %v2859 = vshrl.u32 %v322, 16
      %v2861 = vrot.slane %v2859, 4
      %v2862 = vshll.u32 %v322, 16
      %v2864 = vrot.slane %v2862, 5
      %v2865 = vor.u32 %v2861, %v2864
      %v2866 = vrot.slane %v2865, 4
      %v2868 = vshll.u32 %v323, 16
      %v2870 = vrot.slane %v2868, 5
      %v2871 = vsel %vm2653, %v2866, %v2870
      %v2872 = vshrl.u32 %v323, 16
      %v2874 = vrot.slane %v2872, 4
      %v2875 = vor.u32 %v2874, %v2870
      %v2876 = vrot.slane %v2875, 4
      %v2878 = vshll.u32 %v324, 16
      %v2880 = vrot.slane %v2878, 5
      %v2881 = vsel %vm2653, %v2876, %v2880
      %v2882 = vshrl.u32 %v324, 16
      %v2884 = vrot.slane %v2882, 4
      %v2885 = vor.u32 %v2884, %v2880
      %v2886 = vrot.slane %v2885, 4
      %v2888 = vshll.u32 %v325, 16
      %v2890 = vrot.slane %v2888, 5
      %v2891 = vsel %vm2653, %v2886, %v2890
      %v2893 = vshrl.u32 %v326, 16
      %v2895 = vrot.slane %v2893, 4
      %v2896 = vshll.u32 %v326, 16
      %v2898 = vrot.slane %v2896, 5
      %v2899 = vor.u32 %v2895, %v2898
      %v2900 = vrot.slane %v2899, 4
      %v2902 = vshll.u32 %v327, 16
      %v2904 = vrot.slane %v2902, 5
      %v2905 = vsel %vm2653, %v2900, %v2904
      %v2906 = vshrl.u32 %v327, 16
      %v2908 = vrot.slane %v2906, 4
      %v2909 = vor.u32 %v2908, %v2904
      %v2910 = vrot.slane %v2909, 4
      %v2912 = vshll.u32 %v328, 16
      %v2914 = vrot.slane %v2912, 5
      %v2915 = vsel %vm2653, %v2910, %v2914
      %v2916 = vshrl.u32 %v328, 16
      %v2918 = vrot.slane %v2916, 4
      %v2919 = vor.u32 %v2918, %v2914
      %v2920 = vrot.slane %v2919, 4
      %v2922 = vshll.u32 %v329, 16
      %v2924 = vrot.slane %v2922, 5
      %v2925 = vsel %vm2653, %v2920, %v2924
      %v2927 = vshrl.u32 %v330, 16
      %v2929 = vrot.slane %v2927, 4
      %v2930 = vshll.u32 %v330, 16
      %v2932 = vrot.slane %v2930, 5
      %v2933 = vor.u32 %v2929, %v2932
      %v2934 = vrot.slane %v2933, 4
      %v2936 = vshll.u32 %v331, 16
      %v2938 = vrot.slane %v2936, 5
      %v2939 = vsel %vm2653, %v2934, %v2938
      %v2940 = vshrl.u32 %v331, 16
      %v2942 = vrot.slane %v2940, 4
      %v2943 = vor.u32 %v2942, %v2938
      %v2944 = vrot.slane %v2943, 4
      %v2946 = vshll.u32 %v332, 16
      %v2948 = vrot.slane %v2946, 5
      %v2949 = vsel %vm2653, %v2944, %v2948
      %v2950 = vshrl.u32 %v332, 16
      %v2952 = vrot.slane %v2950, 4
      %v2953 = vor.u32 %v2952, %v2948
      %v2954 = vrot.slane %v2953, 4
      %v2956 = vshll.u32 %v333, 16
      %v2958 = vrot.slane %v2956, 5
      %v2959 = vsel %vm2653, %v2954, %v2958
      %v2961 = vshrl.u32 %v334, 16
      %v2963 = vrot.slane %v2961, 4
      %v2964 = vshll.u32 %v334, 16
      %v2966 = vrot.slane %v2964, 5
      %v2967 = vor.u32 %v2963, %v2966
      %v2968 = vrot.slane %v2967, 4
      %v2970 = vshll.u32 %v335, 16
      %v2972 = vrot.slane %v2970, 5
      %v2973 = vsel %vm2653, %v2968, %v2972
      %v2974 = vshrl.u32 %v335, 16
      %v2976 = vrot.slane %v2974, 4
      %v2977 = vor.u32 %v2976, %v2972
      %v2978 = vrot.slane %v2977, 4
      %v2980 = vshll.u32 %v336, 16
      %v2982 = vrot.slane %v2980, 5
      %v2983 = vsel %vm2653, %v2978, %v2982
      %v2984 = vshrl.u32 %v336, 16
      %v2986 = vrot.slane %v2984, 4
      %v2987 = vor.u32 %v2986, %v2982
      %v2988 = vrot.slane %v2987, 4
      %v2990 = vshll.u32 %v337, 16
      %v2992 = vrot.slane %v2990, 5
      %v2993 = vsel %vm2653, %v2988, %v2992
      %v2995 = vshrl.u32 %v338, 16
      %v2997 = vrot.slane %v2995, 4
      %v2998 = vshll.u32 %v338, 16
      %v3000 = vrot.slane %v2998, 5
      %v3001 = vor.u32 %v2997, %v3000
      %v3002 = vrot.slane %v3001, 4
      %v3004 = vshll.u32 %v339, 16
      %v3006 = vrot.slane %v3004, 5
      %v3007 = vsel %vm2653, %v3002, %v3006
      %v3008 = vshrl.u32 %v339, 16
      %v3010 = vrot.slane %v3008, 4
      %v3011 = vor.u32 %v3010, %v3006
      %v3012 = vrot.slane %v3011, 4
      %v3014 = vshll.u32 %v340, 16
      %v3016 = vrot.slane %v3014, 5
      %v3017 = vsel %vm2653, %v3012, %v3016
      %v3018 = vshrl.u32 %v340, 16
      %v3020 = vrot.slane %v3018, 4
      %v3021 = vor.u32 %v3020, %v3016
      %v3022 = vrot.slane %v3021, 4
      %v3024 = vshll.u32 %v341, 16
      %v3026 = vrot.slane %v3024, 5
      %v3027 = vsel %vm2653, %v3022, %v3026
      %v3029 = vshrl.u32 %v342, 16
      %v3031 = vrot.slane %v3029, 4
      %v3032 = vshll.u32 %v342, 16
      %v3034 = vrot.slane %v3032, 5
      %v3035 = vor.u32 %v3031, %v3034
      %v3036 = vrot.slane %v3035, 4
      %v3038 = vshll.u32 %v343, 16
      %v3040 = vrot.slane %v3038, 5
      %v3041 = vsel %vm2653, %v3036, %v3040
      %v3042 = vshrl.u32 %v343, 16
      %v3044 = vrot.slane %v3042, 4
      %v3045 = vor.u32 %v3044, %v3040
      %v3046 = vrot.slane %v3045, 4
      %v3048 = vshll.u32 %v344, 16
      %v3050 = vrot.slane %v3048, 5
      %v3051 = vsel %vm2653, %v3046, %v3050
      %v3052 = vshrl.u32 %v344, 16
      %v3054 = vrot.slane %v3052, 4
      %v3055 = vor.u32 %v3054, %v3050
      %v3056 = vrot.slane %v3055, 4
      %v3058 = vshll.u32 %v345, 16
      %v3060 = vrot.slane %v3058, 5
      %v3061 = vsel %vm2653, %v3056, %v3060
      %v3063 = vshrl.u32 %v346, 16
      %v3065 = vrot.slane %v3063, 4
      %v3066 = vshll.u32 %v346, 16
      %v3068 = vrot.slane %v3066, 5
      %v3069 = vor.u32 %v3065, %v3068
      %v3070 = vrot.slane %v3069, 4
      %v3072 = vshll.u32 %v347, 16
      %v3074 = vrot.slane %v3072, 5
      %v3075 = vsel %vm2653, %v3070, %v3074
      %v3076 = vshrl.u32 %v347, 16
      %v3078 = vrot.slane %v3076, 4
      %v3079 = vor.u32 %v3078, %v3074
      %v3080 = vrot.slane %v3079, 4
      %v3082 = vshll.u32 %v348, 16
      %v3084 = vrot.slane %v3082, 5
      %v3085 = vsel %vm2653, %v3080, %v3084
      %v3086 = vshrl.u32 %v348, 16
      %v3088 = vrot.slane %v3086, 4
      %v3089 = vor.u32 %v3088, %v3084
      %v3090 = vrot.slane %v3089, 4
      %v3092 = vshll.u32 %v349, 16
      %v3094 = vrot.slane %v3092, 5
      %v3095 = vsel %vm2653, %v3090, %v3094
      %v3097 = vshrl.u32 %v350, 16
      %v3099 = vrot.slane %v3097, 4
      %v3100 = vshll.u32 %v350, 16
      %v3102 = vrot.slane %v3100, 5
      %v3103 = vor.u32 %v3099, %v3102
      %v3104 = vrot.slane %v3103, 4
      %v3106 = vshll.u32 %v351, 16
      %v3108 = vrot.slane %v3106, 5
      %v3109 = vsel %vm2653, %v3104, %v3108
      %v3110 = vshrl.u32 %v351, 16
      %v3112 = vrot.slane %v3110, 4
      %v3113 = vor.u32 %v3112, %v3108
      %v3114 = vrot.slane %v3113, 4
      %v3116 = vshll.u32 %v352, 16
      %v3118 = vrot.slane %v3116, 5
      %v3119 = vsel %vm2653, %v3114, %v3118
      %v3120 = vshrl.u32 %v352, 16
      %v3122 = vrot.slane %v3120, 4
      %v3123 = vor.u32 %v3122, %v3118
      %v3124 = vrot.slane %v3123, 4
      %v3126 = vshll.u32 %v353, 16
      %v3128 = vrot.slane %v3126, 5
      %v3129 = vsel %vm2653, %v3124, %v3128
      %v3131 = vshrl.u32 %v354, 16
      %v3133 = vrot.slane %v3131, 4
      %v3134 = vshll.u32 %v354, 16
      %v3136 = vrot.slane %v3134, 5
      %v3137 = vor.u32 %v3133, %v3136
      %v3138 = vrot.slane %v3137, 4
      %v3140 = vshll.u32 %v355, 16
      %v3142 = vrot.slane %v3140, 5
      %v3143 = vsel %vm2653, %v3138, %v3142
      %v3144 = vshrl.u32 %v355, 16
      %v3146 = vrot.slane %v3144, 4
      %v3147 = vor.u32 %v3146, %v3142
      %v3148 = vrot.slane %v3147, 4
      %v3150 = vshll.u32 %v356, 16
      %v3152 = vrot.slane %v3150, 5
      %v3153 = vsel %vm2653, %v3148, %v3152
      %v3154 = vshrl.u32 %v356, 16
      %v3156 = vrot.slane %v3154, 4
      %v3157 = vor.u32 %v3156, %v3152
      %v3158 = vrot.slane %v3157, 4
      %v3160 = vshll.u32 %v357, 16
      %v3162 = vrot.slane %v3160, 5
      %v3163 = vsel %vm2653, %v3158, %v3162
      %v3165 = vshrl.u32 %v358, 16
      %v3167 = vrot.slane %v3165, 4
      %v3168 = vshll.u32 %v358, 16
      %v3170 = vrot.slane %v3168, 5
      %v3171 = vor.u32 %v3167, %v3170
      %v3172 = vrot.slane %v3171, 4
      %v3174 = vshll.u32 %v359, 16
      %v3176 = vrot.slane %v3174, 5
      %v3177 = vsel %vm2653, %v3172, %v3176
      %v3178 = vshrl.u32 %v359, 16
      %v3180 = vrot.slane %v3178, 4
      %v3181 = vor.u32 %v3180, %v3176
      %v3182 = vrot.slane %v3181, 4
      %v3184 = vshll.u32 %v360, 16
      %v3186 = vrot.slane %v3184, 5
      %v3187 = vsel %vm2653, %v3182, %v3186
      %v3188 = vshrl.u32 %v360, 16
      %v3190 = vrot.slane %v3188, 4
      %v3191 = vor.u32 %v3190, %v3186
      %v3192 = vrot.slane %v3191, 4
      %v3194 = vshll.u32 %v361, 16
      %v3196 = vrot.slane %v3194, 5
      %v3197 = vsel %vm2653, %v3192, %v3196
      %v3199 = vshrl.u32 %v362, 16
      %v3201 = vrot.slane %v3199, 4
      %v3202 = vshll.u32 %v362, 16
      %v3204 = vrot.slane %v3202, 5
      %v3205 = vor.u32 %v3201, %v3204
      %v3206 = vrot.slane %v3205, 4
      %v3208 = vshll.u32 %v363, 16
      %v3210 = vrot.slane %v3208, 5
      %v3211 = vsel %vm2653, %v3206, %v3210
      %v3212 = vshrl.u32 %v363, 16
      %v3214 = vrot.slane %v3212, 4
      %v3215 = vor.u32 %v3214, %v3210
      %v3216 = vrot.slane %v3215, 4
      %v3218 = vshll.u32 %v364, 16
      %v3220 = vrot.slane %v3218, 5
      %v3221 = vsel %vm2653, %v3216, %v3220
      %v3222 = vshrl.u32 %v364, 16
      %v3224 = vrot.slane %v3222, 4
      %v3225 = vor.u32 %v3224, %v3220
      %v3226 = vrot.slane %v3225, 4
      %v3228 = vshll.u32 %v365, 16
      %v3230 = vrot.slane %v3228, 5
      %v3231 = vsel %vm2653, %v3226, %v3230
      %v3233 = vshrl.u32 %v366, 16
      %v3235 = vrot.slane %v3233, 4
      %v3236 = vshll.u32 %v366, 16
      %v3238 = vrot.slane %v3236, 5
      %v3239 = vor.u32 %v3235, %v3238
      %v3240 = vrot.slane %v3239, 4
      %v3242 = vshll.u32 %v367, 16
      %v3244 = vrot.slane %v3242, 5
      %v3245 = vsel %vm2653, %v3240, %v3244
      %v3246 = vshrl.u32 %v367, 16
      %v3248 = vrot.slane %v3246, 4
      %v3249 = vor.u32 %v3248, %v3244
      %v3250 = vrot.slane %v3249, 4
      %v3252 = vshll.u32 %v368, 16
      %v3254 = vrot.slane %v3252, 5
      %v3255 = vsel %vm2653, %v3250, %v3254
      %v3256 = vshrl.u32 %v368, 16
      %v3258 = vrot.slane %v3256, 4
      %v3259 = vor.u32 %v3258, %v3254
      %v3260 = vrot.slane %v3259, 4
      %v3262 = vshll.u32 %v369, 16
      %v3264 = vrot.slane %v3262, 5
      %v3265 = vsel %vm2653, %v3260, %v3264
      %v3267 = vshrl.u32 %v370, 16
      %v3269 = vrot.slane %v3267, 4
      %v3270 = vshll.u32 %v370, 16
      %v3272 = vrot.slane %v3270, 5
      %v3273 = vor.u32 %v3269, %v3272
      %v3274 = vrot.slane %v3273, 4
      %v3276 = vshll.u32 %v371, 16
      %v3278 = vrot.slane %v3276, 5
      %v3279 = vsel %vm2653, %v3274, %v3278
      %v3280 = vshrl.u32 %v371, 16
      %v3282 = vrot.slane %v3280, 4
      %v3283 = vor.u32 %v3282, %v3278
      %v3284 = vrot.slane %v3283, 4
      %v3286 = vshll.u32 %v372, 16
      %v3288 = vrot.slane %v3286, 5
      %v3289 = vsel %vm2653, %v3284, %v3288
      %v3290 = vshrl.u32 %v372, 16
      %v3292 = vrot.slane %v3290, 4
      %v3293 = vor.u32 %v3292, %v3288
      %v3294 = vrot.slane %v3293, 4
      %v3296 = vshll.u32 %v373, 16
      %v3298 = vrot.slane %v3296, 5
      %v3299 = vsel %vm2653, %v3294, %v3298
      %v3301 = vshrl.u32 %v374, 16
      %v3303 = vrot.slane %v3301, 4
      %v3304 = vshll.u32 %v374, 16
      %v3306 = vrot.slane %v3304, 5
      %v3307 = vor.u32 %v3303, %v3306
      %v3308 = vrot.slane %v3307, 4
      %v3310 = vshll.u32 %v375, 16
      %v3312 = vrot.slane %v3310, 5
      %v3313 = vsel %vm2653, %v3308, %v3312
      %v3314 = vshrl.u32 %v375, 16
      %v3316 = vrot.slane %v3314, 4
      %v3317 = vor.u32 %v3316, %v3312
      %v3318 = vrot.slane %v3317, 4
      %v3320 = vshll.u32 %v376, 16
      %v3322 = vrot.slane %v3320, 5
      %v3323 = vsel %vm2653, %v3318, %v3322
      %v3324 = vshrl.u32 %v376, 16
      %v3326 = vrot.slane %v3324, 4
      %v3327 = vor.u32 %v3326, %v3322
      %v3328 = vrot.slane %v3327, 4
      %v3330 = vshll.u32 %v377, 16
      %v3332 = vrot.slane %v3330, 5
      %v3333 = vsel %vm2653, %v3328, %v3332
      %v3335 = vshrl.u32 %v378, 16
      %v3337 = vrot.slane %v3335, 4
      %v3338 = vshll.u32 %v378, 16
      %v3340 = vrot.slane %v3338, 5
      %v3341 = vor.u32 %v3337, %v3340
      %v3342 = vrot.slane %v3341, 4
      %v3344 = vshll.u32 %v379, 16
      %v3346 = vrot.slane %v3344, 5
      %v3347 = vsel %vm2653, %v3342, %v3346
      %v3348 = vshrl.u32 %v379, 16
      %v3350 = vrot.slane %v3348, 4
      %v3351 = vor.u32 %v3350, %v3346
      %v3352 = vrot.slane %v3351, 4
      %v3354 = vshll.u32 %v380, 16
      %v3356 = vrot.slane %v3354, 5
      %v3357 = vsel %vm2653, %v3352, %v3356
      %v3358 = vshrl.u32 %v380, 16
      %v3360 = vrot.slane %v3358, 4
      %v3361 = vor.u32 %v3360, %v3356
      %v3362 = vrot.slane %v3361, 4
      %v3364 = vshll.u32 %v381, 16
      %v3366 = vrot.slane %v3364, 5
      %v3367 = vsel %vm2653, %v3362, %v3366
      %v3369 = vshrl.u32 %v382, 16
      %v3371 = vrot.slane %v3369, 4
      %v3372 = vshll.u32 %v382, 16
      %v3374 = vrot.slane %v3372, 5
      %v3375 = vor.u32 %v3371, %v3374
      %v3376 = vrot.slane %v3375, 4
      %v3378 = vshll.u32 %v383, 16
      %v3380 = vrot.slane %v3378, 5
      %v3381 = vsel %vm2653, %v3376, %v3380
      %v3382 = vshrl.u32 %v383, 16
      %v3384 = vrot.slane %v3382, 4
      %v3385 = vor.u32 %v3384, %v3380
      %v3386 = vrot.slane %v3385, 4
      %v3388 = vshll.u32 %v384, 16
      %v3390 = vrot.slane %v3388, 5
      %v3391 = vsel %vm2653, %v3386, %v3390
      %v3392 = vshrl.u32 %v384, 16
      %v3394 = vrot.slane %v3392, 4
      %v3395 = vor.u32 %v3394, %v3390
      %v3396 = vrot.slane %v3395, 4
      %v3398 = vshll.u32 %v385, 16
      %v3400 = vrot.slane %v3398, 5
      %v3401 = vsel %vm2653, %v3396, %v3400
      %v3403 = vshrl.u32 %v386, 16
      %v3405 = vrot.slane %v3403, 4
      %v3406 = vshll.u32 %v386, 16
      %v3408 = vrot.slane %v3406, 5
      %v3409 = vor.u32 %v3405, %v3408
      %v3410 = vrot.slane %v3409, 4
      %v3412 = vshll.u32 %v387, 16
      %v3414 = vrot.slane %v3412, 5
      %v3415 = vsel %vm2653, %v3410, %v3414
      %v3416 = vshrl.u32 %v387, 16
      %v3418 = vrot.slane %v3416, 4
      %v3419 = vor.u32 %v3418, %v3414
      %v3420 = vrot.slane %v3419, 4
      %v3422 = vshll.u32 %v388, 16
      %v3424 = vrot.slane %v3422, 5
      %v3425 = vsel %vm2653, %v3420, %v3424
      %v3426 = vshrl.u32 %v388, 16
      %v3428 = vrot.slane %v3426, 4
      %v3429 = vor.u32 %v3428, %v3424
      %v3430 = vrot.slane %v3429, 4
      %v3432 = vshll.u32 %v389, 16
      %v3434 = vrot.slane %v3432, 5
      %v3435 = vsel %vm2653, %v3430, %v3434
      %v3437 = vshrl.u32 %v390, 16
      %v3439 = vrot.slane %v3437, 4
      %v3440 = vshll.u32 %v390, 16
      %v3442 = vrot.slane %v3440, 5
      %v3443 = vor.u32 %v3439, %v3442
      %v3444 = vrot.slane %v3443, 4
      %v3446 = vshll.u32 %v391, 16
      %v3448 = vrot.slane %v3446, 5
      %v3449 = vsel %vm2653, %v3444, %v3448
      %v3450 = vshrl.u32 %v391, 16
      %v3452 = vrot.slane %v3450, 4
      %v3453 = vor.u32 %v3452, %v3448
      %v3454 = vrot.slane %v3453, 4
      %v3456 = vshll.u32 %v392, 16
      %v3458 = vrot.slane %v3456, 5
      %v3459 = vsel %vm2653, %v3454, %v3458
      %v3460 = vshrl.u32 %v392, 16
      %v3462 = vrot.slane %v3460, 4
      %v3463 = vor.u32 %v3462, %v3458
      %v3464 = vrot.slane %v3463, 4
      %v3466 = vshll.u32 %v393, 16
      %v3468 = vrot.slane %v3466, 5
      %v3469 = vsel %vm2653, %v3464, %v3468
      %v3471 = vshrl.u32 %v394, 16
      %v3473 = vrot.slane %v3471, 4
      %v3474 = vshll.u32 %v394, 16
      %v3476 = vrot.slane %v3474, 5
      %v3477 = vor.u32 %v3473, %v3476
      %v3478 = vrot.slane %v3477, 4
      %v3480 = vshll.u32 %v395, 16
      %v3482 = vrot.slane %v3480, 5
      %v3483 = vsel %vm2653, %v3478, %v3482
      %v3484 = vshrl.u32 %v395, 16
      %v3486 = vrot.slane %v3484, 4
      %v3487 = vor.u32 %v3486, %v3482
      %v3488 = vrot.slane %v3487, 4
      %v3490 = vshll.u32 %v396, 16
      %v3492 = vrot.slane %v3490, 5
      %v3493 = vsel %vm2653, %v3488, %v3492
      %v3494 = vshrl.u32 %v396, 16
      %v3496 = vrot.slane %v3494, 4
      %v3497 = vor.u32 %v3496, %v3492
      %v3498 = vrot.slane %v3497, 4
      %v3500 = vshll.u32 %v397, 16
      %v3502 = vrot.slane %v3500, 5
      %v3503 = vsel %vm2653, %v3498, %v3502
      %v3505 = vshrl.u32 %v398, 16
      %v3507 = vrot.slane %v3505, 4
      %v3508 = vshll.u32 %v398, 16
      %v3510 = vrot.slane %v3508, 5
      %v3511 = vor.u32 %v3507, %v3510
      %v3512 = vrot.slane %v3511, 4
      %v3514 = vshll.u32 %v399, 16
      %v3516 = vrot.slane %v3514, 5
      %v3517 = vsel %vm2653, %v3512, %v3516
      %v3518 = vshrl.u32 %v399, 16
      %v3520 = vrot.slane %v3518, 4
      %v3521 = vor.u32 %v3520, %v3516
      %v3522 = vrot.slane %v3521, 4
      %v3524 = vshll.u32 %v400, 16
      %v3526 = vrot.slane %v3524, 5
      %v3527 = vsel %vm2653, %v3522, %v3526
      %v3528 = vshrl.u32 %v400, 16
      %v3530 = vrot.slane %v3528, 4
      %v3531 = vor.u32 %v3530, %v3526
      %v3532 = vrot.slane %v3531, 4
      %v3534 = vshll.u32 %v401, 16
      %v3536 = vrot.slane %v3534, 5
      %v3537 = vsel %vm2653, %v3532, %v3536
      %s3538 = scalar_lea.vmem %s281, 32
      %v3539 = vld [vmem:[%s3538] sm:$0xf]
      %v3540 = vld [vmem:[%s3538 + $0x4] sm:$0xf]
      %v3541 = vld [vmem:[%s3538 + $0x8] sm:$0xf]
      %v3542 = vld [vmem:[%s3538 + $0xc] sm:$0xf]
      %v3543 = vld [vmem:[%s3538 + $0x10] sm:$0xf]
      %v3544 = vld [vmem:[%s3538 + $0x14] sm:$0xf]
      %v3545 = vld [vmem:[%s3538 + $0x18] sm:$0xf]
      %v3546 = vld [vmem:[%s3538 + $0x1c] sm:$0xf]
      %v3547 = vunpack.c.l.b16 %v2667
      %v3548 = vunpack.c.l.b16 %v2677
      %v3549 = vunpack.c.l.b16 %v2687
      %v3550 = vunpack.c.l.b16 %v2701
      %v3551 = vunpack.c.l.b16 %v2711
      %v3552 = vunpack.c.l.b16 %v2721
      %v3553 = vunpack.c.l.b16 %v2735
      %v3554 = vunpack.c.l.b16 %v2745
      %v3555 = vunpack.c.l.b16 %v2755
      %v3556 = vunpack.c.l.b16 %v2769
      %v3557 = vunpack.c.l.b16 %v2779
      %v3558 = vunpack.c.l.b16 %v2789
      %v3559 = vunpack.c.l.b16 %v2803
      %v3560 = vunpack.c.l.b16 %v2813
      %v3561 = vunpack.c.l.b16 %v2823
      %v3562 = vunpack.c.l.b16 %v2837
      %v3563 = vunpack.c.l.b16 %v2847
      %v3564 = vunpack.c.l.b16 %v2857
      %v3565 = vunpack.c.l.b16 %v2871
      %v3566 = vunpack.c.l.b16 %v2881
      %v3567 = vunpack.c.l.b16 %v2891
      %v3568 = vunpack.c.l.b16 %v2905
      %v3569 = vunpack.c.l.b16 %v2915
      %v3570 = vunpack.c.l.b16 %v2925
      %v3571 = vunpack.c.l.b16 %v2939
      %v3572 = vunpack.c.l.b16 %v2949
      %v3573 = vunpack.c.l.b16 %v2959
      %v3574 = vunpack.c.l.b16 %v2973
      %v3575 = vunpack.c.l.b16 %v2983
      %v3576 = vunpack.c.l.b16 %v2993
      %v3577 = vunpack.c.l.b16 %v3007
      %v3578 = vunpack.c.l.b16 %v3017
      %v3579 = vunpack.c.l.b16 %v3027
      %v3580 = vunpack.c.l.b16 %v3041
      %v3581 = vunpack.c.l.b16 %v3051
      %v3582 = vunpack.c.l.b16 %v3061
      %v3583 = vunpack.c.l.b16 %v3075
      %v3584 = vunpack.c.l.b16 %v3085
      %v3585 = vunpack.c.l.b16 %v3095
      %v3586 = vunpack.c.l.b16 %v3109
      %v3587 = vunpack.c.l.b16 %v3119
      %v3588 = vunpack.c.l.b16 %v3129
      %v3589 = vunpack.c.l.b16 %v3143
      %v3590 = vunpack.c.l.b16 %v3153
      %v3591 = vunpack.c.l.b16 %v3163
      %v3592 = vunpack.c.l.b16 %v3177
      %v3593 = vunpack.c.l.b16 %v3187
      %v3594 = vunpack.c.l.b16 %v3197
      %v3595 = vunpack.c.l.b16 %v3211
      %v3596 = vunpack.c.l.b16 %v3221
      %v3597 = vunpack.c.l.b16 %v3231
      %v3598 = vunpack.c.l.b16 %v3245
      %v3599 = vunpack.c.l.b16 %v3255
      %v3600 = vunpack.c.l.b16 %v3265
      %v3601 = vunpack.c.l.b16 %v3279
      %v3602 = vunpack.c.l.b16 %v3289
      %v3603 = vunpack.c.l.b16 %v3299
      %v3604 = vunpack.c.l.b16 %v3313
      %v3605 = vunpack.c.l.b16 %v3323
      %v3606 = vunpack.c.l.b16 %v3333
      %v3607 = vunpack.c.l.b16 %v3347
      %v3608 = vunpack.c.l.b16 %v3357
      %v3609 = vunpack.c.l.b16 %v3367
      %v3610 = vunpack.c.l.b16 %v3381
      %v3611 = vunpack.c.l.b16 %v3391
      %v3612 = vunpack.c.l.b16 %v3401
      %v3613 = vunpack.c.l.b16 %v3415
      %v3614 = vunpack.c.l.b16 %v3425
      %v3615 = vunpack.c.l.b16 %v3435
      %v3616 = vunpack.c.l.b16 %v3449
      %v3617 = vunpack.c.l.b16 %v3459
      %v3618 = vunpack.c.l.b16 %v3469
      %v3619 = vpack.c.b16 %v3548, %v3547
      %v3620 = vpack.c.b16 %v3550, %v3549
      %v3621 = vpack.c.b16 %v3552, %v3551
      %v3622 = vpack.c.b16 %v3554, %v3553
      %v3623 = vpack.c.b16 %v3556, %v3555
      %v3624 = vpack.c.b16 %v3558, %v3557
      %v3625 = vpack.c.b16 %v3560, %v3559
      %v3626 = vpack.c.b16 %v3562, %v3561
      %v3627 = vpack.c.b16 %v3564, %v3563
      %v3628 = vpack.c.b16 %v3566, %v3565
      %v3629 = vpack.c.b16 %v3568, %v3567
      %v3630 = vpack.c.b16 %v3570, %v3569
      %v3631 = vpack.c.b16 %v3572, %v3571
      %v3632 = vpack.c.b16 %v3574, %v3573
      %v3633 = vpack.c.b16 %v3576, %v3575
      %v3634 = vpack.c.b16 %v3578, %v3577
      %v3635 = vpack.c.b16 %v3580, %v3579
      %v3636 = vpack.c.b16 %v3582, %v3581
      %v3637 = vpack.c.b16 %v3584, %v3583
      %v3638 = vpack.c.b16 %v3586, %v3585
      %v3639 = vpack.c.b16 %v3588, %v3587
      %v3640 = vpack.c.b16 %v3590, %v3589
      %v3641 = vpack.c.b16 %v3592, %v3591
      %v3642 = vpack.c.b16 %v3594, %v3593
      %v3643 = vpack.c.b16 %v3596, %v3595
      %v3644 = vpack.c.b16 %v3598, %v3597
      %v3645 = vpack.c.b16 %v3600, %v3599
      %v3646 = vpack.c.b16 %v3602, %v3601
      %v3647 = vpack.c.b16 %v3604, %v3603
      %v3648 = vpack.c.b16 %v3606, %v3605
      %v3649 = vpack.c.b16 %v3608, %v3607
      %v3650 = vpack.c.b16 %v3610, %v3609
      %v3651 = vpack.c.b16 %v3612, %v3611
      %v3652 = vpack.c.b16 %v3614, %v3613
      %v3653 = vpack.c.b16 %v3616, %v3615
      %v3654 = vpack.c.b16 %v3618, %v3617
      %v3663 = vunpack.c.l.b16 %v3539
      %v3664 = vunpack.c.l.b16 %v3540
      %v3665 = vunpack.c.l.b16 %v3541
      %v3666 = vunpack.c.l.b16 %v3542
      %v3667 = vunpack.c.l.b16 %v3543
      %v3668 = vunpack.c.l.b16 %v3544
      %v3669 = vunpack.c.l.b16 %v3545
      %v3670 = vunpack.c.l.b16 %v3546
      %v3671 = vpack.c.b16 %v3664, %v3663
      %v3672 = vpack.c.b16 %v3666, %v3665
      %v3673 = vpack.c.b16 %v3668, %v3667
      %v3674 = vpack.c.b16 %v3670, %v3669
      %v3680 = vsel %vm614, %v3619, 0
      %v3683 = vsel %vm614, %v3620, 0
      %v3686 = vsel %vm614, %v3621, 0
      %v3689 = vsel %vm614, %v3622, 0
      %v3692 = vsel %vm614, %v3623, 0
      %v3695 = vsel %vm614, %v3624, 0
      %v3698 = vsel %vm614, %v3625, 0
      %v3701 = vsel %vm614, %v3626, 0
      %v3704 = vsel %vm614, %v3627, 0
      %v3707 = vsel %vm614, %v3628, 0
      %v3710 = vsel %vm614, %v3629, 0
      %v3713 = vsel %vm614, %v3630, 0
      %v3716 = vsel %vm614, %v3631, 0
      %v3719 = vsel %vm614, %v3632, 0
      %v3722 = vsel %vm614, %v3633, 0
      %v3725 = vsel %vm614, %v3634, 0
      %v3728 = vsel %vm614, %v3635, 0
      %v3731 = vsel %vm614, %v3636, 0
      %v3734 = vsel %vm614, %v3637, 0
      %v3737 = vsel %vm614, %v3638, 0
      %v3740 = vsel %vm614, %v3639, 0
      %v3743 = vsel %vm614, %v3640, 0
      %v3746 = vsel %vm614, %v3641, 0
      %v3749 = vsel %vm614, %v3642, 0
      %v3752 = vsel %vm614, %v3643, 0
      %v3755 = vsel %vm614, %v3644, 0
      %v3758 = vsel %vm614, %v3645, 0
      %v3761 = vsel %vm614, %v3646, 0
      %v3764 = vsel %vm614, %v3647, 0
      %v3767 = vsel %vm614, %v3648, 0
      %v3770 = vsel %vm614, %v3649, 0
      %v3773 = vsel %vm614, %v3650, 0
      %v3776 = vsel %vm614, %v3651, 0
      %v3779 = vsel %vm614, %v3652, 0
      %v3782 = vsel %vm614, %v3653, 0
      %v3785 = vsel %vm614, %v3654, 0
      %3787 = vmatprep.subr.bf16.mxu0 0
      %3788 = vmatpush1.bf16.msra.mxu0 %v3671
      %3789 = vmatprep.subr.bf16.mxu0 0
      %3790 = vmatpush1.bf16.msra.mxu0 %v3672
      %3791 = vmatprep.subr.bf16.mxu0 0
      %3792 = vmatpush1.bf16.msra.mxu0 %v3673
      %3793 = vmatprep.subr.bf16.mxu0 0
      %3794 = vmatpush1.bf16.msra.mxu0 %v3674
      %3795 = vmatprep.subr.bf16.mxu0 0
      %3796 = vmatpush1.bf16.msra.mxu0 0
      %3797 = vmatprep.subr.bf16.mxu0 0
      %3798 = vmatpush1.bf16.msra.mxu0 0
      %3799 = vmatprep.subr.bf16.mxu0 0
      %3800 = vmatpush1.bf16.msra.mxu0 0
      %3801 = vmatprep.subr.bf16.mxu0 0
      %3802 = vmatpush1.bf16.msra.mxu0 0
      %3803 = vmatprep.subr.bf16.mxu0 0
      %3804 = vmatpush1.bf16.msra.mxu0 0
      %3805 = vmatprep.subr.bf16.mxu0 0
      %3806 = vmatpush1.bf16.msra.mxu0 0
      %3807 = vmatprep.subr.bf16.mxu0 0
      %3808 = vmatpush1.bf16.msra.mxu0 0
      %3809 = vmatprep.subr.bf16.mxu0 0
      %3810 = vmatpush1.bf16.msra.mxu0 0
      %3811 = vmatprep.subr.bf16.mxu0 0
      %3812 = vmatpush1.bf16.msra.mxu0 0
      %3813 = vmatprep.subr.bf16.mxu0 0
      %3814 = vmatpush1.bf16.msra.mxu0 0
      %3815 = vmatprep.subr.bf16.mxu0 0
      %3816 = vmatpush1.bf16.msra.mxu0 0
      %3817 = vmatprep.subr.bf16.mxu0 0
      %3818 = vmatpush1.bf16.msra.mxu0 0
      %3819 = vmatprep.mubr.bf16.mxu0 0
      %3820 = vmatmul.mubr.bf16.gmra.mrb[0].mxu0 %v3680
      %v3821 = vpop.f32.mrb[0].mxu0
      %v3822 = vadd.f32 0.0, %v3821
      %v3823 = vpop.f32.mrb[0].mxu0
      %v3824 = vpop.f32.mrb[0].mxu0
      %v3825 = vadd.f32 0.0, %v3824
      %v3826 = vpop.f32.mrb[0].mxu0
      %3827 = vmatprep.mubr.bf16.mxu0 0
      %3828 = vmatmul.mubr.bf16.gmra.mrb[0].mxu0 %v3683
      %v3829 = vpop.f32.mrb[0].mxu0
      %v3830 = vadd.f32 0.0, %v3829
      %v3831 = vpop.f32.mrb[0].mxu0
      %v3832 = vpop.f32.mrb[0].mxu0
      %v3833 = vadd.f32 0.0, %v3832
      %v3834 = vpop.f32.mrb[0].mxu0
      %3835 = vmatprep.mubr.bf16.mxu0 0
      %3836 = vmatmul.mubr.bf16.gmra.mrb[0].mxu0 %v3686
      %v3837 = vpop.f32.mrb[0].mxu0
      %v3838 = vadd.f32 0.0, %v3837
      %v3839 = vpop.f32.mrb[0].mxu0
      %v3840 = vpop.f32.mrb[0].mxu0
      %v3841 = vadd.f32 0.0, %v3840
      %v3842 = vpop.f32.mrb[0].mxu0
      %3843 = vmatprep.mubr.bf16.mxu0 0
      %3844 = vmatmul.mubr.bf16.gmra.mrb[0].mxu0 %v3689
      %v3845 = vpop.f32.mrb[0].mxu0
      %v3846 = vadd.f32 0.0, %v3845
      %v3847 = vpop.f32.mrb[0].mxu0
      %v3848 = vpop.f32.mrb[0].mxu0
      %v3849 = vadd.f32 0.0, %v3848
      %v3850 = vpop.f32.mrb[0].mxu0
      %3851 = vmatprep.mubr.bf16.mxu0 0
      %3852 = vmatmul.mubr.bf16.gmra.mrb[0].mxu0 %v3692
      %v3853 = vpop.f32.mrb[0].mxu0
      %v3854 = vadd.f32 0.0, %v3853
      %v3855 = vpop.f32.mrb[0].mxu0
      %v3856 = vpop.f32.mrb[0].mxu0
      %v3857 = vadd.f32 0.0, %v3856
      %v3858 = vpop.f32.mrb[0].mxu0
      %3859 = vmatprep.mubr.bf16.mxu0 0
      %3860 = vmatmul.mubr.bf16.gmra.mrb[0].mxu0 %v3695
      %v3861 = vpop.f32.mrb[0].mxu0
      %v3862 = vadd.f32 0.0, %v3861
      %v3863 = vpop.f32.mrb[0].mxu0
      %v3864 = vpop.f32.mrb[0].mxu0
      %v3865 = vadd.f32 0.0, %v3864
      %v3866 = vpop.f32.mrb[0].mxu0
      %3867 = vmatprep.mubr.bf16.mxu0 0
      %3868 = vmatmul.mubr.bf16.gmra.mrb[0].mxu0 %v3698
      %v3869 = vpop.f32.mrb[0].mxu0
      %v3870 = vadd.f32 0.0, %v3869
      %v3871 = vpop.f32.mrb[0].mxu0
      %v3872 = vpop.f32.mrb[0].mxu0
      %v3873 = vadd.f32 0.0, %v3872
      %v3874 = vpop.f32.mrb[0].mxu0
      %3875 = vmatprep.mubr.bf16.mxu0 0
      %3876 = vmatmul.mubr.bf16.gmra.mrb[0].mxu0 %v3701
      %v3877 = vpop.f32.mrb[0].mxu0
      %v3878 = vadd.f32 0.0, %v3877
      %v3879 = vpop.f32.mrb[0].mxu0
      %v3880 = vpop.f32.mrb[0].mxu0
      %v3881 = vadd.f32 0.0, %v3880
      %v3882 = vpop.f32.mrb[0].mxu0
      %3883 = vmatprep.mubr.bf16.mxu0 0
      %3884 = vmatmul.mubr.bf16.gmra.mrb[0].mxu0 %v3704
      %v3885 = vpop.f32.mrb[0].mxu0
      %v3886 = vadd.f32 0.0, %v3885
      %v3887 = vpop.f32.mrb[0].mxu0
      %v3888 = vpop.f32.mrb[0].mxu0
      %v3889 = vadd.f32 0.0, %v3888
      %v3890 = vpop.f32.mrb[0].mxu0
      %3891 = vmatprep.mubr.bf16.mxu0 0
      %3892 = vmatmul.mubr.bf16.gmra.mrb[0].mxu0 %v3707
      %v3893 = vpop.f32.mrb[0].mxu0
      %v3894 = vadd.f32 0.0, %v3893
      %v3895 = vpop.f32.mrb[0].mxu0
      %v3896 = vpop.f32.mrb[0].mxu0
      %v3897 = vadd.f32 0.0, %v3896
      %v3898 = vpop.f32.mrb[0].mxu0
      %3899 = vmatprep.mubr.bf16.mxu0 0
      %3900 = vmatmul.mubr.bf16.gmra.mrb[0].mxu0 %v3710
      %v3901 = vpop.f32.mrb[0].mxu0
      %v3902 = vadd.f32 0.0, %v3901
      %v3903 = vpop.f32.mrb[0].mxu0
      %v3904 = vpop.f32.mrb[0].mxu0
      %v3905 = vadd.f32 0.0, %v3904
      %v3906 = vpop.f32.mrb[0].mxu0
      %3907 = vmatprep.mubr.bf16.mxu0 0
      %3908 = vmatmul.mubr.bf16.gmra.mrb[0].mxu0 %v3713
      %v3909 = vpop.f32.mrb[0].mxu0
      %v3910 = vadd.f32 0.0, %v3909
      %v3911 = vpop.f32.mrb[0].mxu0
      %v3912 = vpop.f32.mrb[0].mxu0
      %v3913 = vadd.f32 0.0, %v3912
      %v3914 = vpop.f32.mrb[0].mxu0
      %3915 = vmatprep.mubr.bf16.mxu0 0
      %3916 = vmatmul.mubr.bf16.gmra.mrb[0].mxu0 %v3716
      %v3917 = vpop.f32.mrb[0].mxu0
      %v3918 = vadd.f32 0.0, %v3917
      %v3919 = vpop.f32.mrb[0].mxu0
      %v3920 = vpop.f32.mrb[0].mxu0
      %v3921 = vadd.f32 0.0, %v3920
      %v3922 = vpop.f32.mrb[0].mxu0
      %3923 = vmatprep.mubr.bf16.mxu0 0
      %3924 = vmatmul.mubr.bf16.gmra.mrb[0].mxu0 %v3719
      %v3925 = vpop.f32.mrb[0].mxu0
      %v3926 = vadd.f32 0.0, %v3925
      %v3927 = vpop.f32.mrb[0].mxu0
      %v3928 = vpop.f32.mrb[0].mxu0
      %v3929 = vadd.f32 0.0, %v3928
      %v3930 = vpop.f32.mrb[0].mxu0
      %3931 = vmatprep.mubr.bf16.mxu0 0
      %3932 = vmatmul.mubr.bf16.gmra.mrb[0].mxu0 %v3722
      %v3933 = vpop.f32.mrb[0].mxu0
      %v3934 = vadd.f32 0.0, %v3933
      %v3935 = vpop.f32.mrb[0].mxu0
      %v3936 = vpop.f32.mrb[0].mxu0
      %v3937 = vadd.f32 0.0, %v3936
      %v3938 = vpop.f32.mrb[0].mxu0
      %3939 = vmatprep.mubr.bf16.mxu0 0
      %3940 = vmatmul.mubr.bf16.gmra.mrb[0].mxu0 %v3725
      %v3941 = vpop.f32.mrb[0].mxu0
      %v3942 = vadd.f32 0.0, %v3941
      %v3943 = vpop.f32.mrb[0].mxu0
      %v3944 = vpop.f32.mrb[0].mxu0
      %v3945 = vadd.f32 0.0, %v3944
      %v3946 = vpop.f32.mrb[0].mxu0
      %3947 = vmatprep.mubr.bf16.mxu0 0
      %3948 = vmatmul.mubr.bf16.gmra.mrb[0].mxu0 %v3728
      %v3949 = vpop.f32.mrb[0].mxu0
      %v3950 = vadd.f32 0.0, %v3949
      %v3951 = vpop.f32.mrb[0].mxu0
      %v3952 = vpop.f32.mrb[0].mxu0
      %v3953 = vadd.f32 0.0, %v3952
      %v3954 = vpop.f32.mrb[0].mxu0
      %3955 = vmatprep.mubr.bf16.mxu0 0
      %3956 = vmatmul.mubr.bf16.gmra.mrb[0].mxu0 %v3731
      %v3957 = vpop.f32.mrb[0].mxu0
      %v3958 = vadd.f32 0.0, %v3957
      %v3959 = vpop.f32.mrb[0].mxu0
      %v3960 = vpop.f32.mrb[0].mxu0
      %v3961 = vadd.f32 0.0, %v3960
      %v3962 = vpop.f32.mrb[0].mxu0
      %3963 = vmatprep.mubr.bf16.mxu0 0
      %3964 = vmatmul.mubr.bf16.gmra.mrb[0].mxu0 %v3734
      %v3965 = vpop.f32.mrb[0].mxu0
      %v3966 = vadd.f32 0.0, %v3965
      %v3967 = vpop.f32.mrb[0].mxu0
      %v3968 = vpop.f32.mrb[0].mxu0
      %v3969 = vadd.f32 0.0, %v3968
      %v3970 = vpop.f32.mrb[0].mxu0
      %3971 = vmatprep.mubr.bf16.mxu0 0
      %3972 = vmatmul.mubr.bf16.gmra.mrb[0].mxu0 %v3737
      %v3973 = vpop.f32.mrb[0].mxu0
      %v3974 = vadd.f32 0.0, %v3973
      %v3975 = vpop.f32.mrb[0].mxu0
      %v3976 = vpop.f32.mrb[0].mxu0
      %v3977 = vadd.f32 0.0, %v3976
      %v3978 = vpop.f32.mrb[0].mxu0
      %3979 = vmatprep.mubr.bf16.mxu0 0
      %3980 = vmatmul.mubr.bf16.gmra.mrb[0].mxu0 %v3740
      %v3981 = vpop.f32.mrb[0].mxu0
      %v3982 = vadd.f32 0.0, %v3981
      %v3983 = vpop.f32.mrb[0].mxu0
      %v3984 = vpop.f32.mrb[0].mxu0
      %v3985 = vadd.f32 0.0, %v3984
      %v3986 = vpop.f32.mrb[0].mxu0
      %3987 = vmatprep.mubr.bf16.mxu0 0
      %3988 = vmatmul.mubr.bf16.gmra.mrb[0].mxu0 %v3743
      %v3989 = vpop.f32.mrb[0].mxu0
      %v3990 = vadd.f32 0.0, %v3989
      %v3991 = vpop.f32.mrb[0].mxu0
      %v3992 = vpop.f32.mrb[0].mxu0
      %v3993 = vadd.f32 0.0, %v3992
      %v3994 = vpop.f32.mrb[0].mxu0
      %3995 = vmatprep.mubr.bf16.mxu0 0
      %3996 = vmatmul.mubr.bf16.gmra.mrb[0].mxu0 %v3746
      %v3997 = vpop.f32.mrb[0].mxu0
      %v3998 = vadd.f32 0.0, %v3997
      %v3999 = vpop.f32.mrb[0].mxu0
      %v4000 = vpop.f32.mrb[0].mxu0
      %v4001 = vadd.f32 0.0, %v4000
      %v4002 = vpop.f32.mrb[0].mxu0
      %4003 = vmatprep.mubr.bf16.mxu0 0
      %4004 = vmatmul.mubr.bf16.gmra.mrb[0].mxu0 %v3749
      %v4005 = vpop.f32.mrb[0].mxu0
      %v4006 = vadd.f32 0.0, %v4005
      %v4007 = vpop.f32.mrb[0].mxu0
      %v4008 = vpop.f32.mrb[0].mxu0
      %v4009 = vadd.f32 0.0, %v4008
      %v4010 = vpop.f32.mrb[0].mxu0
      %4011 = vmatprep.mubr.bf16.mxu0 0
      %4012 = vmatmul.mubr.bf16.gmra.mrb[0].mxu0 %v3752
      %v4013 = vpop.f32.mrb[0].mxu0
      %v4014 = vadd.f32 0.0, %v4013
      %v4015 = vpop.f32.mrb[0].mxu0
      %v4016 = vpop.f32.mrb[0].mxu0
      %v4017 = vadd.f32 0.0, %v4016
      %v4018 = vpop.f32.mrb[0].mxu0
      %4019 = vmatprep.mubr.bf16.mxu0 0
      %4020 = vmatmul.mubr.bf16.gmra.mrb[0].mxu0 %v3755
      %v4021 = vpop.f32.mrb[0].mxu0
      %v4022 = vadd.f32 0.0, %v4021
      %v4023 = vpop.f32.mrb[0].mxu0
      %v4024 = vpop.f32.mrb[0].mxu0
      %v4025 = vadd.f32 0.0, %v4024
      %v4026 = vpop.f32.mrb[0].mxu0
      %4027 = vmatprep.mubr.bf16.mxu0 0
      %4028 = vmatmul.mubr.bf16.gmra.mrb[0].mxu0 %v3758
      %v4029 = vpop.f32.mrb[0].mxu0
      %v4030 = vadd.f32 0.0, %v4029
      %v4031 = vpop.f32.mrb[0].mxu0
      %v4032 = vpop.f32.mrb[0].mxu0
      %v4033 = vadd.f32 0.0, %v4032
      %v4034 = vpop.f32.mrb[0].mxu0
      %4035 = vmatprep.mubr.bf16.mxu0 0
      %4036 = vmatmul.mubr.bf16.gmra.mrb[0].mxu0 %v3761
      %v4037 = vpop.f32.mrb[0].mxu0
      %v4038 = vadd.f32 0.0, %v4037
      %v4039 = vpop.f32.mrb[0].mxu0
      %v4040 = vpop.f32.mrb[0].mxu0
      %v4041 = vadd.f32 0.0, %v4040
      %v4042 = vpop.f32.mrb[0].mxu0
      %4043 = vmatprep.mubr.bf16.mxu0 0
      %4044 = vmatmul.mubr.bf16.gmra.mrb[0].mxu0 %v3764
      %v4045 = vpop.f32.mrb[0].mxu0
      %v4046 = vadd.f32 0.0, %v4045
      %v4047 = vpop.f32.mrb[0].mxu0
      %v4048 = vpop.f32.mrb[0].mxu0
      %v4049 = vadd.f32 0.0, %v4048
      %v4050 = vpop.f32.mrb[0].mxu0
      %4051 = vmatprep.mubr.bf16.mxu0 0
      %4052 = vmatmul.mubr.bf16.gmra.mrb[0].mxu0 %v3767
      %v4053 = vpop.f32.mrb[0].mxu0
      %v4054 = vadd.f32 0.0, %v4053
      %v4055 = vpop.f32.mrb[0].mxu0
      %v4056 = vpop.f32.mrb[0].mxu0
      %v4057 = vadd.f32 0.0, %v4056
      %v4058 = vpop.f32.mrb[0].mxu0
      %4059 = vmatprep.mubr.bf16.mxu0 0
      %4060 = vmatmul.mubr.bf16.gmra.mrb[0].mxu0 %v3770
      %v4061 = vpop.f32.mrb[0].mxu0
      %v4062 = vadd.f32 0.0, %v4061
      %v4063 = vpop.f32.mrb[0].mxu0
      %v4064 = vpop.f32.mrb[0].mxu0
      %v4065 = vadd.f32 0.0, %v4064
      %v4066 = vpop.f32.mrb[0].mxu0
      %4067 = vmatprep.mubr.bf16.mxu0 0
      %4068 = vmatmul.mubr.bf16.gmra.mrb[0].mxu0 %v3773
      %v4069 = vpop.f32.mrb[0].mxu0
      %v4070 = vadd.f32 0.0, %v4069
      %v4071 = vpop.f32.mrb[0].mxu0
      %v4072 = vpop.f32.mrb[0].mxu0
      %v4073 = vadd.f32 0.0, %v4072
      %v4074 = vpop.f32.mrb[0].mxu0
      %4075 = vmatprep.mubr.bf16.mxu0 0
      %4076 = vmatmul.mubr.bf16.gmra.mrb[0].mxu0 %v3776
      %v4077 = vpop.f32.mrb[0].mxu0
      %v4078 = vadd.f32 0.0, %v4077
      %v4079 = vpop.f32.mrb[0].mxu0
      %v4080 = vpop.f32.mrb[0].mxu0
      %v4081 = vadd.f32 0.0, %v4080
      %v4082 = vpop.f32.mrb[0].mxu0
      %4083 = vmatprep.mubr.bf16.mxu0 0
      %4084 = vmatmul.mubr.bf16.gmra.mrb[0].mxu0 %v3779
      %v4085 = vpop.f32.mrb[0].mxu0
      %v4086 = vadd.f32 0.0, %v4085
      %v4087 = vpop.f32.mrb[0].mxu0
      %v4088 = vpop.f32.mrb[0].mxu0
      %v4089 = vadd.f32 0.0, %v4088
      %v4090 = vpop.f32.mrb[0].mxu0
      %4091 = vmatprep.mubr.bf16.mxu0 0
      %4092 = vmatmul.mubr.bf16.gmra.mrb[0].mxu0 %v3782
      %v4093 = vpop.f32.mrb[0].mxu0
      %v4094 = vadd.f32 0.0, %v4093
      %v4095 = vpop.f32.mrb[0].mxu0
      %v4096 = vpop.f32.mrb[0].mxu0
      %v4097 = vadd.f32 0.0, %v4096
      %v4098 = vpop.f32.mrb[0].mxu0
      %4099 = vmatprep.mubr.bf16.mxu0 0
      %4100 = vmatmul.mubr.bf16.gmra.mrb[0].mxu0 %v3785
      %v4101 = vpop.f32.mrb[0].mxu0
      %v4102 = vadd.f32 0.0, %v4101
      %v4103 = vpop.f32.mrb[0].mxu0
      %v4104 = vpop.f32.mrb[0].mxu0
      %v4105 = vadd.f32 0.0, %v4104
      %v4106 = vpop.f32.mrb[0].mxu0
      %4107 = vdwg.mxu0
      %v4108 = vld [vmem:[#allocation2] sm:$0xff]
      %v4109 = vld [vmem:[#allocation2 + $0x8] sm:$0xff]
      %v4110 = vld [vmem:[#allocation2 + $0x10] sm:$0xff]
      %v4111 = vld [vmem:[#allocation2 + $0x18] sm:$0xff]
      %v4112 = vld [vmem:[#allocation2 + $0x20] sm:$0xff]
      %v4113 = vld [vmem:[#allocation2 + $0x28] sm:$0xff]
      %v4114 = vld [vmem:[#allocation2 + $0x30] sm:$0xff]
      %v4115 = vld [vmem:[#allocation2 + $0x38] sm:$0xff]
      %v4116 = vld [vmem:[#allocation2 + $0x40] sm:$0xff]
      %v4117 = vld [vmem:[#allocation2 + $0x48] sm:$0xff]
      %v4118 = vld [vmem:[#allocation2 + $0x50] sm:$0xff]
      %v4119 = vld [vmem:[#allocation2 + $0x58] sm:$0xff]
      %v4120 = vld [vmem:[#allocation2 + $0x60] sm:$0xff]
      %v4121 = vld [vmem:[#allocation2 + $0x68] sm:$0xff]
      %v4122 = vld [vmem:[#allocation2 + $0x70] sm:$0xff]
      %v4123 = vld [vmem:[#allocation2 + $0x78] sm:$0xff]
      %v4124 = vld [vmem:[#allocation2 + $0x80] sm:$0xff]
      %v4125 = vld [vmem:[#allocation2 + $0x88] sm:$0xff]
      %v4126 = vld [vmem:[#allocation2 + $0x90] sm:$0xff]
      %v4127 = vld [vmem:[#allocation2 + $0x98] sm:$0xff]
      %v4128 = vld [vmem:[#allocation2 + $0xa0] sm:$0xff]
      %v4129 = vld [vmem:[#allocation2 + $0xa8] sm:$0xff]
      %v4130 = vld [vmem:[#allocation2 + $0xb0] sm:$0xff]
      %v4131 = vld [vmem:[#allocation2 + $0xb8] sm:$0xff]
      %v4132 = vld [vmem:[#allocation2 + $0xc0] sm:$0xff]
      %v4133 = vld [vmem:[#allocation2 + $0xc8] sm:$0xff]
      %v4134 = vld [vmem:[#allocation2 + $0xd0] sm:$0xff]
      %v4135 = vld [vmem:[#allocation2 + $0xd8] sm:$0xff]
      %v4136 = vld [vmem:[#allocation2 + $0xe0] sm:$0xff]
      %v4137 = vld [vmem:[#allocation2 + $0xe8] sm:$0xff]
      %v4138 = vld [vmem:[#allocation2 + $0xf0] sm:$0xff]
      %v4139 = vld [vmem:[#allocation2 + $0xf8] sm:$0xff]
      %v4140 = vld [vmem:[#allocation2 + $0x100] sm:$0xff]
      %v4141 = vld [vmem:[#allocation2 + $0x108] sm:$0xff]
      %v4142 = vld [vmem:[#allocation2 + $0x110] sm:$0xff]
      %v4143 = vld [vmem:[#allocation2 + $0x118] sm:$0xff]
      %v4144 = vld [vmem:[#allocation2 + $0x120] sm:$0xff]
      %v4145 = vld [vmem:[#allocation2 + $0x128] sm:$0xff]
      %v4146 = vld [vmem:[#allocation2 + $0x130] sm:$0xff]
      %v4147 = vld [vmem:[#allocation2 + $0x138] sm:$0xff]
      %v4148 = vld [vmem:[#allocation2 + $0x140] sm:$0xff]
      %v4149 = vld [vmem:[#allocation2 + $0x148] sm:$0xff]
      %v4150 = vld [vmem:[#allocation2 + $0x150] sm:$0xff]
      %v4151 = vld [vmem:[#allocation2 + $0x158] sm:$0xff]
      %v4152 = vld [vmem:[#allocation2 + $0x160] sm:$0xff]
      %v4153 = vld [vmem:[#allocation2 + $0x168] sm:$0xff]
      %v4154 = vld [vmem:[#allocation2 + $0x170] sm:$0xff]
      %v4155 = vld [vmem:[#allocation2 + $0x178] sm:$0xff]
      %v4156 = vld [vmem:[#allocation2 + $0x180] sm:$0xff]
      %v4157 = vld [vmem:[#allocation2 + $0x188] sm:$0xff]
      %v4158 = vld [vmem:[#allocation2 + $0x190] sm:$0xff]
      %v4159 = vld [vmem:[#allocation2 + $0x198] sm:$0xff]
      %v4160 = vld [vmem:[#allocation2 + $0x1a0] sm:$0xff]
      %v4161 = vld [vmem:[#allocation2 + $0x1a8] sm:$0xff]
      %v4162 = vld [vmem:[#allocation2 + $0x1b0] sm:$0xff]
      %v4163 = vld [vmem:[#allocation2 + $0x1b8] sm:$0xff]
      %v4164 = vld [vmem:[#allocation2 + $0x1c0] sm:$0xff]
      %v4165 = vld [vmem:[#allocation2 + $0x1c8] sm:$0xff]
      %v4166 = vld [vmem:[#allocation2 + $0x1d0] sm:$0xff]
      %v4167 = vld [vmem:[#allocation2 + $0x1d8] sm:$0xff]
      %v4168 = vld [vmem:[#allocation2 + $0x1e0] sm:$0xff]
      %v4169 = vld [vmem:[#allocation2 + $0x1e8] sm:$0xff]
      %v4170 = vld [vmem:[#allocation2 + $0x1f0] sm:$0xff]
      %v4171 = vld [vmem:[#allocation2 + $0x1f8] sm:$0xff]
      %v4172 = vld [vmem:[#allocation2 + $0x200] sm:$0xff]
      %v4173 = vld [vmem:[#allocation2 + $0x208] sm:$0xff]
      %v4174 = vld [vmem:[#allocation2 + $0x210] sm:$0xff]
      %v4175 = vld [vmem:[#allocation2 + $0x218] sm:$0xff]
      %v4176 = vld [vmem:[#allocation2 + $0x220] sm:$0xff]
      %v4177 = vld [vmem:[#allocation2 + $0x228] sm:$0xff]
      %v4178 = vld [vmem:[#allocation2 + $0x230] sm:$0xff]
      %v4179 = vld [vmem:[#allocation2 + $0x238] sm:$0xff]
      %v4180 = vadd.f32 %v4108, %v3822
      %v4181 = vadd.f32 %v4109, %v3825
      %v4182 = vadd.f32 %v4110, %v3830
      %v4183 = vadd.f32 %v4111, %v3833
      %v4184 = vadd.f32 %v4112, %v3838
      %v4185 = vadd.f32 %v4113, %v3841
      %v4186 = vadd.f32 %v4114, %v3846
      %v4187 = vadd.f32 %v4115, %v3849
      %v4188 = vadd.f32 %v4116, %v3854
      %v4189 = vadd.f32 %v4117, %v3857
      %v4190 = vadd.f32 %v4118, %v3862
      %v4191 = vadd.f32 %v4119, %v3865
      %v4192 = vadd.f32 %v4120, %v3870
      %v4193 = vadd.f32 %v4121, %v3873
      %v4194 = vadd.f32 %v4122, %v3878
      %v4195 = vadd.f32 %v4123, %v3881
      %v4196 = vadd.f32 %v4124, %v3886
      %v4197 = vadd.f32 %v4125, %v3889
      %v4198 = vadd.f32 %v4126, %v3894
      %v4199 = vadd.f32 %v4127, %v3897
      %v4200 = vadd.f32 %v4128, %v3902
      %v4201 = vadd.f32 %v4129, %v3905
      %v4202 = vadd.f32 %v4130, %v3910
      %v4203 = vadd.f32 %v4131, %v3913
      %v4204 = vadd.f32 %v4132, %v3918
      %v4205 = vadd.f32 %v4133, %v3921
      %v4206 = vadd.f32 %v4134, %v3926
      %v4207 = vadd.f32 %v4135, %v3929
      %v4208 = vadd.f32 %v4136, %v3934
      %v4209 = vadd.f32 %v4137, %v3937
      %v4210 = vadd.f32 %v4138, %v3942
      %v4211 = vadd.f32 %v4139, %v3945
      %v4212 = vadd.f32 %v4140, %v3950
      %v4213 = vadd.f32 %v4141, %v3953
      %v4214 = vadd.f32 %v4142, %v3958
      %v4215 = vadd.f32 %v4143, %v3961
      %v4216 = vadd.f32 %v4144, %v3966
      %v4217 = vadd.f32 %v4145, %v3969
      %v4218 = vadd.f32 %v4146, %v3974
      %v4219 = vadd.f32 %v4147, %v3977
      %v4220 = vadd.f32 %v4148, %v3982
      %v4221 = vadd.f32 %v4149, %v3985
      %v4222 = vadd.f32 %v4150, %v3990
      %v4223 = vadd.f32 %v4151, %v3993
      %v4224 = vadd.f32 %v4152, %v3998
      %v4225 = vadd.f32 %v4153, %v4001
      %v4226 = vadd.f32 %v4154, %v4006
      %v4227 = vadd.f32 %v4155, %v4009
      %v4228 = vadd.f32 %v4156, %v4014
      %v4229 = vadd.f32 %v4157, %v4017
      %v4230 = vadd.f32 %v4158, %v4022
      %v4231 = vadd.f32 %v4159, %v4025
      %v4232 = vadd.f32 %v4160, %v4030
      %v4233 = vadd.f32 %v4161, %v4033
      %v4234 = vadd.f32 %v4162, %v4038
      %v4235 = vadd.f32 %v4163, %v4041
      %v4236 = vadd.f32 %v4164, %v4046
      %v4237 = vadd.f32 %v4165, %v4049
      %v4238 = vadd.f32 %v4166, %v4054
      %v4239 = vadd.f32 %v4167, %v4057
      %v4240 = vadd.f32 %v4168, %v4062
      %v4241 = vadd.f32 %v4169, %v4065
      %v4242 = vadd.f32 %v4170, %v4070
      %v4243 = vadd.f32 %v4171, %v4073
      %v4244 = vadd.f32 %v4172, %v4078
      %v4245 = vadd.f32 %v4173, %v4081
      %v4246 = vadd.f32 %v4174, %v4086
      %v4247 = vadd.f32 %v4175, %v4089
      %v4248 = vadd.f32 %v4176, %v4094
      %v4249 = vadd.f32 %v4177, %v4097
      %v4250 = vadd.f32 %v4178, %v4102
      %v4251 = vadd.f32 %v4179, %v4105
      %4252 = vst.msk [vmem:[#allocation2] sm:$0xff] %vm1990, %v4180
      %4253 = vst.msk [vmem:[#allocation2 + $0x8] sm:$0xff] %vm1990, %v4181
      %4254 = vst.msk [vmem:[#allocation2 + $0x10] sm:$0xff] %vm1990, %v4182
      %4255 = vst.msk [vmem:[#allocation2 + $0x18] sm:$0xff] %vm1990, %v4183
      %4256 = vst.msk [vmem:[#allocation2 + $0x20] sm:$0xff] %vm1990, %v4184
      %4257 = vst.msk [vmem:[#allocation2 + $0x28] sm:$0xff] %vm1990, %v4185
      %4258 = vst.msk [vmem:[#allocation2 + $0x30] sm:$0xff] %vm1990, %v4186
      %4259 = vst.msk [vmem:[#allocation2 + $0x38] sm:$0xff] %vm1990, %v4187
      %4260 = vst.msk [vmem:[#allocation2 + $0x40] sm:$0xff] %vm1990, %v4188
      %4261 = vst.msk [vmem:[#allocation2 + $0x48] sm:$0xff] %vm1990, %v4189
      %4262 = vst.msk [vmem:[#allocation2 + $0x50] sm:$0xff] %vm1990, %v4190
      %4263 = vst.msk [vmem:[#allocation2 + $0x58] sm:$0xff] %vm1990, %v4191
      %4264 = vst.msk [vmem:[#allocation2 + $0x60] sm:$0xff] %vm1990, %v4192
      %4265 = vst.msk [vmem:[#allocation2 + $0x68] sm:$0xff] %vm1990, %v4193
      %4266 = vst.msk [vmem:[#allocation2 + $0x70] sm:$0xff] %vm1990, %v4194
      %4267 = vst.msk [vmem:[#allocation2 + $0x78] sm:$0xff] %vm1990, %v4195
      %4268 = vst.msk [vmem:[#allocation2 + $0x80] sm:$0xff] %vm1990, %v4196
      %4269 = vst.msk [vmem:[#allocation2 + $0x88] sm:$0xff] %vm1990, %v4197
      %4270 = vst.msk [vmem:[#allocation2 + $0x90] sm:$0xff] %vm1990, %v4198
      %4271 = vst.msk [vmem:[#allocation2 + $0x98] sm:$0xff] %vm1990, %v4199
      %4272 = vst.msk [vmem:[#allocation2 + $0xa0] sm:$0xff] %vm1990, %v4200
      %4273 = vst.msk [vmem:[#allocation2 + $0xa8] sm:$0xff] %vm1990, %v4201
      %4274 = vst.msk [vmem:[#allocation2 + $0xb0] sm:$0xff] %vm1990, %v4202
      %4275 = vst.msk [vmem:[#allocation2 + $0xb8] sm:$0xff] %vm1990, %v4203
      %4276 = vst.msk [vmem:[#allocation2 + $0xc0] sm:$0xff] %vm1990, %v4204
      %4277 = vst.msk [vmem:[#allocation2 + $0xc8] sm:$0xff] %vm1990, %v4205
      %4278 = vst.msk [vmem:[#allocation2 + $0xd0] sm:$0xff] %vm1990, %v4206
      %4279 = vst.msk [vmem:[#allocation2 + $0xd8] sm:$0xff] %vm1990, %v4207
      %4280 = vst.msk [vmem:[#allocation2 + $0xe0] sm:$0xff] %vm1990, %v4208
      %4281 = vst.msk [vmem:[#allocation2 + $0xe8] sm:$0xff] %vm1990, %v4209
      %4282 = vst.msk [vmem:[#allocation2 + $0xf0] sm:$0xff] %vm1990, %v4210
      %4283 = vst.msk [vmem:[#allocation2 + $0xf8] sm:$0xff] %vm1990, %v4211
      %4284 = vst.msk [vmem:[#allocation2 + $0x100] sm:$0xff] %vm1990, %v4212
      %4285 = vst.msk [vmem:[#allocation2 + $0x108] sm:$0xff] %vm1990, %v4213
      %4286 = vst.msk [vmem:[#allocation2 + $0x110] sm:$0xff] %vm1990, %v4214
      %4287 = vst.msk [vmem:[#allocation2 + $0x118] sm:$0xff] %vm1990, %v4215
      %4288 = vst.msk [vmem:[#allocation2 + $0x120] sm:$0xff] %vm1990, %v4216
      %4289 = vst.msk [vmem:[#allocation2 + $0x128] sm:$0xff] %vm1990, %v4217
      %4290 = vst.msk [vmem:[#allocation2 + $0x130] sm:$0xff] %vm1990, %v4218
      %4291 = vst.msk [vmem:[#allocation2 + $0x138] sm:$0xff] %vm1990, %v4219
      %4292 = vst.msk [vmem:[#allocation2 + $0x140] sm:$0xff] %vm1990, %v4220
      %4293 = vst.msk [vmem:[#allocation2 + $0x148] sm:$0xff] %vm1990, %v4221
      %4294 = vst.msk [vmem:[#allocation2 + $0x150] sm:$0xff] %vm1990, %v4222
      %4295 = vst.msk [vmem:[#allocation2 + $0x158] sm:$0xff] %vm1990, %v4223
      %4296 = vst.msk [vmem:[#allocation2 + $0x160] sm:$0xff] %vm1990, %v4224
      %4297 = vst.msk [vmem:[#allocation2 + $0x168] sm:$0xff] %vm1990, %v4225
      %4298 = vst.msk [vmem:[#allocation2 + $0x170] sm:$0xff] %vm1990, %v4226
      %4299 = vst.msk [vmem:[#allocation2 + $0x178] sm:$0xff] %vm1990, %v4227
      %4300 = vst.msk [vmem:[#allocation2 + $0x180] sm:$0xff] %vm1990, %v4228
      %4301 = vst.msk [vmem:[#allocation2 + $0x188] sm:$0xff] %vm1990, %v4229
      %4302 = vst.msk [vmem:[#allocation2 + $0x190] sm:$0xff] %vm1990, %v4230
      %4303 = vst.msk [vmem:[#allocation2 + $0x198] sm:$0xff] %vm1990, %v4231
      %4304 = vst.msk [vmem:[#allocation2 + $0x1a0] sm:$0xff] %vm1990, %v4232
      %4305 = vst.msk [vmem:[#allocation2 + $0x1a8] sm:$0xff] %vm1990, %v4233
      %4306 = vst.msk [vmem:[#allocation2 + $0x1b0] sm:$0xff] %vm1990, %v4234
      %4307 = vst.msk [vmem:[#allocation2 + $0x1b8] sm:$0xff] %vm1990, %v4235
      %4308 = vst.msk [vmem:[#allocation2 + $0x1c0] sm:$0xff] %vm1990, %v4236
      %4309 = vst.msk [vmem:[#allocation2 + $0x1c8] sm:$0xff] %vm1990, %v4237
      %4310 = vst.msk [vmem:[#allocation2 + $0x1d0] sm:$0xff] %vm1990, %v4238
      %4311 = vst.msk [vmem:[#allocation2 + $0x1d8] sm:$0xff] %vm1990, %v4239
      %4312 = vst.msk [vmem:[#allocation2 + $0x1e0] sm:$0xff] %vm1990, %v4240
      %4313 = vst.msk [vmem:[#allocation2 + $0x1e8] sm:$0xff] %vm1990, %v4241
      %4314 = vst.msk [vmem:[#allocation2 + $0x1f0] sm:$0xff] %vm1990, %v4242
      %4315 = vst.msk [vmem:[#allocation2 + $0x1f8] sm:$0xff] %vm1990, %v4243
      %4316 = vst.msk [vmem:[#allocation2 + $0x200] sm:$0xff] %vm1990, %v4244
      %4317 = vst.msk [vmem:[#allocation2 + $0x208] sm:$0xff] %vm1990, %v4245
      %4318 = vst.msk [vmem:[#allocation2 + $0x210] sm:$0xff] %vm1990, %v4246
      %4319 = vst.msk [vmem:[#allocation2 + $0x218] sm:$0xff] %vm1990, %v4247
      %4320 = vst.msk [vmem:[#allocation2 + $0x220] sm:$0xff] %vm1990, %v4248
      %4321 = vst.msk [vmem:[#allocation2 + $0x228] sm:$0xff] %vm1990, %v4249
      %4322 = vst.msk [vmem:[#allocation2 + $0x230] sm:$0xff] %vm1990, %v4250
      %4323 = vst.msk [vmem:[#allocation2 + $0x238] sm:$0xff] %vm1990, %v4251
      %s4324 = scalar_lea.vmem %s281, 128
      %v4325 = vld [vmem:[%s4324] sm:$0xf]
      %v4326 = vld [vmem:[%s4324 + $0x4] sm:$0xf]
      %v4327 = vld [vmem:[%s4324 + $0x8] sm:$0xf]
      %v4328 = vld [vmem:[%s4324 + $0xc] sm:$0xf]
      %v4329 = vld [vmem:[%s4324 + $0x10] sm:$0xf]
      %v4330 = vld [vmem:[%s4324 + $0x14] sm:$0xf]
      %v4331 = vld [vmem:[%s4324 + $0x18] sm:$0xf]
      %v4332 = vld [vmem:[%s4324 + $0x1c] sm:$0xf]
      %v4333 = vunpack.c.l.b16 %v3483
      %v4334 = vunpack.c.l.b16 %v3493
      %v4335 = vunpack.c.l.b16 %v3503
      %v4336 = vpack.c.b16 %v3551, %v3550
      %v4337 = vpack.c.b16 %v3553, %v3552
      %v4338 = vpack.c.b16 %v3555, %v3554
      %v4339 = vpack.c.b16 %v3557, %v3556
      %v4340 = vpack.c.b16 %v3559, %v3558
      %v4341 = vpack.c.b16 %v3561, %v3560
      %v4342 = vpack.c.b16 %v3563, %v3562
      %v4343 = vpack.c.b16 %v3565, %v3564
      %v4344 = vpack.c.b16 %v3567, %v3566
      %v4345 = vpack.c.b16 %v3569, %v3568
      %v4346 = vpack.c.b16 %v3571, %v3570
      %v4347 = vpack.c.b16 %v3573, %v3572
      %v4348 = vpack.c.b16 %v3575, %v3574
      %v4349 = vpack.c.b16 %v3577, %v3576
      %v4350 = vpack.c.b16 %v3579, %v3578
      %v4351 = vpack.c.b16 %v3581, %v3580
      %v4352 = vpack.c.b16 %v3583, %v3582
      %v4353 = vpack.c.b16 %v3585, %v3584
      %v4354 = vpack.c.b16 %v3587, %v3586
      %v4355 = vpack.c.b16 %v3589, %v3588
      %v4356 = vpack.c.b16 %v3591, %v3590
      %v4357 = vpack.c.b16 %v3593, %v3592
      %v4358 = vpack.c.b16 %v3595, %v3594
      %v4359 = vpack.c.b16 %v3597, %v3596
      %v4360 = vpack.c.b16 %v3599, %v3598
      %v4361 = vpack.c.b16 %v3601, %v3600
      %v4362 = vpack.c.b16 %v3603, %v3602
      %v4363 = vpack.c.b16 %v3605, %v3604
      %v4364 = vpack.c.b16 %v3607, %v3606
      %v4365 = vpack.c.b16 %v3609, %v3608
      %v4366 = vpack.c.b16 %v3611, %v3610
      %v4367 = vpack.c.b16 %v3613, %v3612
      %v4368 = vpack.c.b16 %v3615, %v3614
      %v4369 = vpack.c.b16 %v3617, %v3616
      %v4370 = vpack.c.b16 %v4333, %v3618
      %v4371 = vpack.c.b16 %v4335, %v4334
      %v4380 = vunpack.c.l.b16 %v4325
      %v4381 = vunpack.c.l.b16 %v4326
      %v4382 = vunpack.c.l.b16 %v4327
      %v4383 = vunpack.c.l.b16 %v4328
      %v4384 = vunpack.c.l.b16 %v4329
      %v4385 = vunpack.c.l.b16 %v4330
      %v4386 = vunpack.c.l.b16 %v4331
      %v4387 = vunpack.c.l.b16 %v4332
      %v4388 = vpack.c.b16 %v4381, %v4380
      %v4389 = vpack.c.b16 %v4383, %v4382
      %v4390 = vpack.c.b16 %v4385, %v4384
      %v4391 = vpack.c.b16 %v4387, %v4386
      %v4397 = vsel %vm614, %v4336, 0
      %v4400 = vsel %vm614, %v4337, 0
      %v4403 = vsel %vm614, %v4338, 0
      %v4406 = vsel %vm614, %v4339, 0
      %v4409 = vsel %vm614, %v4340, 0
      %v4412 = vsel %vm614, %v4341, 0
      %v4415 = vsel %vm614, %v4342, 0
      %v4418 = vsel %vm614, %v4343, 0
      %v4421 = vsel %vm614, %v4344, 0
      %v4424 = vsel %vm614, %v4345, 0
      %v4427 = vsel %vm614, %v4346, 0
      %v4430 = vsel %vm614, %v4347, 0
      %v4433 = vsel %vm614, %v4348, 0
      %v4436 = vsel %vm614, %v4349, 0
      %v4439 = vsel %vm614, %v4350, 0
      %v4442 = vsel %vm614, %v4351, 0
      %v4445 = vsel %vm614, %v4352, 0
      %v4448 = vsel %vm614, %v4353, 0
      %v4451 = vsel %vm614, %v4354, 0
      %v4454 = vsel %vm614, %v4355, 0
      %v4457 = vsel %vm614, %v4356, 0
      %v4460 = vsel %vm614, %v4357, 0
      %v4463 = vsel %vm614, %v4358, 0
      %v4466 = vsel %vm614, %v4359, 0
      %v4469 = vsel %vm614, %v4360, 0
      %v4472 = vsel %vm614, %v4361, 0
      %v4475 = vsel %vm614, %v4362, 0
      %v4478 = vsel %vm614, %v4363, 0
      %v4481 = vsel %vm614, %v4364, 0
      %v4484 = vsel %vm614, %v4365, 0
      %v4487 = vsel %vm614, %v4366, 0
      %v4490 = vsel %vm614, %v4367, 0
      %v4493 = vsel %vm614, %v4368, 0
      %v4496 = vsel %vm614, %v4369, 0
      %v4499 = vsel %vm614, %v4370, 0
      %v4502 = vsel %vm614, %v4371, 0
      %4504 = vmatprep.subr.bf16.mxu0 0
      %4505 = vmatpush1.bf16.msra.mxu0 %v4388
      %4506 = vmatprep.subr.bf16.mxu0 0
      %4507 = vmatpush1.bf16.msra.mxu0 %v4389
      %4508 = vmatprep.subr.bf16.mxu0 0
      %4509 = vmatpush1.bf16.msra.mxu0 %v4390
      %4510 = vmatprep.subr.bf16.mxu0 0
      %4511 = vmatpush1.bf16.msra.mxu0 %v4391
      %4512 = vmatprep.subr.bf16.mxu0 0
      %4513 = vmatpush1.bf16.msra.mxu0 0
      %4514 = vmatprep.subr.bf16.mxu0 0
      %4515 = vmatpush1.bf16.msra.mxu0 0
      %4516 = vmatprep.subr.bf16.mxu0 0
      %4517 = vmatpush1.bf16.msra.mxu0 0
      %4518 = vmatprep.subr.bf16.mxu0 0
      %4519 = vmatpush1.bf16.msra.mxu0 0
      %4520 = vmatprep.subr.bf16.mxu0 0
      %4521 = vmatpush1.bf16.msra.mxu0 0
      %4522 = vmatprep.subr.bf16.mxu0 0
      %4523 = vmatpush1.bf16.msra.mxu0 0
      %4524 = vmatprep.subr.bf16.mxu0 0
      %4525 = vmatpush1.bf16.msra.mxu0 0
      %4526 = vmatprep.subr.bf16.mxu0 0
      %4527 = vmatpush1.bf16.msra.mxu0 0
      %4528 = vmatprep.subr.bf16.mxu0 0
      %4529 = vmatpush1.bf16.msra.mxu0 0
      %4530 = vmatprep.subr.bf16.mxu0 0
      %4531 = vmatpush1.bf16.msra.mxu0 0
      %4532 = vmatprep.subr.bf16.mxu0 0
      %4533 = vmatpush1.bf16.msra.mxu0 0
      %4534 = vmatprep.subr.bf16.mxu0 0
      %4535 = vmatpush1.bf16.msra.mxu0 0
      %4536 = vmatprep.mubr.bf16.mxu0 0
      %4537 = vmatmul.mubr.bf16.gmra.mrb[0].mxu0 %v4397
      %v4538 = vpop.f32.mrb[0].mxu0
      %v4539 = vadd.f32 0.0, %v4538
      %v4540 = vpop.f32.mrb[0].mxu0
      %v4541 = vpop.f32.mrb[0].mxu0
      %v4542 = vadd.f32 0.0, %v4541
      %v4543 = vpop.f32.mrb[0].mxu0
      %4544 = vmatprep.mubr.bf16.mxu0 0
      %4545 = vmatmul.mubr.bf16.gmra.mrb[0].mxu0 %v4400
      %v4546 = vpop.f32.mrb[0].mxu0
      %v4547 = vadd.f32 0.0, %v4546
      %v4548 = vpop.f32.mrb[0].mxu0
      %v4549 = vpop.f32.mrb[0].mxu0
      %v4550 = vadd.f32 0.0, %v4549
      %v4551 = vpop.f32.mrb[0].mxu0
      %4552 = vmatprep.mubr.bf16.mxu0 0
      %4553 = vmatmul.mubr.bf16.gmra.mrb[0].mxu0 %v4403
      %v4554 = vpop.f32.mrb[0].mxu0
      %v4555 = vadd.f32 0.0, %v4554
      %v4556 = vpop.f32.mrb[0].mxu0
      %v4557 = vpop.f32.mrb[0].mxu0
      %v4558 = vadd.f32 0.0, %v4557
      %v4559 = vpop.f32.mrb[0].mxu0
      %4560 = vmatprep.mubr.bf16.mxu0 0
      %4561 = vmatmul.mubr.bf16.gmra.mrb[0].mxu0 %v4406
      %v4562 = vpop.f32.mrb[0].mxu0
      %v4563 = vadd.f32 0.0, %v4562
      %v4564 = vpop.f32.mrb[0].mxu0
      %v4565 = vpop.f32.mrb[0].mxu0
      %v4566 = vadd.f32 0.0, %v4565
      %v4567 = vpop.f32.mrb[0].mxu0
      %4568 = vmatprep.mubr.bf16.mxu0 0
      %4569 = vmatmul.mubr.bf16.gmra.mrb[0].mxu0 %v4409
      %v4570 = vpop.f32.mrb[0].mxu0
      %v4571 = vadd.f32 0.0, %v4570
      %v4572 = vpop.f32.mrb[0].mxu0
      %v4573 = vpop.f32.mrb[0].mxu0
      %v4574 = vadd.f32 0.0, %v4573
      %v4575 = vpop.f32.mrb[0].mxu0
      %4576 = vmatprep.mubr.bf16.mxu0 0
      %4577 = vmatmul.mubr.bf16.gmra.mrb[0].mxu0 %v4412
      %v4578 = vpop.f32.mrb[0].mxu0
      %v4579 = vadd.f32 0.0, %v4578
      %v4580 = vpop.f32.mrb[0].mxu0
      %v4581 = vpop.f32.mrb[0].mxu0
      %v4582 = vadd.f32 0.0, %v4581
      %v4583 = vpop.f32.mrb[0].mxu0
      %4584 = vmatprep.mubr.bf16.mxu0 0
      %4585 = vmatmul.mubr.bf16.gmra.mrb[0].mxu0 %v4415
      %v4586 = vpop.f32.mrb[0].mxu0
      %v4587 = vadd.f32 0.0, %v4586
      %v4588 = vpop.f32.mrb[0].mxu0
      %v4589 = vpop.f32.mrb[0].mxu0
      %v4590 = vadd.f32 0.0, %v4589
      %v4591 = vpop.f32.mrb[0].mxu0
      %4592 = vmatprep.mubr.bf16.mxu0 0
      %4593 = vmatmul.mubr.bf16.gmra.mrb[0].mxu0 %v4418
      %v4594 = vpop.f32.mrb[0].mxu0
      %v4595 = vadd.f32 0.0, %v4594
      %v4596 = vpop.f32.mrb[0].mxu0
      %v4597 = vpop.f32.mrb[0].mxu0
      %v4598 = vadd.f32 0.0, %v4597
      %v4599 = vpop.f32.mrb[0].mxu0
      %4600 = vmatprep.mubr.bf16.mxu0 0
      %4601 = vmatmul.mubr.bf16.gmra.mrb[0].mxu0 %v4421
      %v4602 = vpop.f32.mrb[0].mxu0
      %v4603 = vadd.f32 0.0, %v4602
      %v4604 = vpop.f32.mrb[0].mxu0
      %v4605 = vpop.f32.mrb[0].mxu0
      %v4606 = vadd.f32 0.0, %v4605
      %v4607 = vpop.f32.mrb[0].mxu0
      %4608 = vmatprep.mubr.bf16.mxu0 0
      %4609 = vmatmul.mubr.bf16.gmra.mrb[0].mxu0 %v4424
      %v4610 = vpop.f32.mrb[0].mxu0
      %v4611 = vadd.f32 0.0, %v4610
      %v4612 = vpop.f32.mrb[0].mxu0
      %v4613 = vpop.f32.mrb[0].mxu0
      %v4614 = vadd.f32 0.0, %v4613
      %v4615 = vpop.f32.mrb[0].mxu0
      %4616 = vmatprep.mubr.bf16.mxu0 0
      %4617 = vmatmul.mubr.bf16.gmra.mrb[0].mxu0 %v4427
      %v4618 = vpop.f32.mrb[0].mxu0
      %v4619 = vadd.f32 0.0, %v4618
      %v4620 = vpop.f32.mrb[0].mxu0
      %v4621 = vpop.f32.mrb[0].mxu0
      %v4622 = vadd.f32 0.0, %v4621
      %v4623 = vpop.f32.mrb[0].mxu0
      %4624 = vmatprep.mubr.bf16.mxu0 0
      %4625 = vmatmul.mubr.bf16.gmra.mrb[0].mxu0 %v4430
      %v4626 = vpop.f32.mrb[0].mxu0
      %v4627 = vadd.f32 0.0, %v4626
      %v4628 = vpop.f32.mrb[0].mxu0
      %v4629 = vpop.f32.mrb[0].mxu0
      %v4630 = vadd.f32 0.0, %v4629
      %v4631 = vpop.f32.mrb[0].mxu0
      %4632 = vmatprep.mubr.bf16.mxu0 0
      %4633 = vmatmul.mubr.bf16.gmra.mrb[0].mxu0 %v4433
      %v4634 = vpop.f32.mrb[0].mxu0
      %v4635 = vadd.f32 0.0, %v4634
      %v4636 = vpop.f32.mrb[0].mxu0
      %v4637 = vpop.f32.mrb[0].mxu0
      %v4638 = vadd.f32 0.0, %v4637
      %v4639 = vpop.f32.mrb[0].mxu0
      %4640 = vmatprep.mubr.bf16.mxu0 0
      %4641 = vmatmul.mubr.bf16.gmra.mrb[0].mxu0 %v4436
      %v4642 = vpop.f32.mrb[0].mxu0
      %v4643 = vadd.f32 0.0, %v4642
      %v4644 = vpop.f32.mrb[0].mxu0
      %v4645 = vpop.f32.mrb[0].mxu0
      %v4646 = vadd.f32 0.0, %v4645
      %v4647 = vpop.f32.mrb[0].mxu0
      %4648 = vmatprep.mubr.bf16.mxu0 0
      %4649 = vmatmul.mubr.bf16.gmra.mrb[0].mxu0 %v4439
      %v4650 = vpop.f32.mrb[0].mxu0
      %v4651 = vadd.f32 0.0, %v4650
      %v4652 = vpop.f32.mrb[0].mxu0
      %v4653 = vpop.f32.mrb[0].mxu0
      %v4654 = vadd.f32 0.0, %v4653
      %v4655 = vpop.f32.mrb[0].mxu0
      %4656 = vmatprep.mubr.bf16.mxu0 0
      %4657 = vmatmul.mubr.bf16.gmra.mrb[0].mxu0 %v4442
      %v4658 = vpop.f32.mrb[0].mxu0
      %v4659 = vadd.f32 0.0, %v4658
      %v4660 = vpop.f32.mrb[0].mxu0
      %v4661 = vpop.f32.mrb[0].mxu0
      %v4662 = vadd.f32 0.0, %v4661
      %v4663 = vpop.f32.mrb[0].mxu0
      %4664 = vmatprep.mubr.bf16.mxu0 0
      %4665 = vmatmul.mubr.bf16.gmra.mrb[0].mxu0 %v4445
      %v4666 = vpop.f32.mrb[0].mxu0
      %v4667 = vadd.f32 0.0, %v4666
      %v4668 = vpop.f32.mrb[0].mxu0
      %v4669 = vpop.f32.mrb[0].mxu0
      %v4670 = vadd.f32 0.0, %v4669
      %v4671 = vpop.f32.mrb[0].mxu0
      %4672 = vmatprep.mubr.bf16.mxu0 0
      %4673 = vmatmul.mubr.bf16.gmra.mrb[0].mxu0 %v4448
      %v4674 = vpop.f32.mrb[0].mxu0
      %v4675 = vadd.f32 0.0, %v4674
      %v4676 = vpop.f32.mrb[0].mxu0
      %v4677 = vpop.f32.mrb[0].mxu0
      %v4678 = vadd.f32 0.0, %v4677
      %v4679 = vpop.f32.mrb[0].mxu0
      %4680 = vmatprep.mubr.bf16.mxu0 0
      %4681 = vmatmul.mubr.bf16.gmra.mrb[0].mxu0 %v4451
      %v4682 = vpop.f32.mrb[0].mxu0
      %v4683 = vadd.f32 0.0, %v4682
      %v4684 = vpop.f32.mrb[0].mxu0
      %v4685 = vpop.f32.mrb[0].mxu0
      %v4686 = vadd.f32 0.0, %v4685
      %v4687 = vpop.f32.mrb[0].mxu0
      %4688 = vmatprep.mubr.bf16.mxu0 0
      %4689 = vmatmul.mubr.bf16.gmra.mrb[0].mxu0 %v4454
      %v4690 = vpop.f32.mrb[0].mxu0
      %v4691 = vadd.f32 0.0, %v4690
      %v4692 = vpop.f32.mrb[0].mxu0
      %v4693 = vpop.f32.mrb[0].mxu0
      %v4694 = vadd.f32 0.0, %v4693
      %v4695 = vpop.f32.mrb[0].mxu0
      %4696 = vmatprep.mubr.bf16.mxu0 0
      %4697 = vmatmul.mubr.bf16.gmra.mrb[0].mxu0 %v4457
      %v4698 = vpop.f32.mrb[0].mxu0
      %v4699 = vadd.f32 0.0, %v4698
      %v4700 = vpop.f32.mrb[0].mxu0
      %v4701 = vpop.f32.mrb[0].mxu0
      %v4702 = vadd.f32 0.0, %v4701
      %v4703 = vpop.f32.mrb[0].mxu0
      %4704 = vmatprep.mubr.bf16.mxu0 0
      %4705 = vmatmul.mubr.bf16.gmra.mrb[0].mxu0 %v4460
      %v4706 = vpop.f32.mrb[0].mxu0
      %v4707 = vadd.f32 0.0, %v4706
      %v4708 = vpop.f32.mrb[0].mxu0
      %v4709 = vpop.f32.mrb[0].mxu0
      %v4710 = vadd.f32 0.0, %v4709
      %v4711 = vpop.f32.mrb[0].mxu0
      %4712 = vmatprep.mubr.bf16.mxu0 0
      %4713 = vmatmul.mubr.bf16.gmra.mrb[0].mxu0 %v4463
      %v4714 = vpop.f32.mrb[0].mxu0
      %v4715 = vadd.f32 0.0, %v4714
      %v4716 = vpop.f32.mrb[0].mxu0
      %v4717 = vpop.f32.mrb[0].mxu0
      %v4718 = vadd.f32 0.0, %v4717
      %v4719 = vpop.f32.mrb[0].mxu0
      %4720 = vmatprep.mubr.bf16.mxu0 0
      %4721 = vmatmul.mubr.bf16.gmra.mrb[0].mxu0 %v4466
      %v4722 = vpop.f32.mrb[0].mxu0
      %v4723 = vadd.f32 0.0, %v4722
      %v4724 = vpop.f32.mrb[0].mxu0
      %v4725 = vpop.f32.mrb[0].mxu0
      %v4726 = vadd.f32 0.0, %v4725
      %v4727 = vpop.f32.mrb[0].mxu0
      %4728 = vmatprep.mubr.bf16.mxu0 0
      %4729 = vmatmul.mubr.bf16.gmra.mrb[0].mxu0 %v4469
      %v4730 = vpop.f32.mrb[0].mxu0
      %v4731 = vadd.f32 0.0, %v4730
      %v4732 = vpop.f32.mrb[0].mxu0
      %v4733 = vpop.f32.mrb[0].mxu0
      %v4734 = vadd.f32 0.0, %v4733
      %v4735 = vpop.f32.mrb[0].mxu0
      %4736 = vmatprep.mubr.bf16.mxu0 0
      %4737 = vmatmul.mubr.bf16.gmra.mrb[0].mxu0 %v4472
      %v4738 = vpop.f32.mrb[0].mxu0
      %v4739 = vadd.f32 0.0, %v4738
      %v4740 = vpop.f32.mrb[0].mxu0
      %v4741 = vpop.f32.mrb[0].mxu0
      %v4742 = vadd.f32 0.0, %v4741
      %v4743 = vpop.f32.mrb[0].mxu0
      %4744 = vmatprep.mubr.bf16.mxu0 0
      %4745 = vmatmul.mubr.bf16.gmra.mrb[0].mxu0 %v4475
      %v4746 = vpop.f32.mrb[0].mxu0
      %v4747 = vadd.f32 0.0, %v4746
      %v4748 = vpop.f32.mrb[0].mxu0
      %v4749 = vpop.f32.mrb[0].mxu0
      %v4750 = vadd.f32 0.0, %v4749
      %v4751 = vpop.f32.mrb[0].mxu0
      %4752 = vmatprep.mubr.bf16.mxu0 0
      %4753 = vmatmul.mubr.bf16.gmra.mrb[0].mxu0 %v4478
      %v4754 = vpop.f32.mrb[0].mxu0
      %v4755 = vadd.f32 0.0, %v4754
      %v4756 = vpop.f32.mrb[0].mxu0
      %v4757 = vpop.f32.mrb[0].mxu0
      %v4758 = vadd.f32 0.0, %v4757
      %v4759 = vpop.f32.mrb[0].mxu0
      %4760 = vmatprep.mubr.bf16.mxu0 0
      %4761 = vmatmul.mubr.bf16.gmra.mrb[0].mxu0 %v4481
      %v4762 = vpop.f32.mrb[0].mxu0
      %v4763 = vadd.f32 0.0, %v4762
      %v4764 = vpop.f32.mrb[0].mxu0
      %v4765 = vpop.f32.mrb[0].mxu0
      %v4766 = vadd.f32 0.0, %v4765
      %v4767 = vpop.f32.mrb[0].mxu0
      %4768 = vmatprep.mubr.bf16.mxu0 0
      %4769 = vmatmul.mubr.bf16.gmra.mrb[0].mxu0 %v4484
      %v4770 = vpop.f32.mrb[0].mxu0
      %v4771 = vadd.f32 0.0, %v4770
      %v4772 = vpop.f32.mrb[0].mxu0
      %v4773 = vpop.f32.mrb[0].mxu0
      %v4774 = vadd.f32 0.0, %v4773
      %v4775 = vpop.f32.mrb[0].mxu0
      %4776 = vmatprep.mubr.bf16.mxu0 0
      %4777 = vmatmul.mubr.bf16.gmra.mrb[0].mxu0 %v4487
      %v4778 = vpop.f32.mrb[0].mxu0
      %v4779 = vadd.f32 0.0, %v4778
      %v4780 = vpop.f32.mrb[0].mxu0
      %v4781 = vpop.f32.mrb[0].mxu0
      %v4782 = vadd.f32 0.0, %v4781
      %v4783 = vpop.f32.mrb[0].mxu0
      %4784 = vmatprep.mubr.bf16.mxu0 0
      %4785 = vmatmul.mubr.bf16.gmra.mrb[0].mxu0 %v4490
      %v4786 = vpop.f32.mrb[0].mxu0
      %v4787 = vadd.f32 0.0, %v4786
      %v4788 = vpop.f32.mrb[0].mxu0
      %v4789 = vpop.f32.mrb[0].mxu0
      %v4790 = vadd.f32 0.0, %v4789
      %v4791 = vpop.f32.mrb[0].mxu0
      %4792 = vmatprep.mubr.bf16.mxu0 0
      %4793 = vmatmul.mubr.bf16.gmra.mrb[0].mxu0 %v4493
      %v4794 = vpop.f32.mrb[0].mxu0
      %v4795 = vadd.f32 0.0, %v4794
      %v4796 = vpop.f32.mrb[0].mxu0
      %v4797 = vpop.f32.mrb[0].mxu0
      %v4798 = vadd.f32 0.0, %v4797
      %v4799 = vpop.f32.mrb[0].mxu0
      %4800 = vmatprep.mubr.bf16.mxu0 0
      %4801 = vmatmul.mubr.bf16.gmra.mrb[0].mxu0 %v4496
      %v4802 = vpop.f32.mrb[0].mxu0
      %v4803 = vadd.f32 0.0, %v4802
      %v4804 = vpop.f32.mrb[0].mxu0
      %v4805 = vpop.f32.mrb[0].mxu0
      %v4806 = vadd.f32 0.0, %v4805
      %v4807 = vpop.f32.mrb[0].mxu0
      %4808 = vmatprep.mubr.bf16.mxu0 0
      %4809 = vmatmul.mubr.bf16.gmra.mrb[0].mxu0 %v4499
      %v4810 = vpop.f32.mrb[0].mxu0
      %v4811 = vadd.f32 0.0, %v4810
      %v4812 = vpop.f32.mrb[0].mxu0
      %v4813 = vpop.f32.mrb[0].mxu0
      %v4814 = vadd.f32 0.0, %v4813
      %v4815 = vpop.f32.mrb[0].mxu0
      %4816 = vmatprep.mubr.bf16.mxu0 0
      %4817 = vmatmul.mubr.bf16.gmra.mrb[0].mxu0 %v4502
      %v4818 = vpop.f32.mrb[0].mxu0
      %v4819 = vadd.f32 0.0, %v4818
      %v4820 = vpop.f32.mrb[0].mxu0
      %v4821 = vpop.f32.mrb[0].mxu0
      %v4822 = vadd.f32 0.0, %v4821
      %v4823 = vpop.f32.mrb[0].mxu0
      %4824 = vdwg.mxu0
      %v4825 = vld [vmem:[#allocation2] sm:$0xff]
      %v4826 = vld [vmem:[#allocation2 + $0x8] sm:$0xff]
      %v4827 = vld [vmem:[#allocation2 + $0x10] sm:$0xff]
      %v4828 = vld [vmem:[#allocation2 + $0x18] sm:$0xff]
      %v4829 = vld [vmem:[#allocation2 + $0x20] sm:$0xff]
      %v4830 = vld [vmem:[#allocation2 + $0x28] sm:$0xff]
      %v4831 = vld [vmem:[#allocation2 + $0x30] sm:$0xff]
      %v4832 = vld [vmem:[#allocation2 + $0x38] sm:$0xff]
      %v4833 = vld [vmem:[#allocation2 + $0x40] sm:$0xff]
      %v4834 = vld [vmem:[#allocation2 + $0x48] sm:$0xff]
      %v4835 = vld [vmem:[#allocation2 + $0x50] sm:$0xff]
      %v4836 = vld [vmem:[#allocation2 + $0x58] sm:$0xff]
      %v4837 = vld [vmem:[#allocation2 + $0x60] sm:$0xff]
      %v4838 = vld [vmem:[#allocation2 + $0x68] sm:$0xff]
      %v4839 = vld [vmem:[#allocation2 + $0x70] sm:$0xff]
      %v4840 = vld [vmem:[#allocation2 + $0x78] sm:$0xff]
      %v4841 = vld [vmem:[#allocation2 + $0x80] sm:$0xff]
      %v4842 = vld [vmem:[#allocation2 + $0x88] sm:$0xff]
      %v4843 = vld [vmem:[#allocation2 + $0x90] sm:$0xff]
      %v4844 = vld [vmem:[#allocation2 + $0x98] sm:$0xff]
      %v4845 = vld [vmem:[#allocation2 + $0xa0] sm:$0xff]
      %v4846 = vld [vmem:[#allocation2 + $0xa8] sm:$0xff]
      %v4847 = vld [vmem:[#allocation2 + $0xb0] sm:$0xff]
      %v4848 = vld [vmem:[#allocation2 + $0xb8] sm:$0xff]
      %v4849 = vld [vmem:[#allocation2 + $0xc0] sm:$0xff]
      %v4850 = vld [vmem:[#allocation2 + $0xc8] sm:$0xff]
      %v4851 = vld [vmem:[#allocation2 + $0xd0] sm:$0xff]
      %v4852 = vld [vmem:[#allocation2 + $0xd8] sm:$0xff]
      %v4853 = vld [vmem:[#allocation2 + $0xe0] sm:$0xff]
      %v4854 = vld [vmem:[#allocation2 + $0xe8] sm:$0xff]
      %v4855 = vld [vmem:[#allocation2 + $0xf0] sm:$0xff]
      %v4856 = vld [vmem:[#allocation2 + $0xf8] sm:$0xff]
      %v4857 = vld [vmem:[#allocation2 + $0x100] sm:$0xff]
      %v4858 = vld [vmem:[#allocation2 + $0x108] sm:$0xff]
      %v4859 = vld [vmem:[#allocation2 + $0x110] sm:$0xff]
      %v4860 = vld [vmem:[#allocation2 + $0x118] sm:$0xff]
      %v4861 = vld [vmem:[#allocation2 + $0x120] sm:$0xff]
      %v4862 = vld [vmem:[#allocation2 + $0x128] sm:$0xff]
      %v4863 = vld [vmem:[#allocation2 + $0x130] sm:$0xff]
      %v4864 = vld [vmem:[#allocation2 + $0x138] sm:$0xff]
      %v4865 = vld [vmem:[#allocation2 + $0x140] sm:$0xff]
      %v4866 = vld [vmem:[#allocation2 + $0x148] sm:$0xff]
      %v4867 = vld [vmem:[#allocation2 + $0x150] sm:$0xff]
      %v4868 = vld [vmem:[#allocation2 + $0x158] sm:$0xff]
      %v4869 = vld [vmem:[#allocation2 + $0x160] sm:$0xff]
      %v4870 = vld [vmem:[#allocation2 + $0x168] sm:$0xff]
      %v4871 = vld [vmem:[#allocation2 + $0x170] sm:$0xff]
      %v4872 = vld [vmem:[#allocation2 + $0x178] sm:$0xff]
      %v4873 = vld [vmem:[#allocation2 + $0x180] sm:$0xff]
      %v4874 = vld [vmem:[#allocation2 + $0x188] sm:$0xff]
      %v4875 = vld [vmem:[#allocation2 + $0x190] sm:$0xff]
      %v4876 = vld [vmem:[#allocation2 + $0x198] sm:$0xff]
      %v4877 = vld [vmem:[#allocation2 + $0x1a0] sm:$0xff]
      %v4878 = vld [vmem:[#allocation2 + $0x1a8] sm:$0xff]
      %v4879 = vld [vmem:[#allocation2 + $0x1b0] sm:$0xff]
      %v4880 = vld [vmem:[#allocation2 + $0x1b8] sm:$0xff]
      %v4881 = vld [vmem:[#allocation2 + $0x1c0] sm:$0xff]
      %v4882 = vld [vmem:[#allocation2 + $0x1c8] sm:$0xff]
      %v4883 = vld [vmem:[#allocation2 + $0x1d0] sm:$0xff]
      %v4884 = vld [vmem:[#allocation2 + $0x1d8] sm:$0xff]
      %v4885 = vld [vmem:[#allocation2 + $0x1e0] sm:$0xff]
      %v4886 = vld [vmem:[#allocation2 + $0x1e8] sm:$0xff]
      %v4887 = vld [vmem:[#allocation2 + $0x1f0] sm:$0xff]
      %v4888 = vld [vmem:[#allocation2 + $0x1f8] sm:$0xff]
      %v4889 = vld [vmem:[#allocation2 + $0x200] sm:$0xff]
      %v4890 = vld [vmem:[#allocation2 + $0x208] sm:$0xff]
      %v4891 = vld [vmem:[#allocation2 + $0x210] sm:$0xff]
      %v4892 = vld [vmem:[#allocation2 + $0x218] sm:$0xff]
      %v4893 = vld [vmem:[#allocation2 + $0x220] sm:$0xff]
      %v4894 = vld [vmem:[#allocation2 + $0x228] sm:$0xff]
      %v4895 = vld [vmem:[#allocation2 + $0x230] sm:$0xff]
      %v4896 = vld [vmem:[#allocation2 + $0x238] sm:$0xff]
      %v4897 = vadd.f32 %v4825, %v4539
      %v4898 = vadd.f32 %v4826, %v4542
      %v4899 = vadd.f32 %v4827, %v4547
      %v4900 = vadd.f32 %v4828, %v4550
      %v4901 = vadd.f32 %v4829, %v4555
      %v4902 = vadd.f32 %v4830, %v4558
      %v4903 = vadd.f32 %v4831, %v4563
      %v4904 = vadd.f32 %v4832, %v4566
      %v4905 = vadd.f32 %v4833, %v4571
      %v4906 = vadd.f32 %v4834, %v4574
      %v4907 = vadd.f32 %v4835, %v4579
      %v4908 = vadd.f32 %v4836, %v4582
      %v4909 = vadd.f32 %v4837, %v4587
      %v4910 = vadd.f32 %v4838, %v4590
      %v4911 = vadd.f32 %v4839, %v4595
      %v4912 = vadd.f32 %v4840, %v4598
      %v4913 = vadd.f32 %v4841, %v4603
      %v4914 = vadd.f32 %v4842, %v4606
      %v4915 = vadd.f32 %v4843, %v4611
      %v4916 = vadd.f32 %v4844, %v4614
      %v4917 = vadd.f32 %v4845, %v4619
      %v4918 = vadd.f32 %v4846, %v4622
      %v4919 = vadd.f32 %v4847, %v4627
      %v4920 = vadd.f32 %v4848, %v4630
      %v4921 = vadd.f32 %v4849, %v4635
      %v4922 = vadd.f32 %v4850, %v4638
      %v4923 = vadd.f32 %v4851, %v4643
      %v4924 = vadd.f32 %v4852, %v4646
      %v4925 = vadd.f32 %v4853, %v4651
      %v4926 = vadd.f32 %v4854, %v4654
      %v4927 = vadd.f32 %v4855, %v4659
      %v4928 = vadd.f32 %v4856, %v4662
      %v4929 = vadd.f32 %v4857, %v4667
      %v4930 = vadd.f32 %v4858, %v4670
      %v4931 = vadd.f32 %v4859, %v4675
      %v4932 = vadd.f32 %v4860, %v4678
      %v4933 = vadd.f32 %v4861, %v4683
      %v4934 = vadd.f32 %v4862, %v4686
      %v4935 = vadd.f32 %v4863, %v4691
      %v4936 = vadd.f32 %v4864, %v4694
      %v4937 = vadd.f32 %v4865, %v4699
      %v4938 = vadd.f32 %v4866, %v4702
      %v4939 = vadd.f32 %v4867, %v4707
      %v4940 = vadd.f32 %v4868, %v4710
      %v4941 = vadd.f32 %v4869, %v4715
      %v4942 = vadd.f32 %v4870, %v4718
      %v4943 = vadd.f32 %v4871, %v4723
      %v4944 = vadd.f32 %v4872, %v4726
      %v4945 = vadd.f32 %v4873, %v4731
      %v4946 = vadd.f32 %v4874, %v4734
      %v4947 = vadd.f32 %v4875, %v4739
      %v4948 = vadd.f32 %v4876, %v4742
      %v4949 = vadd.f32 %v4877, %v4747
      %v4950 = vadd.f32 %v4878, %v4750
      %v4951 = vadd.f32 %v4879, %v4755
      %v4952 = vadd.f32 %v4880, %v4758
      %v4953 = vadd.f32 %v4881, %v4763
      %v4954 = vadd.f32 %v4882, %v4766
      %v4955 = vadd.f32 %v4883, %v4771
      %v4956 = vadd.f32 %v4884, %v4774
      %v4957 = vadd.f32 %v4885, %v4779
      %v4958 = vadd.f32 %v4886, %v4782
      %v4959 = vadd.f32 %v4887, %v4787
      %v4960 = vadd.f32 %v4888, %v4790
      %v4961 = vadd.f32 %v4889, %v4795
      %v4962 = vadd.f32 %v4890, %v4798
      %v4963 = vadd.f32 %v4891, %v4803
      %v4964 = vadd.f32 %v4892, %v4806
      %v4965 = vadd.f32 %v4893, %v4811
      %v4966 = vadd.f32 %v4894, %v4814
      %v4967 = vadd.f32 %v4895, %v4819
      %v4968 = vadd.f32 %v4896, %v4822
      %4969 = vst.msk [vmem:[#allocation2] sm:$0xff] %vm1990, %v4897
      %4970 = vst.msk [vmem:[#allocation2 + $0x8] sm:$0xff] %vm1990, %v4898
      %4971 = vst.msk [vmem:[#allocation2 + $0x10] sm:$0xff] %vm1990, %v4899
      %4972 = vst.msk [vmem:[#allocation2 + $0x18] sm:$0xff] %vm1990, %v4900
      %4973 = vst.msk [vmem:[#allocation2 + $0x20] sm:$0xff] %vm1990, %v4901
      %4974 = vst.msk [vmem:[#allocation2 + $0x28] sm:$0xff] %vm1990, %v4902
      %4975 = vst.msk [vmem:[#allocation2 + $0x30] sm:$0xff] %vm1990, %v4903
      %4976 = vst.msk [vmem:[#allocation2 + $0x38] sm:$0xff] %vm1990, %v4904
      %4977 = vst.msk [vmem:[#allocation2 + $0x40] sm:$0xff] %vm1990, %v4905
      %4978 = vst.msk [vmem:[#allocation2 + $0x48] sm:$0xff] %vm1990, %v4906
      %4979 = vst.msk [vmem:[#allocation2 + $0x50] sm:$0xff] %vm1990, %v4907
      %4980 = vst.msk [vmem:[#allocation2 + $0x58] sm:$0xff] %vm1990, %v4908
      %4981 = vst.msk [vmem:[#allocation2 + $0x60] sm:$0xff] %vm1990, %v4909
      %4982 = vst.msk [vmem:[#allocation2 + $0x68] sm:$0xff] %vm1990, %v4910
      %4983 = vst.msk [vmem:[#allocation2 + $0x70] sm:$0xff] %vm1990, %v4911
      %4984 = vst.msk [vmem:[#allocation2 + $0x78] sm:$0xff] %vm1990, %v4912
      %4985 = vst.msk [vmem:[#allocation2 + $0x80] sm:$0xff] %vm1990, %v4913
      %4986 = vst.msk [vmem:[#allocation2 + $0x88] sm:$0xff] %vm1990, %v4914
      %4987 = vst.msk [vmem:[#allocation2 + $0x90] sm:$0xff] %vm1990, %v4915
      %4988 = vst.msk [vmem:[#allocation2 + $0x98] sm:$0xff] %vm1990, %v4916
      %4989 = vst.msk [vmem:[#allocation2 + $0xa0] sm:$0xff] %vm1990, %v4917
      %4990 = vst.msk [vmem:[#allocation2 + $0xa8] sm:$0xff] %vm1990, %v4918
      %4991 = vst.msk [vmem:[#allocation2 + $0xb0] sm:$0xff] %vm1990, %v4919
      %4992 = vst.msk [vmem:[#allocation2 + $0xb8] sm:$0xff] %vm1990, %v4920
      %4993 = vst.msk [vmem:[#allocation2 + $0xc0] sm:$0xff] %vm1990, %v4921
      %4994 = vst.msk [vmem:[#allocation2 + $0xc8] sm:$0xff] %vm1990, %v4922
      %4995 = vst.msk [vmem:[#allocation2 + $0xd0] sm:$0xff] %vm1990, %v4923
      %4996 = vst.msk [vmem:[#allocation2 + $0xd8] sm:$0xff] %vm1990, %v4924
      %4997 = vst.msk [vmem:[#allocation2 + $0xe0] sm:$0xff] %vm1990, %v4925
      %4998 = vst.msk [vmem:[#allocation2 + $0xe8] sm:$0xff] %vm1990, %v4926
      %4999 = vst.msk [vmem:[#allocation2 + $0xf0] sm:$0xff] %vm1990, %v4927
      %5000 = vst.msk [vmem:[#allocation2 + $0xf8] sm:$0xff] %vm1990, %v4928
      %5001 = vst.msk [vmem:[#allocation2 + $0x100] sm:$0xff] %vm1990, %v4929
      %5002 = vst.msk [vmem:[#allocation2 + $0x108] sm:$0xff] %vm1990, %v4930
      %5003 = vst.msk [vmem:[#allocation2 + $0x110] sm:$0xff] %vm1990, %v4931
      %5004 = vst.msk [vmem:[#allocation2 + $0x118] sm:$0xff] %vm1990, %v4932
      %5005 = vst.msk [vmem:[#allocation2 + $0x120] sm:$0xff] %vm1990, %v4933
      %5006 = vst.msk [vmem:[#allocation2 + $0x128] sm:$0xff] %vm1990, %v4934
      %5007 = vst.msk [vmem:[#allocation2 + $0x130] sm:$0xff] %vm1990, %v4935
      %5008 = vst.msk [vmem:[#allocation2 + $0x138] sm:$0xff] %vm1990, %v4936
      %5009 = vst.msk [vmem:[#allocation2 + $0x140] sm:$0xff] %vm1990, %v4937
      %5010 = vst.msk [vmem:[#allocation2 + $0x148] sm:$0xff] %vm1990, %v4938
      %5011 = vst.msk [vmem:[#allocation2 + $0x150] sm:$0xff] %vm1990, %v4939
      %5012 = vst.msk [vmem:[#allocation2 + $0x158] sm:$0xff] %vm1990, %v4940
      %5013 = vst.msk [vmem:[#allocation2 + $0x160] sm:$0xff] %vm1990, %v4941
      %5014 = vst.msk [vmem:[#allocation2 + $0x168] sm:$0xff] %vm1990, %v4942
      %5015 = vst.msk [vmem:[#allocation2 + $0x170] sm:$0xff] %vm1990, %v4943
      %5016 = vst.msk [vmem:[#allocation2 + $0x178] sm:$0xff] %vm1990, %v4944
      %5017 = vst.msk [vmem:[#allocation2 + $0x180] sm:$0xff] %vm1990, %v4945
      %5018 = vst.msk [vmem:[#allocation2 + $0x188] sm:$0xff] %vm1990, %v4946
      %5019 = vst.msk [vmem:[#allocation2 + $0x190] sm:$0xff] %vm1990, %v4947
      %5020 = vst.msk [vmem:[#allocation2 + $0x198] sm:$0xff] %vm1990, %v4948
      %5021 = vst.msk [vmem:[#allocation2 + $0x1a0] sm:$0xff] %vm1990, %v4949
      %5022 = vst.msk [vmem:[#allocation2 + $0x1a8] sm:$0xff] %vm1990, %v4950
      %5023 = vst.msk [vmem:[#allocation2 + $0x1b0] sm:$0xff] %vm1990, %v4951
      %5024 = vst.msk [vmem:[#allocation2 + $0x1b8] sm:$0xff] %vm1990, %v4952
      %5025 = vst.msk [vmem:[#allocation2 + $0x1c0] sm:$0xff] %vm1990, %v4953
      %5026 = vst.msk [vmem:[#allocation2 + $0x1c8] sm:$0xff] %vm1990, %v4954
      %5027 = vst.msk [vmem:[#allocation2 + $0x1d0] sm:$0xff] %vm1990, %v4955
      %5028 = vst.msk [vmem:[#allocation2 + $0x1d8] sm:$0xff] %vm1990, %v4956
      %5029 = vst.msk [vmem:[#allocation2 + $0x1e0] sm:$0xff] %vm1990, %v4957
      %5030 = vst.msk [vmem:[#allocation2 + $0x1e8] sm:$0xff] %vm1990, %v4958
      %5031 = vst.msk [vmem:[#allocation2 + $0x1f0] sm:$0xff] %vm1990, %v4959
      %5032 = vst.msk [vmem:[#allocation2 + $0x1f8] sm:$0xff] %vm1990, %v4960
      %5033 = vst.msk [vmem:[#allocation2 + $0x200] sm:$0xff] %vm1990, %v4961
      %5034 = vst.msk [vmem:[#allocation2 + $0x208] sm:$0xff] %vm1990, %v4962
      %5035 = vst.msk [vmem:[#allocation2 + $0x210] sm:$0xff] %vm1990, %v4963
      %5036 = vst.msk [vmem:[#allocation2 + $0x218] sm:$0xff] %vm1990, %v4964
      %5037 = vst.msk [vmem:[#allocation2 + $0x220] sm:$0xff] %vm1990, %v4965
      %5038 = vst.msk [vmem:[#allocation2 + $0x228] sm:$0xff] %vm1990, %v4966
      %5039 = vst.msk [vmem:[#allocation2 + $0x230] sm:$0xff] %vm1990, %v4967
      %5040 = vst.msk [vmem:[#allocation2 + $0x238] sm:$0xff] %vm1990, %v4968
      %s5041 = scalar_lea.vmem %s281, 224
      %v5042 = vld [vmem:[%s5041] sm:$0xf]
      %v5043 = vld [vmem:[%s5041 + $0x4] sm:$0xf]
      %v5044 = vld [vmem:[%s5041 + $0x8] sm:$0xf]
      %v5045 = vld [vmem:[%s5041 + $0xc] sm:$0xf]
      %v5046 = vld [vmem:[%s5041 + $0x10] sm:$0xf]
      %v5047 = vld [vmem:[%s5041 + $0x14] sm:$0xf]
      %v5048 = vld [vmem:[%s5041 + $0x18] sm:$0xf]
      %v5049 = vld [vmem:[%s5041 + $0x1c] sm:$0xf]
      %v5050 = vunpack.c.l.b16 %v3517
      %v5051 = vunpack.c.l.b16 %v3527
      %v5052 = vunpack.c.l.b16 %v3537
      %v5053 = vpack.c.b16 %v4334, %v4333
      %v5054 = vpack.c.b16 %v5050, %v4335
      %v5055 = vpack.c.b16 %v5052, %v5051
      %v5064 = vunpack.c.l.b16 %v5042
      %v5065 = vunpack.c.l.b16 %v5043
      %v5066 = vunpack.c.l.b16 %v5044
      %v5067 = vunpack.c.l.b16 %v5045
      %v5068 = vunpack.c.l.b16 %v5046
      %v5069 = vunpack.c.l.b16 %v5047
      %v5070 = vunpack.c.l.b16 %v5048
      %v5071 = vunpack.c.l.b16 %v5049
      %v5072 = vpack.c.b16 %v5065, %v5064
      %v5073 = vpack.c.b16 %v5067, %v5066
      %v5074 = vpack.c.b16 %v5069, %v5068
      %v5075 = vpack.c.b16 %v5071, %v5070
      %v5081 = vsel %vm614, %v5053, 0
      %v5084 = vsel %vm614, %v5054, 0
      %v5087 = vsel %vm614, %v5055, 0
      %5089 = vmatprep.subr.bf16.mxu0 0
      %5090 = vmatpush1.bf16.msra.mxu0 %v5072
      %5091 = vmatprep.subr.bf16.mxu0 0
      %5092 = vmatpush1.bf16.msra.mxu0 %v5073
      %5093 = vmatprep.subr.bf16.mxu0 0
      %5094 = vmatpush1.bf16.msra.mxu0 %v5074
      %5095 = vmatprep.subr.bf16.mxu0 0
      %5096 = vmatpush1.bf16.msra.mxu0 %v5075
      %5097 = vmatprep.subr.bf16.mxu0 0
      %5098 = vmatpush1.bf16.msra.mxu0 0
      %5099 = vmatprep.subr.bf16.mxu0 0
      %5100 = vmatpush1.bf16.msra.mxu0 0
      %5101 = vmatprep.subr.bf16.mxu0 0
      %5102 = vmatpush1.bf16.msra.mxu0 0
      %5103 = vmatprep.subr.bf16.mxu0 0
      %5104 = vmatpush1.bf16.msra.mxu0 0
      %5105 = vmatprep.subr.bf16.mxu0 0
      %5106 = vmatpush1.bf16.msra.mxu0 0
      %5107 = vmatprep.subr.bf16.mxu0 0
      %5108 = vmatpush1.bf16.msra.mxu0 0
      %5109 = vmatprep.subr.bf16.mxu0 0
      %5110 = vmatpush1.bf16.msra.mxu0 0
      %5111 = vmatprep.subr.bf16.mxu0 0
      %5112 = vmatpush1.bf16.msra.mxu0 0
      %5113 = vmatprep.subr.bf16.mxu0 0
      %5114 = vmatpush1.bf16.msra.mxu0 0
      %5115 = vmatprep.subr.bf16.mxu0 0
      %5116 = vmatpush1.bf16.msra.mxu0 0
      %5117 = vmatprep.subr.bf16.mxu0 0
      %5118 = vmatpush1.bf16.msra.mxu0 0
      %5119 = vmatprep.subr.bf16.mxu0 0
      %5120 = vmatpush1.bf16.msra.mxu0 0
      %5121 = vmatprep.mubr.bf16.mxu0 0
      %5122 = vmatmul.mubr.bf16.gmra.mrb[0].mxu0 %v3689
      %v5123 = vpop.f32.mrb[0].mxu0
      %v5124 = vadd.f32 0.0, %v5123
      %v5125 = vpop.f32.mrb[0].mxu0
      %v5126 = vpop.f32.mrb[0].mxu0
      %v5127 = vadd.f32 0.0, %v5126
      %v5128 = vpop.f32.mrb[0].mxu0
      %5129 = vmatprep.mubr.bf16.mxu0 0
      %5130 = vmatmul.mubr.bf16.gmra.mrb[0].mxu0 %v3692
      %v5131 = vpop.f32.mrb[0].mxu0
      %v5132 = vadd.f32 0.0, %v5131
      %v5133 = vpop.f32.mrb[0].mxu0
      %v5134 = vpop.f32.mrb[0].mxu0
      %v5135 = vadd.f32 0.0, %v5134
      %v5136 = vpop.f32.mrb[0].mxu0
      %5137 = vmatprep.mubr.bf16.mxu0 0
      %5138 = vmatmul.mubr.bf16.gmra.mrb[0].mxu0 %v3695
      %v5139 = vpop.f32.mrb[0].mxu0
      %v5140 = vadd.f32 0.0, %v5139
      %v5141 = vpop.f32.mrb[0].mxu0
      %v5142 = vpop.f32.mrb[0].mxu0
      %v5143 = vadd.f32 0.0, %v5142
      %v5144 = vpop.f32.mrb[0].mxu0
      %5145 = vmatprep.mubr.bf16.mxu0 0
      %5146 = vmatmul.mubr.bf16.gmra.mrb[0].mxu0 %v3698
      %v5147 = vpop.f32.mrb[0].mxu0
      %v5148 = vadd.f32 0.0, %v5147
      %v5149 = vpop.f32.mrb[0].mxu0
      %v5150 = vpop.f32.mrb[0].mxu0
      %v5151 = vadd.f32 0.0, %v5150
      %v5152 = vpop.f32.mrb[0].mxu0
      %5153 = vmatprep.mubr.bf16.mxu0 0
      %5154 = vmatmul.mubr.bf16.gmra.mrb[0].mxu0 %v3701
      %v5155 = vpop.f32.mrb[0].mxu0
      %v5156 = vadd.f32 0.0, %v5155
      %v5157 = vpop.f32.mrb[0].mxu0
      %v5158 = vpop.f32.mrb[0].mxu0
      %v5159 = vadd.f32 0.0, %v5158
      %v5160 = vpop.f32.mrb[0].mxu0
      %5161 = vmatprep.mubr.bf16.mxu0 0
      %5162 = vmatmul.mubr.bf16.gmra.mrb[0].mxu0 %v3704
      %v5163 = vpop.f32.mrb[0].mxu0
      %v5164 = vadd.f32 0.0, %v5163
      %v5165 = vpop.f32.mrb[0].mxu0
      %v5166 = vpop.f32.mrb[0].mxu0
      %v5167 = vadd.f32 0.0, %v5166
      %v5168 = vpop.f32.mrb[0].mxu0
      %5169 = vmatprep.mubr.bf16.mxu0 0
      %5170 = vmatmul.mubr.bf16.gmra.mrb[0].mxu0 %v3707
      %v5171 = vpop.f32.mrb[0].mxu0
      %v5172 = vadd.f32 0.0, %v5171
      %v5173 = vpop.f32.mrb[0].mxu0
      %v5174 = vpop.f32.mrb[0].mxu0
      %v5175 = vadd.f32 0.0, %v5174
      %v5176 = vpop.f32.mrb[0].mxu0
      %5177 = vmatprep.mubr.bf16.mxu0 0
      %5178 = vmatmul.mubr.bf16.gmra.mrb[0].mxu0 %v3710
      %v5179 = vpop.f32.mrb[0].mxu0
      %v5180 = vadd.f32 0.0, %v5179
      %v5181 = vpop.f32.mrb[0].mxu0
      %v5182 = vpop.f32.mrb[0].mxu0
      %v5183 = vadd.f32 0.0, %v5182
      %v5184 = vpop.f32.mrb[0].mxu0
      %5185 = vmatprep.mubr.bf16.mxu0 0
      %5186 = vmatmul.mubr.bf16.gmra.mrb[0].mxu0 %v3713
      %v5187 = vpop.f32.mrb[0].mxu0
      %v5188 = vadd.f32 0.0, %v5187
      %v5189 = vpop.f32.mrb[0].mxu0
      %v5190 = vpop.f32.mrb[0].mxu0
      %v5191 = vadd.f32 0.0, %v5190
      %v5192 = vpop.f32.mrb[0].mxu0
      %5193 = vmatprep.mubr.bf16.mxu0 0
      %5194 = vmatmul.mubr.bf16.gmra.mrb[0].mxu0 %v3716
      %v5195 = vpop.f32.mrb[0].mxu0
      %v5196 = vadd.f32 0.0, %v5195
      %v5197 = vpop.f32.mrb[0].mxu0
      %v5198 = vpop.f32.mrb[0].mxu0
      %v5199 = vadd.f32 0.0, %v5198
      %v5200 = vpop.f32.mrb[0].mxu0
      %5201 = vmatprep.mubr.bf16.mxu0 0
      %5202 = vmatmul.mubr.bf16.gmra.mrb[0].mxu0 %v3719
      %v5203 = vpop.f32.mrb[0].mxu0
      %v5204 = vadd.f32 0.0, %v5203
      %v5205 = vpop.f32.mrb[0].mxu0
      %v5206 = vpop.f32.mrb[0].mxu0
      %v5207 = vadd.f32 0.0, %v5206
      %v5208 = vpop.f32.mrb[0].mxu0
      %5209 = vmatprep.mubr.bf16.mxu0 0
      %5210 = vmatmul.mubr.bf16.gmra.mrb[0].mxu0 %v3722
      %v5211 = vpop.f32.mrb[0].mxu0
      %v5212 = vadd.f32 0.0, %v5211
      %v5213 = vpop.f32.mrb[0].mxu0
      %v5214 = vpop.f32.mrb[0].mxu0
      %v5215 = vadd.f32 0.0, %v5214
      %v5216 = vpop.f32.mrb[0].mxu0
      %5217 = vmatprep.mubr.bf16.mxu0 0
      %5218 = vmatmul.mubr.bf16.gmra.mrb[0].mxu0 %v3725
      %v5219 = vpop.f32.mrb[0].mxu0
      %v5220 = vadd.f32 0.0, %v5219
      %v5221 = vpop.f32.mrb[0].mxu0
      %v5222 = vpop.f32.mrb[0].mxu0
      %v5223 = vadd.f32 0.0, %v5222
      %v5224 = vpop.f32.mrb[0].mxu0
      %5225 = vmatprep.mubr.bf16.mxu0 0
      %5226 = vmatmul.mubr.bf16.gmra.mrb[0].mxu0 %v3728
      %v5227 = vpop.f32.mrb[0].mxu0
      %v5228 = vadd.f32 0.0, %v5227
      %v5229 = vpop.f32.mrb[0].mxu0
      %v5230 = vpop.f32.mrb[0].mxu0
      %v5231 = vadd.f32 0.0, %v5230
      %v5232 = vpop.f32.mrb[0].mxu0
      %5233 = vmatprep.mubr.bf16.mxu0 0
      %5234 = vmatmul.mubr.bf16.gmra.mrb[0].mxu0 %v3731
      %v5235 = vpop.f32.mrb[0].mxu0
      %v5236 = vadd.f32 0.0, %v5235
      %v5237 = vpop.f32.mrb[0].mxu0
      %v5238 = vpop.f32.mrb[0].mxu0
      %v5239 = vadd.f32 0.0, %v5238
      %v5240 = vpop.f32.mrb[0].mxu0
      %5241 = vmatprep.mubr.bf16.mxu0 0
      %5242 = vmatmul.mubr.bf16.gmra.mrb[0].mxu0 %v3734
      %v5243 = vpop.f32.mrb[0].mxu0
      %v5244 = vadd.f32 0.0, %v5243
      %v5245 = vpop.f32.mrb[0].mxu0
      %v5246 = vpop.f32.mrb[0].mxu0
      %v5247 = vadd.f32 0.0, %v5246
      %v5248 = vpop.f32.mrb[0].mxu0
      %5249 = vmatprep.mubr.bf16.mxu0 0
      %5250 = vmatmul.mubr.bf16.gmra.mrb[0].mxu0 %v3737
      %v5251 = vpop.f32.mrb[0].mxu0
      %v5252 = vadd.f32 0.0, %v5251
      %v5253 = vpop.f32.mrb[0].mxu0
      %v5254 = vpop.f32.mrb[0].mxu0
      %v5255 = vadd.f32 0.0, %v5254
      %v5256 = vpop.f32.mrb[0].mxu0
      %5257 = vmatprep.mubr.bf16.mxu0 0
      %5258 = vmatmul.mubr.bf16.gmra.mrb[0].mxu0 %v3740
      %v5259 = vpop.f32.mrb[0].mxu0
      %v5260 = vadd.f32 0.0, %v5259
      %v5261 = vpop.f32.mrb[0].mxu0
      %v5262 = vpop.f32.mrb[0].mxu0
      %v5263 = vadd.f32 0.0, %v5262
      %v5264 = vpop.f32.mrb[0].mxu0
      %5265 = vmatprep.mubr.bf16.mxu0 0
      %5266 = vmatmul.mubr.bf16.gmra.mrb[0].mxu0 %v3743
      %v5267 = vpop.f32.mrb[0].mxu0
      %v5268 = vadd.f32 0.0, %v5267
      %v5269 = vpop.f32.mrb[0].mxu0
      %v5270 = vpop.f32.mrb[0].mxu0
      %v5271 = vadd.f32 0.0, %v5270
      %v5272 = vpop.f32.mrb[0].mxu0
      %5273 = vmatprep.mubr.bf16.mxu0 0
      %5274 = vmatmul.mubr.bf16.gmra.mrb[0].mxu0 %v3746
      %v5275 = vpop.f32.mrb[0].mxu0
      %v5276 = vadd.f32 0.0, %v5275
      %v5277 = vpop.f32.mrb[0].mxu0
      %v5278 = vpop.f32.mrb[0].mxu0
      %v5279 = vadd.f32 0.0, %v5278
      %v5280 = vpop.f32.mrb[0].mxu0
      %5281 = vmatprep.mubr.bf16.mxu0 0
      %5282 = vmatmul.mubr.bf16.gmra.mrb[0].mxu0 %v3749
      %v5283 = vpop.f32.mrb[0].mxu0
      %v5284 = vadd.f32 0.0, %v5283
      %v5285 = vpop.f32.mrb[0].mxu0
      %v5286 = vpop.f32.mrb[0].mxu0
      %v5287 = vadd.f32 0.0, %v5286
      %v5288 = vpop.f32.mrb[0].mxu0
      %5289 = vmatprep.mubr.bf16.mxu0 0
      %5290 = vmatmul.mubr.bf16.gmra.mrb[0].mxu0 %v3752
      %v5291 = vpop.f32.mrb[0].mxu0
      %v5292 = vadd.f32 0.0, %v5291
      %v5293 = vpop.f32.mrb[0].mxu0
      %v5294 = vpop.f32.mrb[0].mxu0
      %v5295 = vadd.f32 0.0, %v5294
      %v5296 = vpop.f32.mrb[0].mxu0
      %5297 = vmatprep.mubr.bf16.mxu0 0
      %5298 = vmatmul.mubr.bf16.gmra.mrb[0].mxu0 %v3755
      %v5299 = vpop.f32.mrb[0].mxu0
      %v5300 = vadd.f32 0.0, %v5299
      %v5301 = vpop.f32.mrb[0].mxu0
      %v5302 = vpop.f32.mrb[0].mxu0
      %v5303 = vadd.f32 0.0, %v5302
      %v5304 = vpop.f32.mrb[0].mxu0
      %5305 = vmatprep.mubr.bf16.mxu0 0
      %5306 = vmatmul.mubr.bf16.gmra.mrb[0].mxu0 %v3758
      %v5307 = vpop.f32.mrb[0].mxu0
      %v5308 = vadd.f32 0.0, %v5307
      %v5309 = vpop.f32.mrb[0].mxu0
      %v5310 = vpop.f32.mrb[0].mxu0
      %v5311 = vadd.f32 0.0, %v5310
      %v5312 = vpop.f32.mrb[0].mxu0
      %5313 = vmatprep.mubr.bf16.mxu0 0
      %5314 = vmatmul.mubr.bf16.gmra.mrb[0].mxu0 %v3761
      %v5315 = vpop.f32.mrb[0].mxu0
      %v5316 = vadd.f32 0.0, %v5315
      %v5317 = vpop.f32.mrb[0].mxu0
      %v5318 = vpop.f32.mrb[0].mxu0
      %v5319 = vadd.f32 0.0, %v5318
      %v5320 = vpop.f32.mrb[0].mxu0
      %5321 = vmatprep.mubr.bf16.mxu0 0
      %5322 = vmatmul.mubr.bf16.gmra.mrb[0].mxu0 %v3764
      %v5323 = vpop.f32.mrb[0].mxu0
      %v5324 = vadd.f32 0.0, %v5323
      %v5325 = vpop.f32.mrb[0].mxu0
      %v5326 = vpop.f32.mrb[0].mxu0
      %v5327 = vadd.f32 0.0, %v5326
      %v5328 = vpop.f32.mrb[0].mxu0
      %5329 = vmatprep.mubr.bf16.mxu0 0
      %5330 = vmatmul.mubr.bf16.gmra.mrb[0].mxu0 %v3767
      %v5331 = vpop.f32.mrb[0].mxu0
      %v5332 = vadd.f32 0.0, %v5331
      %v5333 = vpop.f32.mrb[0].mxu0
      %v5334 = vpop.f32.mrb[0].mxu0
      %v5335 = vadd.f32 0.0, %v5334
      %v5336 = vpop.f32.mrb[0].mxu0
      %5337 = vmatprep.mubr.bf16.mxu0 0
      %5338 = vmatmul.mubr.bf16.gmra.mrb[0].mxu0 %v3770
      %v5339 = vpop.f32.mrb[0].mxu0
      %v5340 = vadd.f32 0.0, %v5339
      %v5341 = vpop.f32.mrb[0].mxu0
      %v5342 = vpop.f32.mrb[0].mxu0
      %v5343 = vadd.f32 0.0, %v5342
      %v5344 = vpop.f32.mrb[0].mxu0
      %5345 = vmatprep.mubr.bf16.mxu0 0
      %5346 = vmatmul.mubr.bf16.gmra.mrb[0].mxu0 %v3773
      %v5347 = vpop.f32.mrb[0].mxu0
      %v5348 = vadd.f32 0.0, %v5347
      %v5349 = vpop.f32.mrb[0].mxu0
      %v5350 = vpop.f32.mrb[0].mxu0
      %v5351 = vadd.f32 0.0, %v5350
      %v5352 = vpop.f32.mrb[0].mxu0
      %5353 = vmatprep.mubr.bf16.mxu0 0
      %5354 = vmatmul.mubr.bf16.gmra.mrb[0].mxu0 %v3776
      %v5355 = vpop.f32.mrb[0].mxu0
      %v5356 = vadd.f32 0.0, %v5355
      %v5357 = vpop.f32.mrb[0].mxu0
      %v5358 = vpop.f32.mrb[0].mxu0
      %v5359 = vadd.f32 0.0, %v5358
      %v5360 = vpop.f32.mrb[0].mxu0
      %5361 = vmatprep.mubr.bf16.mxu0 0
      %5362 = vmatmul.mubr.bf16.gmra.mrb[0].mxu0 %v3779
      %v5363 = vpop.f32.mrb[0].mxu0
      %v5364 = vadd.f32 0.0, %v5363
      %v5365 = vpop.f32.mrb[0].mxu0
      %v5366 = vpop.f32.mrb[0].mxu0
      %v5367 = vadd.f32 0.0, %v5366
      %v5368 = vpop.f32.mrb[0].mxu0
      %5369 = vmatprep.mubr.bf16.mxu0 0
      %5370 = vmatmul.mubr.bf16.gmra.mrb[0].mxu0 %v3782
      %v5371 = vpop.f32.mrb[0].mxu0
      %v5372 = vadd.f32 0.0, %v5371
      %v5373 = vpop.f32.mrb[0].mxu0
      %v5374 = vpop.f32.mrb[0].mxu0
      %v5375 = vadd.f32 0.0, %v5374
      %v5376 = vpop.f32.mrb[0].mxu0
      %5377 = vmatprep.mubr.bf16.mxu0 0
      %5378 = vmatmul.mubr.bf16.gmra.mrb[0].mxu0 %v3785
      %v5379 = vpop.f32.mrb[0].mxu0
      %v5380 = vadd.f32 0.0, %v5379
      %v5381 = vpop.f32.mrb[0].mxu0
      %v5382 = vpop.f32.mrb[0].mxu0
      %v5383 = vadd.f32 0.0, %v5382
      %v5384 = vpop.f32.mrb[0].mxu0
      %5385 = vmatprep.mubr.bf16.mxu0 0
      %5386 = vmatmul.mubr.bf16.gmra.mrb[0].mxu0 %v5081
      %v5387 = vpop.f32.mrb[0].mxu0
      %v5388 = vadd.f32 0.0, %v5387
      %v5389 = vpop.f32.mrb[0].mxu0
      %v5390 = vpop.f32.mrb[0].mxu0
      %v5391 = vadd.f32 0.0, %v5390
      %v5392 = vpop.f32.mrb[0].mxu0
      %5393 = vmatprep.mubr.bf16.mxu0 0
      %5394 = vmatmul.mubr.bf16.gmra.mrb[0].mxu0 %v5084
      %v5395 = vpop.f32.mrb[0].mxu0
      %v5396 = vadd.f32 0.0, %v5395
      %v5397 = vpop.f32.mrb[0].mxu0
      %v5398 = vpop.f32.mrb[0].mxu0
      %v5399 = vadd.f32 0.0, %v5398
      %v5400 = vpop.f32.mrb[0].mxu0
      %5401 = vmatprep.mubr.bf16.mxu0 0
      %5402 = vmatmul.mubr.bf16.gmra.mrb[0].mxu0 %v5087
      %v5403 = vpop.f32.mrb[0].mxu0
      %v5404 = vadd.f32 0.0, %v5403
      %v5405 = vpop.f32.mrb[0].mxu0
      %v5406 = vpop.f32.mrb[0].mxu0
      %v5407 = vadd.f32 0.0, %v5406
      %v5408 = vpop.f32.mrb[0].mxu0
      %5409 = vdwg.mxu0
      %v5410 = vld [vmem:[#allocation2] sm:$0xff]
      %v5411 = vld [vmem:[#allocation2 + $0x8] sm:$0xff]
      %v5412 = vld [vmem:[#allocation2 + $0x10] sm:$0xff]
      %v5413 = vld [vmem:[#allocation2 + $0x18] sm:$0xff]
      %v5414 = vld [vmem:[#allocation2 + $0x20] sm:$0xff]
      %v5415 = vld [vmem:[#allocation2 + $0x28] sm:$0xff]
      %v5416 = vld [vmem:[#allocation2 + $0x30] sm:$0xff]
      %v5417 = vld [vmem:[#allocation2 + $0x38] sm:$0xff]
      %v5418 = vld [vmem:[#allocation2 + $0x40] sm:$0xff]
      %v5419 = vld [vmem:[#allocation2 + $0x48] sm:$0xff]
      %v5420 = vld [vmem:[#allocation2 + $0x50] sm:$0xff]
      %v5421 = vld [vmem:[#allocation2 + $0x58] sm:$0xff]
      %v5422 = vld [vmem:[#allocation2 + $0x60] sm:$0xff]
      %v5423 = vld [vmem:[#allocation2 + $0x68] sm:$0xff]
      %v5424 = vld [vmem:[#allocation2 + $0x70] sm:$0xff]
      %v5425 = vld [vmem:[#allocation2 + $0x78] sm:$0xff]
      %v5426 = vld [vmem:[#allocation2 + $0x80] sm:$0xff]
      %v5427 = vld [vmem:[#allocation2 + $0x88] sm:$0xff]
      %v5428 = vld [vmem:[#allocation2 + $0x90] sm:$0xff]
      %v5429 = vld [vmem:[#allocation2 + $0x98] sm:$0xff]
      %v5430 = vld [vmem:[#allocation2 + $0xa0] sm:$0xff]
      %v5431 = vld [vmem:[#allocation2 + $0xa8] sm:$0xff]
      %v5432 = vld [vmem:[#allocation2 + $0xb0] sm:$0xff]
      %v5433 = vld [vmem:[#allocation2 + $0xb8] sm:$0xff]
      %v5434 = vld [vmem:[#allocation2 + $0xc0] sm:$0xff]
      %v5435 = vld [vmem:[#allocation2 + $0xc8] sm:$0xff]
      %v5436 = vld [vmem:[#allocation2 + $0xd0] sm:$0xff]
      %v5437 = vld [vmem:[#allocation2 + $0xd8] sm:$0xff]
      %v5438 = vld [vmem:[#allocation2 + $0xe0] sm:$0xff]
      %v5439 = vld [vmem:[#allocation2 + $0xe8] sm:$0xff]
      %v5440 = vld [vmem:[#allocation2 + $0xf0] sm:$0xff]
      %v5441 = vld [vmem:[#allocation2 + $0xf8] sm:$0xff]
      %v5442 = vld [vmem:[#allocation2 + $0x100] sm:$0xff]
      %v5443 = vld [vmem:[#allocation2 + $0x108] sm:$0xff]
      %v5444 = vld [vmem:[#allocation2 + $0x110] sm:$0xff]
      %v5445 = vld [vmem:[#allocation2 + $0x118] sm:$0xff]
      %v5446 = vld [vmem:[#allocation2 + $0x120] sm:$0xff]
      %v5447 = vld [vmem:[#allocation2 + $0x128] sm:$0xff]
      %v5448 = vld [vmem:[#allocation2 + $0x130] sm:$0xff]
      %v5449 = vld [vmem:[#allocation2 + $0x138] sm:$0xff]
      %v5450 = vld [vmem:[#allocation2 + $0x140] sm:$0xff]
      %v5451 = vld [vmem:[#allocation2 + $0x148] sm:$0xff]
      %v5452 = vld [vmem:[#allocation2 + $0x150] sm:$0xff]
      %v5453 = vld [vmem:[#allocation2 + $0x158] sm:$0xff]
      %v5454 = vld [vmem:[#allocation2 + $0x160] sm:$0xff]
      %v5455 = vld [vmem:[#allocation2 + $0x168] sm:$0xff]
      %v5456 = vld [vmem:[#allocation2 + $0x170] sm:$0xff]
      %v5457 = vld [vmem:[#allocation2 + $0x178] sm:$0xff]
      %v5458 = vld [vmem:[#allocation2 + $0x180] sm:$0xff]
      %v5459 = vld [vmem:[#allocation2 + $0x188] sm:$0xff]
      %v5460 = vld [vmem:[#allocation2 + $0x190] sm:$0xff]
      %v5461 = vld [vmem:[#allocation2 + $0x198] sm:$0xff]
      %v5462 = vld [vmem:[#allocation2 + $0x1a0] sm:$0xff]
      %v5463 = vld [vmem:[#allocation2 + $0x1a8] sm:$0xff]
      %v5464 = vld [vmem:[#allocation2 + $0x1b0] sm:$0xff]
      %v5465 = vld [vmem:[#allocation2 + $0x1b8] sm:$0xff]
      %v5466 = vld [vmem:[#allocation2 + $0x1c0] sm:$0xff]
      %v5467 = vld [vmem:[#allocation2 + $0x1c8] sm:$0xff]
      %v5468 = vld [vmem:[#allocation2 + $0x1d0] sm:$0xff]
      %v5469 = vld [vmem:[#allocation2 + $0x1d8] sm:$0xff]
      %v5470 = vld [vmem:[#allocation2 + $0x1e0] sm:$0xff]
      %v5471 = vld [vmem:[#allocation2 + $0x1e8] sm:$0xff]
      %v5472 = vld [vmem:[#allocation2 + $0x1f0] sm:$0xff]
      %v5473 = vld [vmem:[#allocation2 + $0x1f8] sm:$0xff]
      %v5474 = vld [vmem:[#allocation2 + $0x200] sm:$0xff]
      %v5475 = vld [vmem:[#allocation2 + $0x208] sm:$0xff]
      %v5476 = vld [vmem:[#allocation2 + $0x210] sm:$0xff]
      %v5477 = vld [vmem:[#allocation2 + $0x218] sm:$0xff]
      %v5478 = vld [vmem:[#allocation2 + $0x220] sm:$0xff]
      %v5479 = vld [vmem:[#allocation2 + $0x228] sm:$0xff]
      %v5480 = vld [vmem:[#allocation2 + $0x230] sm:$0xff]
      %v5481 = vld [vmem:[#allocation2 + $0x238] sm:$0xff]
      %v5482 = vadd.f32 %v5410, %v5124
      %v5483 = vadd.f32 %v5411, %v5127
      %v5484 = vadd.f32 %v5412, %v5132
      %v5485 = vadd.f32 %v5413, %v5135
      %v5486 = vadd.f32 %v5414, %v5140
      %v5487 = vadd.f32 %v5415, %v5143
      %v5488 = vadd.f32 %v5416, %v5148
      %v5489 = vadd.f32 %v5417, %v5151
      %v5490 = vadd.f32 %v5418, %v5156
      %v5491 = vadd.f32 %v5419, %v5159
      %v5492 = vadd.f32 %v5420, %v5164
      %v5493 = vadd.f32 %v5421, %v5167
      %v5494 = vadd.f32 %v5422, %v5172
      %v5495 = vadd.f32 %v5423, %v5175
      %v5496 = vadd.f32 %v5424, %v5180
      %v5497 = vadd.f32 %v5425, %v5183
      %v5498 = vadd.f32 %v5426, %v5188
      %v5499 = vadd.f32 %v5427, %v5191
      %v5500 = vadd.f32 %v5428, %v5196
      %v5501 = vadd.f32 %v5429, %v5199
      %v5502 = vadd.f32 %v5430, %v5204
      %v5503 = vadd.f32 %v5431, %v5207
      %v5504 = vadd.f32 %v5432, %v5212
      %v5505 = vadd.f32 %v5433, %v5215
      %v5506 = vadd.f32 %v5434, %v5220
      %v5507 = vadd.f32 %v5435, %v5223
      %v5508 = vadd.f32 %v5436, %v5228
      %v5509 = vadd.f32 %v5437, %v5231
      %v5510 = vadd.f32 %v5438, %v5236
      %v5511 = vadd.f32 %v5439, %v5239
      %v5512 = vadd.f32 %v5440, %v5244
      %v5513 = vadd.f32 %v5441, %v5247
      %v5514 = vadd.f32 %v5442, %v5252
      %v5515 = vadd.f32 %v5443, %v5255
      %v5516 = vadd.f32 %v5444, %v5260
      %v5517 = vadd.f32 %v5445, %v5263
      %v5518 = vadd.f32 %v5446, %v5268
      %v5519 = vadd.f32 %v5447, %v5271
      %v5520 = vadd.f32 %v5448, %v5276
      %v5521 = vadd.f32 %v5449, %v5279
      %v5522 = vadd.f32 %v5450, %v5284
      %v5523 = vadd.f32 %v5451, %v5287
      %v5524 = vadd.f32 %v5452, %v5292
      %v5525 = vadd.f32 %v5453, %v5295
      %v5526 = vadd.f32 %v5454, %v5300
      %v5527 = vadd.f32 %v5455, %v5303
      %v5528 = vadd.f32 %v5456, %v5308
      %v5529 = vadd.f32 %v5457, %v5311
      %v5530 = vadd.f32 %v5458, %v5316
      %v5531 = vadd.f32 %v5459, %v5319
      %v5532 = vadd.f32 %v5460, %v5324
      %v5533 = vadd.f32 %v5461, %v5327
      %v5534 = vadd.f32 %v5462, %v5332
      %v5535 = vadd.f32 %v5463, %v5335
      %v5536 = vadd.f32 %v5464, %v5340
      %v5537 = vadd.f32 %v5465, %v5343
      %v5538 = vadd.f32 %v5466, %v5348
      %v5539 = vadd.f32 %v5467, %v5351
      %v5540 = vadd.f32 %v5468, %v5356
      %v5541 = vadd.f32 %v5469, %v5359
      %v5542 = vadd.f32 %v5470, %v5364
      %v5543 = vadd.f32 %v5471, %v5367
      %v5544 = vadd.f32 %v5472, %v5372
      %v5545 = vadd.f32 %v5473, %v5375
      %v5546 = vadd.f32 %v5474, %v5380
      %v5547 = vadd.f32 %v5475, %v5383
      %v5548 = vadd.f32 %v5476, %v5388
      %v5549 = vadd.f32 %v5477, %v5391
      %v5550 = vadd.f32 %v5478, %v5396
      %v5551 = vadd.f32 %v5479, %v5399
      %v5552 = vadd.f32 %v5480, %v5404
      %v5553 = vadd.f32 %v5481, %v5407
      %5554 = vst.msk [vmem:[#allocation2] sm:$0xff] %vm1990, %v5482
      %5555 = vst.msk [vmem:[#allocation2 + $0x8] sm:$0xff] %vm1990, %v5483
      %5556 = vst.msk [vmem:[#allocation2 + $0x10] sm:$0xff] %vm1990, %v5484
      %5557 = vst.msk [vmem:[#allocation2 + $0x18] sm:$0xff] %vm1990, %v5485
      %5558 = vst.msk [vmem:[#allocation2 + $0x20] sm:$0xff] %vm1990, %v5486
      %5559 = vst.msk [vmem:[#allocation2 + $0x28] sm:$0xff] %vm1990, %v5487
      %5560 = vst.msk [vmem:[#allocation2 + $0x30] sm:$0xff] %vm1990, %v5488
      %5561 = vst.msk [vmem:[#allocation2 + $0x38] sm:$0xff] %vm1990, %v5489
      %5562 = vst.msk [vmem:[#allocation2 + $0x40] sm:$0xff] %vm1990, %v5490
      %5563 = vst.msk [vmem:[#allocation2 + $0x48] sm:$0xff] %vm1990, %v5491
      %5564 = vst.msk [vmem:[#allocation2 + $0x50] sm:$0xff] %vm1990, %v5492
      %5565 = vst.msk [vmem:[#allocation2 + $0x58] sm:$0xff] %vm1990, %v5493
      %5566 = vst.msk [vmem:[#allocation2 + $0x60] sm:$0xff] %vm1990, %v5494
      %5567 = vst.msk [vmem:[#allocation2 + $0x68] sm:$0xff] %vm1990, %v5495
      %5568 = vst.msk [vmem:[#allocation2 + $0x70] sm:$0xff] %vm1990, %v5496
      %5569 = vst.msk [vmem:[#allocation2 + $0x78] sm:$0xff] %vm1990, %v5497
      %5570 = vst.msk [vmem:[#allocation2 + $0x80] sm:$0xff] %vm1990, %v5498
      %5571 = vst.msk [vmem:[#allocation2 + $0x88] sm:$0xff] %vm1990, %v5499
      %5572 = vst.msk [vmem:[#allocation2 + $0x90] sm:$0xff] %vm1990, %v5500
      %5573 = vst.msk [vmem:[#allocation2 + $0x98] sm:$0xff] %vm1990, %v5501
      %5574 = vst.msk [vmem:[#allocation2 + $0xa0] sm:$0xff] %vm1990, %v5502
      %5575 = vst.msk [vmem:[#allocation2 + $0xa8] sm:$0xff] %vm1990, %v5503
      %5576 = vst.msk [vmem:[#allocation2 + $0xb0] sm:$0xff] %vm1990, %v5504
      %5577 = vst.msk [vmem:[#allocation2 + $0xb8] sm:$0xff] %vm1990, %v5505
      %5578 = vst.msk [vmem:[#allocation2 + $0xc0] sm:$0xff] %vm1990, %v5506
      %5579 = vst.msk [vmem:[#allocation2 + $0xc8] sm:$0xff] %vm1990, %v5507
      %5580 = vst.msk [vmem:[#allocation2 + $0xd0] sm:$0xff] %vm1990, %v5508
      %5581 = vst.msk [vmem:[#allocation2 + $0xd8] sm:$0xff] %vm1990, %v5509
      %5582 = vst.msk [vmem:[#allocation2 + $0xe0] sm:$0xff] %vm1990, %v5510
      %5583 = vst.msk [vmem:[#allocation2 + $0xe8] sm:$0xff] %vm1990, %v5511
      %5584 = vst.msk [vmem:[#allocation2 + $0xf0] sm:$0xff] %vm1990, %v5512
      %5585 = vst.msk [vmem:[#allocation2 + $0xf8] sm:$0xff] %vm1990, %v5513
      %5586 = vst.msk [vmem:[#allocation2 + $0x100] sm:$0xff] %vm1990, %v5514
      %5587 = vst.msk [vmem:[#allocation2 + $0x108] sm:$0xff] %vm1990, %v5515
      %5588 = vst.msk [vmem:[#allocation2 + $0x110] sm:$0xff] %vm1990, %v5516
      %5589 = vst.msk [vmem:[#allocation2 + $0x118] sm:$0xff] %vm1990, %v5517
      %5590 = vst.msk [vmem:[#allocation2 + $0x120] sm:$0xff] %vm1990, %v5518
      %5591 = vst.msk [vmem:[#allocation2 + $0x128] sm:$0xff] %vm1990, %v5519
      %5592 = vst.msk [vmem:[#allocation2 + $0x130] sm:$0xff] %vm1990, %v5520
      %5593 = vst.msk [vmem:[#allocation2 + $0x138] sm:$0xff] %vm1990, %v5521
      %5594 = vst.msk [vmem:[#allocation2 + $0x140] sm:$0xff] %vm1990, %v5522
      %5595 = vst.msk [vmem:[#allocation2 + $0x148] sm:$0xff] %vm1990, %v5523
      %5596 = vst.msk [vmem:[#allocation2 + $0x150] sm:$0xff] %vm1990, %v5524
      %5597 = vst.msk [vmem:[#allocation2 + $0x158] sm:$0xff] %vm1990, %v5525
      %5598 = vst.msk [vmem:[#allocation2 + $0x160] sm:$0xff] %vm1990, %v5526
      %5599 = vst.msk [vmem:[#allocation2 + $0x168] sm:$0xff] %vm1990, %v5527
      %5600 = vst.msk [vmem:[#allocation2 + $0x170] sm:$0xff] %vm1990, %v5528
      %5601 = vst.msk [vmem:[#allocation2 + $0x178] sm:$0xff] %vm1990, %v5529
      %5602 = vst.msk [vmem:[#allocation2 + $0x180] sm:$0xff] %vm1990, %v5530
      %5603 = vst.msk [vmem:[#allocation2 + $0x188] sm:$0xff] %vm1990, %v5531
      %5604 = vst.msk [vmem:[#allocation2 + $0x190] sm:$0xff] %vm1990, %v5532
      %5605 = vst.msk [vmem:[#allocation2 + $0x198] sm:$0xff] %vm1990, %v5533
      %5606 = vst.msk [vmem:[#allocation2 + $0x1a0] sm:$0xff] %vm1990, %v5534
      %5607 = vst.msk [vmem:[#allocation2 + $0x1a8] sm:$0xff] %vm1990, %v5535
      %5608 = vst.msk [vmem:[#allocation2 + $0x1b0] sm:$0xff] %vm1990, %v5536
      %5609 = vst.msk [vmem:[#allocation2 + $0x1b8] sm:$0xff] %vm1990, %v5537
      %5610 = vst.msk [vmem:[#allocation2 + $0x1c0] sm:$0xff] %vm1990, %v5538
      %5611 = vst.msk [vmem:[#allocation2 + $0x1c8] sm:$0xff] %vm1990, %v5539
      %5612 = vst.msk [vmem:[#allocation2 + $0x1d0] sm:$0xff] %vm1990, %v5540
      %5613 = vst.msk [vmem:[#allocation2 + $0x1d8] sm:$0xff] %vm1990, %v5541
      %5614 = vst.msk [vmem:[#allocation2 + $0x1e0] sm:$0xff] %vm1990, %v5542
      %5615 = vst.msk [vmem:[#allocation2 + $0x1e8] sm:$0xff] %vm1990, %v5543
      %5616 = vst.msk [vmem:[#allocation2 + $0x1f0] sm:$0xff] %vm1990, %v5544
      %5617 = vst.msk [vmem:[#allocation2 + $0x1f8] sm:$0xff] %vm1990, %v5545
      %5618 = vst.msk [vmem:[#allocation2 + $0x200] sm:$0xff] %vm1990, %v5546
      %5619 = vst.msk [vmem:[#allocation2 + $0x208] sm:$0xff] %vm1990, %v5547
      %5620 = vst.msk [vmem:[#allocation2 + $0x210] sm:$0xff] %vm1990, %v5548
      %5621 = vst.msk [vmem:[#allocation2 + $0x218] sm:$0xff] %vm1990, %v5549
      %5622 = vst.msk [vmem:[#allocation2 + $0x220] sm:$0xff] %vm1990, %v5550
      %5623 = vst.msk [vmem:[#allocation2 + $0x228] sm:$0xff] %vm1990, %v5551
      %5624 = vst.msk [vmem:[#allocation2 + $0x230] sm:$0xff] %vm1990, %v5552
      %5625 = vst.msk [vmem:[#allocation2 + $0x238] sm:$0xff] %vm1990, %v5553
      %vm5652 = vcmask 1042432
      %vm5653 = vcmask 1046532
      %vm5654 = vmor %vm5652, %vm5653
      %v5655 = vrot.slane %v298, 5
      %v5656 = vrot.slane %v5655, 4
      %v5657 = vrot.slane %v299, 5
      %v5658 = vsel %vm5654, %v5656, %v5657
      %v5659 = vrot.slane %v5657, 4
      %v5660 = vrot.slane %v300, 5
      %v5661 = vsel %vm5654, %v5659, %v5660
      %v5662 = vrot.slane %v5660, 4
      %v5663 = vrot.slane %v301, 5
      %v5664 = vsel %vm5654, %v5662, %v5663
      %v5665 = vrot.slane %v302, 5
      %v5666 = vrot.slane %v5665, 4
      %v5667 = vrot.slane %v303, 5
      %v5668 = vsel %vm5654, %v5666, %v5667
      %v5669 = vrot.slane %v5667, 4
      %v5670 = vrot.slane %v304, 5
      %v5671 = vsel %vm5654, %v5669, %v5670
      %v5672 = vrot.slane %v5670, 4
      %v5673 = vrot.slane %v305, 5
      %v5674 = vsel %vm5654, %v5672, %v5673
      %v5675 = vrot.slane %v306, 5
      %v5676 = vrot.slane %v5675, 4
      %v5677 = vrot.slane %v307, 5
      %v5678 = vsel %vm5654, %v5676, %v5677
      %v5679 = vrot.slane %v5677, 4
      %v5680 = vrot.slane %v308, 5
      %v5681 = vsel %vm5654, %v5679, %v5680
      %v5682 = vrot.slane %v5680, 4
      %v5683 = vrot.slane %v309, 5
      %v5684 = vsel %vm5654, %v5682, %v5683
      %v5685 = vrot.slane %v310, 5
      %v5686 = vrot.slane %v5685, 4
      %v5687 = vrot.slane %v311, 5
      %v5688 = vsel %vm5654, %v5686, %v5687
      %v5689 = vrot.slane %v5687, 4
      %v5690 = vrot.slane %v312, 5
      %v5691 = vsel %vm5654, %v5689, %v5690
      %v5692 = vrot.slane %v5690, 4
      %v5693 = vrot.slane %v313, 5
      %v5694 = vsel %vm5654, %v5692, %v5693
      %v5695 = vrot.slane %v314, 5
      %v5696 = vrot.slane %v5695, 4
      %v5697 = vrot.slane %v315, 5
      %v5698 = vsel %vm5654, %v5696, %v5697
      %v5699 = vrot.slane %v5697, 4
      %v5700 = vrot.slane %v316, 5
      %v5701 = vsel %vm5654, %v5699, %v5700
      %v5702 = vrot.slane %v5700, 4
      %v5703 = vrot.slane %v317, 5
      %v5704 = vsel %vm5654, %v5702, %v5703
      %v5705 = vrot.slane %v318, 5
      %v5706 = vrot.slane %v5705, 4
      %v5707 = vrot.slane %v319, 5
      %v5708 = vsel %vm5654, %v5706, %v5707
      %v5709 = vrot.slane %v5707, 4
      %v5710 = vrot.slane %v320, 5
      %v5711 = vsel %vm5654, %v5709, %v5710
      %v5712 = vrot.slane %v5710, 4
      %v5713 = vrot.slane %v321, 5
      %v5714 = vsel %vm5654, %v5712, %v5713
      %v5715 = vrot.slane %v322, 5
      %v5716 = vrot.slane %v5715, 4
      %v5717 = vrot.slane %v323, 5
      %v5718 = vsel %vm5654, %v5716, %v5717
      %v5719 = vrot.slane %v5717, 4
      %v5720 = vrot.slane %v324, 5
      %v5721 = vsel %vm5654, %v5719, %v5720
      %v5722 = vrot.slane %v5720, 4
      %v5723 = vrot.slane %v325, 5
      %v5724 = vsel %vm5654, %v5722, %v5723
      %v5725 = vrot.slane %v326, 5
      %v5726 = vrot.slane %v5725, 4
      %v5727 = vrot.slane %v327, 5
      %v5728 = vsel %vm5654, %v5726, %v5727
      %v5729 = vrot.slane %v5727, 4
      %v5730 = vrot.slane %v328, 5
      %v5731 = vsel %vm5654, %v5729, %v5730
      %v5732 = vrot.slane %v5730, 4
      %v5733 = vrot.slane %v329, 5
      %v5734 = vsel %vm5654, %v5732, %v5733
      %v5735 = vrot.slane %v330, 5
      %v5736 = vrot.slane %v5735, 4
      %v5737 = vrot.slane %v331, 5
      %v5738 = vsel %vm5654, %v5736, %v5737
      %v5739 = vrot.slane %v5737, 4
      %v5740 = vrot.slane %v332, 5
      %v5741 = vsel %vm5654, %v5739, %v5740
      %v5742 = vrot.slane %v5740, 4
      %v5743 = vrot.slane %v333, 5
      %v5744 = vsel %vm5654, %v5742, %v5743
      %v5745 = vrot.slane %v334, 5
      %v5746 = vrot.slane %v5745, 4
      %v5747 = vrot.slane %v335, 5
      %v5748 = vsel %vm5654, %v5746, %v5747
      %v5749 = vrot.slane %v5747, 4
      %v5750 = vrot.slane %v336, 5
      %v5751 = vsel %vm5654, %v5749, %v5750
      %v5752 = vrot.slane %v5750, 4
      %v5753 = vrot.slane %v337, 5
      %v5754 = vsel %vm5654, %v5752, %v5753
      %v5755 = vrot.slane %v338, 5
      %v5756 = vrot.slane %v5755, 4
      %v5757 = vrot.slane %v339, 5
      %v5758 = vsel %vm5654, %v5756, %v5757
      %v5759 = vrot.slane %v5757, 4
      %v5760 = vrot.slane %v340, 5
      %v5761 = vsel %vm5654, %v5759, %v5760
      %v5762 = vrot.slane %v5760, 4
      %v5763 = vrot.slane %v341, 5
      %v5764 = vsel %vm5654, %v5762, %v5763
      %v5765 = vrot.slane %v342, 5
      %v5766 = vrot.slane %v5765, 4
      %v5767 = vrot.slane %v343, 5
      %v5768 = vsel %vm5654, %v5766, %v5767
      %v5769 = vrot.slane %v5767, 4
      %v5770 = vrot.slane %v344, 5
      %v5771 = vsel %vm5654, %v5769, %v5770
      %v5772 = vrot.slane %v5770, 4
      %v5773 = vrot.slane %v345, 5
      %v5774 = vsel %vm5654, %v5772, %v5773
      %v5775 = vrot.slane %v346, 5
      %v5776 = vrot.slane %v5775, 4
      %v5777 = vrot.slane %v347, 5
      %v5778 = vsel %vm5654, %v5776, %v5777
      %v5779 = vrot.slane %v5777, 4
      %v5780 = vrot.slane %v348, 5
      %v5781 = vsel %vm5654, %v5779, %v5780
      %v5782 = vrot.slane %v5780, 4
      %v5783 = vrot.slane %v349, 5
      %v5784 = vsel %vm5654, %v5782, %v5783
      %v5785 = vrot.slane %v350, 5
      %v5786 = vrot.slane %v5785, 4
      %v5787 = vrot.slane %v351, 5
      %v5788 = vsel %vm5654, %v5786, %v5787
      %v5789 = vrot.slane %v5787, 4
      %v5790 = vrot.slane %v352, 5
      %v5791 = vsel %vm5654, %v5789, %v5790
      %v5792 = vrot.slane %v5790, 4
      %v5793 = vrot.slane %v353, 5
      %v5794 = vsel %vm5654, %v5792, %v5793
      %v5795 = vrot.slane %v354, 5
      %v5796 = vrot.slane %v5795, 4
      %v5797 = vrot.slane %v355, 5
      %v5798 = vsel %vm5654, %v5796, %v5797
      %v5799 = vrot.slane %v5797, 4
      %v5800 = vrot.slane %v356, 5
      %v5801 = vsel %vm5654, %v5799, %v5800
      %v5802 = vrot.slane %v5800, 4
      %v5803 = vrot.slane %v357, 5
      %v5804 = vsel %vm5654, %v5802, %v5803
      %v5805 = vrot.slane %v358, 5
      %v5806 = vrot.slane %v5805, 4
      %v5807 = vrot.slane %v359, 5
      %v5808 = vsel %vm5654, %v5806, %v5807
      %v5809 = vrot.slane %v5807, 4
      %v5810 = vrot.slane %v360, 5
      %v5811 = vsel %vm5654, %v5809, %v5810
      %v5812 = vrot.slane %v5810, 4
      %v5813 = vrot.slane %v361, 5
      %v5814 = vsel %vm5654, %v5812, %v5813
      %v5815 = vrot.slane %v362, 5
      %v5816 = vrot.slane %v5815, 4
      %v5817 = vrot.slane %v363, 5
      %v5818 = vsel %vm5654, %v5816, %v5817
      %v5819 = vrot.slane %v5817, 4
      %v5820 = vrot.slane %v364, 5
      %v5821 = vsel %vm5654, %v5819, %v5820
      %v5822 = vrot.slane %v5820, 4
      %v5823 = vrot.slane %v365, 5
      %v5824 = vsel %vm5654, %v5822, %v5823
      %v5825 = vrot.slane %v366, 5
      %v5826 = vrot.slane %v5825, 4
      %v5827 = vrot.slane %v367, 5
      %v5828 = vsel %vm5654, %v5826, %v5827
      %v5829 = vrot.slane %v5827, 4
      %v5830 = vrot.slane %v368, 5
      %v5831 = vsel %vm5654, %v5829, %v5830
      %v5832 = vrot.slane %v5830, 4
      %v5833 = vrot.slane %v369, 5
      %v5834 = vsel %vm5654, %v5832, %v5833
      %v5835 = vrot.slane %v370, 5
      %v5836 = vrot.slane %v5835, 4
      %v5837 = vrot.slane %v371, 5
      %v5838 = vsel %vm5654, %v5836, %v5837
      %v5839 = vrot.slane %v5837, 4
      %v5840 = vrot.slane %v372, 5
      %v5841 = vsel %vm5654, %v5839, %v5840
      %v5842 = vrot.slane %v5840, 4
      %v5843 = vrot.slane %v373, 5
      %v5844 = vsel %vm5654, %v5842, %v5843
      %v5845 = vrot.slane %v374, 5
      %v5846 = vrot.slane %v5845, 4
      %v5847 = vrot.slane %v375, 5
      %v5848 = vsel %vm5654, %v5846, %v5847
      %v5849 = vrot.slane %v5847, 4
      %v5850 = vrot.slane %v376, 5
      %v5851 = vsel %vm5654, %v5849, %v5850
      %v5852 = vrot.slane %v5850, 4
      %v5853 = vrot.slane %v377, 5
      %v5854 = vsel %vm5654, %v5852, %v5853
      %v5855 = vrot.slane %v378, 5
      %v5856 = vrot.slane %v5855, 4
      %v5857 = vrot.slane %v379, 5
      %v5858 = vsel %vm5654, %v5856, %v5857
      %v5859 = vrot.slane %v5857, 4
      %v5860 = vrot.slane %v380, 5
      %v5861 = vsel %vm5654, %v5859, %v5860
      %v5862 = vrot.slane %v5860, 4
      %v5863 = vrot.slane %v381, 5
      %v5864 = vsel %vm5654, %v5862, %v5863
      %v5865 = vrot.slane %v382, 5
      %v5866 = vrot.slane %v5865, 4
      %v5867 = vrot.slane %v383, 5
      %v5868 = vsel %vm5654, %v5866, %v5867
      %v5869 = vrot.slane %v5867, 4
      %v5870 = vrot.slane %v384, 5
      %v5871 = vsel %vm5654, %v5869, %v5870
      %v5872 = vrot.slane %v5870, 4
      %v5873 = vrot.slane %v385, 5
      %v5874 = vsel %vm5654, %v5872, %v5873
      %v5875 = vrot.slane %v386, 5
      %v5876 = vrot.slane %v5875, 4
      %v5877 = vrot.slane %v387, 5
      %v5878 = vsel %vm5654, %v5876, %v5877
      %v5879 = vrot.slane %v5877, 4
      %v5880 = vrot.slane %v388, 5
      %v5881 = vsel %vm5654, %v5879, %v5880
      %v5882 = vrot.slane %v5880, 4
      %v5883 = vrot.slane %v389, 5
      %v5884 = vsel %vm5654, %v5882, %v5883
      %v5885 = vrot.slane %v390, 5
      %v5886 = vrot.slane %v5885, 4
      %v5887 = vrot.slane %v391, 5
      %v5888 = vsel %vm5654, %v5886, %v5887
      %v5889 = vrot.slane %v5887, 4
      %v5890 = vrot.slane %v392, 5
      %v5891 = vsel %vm5654, %v5889, %v5890
      %v5892 = vrot.slane %v5890, 4
      %v5893 = vrot.slane %v393, 5
      %v5894 = vsel %vm5654, %v5892, %v5893
      %v5895 = vrot.slane %v394, 5
      %v5896 = vrot.slane %v5895, 4
      %v5897 = vrot.slane %v395, 5
      %v5898 = vsel %vm5654, %v5896, %v5897
      %v5899 = vrot.slane %v5897, 4
      %v5900 = vrot.slane %v396, 5
      %v5901 = vsel %vm5654, %v5899, %v5900
      %v5902 = vrot.slane %v5900, 4
      %v5903 = vrot.slane %v397, 5
      %v5904 = vsel %vm5654, %v5902, %v5903
      %v5905 = vrot.slane %v398, 5
      %v5906 = vrot.slane %v5905, 4
      %v5907 = vrot.slane %v399, 5
      %v5908 = vsel %vm5654, %v5906, %v5907
      %v5909 = vrot.slane %v5907, 4
      %v5910 = vrot.slane %v400, 5
      %v5911 = vsel %vm5654, %v5909, %v5910
      %v5912 = vrot.slane %v5910, 4
      %v5913 = vrot.slane %v401, 5
      %v5914 = vsel %vm5654, %v5912, %v5913
      %s5915 = scalar_lea.vmem %s281, 64
      %v5916 = vld [vmem:[%s5915] sm:$0xf]
      %v5917 = vld [vmem:[%s5915 + $0x4] sm:$0xf]
      %v5918 = vld [vmem:[%s5915 + $0x8] sm:$0xf]
      %v5919 = vld [vmem:[%s5915 + $0xc] sm:$0xf]
      %v5920 = vld [vmem:[%s5915 + $0x10] sm:$0xf]
      %v5921 = vld [vmem:[%s5915 + $0x14] sm:$0xf]
      %v5922 = vld [vmem:[%s5915 + $0x18] sm:$0xf]
      %v5923 = vld [vmem:[%s5915 + $0x1c] sm:$0xf]
      %v5924 = vunpack.c.l.b16 %v5658
      %v5925 = vunpack.c.l.b16 %v5661
      %v5926 = vunpack.c.l.b16 %v5664
      %v5927 = vunpack.c.l.b16 %v5668
      %v5928 = vunpack.c.l.b16 %v5671
      %v5929 = vunpack.c.l.b16 %v5674
      %v5930 = vunpack.c.l.b16 %v5678
      %v5931 = vunpack.c.l.b16 %v5681
      %v5932 = vunpack.c.l.b16 %v5684
      %v5933 = vunpack.c.l.b16 %v5688
      %v5934 = vunpack.c.l.b16 %v5691
      %v5935 = vunpack.c.l.b16 %v5694
      %v5936 = vunpack.c.l.b16 %v5698
      %v5937 = vunpack.c.l.b16 %v5701
      %v5938 = vunpack.c.l.b16 %v5704
      %v5939 = vunpack.c.l.b16 %v5708
      %v5940 = vunpack.c.l.b16 %v5711
      %v5941 = vunpack.c.l.b16 %v5714
      %v5942 = vunpack.c.l.b16 %v5718
      %v5943 = vunpack.c.l.b16 %v5721
      %v5944 = vunpack.c.l.b16 %v5724
      %v5945 = vunpack.c.l.b16 %v5728
      %v5946 = vunpack.c.l.b16 %v5731
      %v5947 = vunpack.c.l.b16 %v5734
      %v5948 = vunpack.c.l.b16 %v5738
      %v5949 = vunpack.c.l.b16 %v5741
      %v5950 = vunpack.c.l.b16 %v5744
      %v5951 = vunpack.c.l.b16 %v5748
      %v5952 = vunpack.c.l.b16 %v5751
      %v5953 = vunpack.c.l.b16 %v5754
      %v5954 = vunpack.c.l.b16 %v5758
      %v5955 = vunpack.c.l.b16 %v5761
      %v5956 = vunpack.c.l.b16 %v5764
      %v5957 = vunpack.c.l.b16 %v5768
      %v5958 = vunpack.c.l.b16 %v5771
      %v5959 = vunpack.c.l.b16 %v5774
      %v5960 = vunpack.c.l.b16 %v5778
      %v5961 = vunpack.c.l.b16 %v5781
      %v5962 = vunpack.c.l.b16 %v5784
      %v5963 = vunpack.c.l.b16 %v5788
      %v5964 = vunpack.c.l.b16 %v5791
      %v5965 = vunpack.c.l.b16 %v5794
      %v5966 = vunpack.c.l.b16 %v5798
      %v5967 = vunpack.c.l.b16 %v5801
      %v5968 = vunpack.c.l.b16 %v5804
      %v5969 = vunpack.c.l.b16 %v5808
      %v5970 = vunpack.c.l.b16 %v5811
      %v5971 = vunpack.c.l.b16 %v5814
      %v5972 = vunpack.c.l.b16 %v5818
      %v5973 = vunpack.c.l.b16 %v5821
      %v5974 = vunpack.c.l.b16 %v5824
      %v5975 = vunpack.c.l.b16 %v5828
      %v5976 = vunpack.c.l.b16 %v5831
      %v5977 = vunpack.c.l.b16 %v5834
      %v5978 = vunpack.c.l.b16 %v5838
      %v5979 = vunpack.c.l.b16 %v5841
      %v5980 = vunpack.c.l.b16 %v5844
      %v5981 = vunpack.c.l.b16 %v5848
      %v5982 = vunpack.c.l.b16 %v5851
      %v5983 = vunpack.c.l.b16 %v5854
      %v5984 = vunpack.c.l.b16 %v5858
      %v5985 = vunpack.c.l.b16 %v5861
      %v5986 = vunpack.c.l.b16 %v5864
      %v5987 = vunpack.c.l.b16 %v5868
      %v5988 = vunpack.c.l.b16 %v5871
      %v5989 = vunpack.c.l.b16 %v5874
      %v5990 = vunpack.c.l.b16 %v5878
      %v5991 = vunpack.c.l.b16 %v5881
      %v5992 = vunpack.c.l.b16 %v5884
      %v5993 = vunpack.c.l.b16 %v5888
      %v5994 = vunpack.c.l.b16 %v5891
      %v5995 = vunpack.c.l.b16 %v5894
      %v5996 = vpack.c.b16 %v5925, %v5924
      %v5997 = vpack.c.b16 %v5927, %v5926
      %v5998 = vpack.c.b16 %v5929, %v5928
      %v5999 = vpack.c.b16 %v5931, %v5930
      %v6000 = vpack.c.b16 %v5933, %v5932
      %v6001 = vpack.c.b16 %v5935, %v5934
      %v6002 = vpack.c.b16 %v5937, %v5936
      %v6003 = vpack.c.b16 %v5939, %v5938
      %v6004 = vpack.c.b16 %v5941, %v5940
      %v6005 = vpack.c.b16 %v5943, %v5942
      %v6006 = vpack.c.b16 %v5945, %v5944
      %v6007 = vpack.c.b16 %v5947, %v5946
      %v6008 = vpack.c.b16 %v5949, %v5948
      %v6009 = vpack.c.b16 %v5951, %v5950
      %v6010 = vpack.c.b16 %v5953, %v5952
      %v6011 = vpack.c.b16 %v5955, %v5954
      %v6012 = vpack.c.b16 %v5957, %v5956
      %v6013 = vpack.c.b16 %v5959, %v5958
      %v6014 = vpack.c.b16 %v5961, %v5960
      %v6015 = vpack.c.b16 %v5963, %v5962
      %v6016 = vpack.c.b16 %v5965, %v5964
      %v6017 = vpack.c.b16 %v5967, %v5966
      %v6018 = vpack.c.b16 %v5969, %v5968
      %v6019 = vpack.c.b16 %v5971, %v5970
      %v6020 = vpack.c.b16 %v5973, %v5972
      %v6021 = vpack.c.b16 %v5975, %v5974
      %v6022 = vpack.c.b16 %v5977, %v5976
      %v6023 = vpack.c.b16 %v5979, %v5978
      %v6024 = vpack.c.b16 %v5981, %v5980
      %v6025 = vpack.c.b16 %v5983, %v5982
      %v6026 = vpack.c.b16 %v5985, %v5984
      %v6027 = vpack.c.b16 %v5987, %v5986
      %v6028 = vpack.c.b16 %v5989, %v5988
      %v6029 = vpack.c.b16 %v5991, %v5990
      %v6030 = vpack.c.b16 %v5993, %v5992
      %v6031 = vpack.c.b16 %v5995, %v5994
      %v6040 = vunpack.c.l.b16 %v5916
      %v6041 = vunpack.c.l.b16 %v5917
      %v6042 = vunpack.c.l.b16 %v5918
      %v6043 = vunpack.c.l.b16 %v5919
      %v6044 = vunpack.c.l.b16 %v5920
      %v6045 = vunpack.c.l.b16 %v5921
      %v6046 = vunpack.c.l.b16 %v5922
      %v6047 = vunpack.c.l.b16 %v5923
      %v6048 = vpack.c.b16 %v6041, %v6040
      %v6049 = vpack.c.b16 %v6043, %v6042
      %v6050 = vpack.c.b16 %v6045, %v6044
      %v6051 = vpack.c.b16 %v6047, %v6046
      %v6057 = vsel %vm614, %v5996, 0
      %v6060 = vsel %vm614, %v5997, 0
      %v6063 = vsel %vm614, %v5998, 0
      %v6066 = vsel %vm614, %v5999, 0
      %v6069 = vsel %vm614, %v6000, 0
      %v6072 = vsel %vm614, %v6001, 0
      %v6075 = vsel %vm614, %v6002, 0
      %v6078 = vsel %vm614, %v6003, 0
      %v6081 = vsel %vm614, %v6004, 0
      %v6084 = vsel %vm614, %v6005, 0
      %v6087 = vsel %vm614, %v6006, 0
      %v6090 = vsel %vm614, %v6007, 0
      %v6093 = vsel %vm614, %v6008, 0
      %v6096 = vsel %vm614, %v6009, 0
      %v6099 = vsel %vm614, %v6010, 0
      %v6102 = vsel %vm614, %v6011, 0
      %v6105 = vsel %vm614, %v6012, 0
      %v6108 = vsel %vm614, %v6013, 0
      %v6111 = vsel %vm614, %v6014, 0
      %v6114 = vsel %vm614, %v6015, 0
      %v6117 = vsel %vm614, %v6016, 0
      %v6120 = vsel %vm614, %v6017, 0
      %v6123 = vsel %vm614, %v6018, 0
      %v6126 = vsel %vm614, %v6019, 0
      %v6129 = vsel %vm614, %v6020, 0
      %v6132 = vsel %vm614, %v6021, 0
      %v6135 = vsel %vm614, %v6022, 0
      %v6138 = vsel %vm614, %v6023, 0
      %v6141 = vsel %vm614, %v6024, 0
      %v6144 = vsel %vm614, %v6025, 0
      %v6147 = vsel %vm614, %v6026, 0
      %v6150 = vsel %vm614, %v6027, 0
      %v6153 = vsel %vm614, %v6028, 0
      %v6156 = vsel %vm614, %v6029, 0
      %v6159 = vsel %vm614, %v6030, 0
      %v6162 = vsel %vm614, %v6031, 0
      %6164 = vmatprep.subr.bf16.mxu0 0
      %6165 = vmatpush1.bf16.msra.mxu0 %v6048
      %6166 = vmatprep.subr.bf16.mxu0 0
      %6167 = vmatpush1.bf16.msra.mxu0 %v6049
      %6168 = vmatprep.subr.bf16.mxu0 0
      %6169 = vmatpush1.bf16.msra.mxu0 %v6050
      %6170 = vmatprep.subr.bf16.mxu0 0
      %6171 = vmatpush1.bf16.msra.mxu0 %v6051
      %6172 = vmatprep.subr.bf16.mxu0 0
      %6173 = vmatpush1.bf16.msra.mxu0 0
      %6174 = vmatprep.subr.bf16.mxu0 0
      %6175 = vmatpush1.bf16.msra.mxu0 0
      %6176 = vmatprep.subr.bf16.mxu0 0
      %6177 = vmatpush1.bf16.msra.mxu0 0
      %6178 = vmatprep.subr.bf16.mxu0 0
      %6179 = vmatpush1.bf16.msra.mxu0 0
      %6180 = vmatprep.subr.bf16.mxu0 0
      %6181 = vmatpush1.bf16.msra.mxu0 0
      %6182 = vmatprep.subr.bf16.mxu0 0
      %6183 = vmatpush1.bf16.msra.mxu0 0
      %6184 = vmatprep.subr.bf16.mxu0 0
      %6185 = vmatpush1.bf16.msra.mxu0 0
      %6186 = vmatprep.subr.bf16.mxu0 0
      %6187 = vmatpush1.bf16.msra.mxu0 0
      %6188 = vmatprep.subr.bf16.mxu0 0
      %6189 = vmatpush1.bf16.msra.mxu0 0
      %6190 = vmatprep.subr.bf16.mxu0 0
      %6191 = vmatpush1.bf16.msra.mxu0 0
      %6192 = vmatprep.subr.bf16.mxu0 0
      %6193 = vmatpush1.bf16.msra.mxu0 0
      %6194 = vmatprep.subr.bf16.mxu0 0
      %6195 = vmatpush1.bf16.msra.mxu0 0
      %6196 = vmatprep.mubr.bf16.mxu0 0
      %6197 = vmatmul.mubr.bf16.gmra.mrb[0].mxu0 %v6057
      %v6198 = vpop.f32.mrb[0].mxu0
      %v6199 = vadd.f32 0.0, %v6198
      %v6200 = vpop.f32.mrb[0].mxu0
      %v6201 = vpop.f32.mrb[0].mxu0
      %v6202 = vadd.f32 0.0, %v6201
      %v6203 = vpop.f32.mrb[0].mxu0
      %6204 = vmatprep.mubr.bf16.mxu0 0
      %6205 = vmatmul.mubr.bf16.gmra.mrb[0].mxu0 %v6060
      %v6206 = vpop.f32.mrb[0].mxu0
      %v6207 = vadd.f32 0.0, %v6206
      %v6208 = vpop.f32.mrb[0].mxu0
      %v6209 = vpop.f32.mrb[0].mxu0
      %v6210 = vadd.f32 0.0, %v6209
      %v6211 = vpop.f32.mrb[0].mxu0
      %6212 = vmatprep.mubr.bf16.mxu0 0
      %6213 = vmatmul.mubr.bf16.gmra.mrb[0].mxu0 %v6063
      %v6214 = vpop.f32.mrb[0].mxu0
      %v6215 = vadd.f32 0.0, %v6214
      %v6216 = vpop.f32.mrb[0].mxu0
      %v6217 = vpop.f32.mrb[0].mxu0
      %v6218 = vadd.f32 0.0, %v6217
      %v6219 = vpop.f32.mrb[0].mxu0
      %6220 = vmatprep.mubr.bf16.mxu0 0
      %6221 = vmatmul.mubr.bf16.gmra.mrb[0].mxu0 %v6066
      %v6222 = vpop.f32.mrb[0].mxu0
      %v6223 = vadd.f32 0.0, %v6222
      %v6224 = vpop.f32.mrb[0].mxu0
      %v6225 = vpop.f32.mrb[0].mxu0
      %v6226 = vadd.f32 0.0, %v6225
      %v6227 = vpop.f32.mrb[0].mxu0
      %6228 = vmatprep.mubr.bf16.mxu0 0
      %6229 = vmatmul.mubr.bf16.gmra.mrb[0].mxu0 %v6069
      %v6230 = vpop.f32.mrb[0].mxu0
      %v6231 = vadd.f32 0.0, %v6230
      %v6232 = vpop.f32.mrb[0].mxu0
      %v6233 = vpop.f32.mrb[0].mxu0
      %v6234 = vadd.f32 0.0, %v6233
      %v6235 = vpop.f32.mrb[0].mxu0
      %6236 = vmatprep.mubr.bf16.mxu0 0
      %6237 = vmatmul.mubr.bf16.gmra.mrb[0].mxu0 %v6072
      %v6238 = vpop.f32.mrb[0].mxu0
      %v6239 = vadd.f32 0.0, %v6238
      %v6240 = vpop.f32.mrb[0].mxu0
      %v6241 = vpop.f32.mrb[0].mxu0
      %v6242 = vadd.f32 0.0, %v6241
      %v6243 = vpop.f32.mrb[0].mxu0
      %6244 = vmatprep.mubr.bf16.mxu0 0
      %6245 = vmatmul.mubr.bf16.gmra.mrb[0].mxu0 %v6075
      %v6246 = vpop.f32.mrb[0].mxu0
      %v6247 = vadd.f32 0.0, %v6246
      %v6248 = vpop.f32.mrb[0].mxu0
      %v6249 = vpop.f32.mrb[0].mxu0
      %v6250 = vadd.f32 0.0, %v6249
      %v6251 = vpop.f32.mrb[0].mxu0
      %6252 = vmatprep.mubr.bf16.mxu0 0
      %6253 = vmatmul.mubr.bf16.gmra.mrb[0].mxu0 %v6078
      %v6254 = vpop.f32.mrb[0].mxu0
      %v6255 = vadd.f32 0.0, %v6254
      %v6256 = vpop.f32.mrb[0].mxu0
      %v6257 = vpop.f32.mrb[0].mxu0
      %v6258 = vadd.f32 0.0, %v6257
      %v6259 = vpop.f32.mrb[0].mxu0
      %6260 = vmatprep.mubr.bf16.mxu0 0
      %6261 = vmatmul.mubr.bf16.gmra.mrb[0].mxu0 %v6081
      %v6262 = vpop.f32.mrb[0].mxu0
      %v6263 = vadd.f32 0.0, %v6262
      %v6264 = vpop.f32.mrb[0].mxu0
      %v6265 = vpop.f32.mrb[0].mxu0
      %v6266 = vadd.f32 0.0, %v6265
      %v6267 = vpop.f32.mrb[0].mxu0
      %6268 = vmatprep.mubr.bf16.mxu0 0
      %6269 = vmatmul.mubr.bf16.gmra.mrb[0].mxu0 %v6084
      %v6270 = vpop.f32.mrb[0].mxu0
      %v6271 = vadd.f32 0.0, %v6270
      %v6272 = vpop.f32.mrb[0].mxu0
      %v6273 = vpop.f32.mrb[0].mxu0
      %v6274 = vadd.f32 0.0, %v6273
      %v6275 = vpop.f32.mrb[0].mxu0
      %6276 = vmatprep.mubr.bf16.mxu0 0
      %6277 = vmatmul.mubr.bf16.gmra.mrb[0].mxu0 %v6087
      %v6278 = vpop.f32.mrb[0].mxu0
      %v6279 = vadd.f32 0.0, %v6278
      %v6280 = vpop.f32.mrb[0].mxu0
      %v6281 = vpop.f32.mrb[0].mxu0
      %v6282 = vadd.f32 0.0, %v6281
      %v6283 = vpop.f32.mrb[0].mxu0
      %6284 = vmatprep.mubr.bf16.mxu0 0
      %6285 = vmatmul.mubr.bf16.gmra.mrb[0].mxu0 %v6090
      %v6286 = vpop.f32.mrb[0].mxu0
      %v6287 = vadd.f32 0.0, %v6286
      %v6288 = vpop.f32.mrb[0].mxu0
      %v6289 = vpop.f32.mrb[0].mxu0
      %v6290 = vadd.f32 0.0, %v6289
      %v6291 = vpop.f32.mrb[0].mxu0
      %6292 = vmatprep.mubr.bf16.mxu0 0
      %6293 = vmatmul.mubr.bf16.gmra.mrb[0].mxu0 %v6093
      %v6294 = vpop.f32.mrb[0].mxu0
      %v6295 = vadd.f32 0.0, %v6294
      %v6296 = vpop.f32.mrb[0].mxu0
      %v6297 = vpop.f32.mrb[0].mxu0
      %v6298 = vadd.f32 0.0, %v6297
      %v6299 = vpop.f32.mrb[0].mxu0
      %6300 = vmatprep.mubr.bf16.mxu0 0
      %6301 = vmatmul.mubr.bf16.gmra.mrb[0].mxu0 %v6096
      %v6302 = vpop.f32.mrb[0].mxu0
      %v6303 = vadd.f32 0.0, %v6302
      %v6304 = vpop.f32.mrb[0].mxu0
      %v6305 = vpop.f32.mrb[0].mxu0
      %v6306 = vadd.f32 0.0, %v6305
      %v6307 = vpop.f32.mrb[0].mxu0
      %6308 = vmatprep.mubr.bf16.mxu0 0
      %6309 = vmatmul.mubr.bf16.gmra.mrb[0].mxu0 %v6099
      %v6310 = vpop.f32.mrb[0].mxu0
      %v6311 = vadd.f32 0.0, %v6310
      %v6312 = vpop.f32.mrb[0].mxu0
      %v6313 = vpop.f32.mrb[0].mxu0
      %v6314 = vadd.f32 0.0, %v6313
      %v6315 = vpop.f32.mrb[0].mxu0
      %6316 = vmatprep.mubr.bf16.mxu0 0
      %6317 = vmatmul.mubr.bf16.gmra.mrb[0].mxu0 %v6102
      %v6318 = vpop.f32.mrb[0].mxu0
      %v6319 = vadd.f32 0.0, %v6318
      %v6320 = vpop.f32.mrb[0].mxu0
      %v6321 = vpop.f32.mrb[0].mxu0
      %v6322 = vadd.f32 0.0, %v6321
      %v6323 = vpop.f32.mrb[0].mxu0
      %6324 = vmatprep.mubr.bf16.mxu0 0
      %6325 = vmatmul.mubr.bf16.gmra.mrb[0].mxu0 %v6105
      %v6326 = vpop.f32.mrb[0].mxu0
      %v6327 = vadd.f32 0.0, %v6326
      %v6328 = vpop.f32.mrb[0].mxu0
      %v6329 = vpop.f32.mrb[0].mxu0
      %v6330 = vadd.f32 0.0, %v6329
      %v6331 = vpop.f32.mrb[0].mxu0
      %6332 = vmatprep.mubr.bf16.mxu0 0
      %6333 = vmatmul.mubr.bf16.gmra.mrb[0].mxu0 %v6108
      %v6334 = vpop.f32.mrb[0].mxu0
      %v6335 = vadd.f32 0.0, %v6334
      %v6336 = vpop.f32.mrb[0].mxu0
      %v6337 = vpop.f32.mrb[0].mxu0
      %v6338 = vadd.f32 0.0, %v6337
      %v6339 = vpop.f32.mrb[0].mxu0
      %6340 = vmatprep.mubr.bf16.mxu0 0
      %6341 = vmatmul.mubr.bf16.gmra.mrb[0].mxu0 %v6111
      %v6342 = vpop.f32.mrb[0].mxu0
      %v6343 = vadd.f32 0.0, %v6342
      %v6344 = vpop.f32.mrb[0].mxu0
      %v6345 = vpop.f32.mrb[0].mxu0
      %v6346 = vadd.f32 0.0, %v6345
      %v6347 = vpop.f32.mrb[0].mxu0
      %6348 = vmatprep.mubr.bf16.mxu0 0
      %6349 = vmatmul.mubr.bf16.gmra.mrb[0].mxu0 %v6114
      %v6350 = vpop.f32.mrb[0].mxu0
      %v6351 = vadd.f32 0.0, %v6350
      %v6352 = vpop.f32.mrb[0].mxu0
      %v6353 = vpop.f32.mrb[0].mxu0
      %v6354 = vadd.f32 0.0, %v6353
      %v6355 = vpop.f32.mrb[0].mxu0
      %6356 = vmatprep.mubr.bf16.mxu0 0
      %6357 = vmatmul.mubr.bf16.gmra.mrb[0].mxu0 %v6117
      %v6358 = vpop.f32.mrb[0].mxu0
      %v6359 = vadd.f32 0.0, %v6358
      %v6360 = vpop.f32.mrb[0].mxu0
      %v6361 = vpop.f32.mrb[0].mxu0
      %v6362 = vadd.f32 0.0, %v6361
      %v6363 = vpop.f32.mrb[0].mxu0
      %6364 = vmatprep.mubr.bf16.mxu0 0
      %6365 = vmatmul.mubr.bf16.gmra.mrb[0].mxu0 %v6120
      %v6366 = vpop.f32.mrb[0].mxu0
      %v6367 = vadd.f32 0.0, %v6366
      %v6368 = vpop.f32.mrb[0].mxu0
      %v6369 = vpop.f32.mrb[0].mxu0
      %v6370 = vadd.f32 0.0, %v6369
      %v6371 = vpop.f32.mrb[0].mxu0
      %6372 = vmatprep.mubr.bf16.mxu0 0
      %6373 = vmatmul.mubr.bf16.gmra.mrb[0].mxu0 %v6123
      %v6374 = vpop.f32.mrb[0].mxu0
      %v6375 = vadd.f32 0.0, %v6374
      %v6376 = vpop.f32.mrb[0].mxu0
      %v6377 = vpop.f32.mrb[0].mxu0
      %v6378 = vadd.f32 0.0, %v6377
      %v6379 = vpop.f32.mrb[0].mxu0
      %6380 = vmatprep.mubr.bf16.mxu0 0
      %6381 = vmatmul.mubr.bf16.gmra.mrb[0].mxu0 %v6126
      %v6382 = vpop.f32.mrb[0].mxu0
      %v6383 = vadd.f32 0.0, %v6382
      %v6384 = vpop.f32.mrb[0].mxu0
      %v6385 = vpop.f32.mrb[0].mxu0
      %v6386 = vadd.f32 0.0, %v6385
      %v6387 = vpop.f32.mrb[0].mxu0
      %6388 = vmatprep.mubr.bf16.mxu0 0
      %6389 = vmatmul.mubr.bf16.gmra.mrb[0].mxu0 %v6129
      %v6390 = vpop.f32.mrb[0].mxu0
      %v6391 = vadd.f32 0.0, %v6390
      %v6392 = vpop.f32.mrb[0].mxu0
      %v6393 = vpop.f32.mrb[0].mxu0
      %v6394 = vadd.f32 0.0, %v6393
      %v6395 = vpop.f32.mrb[0].mxu0
      %6396 = vmatprep.mubr.bf16.mxu0 0
      %6397 = vmatmul.mubr.bf16.gmra.mrb[0].mxu0 %v6132
      %v6398 = vpop.f32.mrb[0].mxu0
      %v6399 = vadd.f32 0.0, %v6398
      %v6400 = vpop.f32.mrb[0].mxu0
      %v6401 = vpop.f32.mrb[0].mxu0
      %v6402 = vadd.f32 0.0, %v6401
      %v6403 = vpop.f32.mrb[0].mxu0
      %6404 = vmatprep.mubr.bf16.mxu0 0
      %6405 = vmatmul.mubr.bf16.gmra.mrb[0].mxu0 %v6135
      %v6406 = vpop.f32.mrb[0].mxu0
      %v6407 = vadd.f32 0.0, %v6406
      %v6408 = vpop.f32.mrb[0].mxu0
      %v6409 = vpop.f32.mrb[0].mxu0
      %v6410 = vadd.f32 0.0, %v6409
      %v6411 = vpop.f32.mrb[0].mxu0
      %6412 = vmatprep.mubr.bf16.mxu0 0
      %6413 = vmatmul.mubr.bf16.gmra.mrb[0].mxu0 %v6138
      %v6414 = vpop.f32.mrb[0].mxu0
      %v6415 = vadd.f32 0.0, %v6414
      %v6416 = vpop.f32.mrb[0].mxu0
      %v6417 = vpop.f32.mrb[0].mxu0
      %v6418 = vadd.f32 0.0, %v6417
      %v6419 = vpop.f32.mrb[0].mxu0
      %6420 = vmatprep.mubr.bf16.mxu0 0
      %6421 = vmatmul.mubr.bf16.gmra.mrb[0].mxu0 %v6141
      %v6422 = vpop.f32.mrb[0].mxu0
      %v6423 = vadd.f32 0.0, %v6422
      %v6424 = vpop.f32.mrb[0].mxu0
      %v6425 = vpop.f32.mrb[0].mxu0
      %v6426 = vadd.f32 0.0, %v6425
      %v6427 = vpop.f32.mrb[0].mxu0
      %6428 = vmatprep.mubr.bf16.mxu0 0
      %6429 = vmatmul.mubr.bf16.gmra.mrb[0].mxu0 %v6144
      %v6430 = vpop.f32.mrb[0].mxu0
      %v6431 = vadd.f32 0.0, %v6430
      %v6432 = vpop.f32.mrb[0].mxu0
      %v6433 = vpop.f32.mrb[0].mxu0
      %v6434 = vadd.f32 0.0, %v6433
      %v6435 = vpop.f32.mrb[0].mxu0
      %6436 = vmatprep.mubr.bf16.mxu0 0
      %6437 = vmatmul.mubr.bf16.gmra.mrb[0].mxu0 %v6147
      %v6438 = vpop.f32.mrb[0].mxu0
      %v6439 = vadd.f32 0.0, %v6438
      %v6440 = vpop.f32.mrb[0].mxu0
      %v6441 = vpop.f32.mrb[0].mxu0
      %v6442 = vadd.f32 0.0, %v6441
      %v6443 = vpop.f32.mrb[0].mxu0
      %6444 = vmatprep.mubr.bf16.mxu0 0
      %6445 = vmatmul.mubr.bf16.gmra.mrb[0].mxu0 %v6150
      %v6446 = vpop.f32.mrb[0].mxu0
      %v6447 = vadd.f32 0.0, %v6446
      %v6448 = vpop.f32.mrb[0].mxu0
      %v6449 = vpop.f32.mrb[0].mxu0
      %v6450 = vadd.f32 0.0, %v6449
      %v6451 = vpop.f32.mrb[0].mxu0
      %6452 = vmatprep.mubr.bf16.mxu0 0
      %6453 = vmatmul.mubr.bf16.gmra.mrb[0].mxu0 %v6153
      %v6454 = vpop.f32.mrb[0].mxu0
      %v6455 = vadd.f32 0.0, %v6454
      %v6456 = vpop.f32.mrb[0].mxu0
      %v6457 = vpop.f32.mrb[0].mxu0
      %v6458 = vadd.f32 0.0, %v6457
      %v6459 = vpop.f32.mrb[0].mxu0
      %6460 = vmatprep.mubr.bf16.mxu0 0
      %6461 = vmatmul.mubr.bf16.gmra.mrb[0].mxu0 %v6156
      %v6462 = vpop.f32.mrb[0].mxu0
      %v6463 = vadd.f32 0.0, %v6462
      %v6464 = vpop.f32.mrb[0].mxu0
      %v6465 = vpop.f32.mrb[0].mxu0
      %v6466 = vadd.f32 0.0, %v6465
      %v6467 = vpop.f32.mrb[0].mxu0
      %6468 = vmatprep.mubr.bf16.mxu0 0
      %6469 = vmatmul.mubr.bf16.gmra.mrb[0].mxu0 %v6159
      %v6470 = vpop.f32.mrb[0].mxu0
      %v6471 = vadd.f32 0.0, %v6470
      %v6472 = vpop.f32.mrb[0].mxu0
      %v6473 = vpop.f32.mrb[0].mxu0
      %v6474 = vadd.f32 0.0, %v6473
      %v6475 = vpop.f32.mrb[0].mxu0
      %6476 = vmatprep.mubr.bf16.mxu0 0
      %6477 = vmatmul.mubr.bf16.gmra.mrb[0].mxu0 %v6162
      %v6478 = vpop.f32.mrb[0].mxu0
      %v6479 = vadd.f32 0.0, %v6478
      %v6480 = vpop.f32.mrb[0].mxu0
      %v6481 = vpop.f32.mrb[0].mxu0
      %v6482 = vadd.f32 0.0, %v6481
      %v6483 = vpop.f32.mrb[0].mxu0
      %6484 = vdwg.mxu0
      %v6485 = vld [vmem:[#allocation2] sm:$0xff]
      %v6486 = vld [vmem:[#allocation2 + $0x8] sm:$0xff]
      %v6487 = vld [vmem:[#allocation2 + $0x10] sm:$0xff]
      %v6488 = vld [vmem:[#allocation2 + $0x18] sm:$0xff]
      %v6489 = vld [vmem:[#allocation2 + $0x20] sm:$0xff]
      %v6490 = vld [vmem:[#allocation2 + $0x28] sm:$0xff]
      %v6491 = vld [vmem:[#allocation2 + $0x30] sm:$0xff]
      %v6492 = vld [vmem:[#allocation2 + $0x38] sm:$0xff]
      %v6493 = vld [vmem:[#allocation2 + $0x40] sm:$0xff]
      %v6494 = vld [vmem:[#allocation2 + $0x48] sm:$0xff]
      %v6495 = vld [vmem:[#allocation2 + $0x50] sm:$0xff]
      %v6496 = vld [vmem:[#allocation2 + $0x58] sm:$0xff]
      %v6497 = vld [vmem:[#allocation2 + $0x60] sm:$0xff]
      %v6498 = vld [vmem:[#allocation2 + $0x68] sm:$0xff]
      %v6499 = vld [vmem:[#allocation2 + $0x70] sm:$0xff]
      %v6500 = vld [vmem:[#allocation2 + $0x78] sm:$0xff]
      %v6501 = vld [vmem:[#allocation2 + $0x80] sm:$0xff]
      %v6502 = vld [vmem:[#allocation2 + $0x88] sm:$0xff]
      %v6503 = vld [vmem:[#allocation2 + $0x90] sm:$0xff]
      %v6504 = vld [vmem:[#allocation2 + $0x98] sm:$0xff]
      %v6505 = vld [vmem:[#allocation2 + $0xa0] sm:$0xff]
      %v6506 = vld [vmem:[#allocation2 + $0xa8] sm:$0xff]
      %v6507 = vld [vmem:[#allocation2 + $0xb0] sm:$0xff]
      %v6508 = vld [vmem:[#allocation2 + $0xb8] sm:$0xff]
      %v6509 = vld [vmem:[#allocation2 + $0xc0] sm:$0xff]
      %v6510 = vld [vmem:[#allocation2 + $0xc8] sm:$0xff]
      %v6511 = vld [vmem:[#allocation2 + $0xd0] sm:$0xff]
      %v6512 = vld [vmem:[#allocation2 + $0xd8] sm:$0xff]
      %v6513 = vld [vmem:[#allocation2 + $0xe0] sm:$0xff]
      %v6514 = vld [vmem:[#allocation2 + $0xe8] sm:$0xff]
      %v6515 = vld [vmem:[#allocation2 + $0xf0] sm:$0xff]
      %v6516 = vld [vmem:[#allocation2 + $0xf8] sm:$0xff]
      %v6517 = vld [vmem:[#allocation2 + $0x100] sm:$0xff]
      %v6518 = vld [vmem:[#allocation2 + $0x108] sm:$0xff]
      %v6519 = vld [vmem:[#allocation2 + $0x110] sm:$0xff]
      %v6520 = vld [vmem:[#allocation2 + $0x118] sm:$0xff]
      %v6521 = vld [vmem:[#allocation2 + $0x120] sm:$0xff]
      %v6522 = vld [vmem:[#allocation2 + $0x128] sm:$0xff]
      %v6523 = vld [vmem:[#allocation2 + $0x130] sm:$0xff]
      %v6524 = vld [vmem:[#allocation2 + $0x138] sm:$0xff]
      %v6525 = vld [vmem:[#allocation2 + $0x140] sm:$0xff]
      %v6526 = vld [vmem:[#allocation2 + $0x148] sm:$0xff]
      %v6527 = vld [vmem:[#allocation2 + $0x150] sm:$0xff]
      %v6528 = vld [vmem:[#allocation2 + $0x158] sm:$0xff]
      %v6529 = vld [vmem:[#allocation2 + $0x160] sm:$0xff]
      %v6530 = vld [vmem:[#allocation2 + $0x168] sm:$0xff]
      %v6531 = vld [vmem:[#allocation2 + $0x170] sm:$0xff]
      %v6532 = vld [vmem:[#allocation2 + $0x178] sm:$0xff]
      %v6533 = vld [vmem:[#allocation2 + $0x180] sm:$0xff]
      %v6534 = vld [vmem:[#allocation2 + $0x188] sm:$0xff]
      %v6535 = vld [vmem:[#allocation2 + $0x190] sm:$0xff]
      %v6536 = vld [vmem:[#allocation2 + $0x198] sm:$0xff]
      %v6537 = vld [vmem:[#allocation2 + $0x1a0] sm:$0xff]
      %v6538 = vld [vmem:[#allocation2 + $0x1a8] sm:$0xff]
      %v6539 = vld [vmem:[#allocation2 + $0x1b0] sm:$0xff]
      %v6540 = vld [vmem:[#allocation2 + $0x1b8] sm:$0xff]
      %v6541 = vld [vmem:[#allocation2 + $0x1c0] sm:$0xff]
      %v6542 = vld [vmem:[#allocation2 + $0x1c8] sm:$0xff]
      %v6543 = vld [vmem:[#allocation2 + $0x1d0] sm:$0xff]
      %v6544 = vld [vmem:[#allocation2 + $0x1d8] sm:$0xff]
      %v6545 = vld [vmem:[#allocation2 + $0x1e0] sm:$0xff]
      %v6546 = vld [vmem:[#allocation2 + $0x1e8] sm:$0xff]
      %v6547 = vld [vmem:[#allocation2 + $0x1f0] sm:$0xff]
      %v6548 = vld [vmem:[#allocation2 + $0x1f8] sm:$0xff]
      %v6549 = vld [vmem:[#allocation2 + $0x200] sm:$0xff]
      %v6550 = vld [vmem:[#allocation2 + $0x208] sm:$0xff]
      %v6551 = vld [vmem:[#allocation2 + $0x210] sm:$0xff]
      %v6552 = vld [vmem:[#allocation2 + $0x218] sm:$0xff]
      %v6553 = vld [vmem:[#allocation2 + $0x220] sm:$0xff]
      %v6554 = vld [vmem:[#allocation2 + $0x228] sm:$0xff]
      %v6555 = vld [vmem:[#allocation2 + $0x230] sm:$0xff]
      %v6556 = vld [vmem:[#allocation2 + $0x238] sm:$0xff]
      %v6557 = vadd.f32 %v6485, %v6199
      %v6558 = vadd.f32 %v6486, %v6202
      %v6559 = vadd.f32 %v6487, %v6207
      %v6560 = vadd.f32 %v6488, %v6210
      %v6561 = vadd.f32 %v6489, %v6215
      %v6562 = vadd.f32 %v6490, %v6218
      %v6563 = vadd.f32 %v6491, %v6223
      %v6564 = vadd.f32 %v6492, %v6226
      %v6565 = vadd.f32 %v6493, %v6231
      %v6566 = vadd.f32 %v6494, %v6234
      %v6567 = vadd.f32 %v6495, %v6239
      %v6568 = vadd.f32 %v6496, %v6242
      %v6569 = vadd.f32 %v6497, %v6247
      %v6570 = vadd.f32 %v6498, %v6250
      %v6571 = vadd.f32 %v6499, %v6255
      %v6572 = vadd.f32 %v6500, %v6258
      %v6573 = vadd.f32 %v6501, %v6263
      %v6574 = vadd.f32 %v6502, %v6266
      %v6575 = vadd.f32 %v6503, %v6271
      %v6576 = vadd.f32 %v6504, %v6274
      %v6577 = vadd.f32 %v6505, %v6279
      %v6578 = vadd.f32 %v6506, %v6282
      %v6579 = vadd.f32 %v6507, %v6287
      %v6580 = vadd.f32 %v6508, %v6290
      %v6581 = vadd.f32 %v6509, %v6295
      %v6582 = vadd.f32 %v6510, %v6298
      %v6583 = vadd.f32 %v6511, %v6303
      %v6584 = vadd.f32 %v6512, %v6306
      %v6585 = vadd.f32 %v6513, %v6311
      %v6586 = vadd.f32 %v6514, %v6314
      %v6587 = vadd.f32 %v6515, %v6319
      %v6588 = vadd.f32 %v6516, %v6322
      %v6589 = vadd.f32 %v6517, %v6327
      %v6590 = vadd.f32 %v6518, %v6330
      %v6591 = vadd.f32 %v6519, %v6335
      %v6592 = vadd.f32 %v6520, %v6338
      %v6593 = vadd.f32 %v6521, %v6343
      %v6594 = vadd.f32 %v6522, %v6346
      %v6595 = vadd.f32 %v6523, %v6351
      %v6596 = vadd.f32 %v6524, %v6354
      %v6597 = vadd.f32 %v6525, %v6359
      %v6598 = vadd.f32 %v6526, %v6362
      %v6599 = vadd.f32 %v6527, %v6367
      %v6600 = vadd.f32 %v6528, %v6370
      %v6601 = vadd.f32 %v6529, %v6375
      %v6602 = vadd.f32 %v6530, %v6378
      %v6603 = vadd.f32 %v6531, %v6383
      %v6604 = vadd.f32 %v6532, %v6386
      %v6605 = vadd.f32 %v6533, %v6391
      %v6606 = vadd.f32 %v6534, %v6394
      %v6607 = vadd.f32 %v6535, %v6399
      %v6608 = vadd.f32 %v6536, %v6402
      %v6609 = vadd.f32 %v6537, %v6407
      %v6610 = vadd.f32 %v6538, %v6410
      %v6611 = vadd.f32 %v6539, %v6415
      %v6612 = vadd.f32 %v6540, %v6418
      %v6613 = vadd.f32 %v6541, %v6423
      %v6614 = vadd.f32 %v6542, %v6426
      %v6615 = vadd.f32 %v6543, %v6431
      %v6616 = vadd.f32 %v6544, %v6434
      %v6617 = vadd.f32 %v6545, %v6439
      %v6618 = vadd.f32 %v6546, %v6442
      %v6619 = vadd.f32 %v6547, %v6447
      %v6620 = vadd.f32 %v6548, %v6450
      %v6621 = vadd.f32 %v6549, %v6455
      %v6622 = vadd.f32 %v6550, %v6458
      %v6623 = vadd.f32 %v6551, %v6463
      %v6624 = vadd.f32 %v6552, %v6466
      %v6625 = vadd.f32 %v6553, %v6471
      %v6626 = vadd.f32 %v6554, %v6474
      %v6627 = vadd.f32 %v6555, %v6479
      %v6628 = vadd.f32 %v6556, %v6482
      %6629 = vst.msk [vmem:[#allocation2] sm:$0xff] %vm1990, %v6557
      %6630 = vst.msk [vmem:[#allocation2 + $0x8] sm:$0xff] %vm1990, %v6558
      %6631 = vst.msk [vmem:[#allocation2 + $0x10] sm:$0xff] %vm1990, %v6559
      %6632 = vst.msk [vmem:[#allocation2 + $0x18] sm:$0xff] %vm1990, %v6560
      %6633 = vst.msk [vmem:[#allocation2 + $0x20] sm:$0xff] %vm1990, %v6561
      %6634 = vst.msk [vmem:[#allocation2 + $0x28] sm:$0xff] %vm1990, %v6562
      %6635 = vst.msk [vmem:[#allocation2 + $0x30] sm:$0xff] %vm1990, %v6563
      %6636 = vst.msk [vmem:[#allocation2 + $0x38] sm:$0xff] %vm1990, %v6564
      %6637 = vst.msk [vmem:[#allocation2 + $0x40] sm:$0xff] %vm1990, %v6565
      %6638 = vst.msk [vmem:[#allocation2 + $0x48] sm:$0xff] %vm1990, %v6566
      %6639 = vst.msk [vmem:[#allocation2 + $0x50] sm:$0xff] %vm1990, %v6567
      %6640 = vst.msk [vmem:[#allocation2 + $0x58] sm:$0xff] %vm1990, %v6568
      %6641 = vst.msk [vmem:[#allocation2 + $0x60] sm:$0xff] %vm1990, %v6569
      %6642 = vst.msk [vmem:[#allocation2 + $0x68] sm:$0xff] %vm1990, %v6570
      %6643 = vst.msk [vmem:[#allocation2 + $0x70] sm:$0xff] %vm1990, %v6571
      %6644 = vst.msk [vmem:[#allocation2 + $0x78] sm:$0xff] %vm1990, %v6572
      %6645 = vst.msk [vmem:[#allocation2 + $0x80] sm:$0xff] %vm1990, %v6573
      %6646 = vst.msk [vmem:[#allocation2 + $0x88] sm:$0xff] %vm1990, %v6574
      %6647 = vst.msk [vmem:[#allocation2 + $0x90] sm:$0xff] %vm1990, %v6575
      %6648 = vst.msk [vmem:[#allocation2 + $0x98] sm:$0xff] %vm1990, %v6576
      %6649 = vst.msk [vmem:[#allocation2 + $0xa0] sm:$0xff] %vm1990, %v6577
      %6650 = vst.msk [vmem:[#allocation2 + $0xa8] sm:$0xff] %vm1990, %v6578
      %6651 = vst.msk [vmem:[#allocation2 + $0xb0] sm:$0xff] %vm1990, %v6579
      %6652 = vst.msk [vmem:[#allocation2 + $0xb8] sm:$0xff] %vm1990, %v6580
      %6653 = vst.msk [vmem:[#allocation2 + $0xc0] sm:$0xff] %vm1990, %v6581
      %6654 = vst.msk [vmem:[#allocation2 + $0xc8] sm:$0xff] %vm1990, %v6582
      %6655 = vst.msk [vmem:[#allocation2 + $0xd0] sm:$0xff] %vm1990, %v6583
      %6656 = vst.msk [vmem:[#allocation2 + $0xd8] sm:$0xff] %vm1990, %v6584
      %6657 = vst.msk [vmem:[#allocation2 + $0xe0] sm:$0xff] %vm1990, %v6585
      %6658 = vst.msk [vmem:[#allocation2 + $0xe8] sm:$0xff] %vm1990, %v6586
      %6659 = vst.msk [vmem:[#allocation2 + $0xf0] sm:$0xff] %vm1990, %v6587
      %6660 = vst.msk [vmem:[#allocation2 + $0xf8] sm:$0xff] %vm1990, %v6588
      %6661 = vst.msk [vmem:[#allocation2 + $0x100] sm:$0xff] %vm1990, %v6589
      %6662 = vst.msk [vmem:[#allocation2 + $0x108] sm:$0xff] %vm1990, %v6590
      %6663 = vst.msk [vmem:[#allocation2 + $0x110] sm:$0xff] %vm1990, %v6591
      %6664 = vst.msk [vmem:[#allocation2 + $0x118] sm:$0xff] %vm1990, %v6592
      %6665 = vst.msk [vmem:[#allocation2 + $0x120] sm:$0xff] %vm1990, %v6593
      %6666 = vst.msk [vmem:[#allocation2 + $0x128] sm:$0xff] %vm1990, %v6594
      %6667 = vst.msk [vmem:[#allocation2 + $0x130] sm:$0xff] %vm1990, %v6595
      %6668 = vst.msk [vmem:[#allocation2 + $0x138] sm:$0xff] %vm1990, %v6596
      %6669 = vst.msk [vmem:[#allocation2 + $0x140] sm:$0xff] %vm1990, %v6597
      %6670 = vst.msk [vmem:[#allocation2 + $0x148] sm:$0xff] %vm1990, %v6598
      %6671 = vst.msk [vmem:[#allocation2 + $0x150] sm:$0xff] %vm1990, %v6599
      %6672 = vst.msk [vmem:[#allocation2 + $0x158] sm:$0xff] %vm1990, %v6600
      %6673 = vst.msk [vmem:[#allocation2 + $0x160] sm:$0xff] %vm1990, %v6601
      %6674 = vst.msk [vmem:[#allocation2 + $0x168] sm:$0xff] %vm1990, %v6602
      %6675 = vst.msk [vmem:[#allocation2 + $0x170] sm:$0xff] %vm1990, %v6603
      %6676 = vst.msk [vmem:[#allocation2 + $0x178] sm:$0xff] %vm1990, %v6604
      %6677 = vst.msk [vmem:[#allocation2 + $0x180] sm:$0xff] %vm1990, %v6605
      %6678 = vst.msk [vmem:[#allocation2 + $0x188] sm:$0xff] %vm1990, %v6606
      %6679 = vst.msk [vmem:[#allocation2 + $0x190] sm:$0xff] %vm1990, %v6607
      %6680 = vst.msk [vmem:[#allocation2 + $0x198] sm:$0xff] %vm1990, %v6608
      %6681 = vst.msk [vmem:[#allocation2 + $0x1a0] sm:$0xff] %vm1990, %v6609
      %6682 = vst.msk [vmem:[#allocation2 + $0x1a8] sm:$0xff] %vm1990, %v6610
      %6683 = vst.msk [vmem:[#allocation2 + $0x1b0] sm:$0xff] %vm1990, %v6611
      %6684 = vst.msk [vmem:[#allocation2 + $0x1b8] sm:$0xff] %vm1990, %v6612
      %6685 = vst.msk [vmem:[#allocation2 + $0x1c0] sm:$0xff] %vm1990, %v6613
      %6686 = vst.msk [vmem:[#allocation2 + $0x1c8] sm:$0xff] %vm1990, %v6614
      %6687 = vst.msk [vmem:[#allocation2 + $0x1d0] sm:$0xff] %vm1990, %v6615
      %6688 = vst.msk [vmem:[#allocation2 + $0x1d8] sm:$0xff] %vm1990, %v6616
      %6689 = vst.msk [vmem:[#allocation2 + $0x1e0] sm:$0xff] %vm1990, %v6617
      %6690 = vst.msk [vmem:[#allocation2 + $0x1e8] sm:$0xff] %vm1990, %v6618
      %6691 = vst.msk [vmem:[#allocation2 + $0x1f0] sm:$0xff] %vm1990, %v6619
      %6692 = vst.msk [vmem:[#allocation2 + $0x1f8] sm:$0xff] %vm1990, %v6620
      %6693 = vst.msk [vmem:[#allocation2 + $0x200] sm:$0xff] %vm1990, %v6621
      %6694 = vst.msk [vmem:[#allocation2 + $0x208] sm:$0xff] %vm1990, %v6622
      %6695 = vst.msk [vmem:[#allocation2 + $0x210] sm:$0xff] %vm1990, %v6623
      %6696 = vst.msk [vmem:[#allocation2 + $0x218] sm:$0xff] %vm1990, %v6624
      %6697 = vst.msk [vmem:[#allocation2 + $0x220] sm:$0xff] %vm1990, %v6625
      %6698 = vst.msk [vmem:[#allocation2 + $0x228] sm:$0xff] %vm1990, %v6626
      %6699 = vst.msk [vmem:[#allocation2 + $0x230] sm:$0xff] %vm1990, %v6627
      %6700 = vst.msk [vmem:[#allocation2 + $0x238] sm:$0xff] %vm1990, %v6628
      %s6701 = scalar_lea.vmem %s281, 160
      %v6702 = vld [vmem:[%s6701] sm:$0xf]
      %v6703 = vld [vmem:[%s6701 + $0x4] sm:$0xf]
      %v6704 = vld [vmem:[%s6701 + $0x8] sm:$0xf]
      %v6705 = vld [vmem:[%s6701 + $0xc] sm:$0xf]
      %v6706 = vld [vmem:[%s6701 + $0x10] sm:$0xf]
      %v6707 = vld [vmem:[%s6701 + $0x14] sm:$0xf]
      %v6708 = vld [vmem:[%s6701 + $0x18] sm:$0xf]
      %v6709 = vld [vmem:[%s6701 + $0x1c] sm:$0xf]
      %v6710 = vunpack.c.l.b16 %v5898
      %v6711 = vunpack.c.l.b16 %v5901
      %v6712 = vunpack.c.l.b16 %v5904
      %v6713 = vpack.c.b16 %v5928, %v5927
      %v6714 = vpack.c.b16 %v5930, %v5929
      %v6715 = vpack.c.b16 %v5932, %v5931
      %v6716 = vpack.c.b16 %v5934, %v5933
      %v6717 = vpack.c.b16 %v5936, %v5935
      %v6718 = vpack.c.b16 %v5938, %v5937
      %v6719 = vpack.c.b16 %v5940, %v5939
      %v6720 = vpack.c.b16 %v5942, %v5941
      %v6721 = vpack.c.b16 %v5944, %v5943
      %v6722 = vpack.c.b16 %v5946, %v5945
      %v6723 = vpack.c.b16 %v5948, %v5947
      %v6724 = vpack.c.b16 %v5950, %v5949
      %v6725 = vpack.c.b16 %v5952, %v5951
      %v6726 = vpack.c.b16 %v5954, %v5953
      %v6727 = vpack.c.b16 %v5956, %v5955
      %v6728 = vpack.c.b16 %v5958, %v5957
      %v6729 = vpack.c.b16 %v5960, %v5959
      %v6730 = vpack.c.b16 %v5962, %v5961
      %v6731 = vpack.c.b16 %v5964, %v5963
      %v6732 = vpack.c.b16 %v5966, %v5965
      %v6733 = vpack.c.b16 %v5968, %v5967
      %v6734 = vpack.c.b16 %v5970, %v5969
      %v6735 = vpack.c.b16 %v5972, %v5971
      %v6736 = vpack.c.b16 %v5974, %v5973
      %v6737 = vpack.c.b16 %v5976, %v5975
      %v6738 = vpack.c.b16 %v5978, %v5977
      %v6739 = vpack.c.b16 %v5980, %v5979
      %v6740 = vpack.c.b16 %v5982, %v5981
      %v6741 = vpack.c.b16 %v5984, %v5983
      %v6742 = vpack.c.b16 %v5986, %v5985
      %v6743 = vpack.c.b16 %v5988, %v5987
      %v6744 = vpack.c.b16 %v5990, %v5989
      %v6745 = vpack.c.b16 %v5992, %v5991
      %v6746 = vpack.c.b16 %v5994, %v5993
      %v6747 = vpack.c.b16 %v6710, %v5995
      %v6748 = vpack.c.b16 %v6712, %v6711
      %v6757 = vunpack.c.l.b16 %v6702
      %v6758 = vunpack.c.l.b16 %v6703
      %v6759 = vunpack.c.l.b16 %v6704
      %v6760 = vunpack.c.l.b16 %v6705
      %v6761 = vunpack.c.l.b16 %v6706
      %v6762 = vunpack.c.l.b16 %v6707
      %v6763 = vunpack.c.l.b16 %v6708
      %v6764 = vunpack.c.l.b16 %v6709
      %v6765 = vpack.c.b16 %v6758, %v6757
      %v6766 = vpack.c.b16 %v6760, %v6759
      %v6767 = vpack.c.b16 %v6762, %v6761
      %v6768 = vpack.c.b16 %v6764, %v6763
      %v6774 = vsel %vm614, %v6713, 0
      %v6777 = vsel %vm614, %v6714, 0
      %v6780 = vsel %vm614, %v6715, 0
      %v6783 = vsel %vm614, %v6716, 0
      %v6786 = vsel %vm614, %v6717, 0
      %v6789 = vsel %vm614, %v6718, 0
      %v6792 = vsel %vm614, %v6719, 0
      %v6795 = vsel %vm614, %v6720, 0
      %v6798 = vsel %vm614, %v6721, 0
      %v6801 = vsel %vm614, %v6722, 0
      %v6804 = vsel %vm614, %v6723, 0
      %v6807 = vsel %vm614, %v6724, 0
      %v6810 = vsel %vm614, %v6725, 0
      %v6813 = vsel %vm614, %v6726, 0
      %v6816 = vsel %vm614, %v6727, 0
      %v6819 = vsel %vm614, %v6728, 0
      %v6822 = vsel %vm614, %v6729, 0
      %v6825 = vsel %vm614, %v6730, 0
      %v6828 = vsel %vm614, %v6731, 0
      %v6831 = vsel %vm614, %v6732, 0
      %v6834 = vsel %vm614, %v6733, 0
      %v6837 = vsel %vm614, %v6734, 0
      %v6840 = vsel %vm614, %v6735, 0
      %v6843 = vsel %vm614, %v6736, 0
      %v6846 = vsel %vm614, %v6737, 0
      %v6849 = vsel %vm614, %v6738, 0
      %v6852 = vsel %vm614, %v6739, 0
      %v6855 = vsel %vm614, %v6740, 0
      %v6858 = vsel %vm614, %v6741, 0
      %v6861 = vsel %vm614, %v6742, 0
      %v6864 = vsel %vm614, %v6743, 0
      %v6867 = vsel %vm614, %v6744, 0
      %v6870 = vsel %vm614, %v6745, 0
      %v6873 = vsel %vm614, %v6746, 0
      %v6876 = vsel %vm614, %v6747, 0
      %v6879 = vsel %vm614, %v6748, 0
      %6881 = vmatprep.subr.bf16.mxu0 0
      %6882 = vmatpush1.bf16.msra.mxu0 %v6765
      %6883 = vmatprep.subr.bf16.mxu0 0
      %6884 = vmatpush1.bf16.msra.mxu0 %v6766
      %6885 = vmatprep.subr.bf16.mxu0 0
      %6886 = vmatpush1.bf16.msra.mxu0 %v6767
      %6887 = vmatprep.subr.bf16.mxu0 0
      %6888 = vmatpush1.bf16.msra.mxu0 %v6768
      %6889 = vmatprep.subr.bf16.mxu0 0
      %6890 = vmatpush1.bf16.msra.mxu0 0
      %6891 = vmatprep.subr.bf16.mxu0 0
      %6892 = vmatpush1.bf16.msra.mxu0 0
      %6893 = vmatprep.subr.bf16.mxu0 0
      %6894 = vmatpush1.bf16.msra.mxu0 0
      %6895 = vmatprep.subr.bf16.mxu0 0
      %6896 = vmatpush1.bf16.msra.mxu0 0
      %6897 = vmatprep.subr.bf16.mxu0 0
      %6898 = vmatpush1.bf16.msra.mxu0 0
      %6899 = vmatprep.subr.bf16.mxu0 0
      %6900 = vmatpush1.bf16.msra.mxu0 0
      %6901 = vmatprep.subr.bf16.mxu0 0
      %6902 = vmatpush1.bf16.msra.mxu0 0
      %6903 = vmatprep.subr.bf16.mxu0 0
      %6904 = vmatpush1.bf16.msra.mxu0 0
      %6905 = vmatprep.subr.bf16.mxu0 0
      %6906 = vmatpush1.bf16.msra.mxu0 0
      %6907 = vmatprep.subr.bf16.mxu0 0
      %6908 = vmatpush1.bf16.msra.mxu0 0
      %6909 = vmatprep.subr.bf16.mxu0 0
      %6910 = vmatpush1.bf16.msra.mxu0 0
      %6911 = vmatprep.subr.bf16.mxu0 0
      %6912 = vmatpush1.bf16.msra.mxu0 0
      %6913 = vmatprep.mubr.bf16.mxu0 0
      %6914 = vmatmul.mubr.bf16.gmra.mrb[0].mxu0 %v6774
      %v6915 = vpop.f32.mrb[0].mxu0
      %v6916 = vadd.f32 0.0, %v6915
      %v6917 = vpop.f32.mrb[0].mxu0
      %v6918 = vpop.f32.mrb[0].mxu0
      %v6919 = vadd.f32 0.0, %v6918
      %v6920 = vpop.f32.mrb[0].mxu0
      %6921 = vmatprep.mubr.bf16.mxu0 0
      %6922 = vmatmul.mubr.bf16.gmra.mrb[0].mxu0 %v6777
      %v6923 = vpop.f32.mrb[0].mxu0
      %v6924 = vadd.f32 0.0, %v6923
      %v6925 = vpop.f32.mrb[0].mxu0
      %v6926 = vpop.f32.mrb[0].mxu0
      %v6927 = vadd.f32 0.0, %v6926
      %v6928 = vpop.f32.mrb[0].mxu0
      %6929 = vmatprep.mubr.bf16.mxu0 0
      %6930 = vmatmul.mubr.bf16.gmra.mrb[0].mxu0 %v6780
      %v6931 = vpop.f32.mrb[0].mxu0
      %v6932 = vadd.f32 0.0, %v6931
      %v6933 = vpop.f32.mrb[0].mxu0
      %v6934 = vpop.f32.mrb[0].mxu0
      %v6935 = vadd.f32 0.0, %v6934
      %v6936 = vpop.f32.mrb[0].mxu0
      %6937 = vmatprep.mubr.bf16.mxu0 0
      %6938 = vmatmul.mubr.bf16.gmra.mrb[0].mxu0 %v6783
      %v6939 = vpop.f32.mrb[0].mxu0
      %v6940 = vadd.f32 0.0, %v6939
      %v6941 = vpop.f32.mrb[0].mxu0
      %v6942 = vpop.f32.mrb[0].mxu0
      %v6943 = vadd.f32 0.0, %v6942
      %v6944 = vpop.f32.mrb[0].mxu0
      %6945 = vmatprep.mubr.bf16.mxu0 0
      %6946 = vmatmul.mubr.bf16.gmra.mrb[0].mxu0 %v6786
      %v6947 = vpop.f32.mrb[0].mxu0
      %v6948 = vadd.f32 0.0, %v6947
      %v6949 = vpop.f32.mrb[0].mxu0
      %v6950 = vpop.f32.mrb[0].mxu0
      %v6951 = vadd.f32 0.0, %v6950
      %v6952 = vpop.f32.mrb[0].mxu0
      %6953 = vmatprep.mubr.bf16.mxu0 0
      %6954 = vmatmul.mubr.bf16.gmra.mrb[0].mxu0 %v6789
      %v6955 = vpop.f32.mrb[0].mxu0
      %v6956 = vadd.f32 0.0, %v6955
      %v6957 = vpop.f32.mrb[0].mxu0
      %v6958 = vpop.f32.mrb[0].mxu0
      %v6959 = vadd.f32 0.0, %v6958
      %v6960 = vpop.f32.mrb[0].mxu0
      %6961 = vmatprep.mubr.bf16.mxu0 0
      %6962 = vmatmul.mubr.bf16.gmra.mrb[0].mxu0 %v6792
      %v6963 = vpop.f32.mrb[0].mxu0
      %v6964 = vadd.f32 0.0, %v6963
      %v6965 = vpop.f32.mrb[0].mxu0
      %v6966 = vpop.f32.mrb[0].mxu0
      %v6967 = vadd.f32 0.0, %v6966
      %v6968 = vpop.f32.mrb[0].mxu0
      %6969 = vmatprep.mubr.bf16.mxu0 0
      %6970 = vmatmul.mubr.bf16.gmra.mrb[0].mxu0 %v6795
      %v6971 = vpop.f32.mrb[0].mxu0
      %v6972 = vadd.f32 0.0, %v6971
      %v6973 = vpop.f32.mrb[0].mxu0
      %v6974 = vpop.f32.mrb[0].mxu0
      %v6975 = vadd.f32 0.0, %v6974
      %v6976 = vpop.f32.mrb[0].mxu0
      %6977 = vmatprep.mubr.bf16.mxu0 0
      %6978 = vmatmul.mubr.bf16.gmra.mrb[0].mxu0 %v6798
      %v6979 = vpop.f32.mrb[0].mxu0
      %v6980 = vadd.f32 0.0, %v6979
      %v6981 = vpop.f32.mrb[0].mxu0
      %v6982 = vpop.f32.mrb[0].mxu0
      %v6983 = vadd.f32 0.0, %v6982
      %v6984 = vpop.f32.mrb[0].mxu0
      %6985 = vmatprep.mubr.bf16.mxu0 0
      %6986 = vmatmul.mubr.bf16.gmra.mrb[0].mxu0 %v6801
      %v6987 = vpop.f32.mrb[0].mxu0
      %v6988 = vadd.f32 0.0, %v6987
      %v6989 = vpop.f32.mrb[0].mxu0
      %v6990 = vpop.f32.mrb[0].mxu0
      %v6991 = vadd.f32 0.0, %v6990
      %v6992 = vpop.f32.mrb[0].mxu0
      %6993 = vmatprep.mubr.bf16.mxu0 0
      %6994 = vmatmul.mubr.bf16.gmra.mrb[0].mxu0 %v6804
      %v6995 = vpop.f32.mrb[0].mxu0
      %v6996 = vadd.f32 0.0, %v6995
      %v6997 = vpop.f32.mrb[0].mxu0
      %v6998 = vpop.f32.mrb[0].mxu0
      %v6999 = vadd.f32 0.0, %v6998
      %v7000 = vpop.f32.mrb[0].mxu0
      %7001 = vmatprep.mubr.bf16.mxu0 0
      %7002 = vmatmul.mubr.bf16.gmra.mrb[0].mxu0 %v6807
      %v7003 = vpop.f32.mrb[0].mxu0
      %v7004 = vadd.f32 0.0, %v7003
      %v7005 = vpop.f32.mrb[0].mxu0
      %v7006 = vpop.f32.mrb[0].mxu0
      %v7007 = vadd.f32 0.0, %v7006
      %v7008 = vpop.f32.mrb[0].mxu0
      %7009 = vmatprep.mubr.bf16.mxu0 0
      %7010 = vmatmul.mubr.bf16.gmra.mrb[0].mxu0 %v6810
      %v7011 = vpop.f32.mrb[0].mxu0
      %v7012 = vadd.f32 0.0, %v7011
      %v7013 = vpop.f32.mrb[0].mxu0
      %v7014 = vpop.f32.mrb[0].mxu0
      %v7015 = vadd.f32 0.0, %v7014
      %v7016 = vpop.f32.mrb[0].mxu0
      %7017 = vmatprep.mubr.bf16.mxu0 0
      %7018 = vmatmul.mubr.bf16.gmra.mrb[0].mxu0 %v6813
      %v7019 = vpop.f32.mrb[0].mxu0
      %v7020 = vadd.f32 0.0, %v7019
      %v7021 = vpop.f32.mrb[0].mxu0
      %v7022 = vpop.f32.mrb[0].mxu0
      %v7023 = vadd.f32 0.0, %v7022
      %v7024 = vpop.f32.mrb[0].mxu0
      %7025 = vmatprep.mubr.bf16.mxu0 0
      %7026 = vmatmul.mubr.bf16.gmra.mrb[0].mxu0 %v6816
      %v7027 = vpop.f32.mrb[0].mxu0
      %v7028 = vadd.f32 0.0, %v7027
      %v7029 = vpop.f32.mrb[0].mxu0
      %v7030 = vpop.f32.mrb[0].mxu0
      %v7031 = vadd.f32 0.0, %v7030
      %v7032 = vpop.f32.mrb[0].mxu0
      %7033 = vmatprep.mubr.bf16.mxu0 0
      %7034 = vmatmul.mubr.bf16.gmra.mrb[0].mxu0 %v6819
      %v7035 = vpop.f32.mrb[0].mxu0
      %v7036 = vadd.f32 0.0, %v7035
      %v7037 = vpop.f32.mrb[0].mxu0
      %v7038 = vpop.f32.mrb[0].mxu0
      %v7039 = vadd.f32 0.0, %v7038
      %v7040 = vpop.f32.mrb[0].mxu0
      %7041 = vmatprep.mubr.bf16.mxu0 0
      %7042 = vmatmul.mubr.bf16.gmra.mrb[0].mxu0 %v6822
      %v7043 = vpop.f32.mrb[0].mxu0
      %v7044 = vadd.f32 0.0, %v7043
      %v7045 = vpop.f32.mrb[0].mxu0
      %v7046 = vpop.f32.mrb[0].mxu0
      %v7047 = vadd.f32 0.0, %v7046
      %v7048 = vpop.f32.mrb[0].mxu0
      %7049 = vmatprep.mubr.bf16.mxu0 0
      %7050 = vmatmul.mubr.bf16.gmra.mrb[0].mxu0 %v6825
      %v7051 = vpop.f32.mrb[0].mxu0
      %v7052 = vadd.f32 0.0, %v7051
      %v7053 = vpop.f32.mrb[0].mxu0
      %v7054 = vpop.f32.mrb[0].mxu0
      %v7055 = vadd.f32 0.0, %v7054
      %v7056 = vpop.f32.mrb[0].mxu0
      %7057 = vmatprep.mubr.bf16.mxu0 0
      %7058 = vmatmul.mubr.bf16.gmra.mrb[0].mxu0 %v6828
      %v7059 = vpop.f32.mrb[0].mxu0
      %v7060 = vadd.f32 0.0, %v7059
      %v7061 = vpop.f32.mrb[0].mxu0
      %v7062 = vpop.f32.mrb[0].mxu0
      %v7063 = vadd.f32 0.0, %v7062
      %v7064 = vpop.f32.mrb[0].mxu0
      %7065 = vmatprep.mubr.bf16.mxu0 0
      %7066 = vmatmul.mubr.bf16.gmra.mrb[0].mxu0 %v6831
      %v7067 = vpop.f32.mrb[0].mxu0
      %v7068 = vadd.f32 0.0, %v7067
      %v7069 = vpop.f32.mrb[0].mxu0
      %v7070 = vpop.f32.mrb[0].mxu0
      %v7071 = vadd.f32 0.0, %v7070
      %v7072 = vpop.f32.mrb[0].mxu0
      %7073 = vmatprep.mubr.bf16.mxu0 0
      %7074 = vmatmul.mubr.bf16.gmra.mrb[0].mxu0 %v6834
      %v7075 = vpop.f32.mrb[0].mxu0
      %v7076 = vadd.f32 0.0, %v7075
      %v7077 = vpop.f32.mrb[0].mxu0
      %v7078 = vpop.f32.mrb[0].mxu0
      %v7079 = vadd.f32 0.0, %v7078
      %v7080 = vpop.f32.mrb[0].mxu0
      %7081 = vmatprep.mubr.bf16.mxu0 0
      %7082 = vmatmul.mubr.bf16.gmra.mrb[0].mxu0 %v6837
      %v7083 = vpop.f32.mrb[0].mxu0
      %v7084 = vadd.f32 0.0, %v7083
      %v7085 = vpop.f32.mrb[0].mxu0
      %v7086 = vpop.f32.mrb[0].mxu0
      %v7087 = vadd.f32 0.0, %v7086
      %v7088 = vpop.f32.mrb[0].mxu0
      %7089 = vmatprep.mubr.bf16.mxu0 0
      %7090 = vmatmul.mubr.bf16.gmra.mrb[0].mxu0 %v6840
      %v7091 = vpop.f32.mrb[0].mxu0
      %v7092 = vadd.f32 0.0, %v7091
      %v7093 = vpop.f32.mrb[0].mxu0
      %v7094 = vpop.f32.mrb[0].mxu0
      %v7095 = vadd.f32 0.0, %v7094
      %v7096 = vpop.f32.mrb[0].mxu0
      %7097 = vmatprep.mubr.bf16.mxu0 0
      %7098 = vmatmul.mubr.bf16.gmra.mrb[0].mxu0 %v6843
      %v7099 = vpop.f32.mrb[0].mxu0
      %v7100 = vadd.f32 0.0, %v7099
      %v7101 = vpop.f32.mrb[0].mxu0
      %v7102 = vpop.f32.mrb[0].mxu0
      %v7103 = vadd.f32 0.0, %v7102
      %v7104 = vpop.f32.mrb[0].mxu0
      %7105 = vmatprep.mubr.bf16.mxu0 0
      %7106 = vmatmul.mubr.bf16.gmra.mrb[0].mxu0 %v6846
      %v7107 = vpop.f32.mrb[0].mxu0
      %v7108 = vadd.f32 0.0, %v7107
      %v7109 = vpop.f32.mrb[0].mxu0
      %v7110 = vpop.f32.mrb[0].mxu0
      %v7111 = vadd.f32 0.0, %v7110
      %v7112 = vpop.f32.mrb[0].mxu0
      %7113 = vmatprep.mubr.bf16.mxu0 0
      %7114 = vmatmul.mubr.bf16.gmra.mrb[0].mxu0 %v6849
      %v7115 = vpop.f32.mrb[0].mxu0
      %v7116 = vadd.f32 0.0, %v7115
      %v7117 = vpop.f32.mrb[0].mxu0
      %v7118 = vpop.f32.mrb[0].mxu0
      %v7119 = vadd.f32 0.0, %v7118
      %v7120 = vpop.f32.mrb[0].mxu0
      %7121 = vmatprep.mubr.bf16.mxu0 0
      %7122 = vmatmul.mubr.bf16.gmra.mrb[0].mxu0 %v6852
      %v7123 = vpop.f32.mrb[0].mxu0
      %v7124 = vadd.f32 0.0, %v7123
      %v7125 = vpop.f32.mrb[0].mxu0
      %v7126 = vpop.f32.mrb[0].mxu0
      %v7127 = vadd.f32 0.0, %v7126
      %v7128 = vpop.f32.mrb[0].mxu0
      %7129 = vmatprep.mubr.bf16.mxu0 0
      %7130 = vmatmul.mubr.bf16.gmra.mrb[0].mxu0 %v6855
      %v7131 = vpop.f32.mrb[0].mxu0
      %v7132 = vadd.f32 0.0, %v7131
      %v7133 = vpop.f32.mrb[0].mxu0
      %v7134 = vpop.f32.mrb[0].mxu0
      %v7135 = vadd.f32 0.0, %v7134
      %v7136 = vpop.f32.mrb[0].mxu0
      %7137 = vmatprep.mubr.bf16.mxu0 0
      %7138 = vmatmul.mubr.bf16.gmra.mrb[0].mxu0 %v6858
      %v7139 = vpop.f32.mrb[0].mxu0
      %v7140 = vadd.f32 0.0, %v7139
      %v7141 = vpop.f32.mrb[0].mxu0
      %v7142 = vpop.f32.mrb[0].mxu0
      %v7143 = vadd.f32 0.0, %v7142
      %v7144 = vpop.f32.mrb[0].mxu0
      %7145 = vmatprep.mubr.bf16.mxu0 0
      %7146 = vmatmul.mubr.bf16.gmra.mrb[0].mxu0 %v6861
      %v7147 = vpop.f32.mrb[0].mxu0
      %v7148 = vadd.f32 0.0, %v7147
      %v7149 = vpop.f32.mrb[0].mxu0
      %v7150 = vpop.f32.mrb[0].mxu0
      %v7151 = vadd.f32 0.0, %v7150
      %v7152 = vpop.f32.mrb[0].mxu0
      %7153 = vmatprep.mubr.bf16.mxu0 0
      %7154 = vmatmul.mubr.bf16.gmra.mrb[0].mxu0 %v6864
      %v7155 = vpop.f32.mrb[0].mxu0
      %v7156 = vadd.f32 0.0, %v7155
      %v7157 = vpop.f32.mrb[0].mxu0
      %v7158 = vpop.f32.mrb[0].mxu0
      %v7159 = vadd.f32 0.0, %v7158
      %v7160 = vpop.f32.mrb[0].mxu0
      %7161 = vmatprep.mubr.bf16.mxu0 0
      %7162 = vmatmul.mubr.bf16.gmra.mrb[0].mxu0 %v6867
      %v7163 = vpop.f32.mrb[0].mxu0
      %v7164 = vadd.f32 0.0, %v7163
      %v7165 = vpop.f32.mrb[0].mxu0
      %v7166 = vpop.f32.mrb[0].mxu0
      %v7167 = vadd.f32 0.0, %v7166
      %v7168 = vpop.f32.mrb[0].mxu0
      %7169 = vmatprep.mubr.bf16.mxu0 0
      %7170 = vmatmul.mubr.bf16.gmra.mrb[0].mxu0 %v6870
      %v7171 = vpop.f32.mrb[0].mxu0
      %v7172 = vadd.f32 0.0, %v7171
      %v7173 = vpop.f32.mrb[0].mxu0
      %v7174 = vpop.f32.mrb[0].mxu0
      %v7175 = vadd.f32 0.0, %v7174
      %v7176 = vpop.f32.mrb[0].mxu0
      %7177 = vmatprep.mubr.bf16.mxu0 0
      %7178 = vmatmul.mubr.bf16.gmra.mrb[0].mxu0 %v6873
      %v7179 = vpop.f32.mrb[0].mxu0
      %v7180 = vadd.f32 0.0, %v7179
      %v7181 = vpop.f32.mrb[0].mxu0
      %v7182 = vpop.f32.mrb[0].mxu0
      %v7183 = vadd.f32 0.0, %v7182
      %v7184 = vpop.f32.mrb[0].mxu0
      %7185 = vmatprep.mubr.bf16.mxu0 0
      %7186 = vmatmul.mubr.bf16.gmra.mrb[0].mxu0 %v6876
      %v7187 = vpop.f32.mrb[0].mxu0
      %v7188 = vadd.f32 0.0, %v7187
      %v7189 = vpop.f32.mrb[0].mxu0
      %v7190 = vpop.f32.mrb[0].mxu0
      %v7191 = vadd.f32 0.0, %v7190
      %v7192 = vpop.f32.mrb[0].mxu0
      %7193 = vmatprep.mubr.bf16.mxu0 0
      %7194 = vmatmul.mubr.bf16.gmra.mrb[0].mxu0 %v6879
      %v7195 = vpop.f32.mrb[0].mxu0
      %v7196 = vadd.f32 0.0, %v7195
      %v7197 = vpop.f32.mrb[0].mxu0
      %v7198 = vpop.f32.mrb[0].mxu0
      %v7199 = vadd.f32 0.0, %v7198
      %v7200 = vpop.f32.mrb[0].mxu0
      %7201 = vdwg.mxu0
      %v7202 = vld [vmem:[#allocation2] sm:$0xff]
      %v7203 = vld [vmem:[#allocation2 + $0x8] sm:$0xff]
      %v7204 = vld [vmem:[#allocation2 + $0x10] sm:$0xff]
      %v7205 = vld [vmem:[#allocation2 + $0x18] sm:$0xff]
      %v7206 = vld [vmem:[#allocation2 + $0x20] sm:$0xff]
      %v7207 = vld [vmem:[#allocation2 + $0x28] sm:$0xff]
      %v7208 = vld [vmem:[#allocation2 + $0x30] sm:$0xff]
      %v7209 = vld [vmem:[#allocation2 + $0x38] sm:$0xff]
      %v7210 = vld [vmem:[#allocation2 + $0x40] sm:$0xff]
      %v7211 = vld [vmem:[#allocation2 + $0x48] sm:$0xff]
      %v7212 = vld [vmem:[#allocation2 + $0x50] sm:$0xff]
      %v7213 = vld [vmem:[#allocation2 + $0x58] sm:$0xff]
      %v7214 = vld [vmem:[#allocation2 + $0x60] sm:$0xff]
      %v7215 = vld [vmem:[#allocation2 + $0x68] sm:$0xff]
      %v7216 = vld [vmem:[#allocation2 + $0x70] sm:$0xff]
      %v7217 = vld [vmem:[#allocation2 + $0x78] sm:$0xff]
      %v7218 = vld [vmem:[#allocation2 + $0x80] sm:$0xff]
      %v7219 = vld [vmem:[#allocation2 + $0x88] sm:$0xff]
      %v7220 = vld [vmem:[#allocation2 + $0x90] sm:$0xff]
      %v7221 = vld [vmem:[#allocation2 + $0x98] sm:$0xff]
      %v7222 = vld [vmem:[#allocation2 + $0xa0] sm:$0xff]
      %v7223 = vld [vmem:[#allocation2 + $0xa8] sm:$0xff]
      %v7224 = vld [vmem:[#allocation2 + $0xb0] sm:$0xff]
      %v7225 = vld [vmem:[#allocation2 + $0xb8] sm:$0xff]
      %v7226 = vld [vmem:[#allocation2 + $0xc0] sm:$0xff]
      %v7227 = vld [vmem:[#allocation2 + $0xc8] sm:$0xff]
      %v7228 = vld [vmem:[#allocation2 + $0xd0] sm:$0xff]
      %v7229 = vld [vmem:[#allocation2 + $0xd8] sm:$0xff]
      %v7230 = vld [vmem:[#allocation2 + $0xe0] sm:$0xff]
      %v7231 = vld [vmem:[#allocation2 + $0xe8] sm:$0xff]
      %v7232 = vld [vmem:[#allocation2 + $0xf0] sm:$0xff]
      %v7233 = vld [vmem:[#allocation2 + $0xf8] sm:$0xff]
      %v7234 = vld [vmem:[#allocation2 + $0x100] sm:$0xff]
      %v7235 = vld [vmem:[#allocation2 + $0x108] sm:$0xff]
      %v7236 = vld [vmem:[#allocation2 + $0x110] sm:$0xff]
      %v7237 = vld [vmem:[#allocation2 + $0x118] sm:$0xff]
      %v7238 = vld [vmem:[#allocation2 + $0x120] sm:$0xff]
      %v7239 = vld [vmem:[#allocation2 + $0x128] sm:$0xff]
      %v7240 = vld [vmem:[#allocation2 + $0x130] sm:$0xff]
      %v7241 = vld [vmem:[#allocation2 + $0x138] sm:$0xff]
      %v7242 = vld [vmem:[#allocation2 + $0x140] sm:$0xff]
      %v7243 = vld [vmem:[#allocation2 + $0x148] sm:$0xff]
      %v7244 = vld [vmem:[#allocation2 + $0x150] sm:$0xff]
      %v7245 = vld [vmem:[#allocation2 + $0x158] sm:$0xff]
      %v7246 = vld [vmem:[#allocation2 + $0x160] sm:$0xff]
      %v7247 = vld [vmem:[#allocation2 + $0x168] sm:$0xff]
      %v7248 = vld [vmem:[#allocation2 + $0x170] sm:$0xff]
      %v7249 = vld [vmem:[#allocation2 + $0x178] sm:$0xff]
      %v7250 = vld [vmem:[#allocation2 + $0x180] sm:$0xff]
      %v7251 = vld [vmem:[#allocation2 + $0x188] sm:$0xff]
      %v7252 = vld [vmem:[#allocation2 + $0x190] sm:$0xff]
      %v7253 = vld [vmem:[#allocation2 + $0x198] sm:$0xff]
      %v7254 = vld [vmem:[#allocation2 + $0x1a0] sm:$0xff]
      %v7255 = vld [vmem:[#allocation2 + $0x1a8] sm:$0xff]
      %v7256 = vld [vmem:[#allocation2 + $0x1b0] sm:$0xff]
      %v7257 = vld [vmem:[#allocation2 + $0x1b8] sm:$0xff]
      %v7258 = vld [vmem:[#allocation2 + $0x1c0] sm:$0xff]
      %v7259 = vld [vmem:[#allocation2 + $0x1c8] sm:$0xff]
      %v7260 = vld [vmem:[#allocation2 + $0x1d0] sm:$0xff]
      %v7261 = vld [vmem:[#allocation2 + $0x1d8] sm:$0xff]
      %v7262 = vld [vmem:[#allocation2 + $0x1e0] sm:$0xff]
      %v7263 = vld [vmem:[#allocation2 + $0x1e8] sm:$0xff]
      %v7264 = vld [vmem:[#allocation2 + $0x1f0] sm:$0xff]
      %v7265 = vld [vmem:[#allocation2 + $0x1f8] sm:$0xff]
      %v7266 = vld [vmem:[#allocation2 + $0x200] sm:$0xff]
      %v7267 = vld [vmem:[#allocation2 + $0x208] sm:$0xff]
      %v7268 = vld [vmem:[#allocation2 + $0x210] sm:$0xff]
      %v7269 = vld [vmem:[#allocation2 + $0x218] sm:$0xff]
      %v7270 = vld [vmem:[#allocation2 + $0x220] sm:$0xff]
      %v7271 = vld [vmem:[#allocation2 + $0x228] sm:$0xff]
      %v7272 = vld [vmem:[#allocation2 + $0x230] sm:$0xff]
      %v7273 = vld [vmem:[#allocation2 + $0x238] sm:$0xff]
      %v7274 = vadd.f32 %v7202, %v6916
      %v7275 = vadd.f32 %v7203, %v6919
      %v7276 = vadd.f32 %v7204, %v6924
      %v7277 = vadd.f32 %v7205, %v6927
      %v7278 = vadd.f32 %v7206, %v6932
      %v7279 = vadd.f32 %v7207, %v6935
      %v7280 = vadd.f32 %v7208, %v6940
      %v7281 = vadd.f32 %v7209, %v6943
      %v7282 = vadd.f32 %v7210, %v6948
      %v7283 = vadd.f32 %v7211, %v6951
      %v7284 = vadd.f32 %v7212, %v6956
      %v7285 = vadd.f32 %v7213, %v6959
      %v7286 = vadd.f32 %v7214, %v6964
      %v7287 = vadd.f32 %v7215, %v6967
      %v7288 = vadd.f32 %v7216, %v6972
      %v7289 = vadd.f32 %v7217, %v6975
      %v7290 = vadd.f32 %v7218, %v6980
      %v7291 = vadd.f32 %v7219, %v6983
      %v7292 = vadd.f32 %v7220, %v6988
      %v7293 = vadd.f32 %v7221, %v6991
      %v7294 = vadd.f32 %v7222, %v6996
      %v7295 = vadd.f32 %v7223, %v6999
      %v7296 = vadd.f32 %v7224, %v7004
      %v7297 = vadd.f32 %v7225, %v7007
      %v7298 = vadd.f32 %v7226, %v7012
      %v7299 = vadd.f32 %v7227, %v7015
      %v7300 = vadd.f32 %v7228, %v7020
      %v7301 = vadd.f32 %v7229, %v7023
      %v7302 = vadd.f32 %v7230, %v7028
      %v7303 = vadd.f32 %v7231, %v7031
      %v7304 = vadd.f32 %v7232, %v7036
      %v7305 = vadd.f32 %v7233, %v7039
      %v7306 = vadd.f32 %v7234, %v7044
      %v7307 = vadd.f32 %v7235, %v7047
      %v7308 = vadd.f32 %v7236, %v7052
      %v7309 = vadd.f32 %v7237, %v7055
      %v7310 = vadd.f32 %v7238, %v7060
      %v7311 = vadd.f32 %v7239, %v7063
      %v7312 = vadd.f32 %v7240, %v7068
      %v7313 = vadd.f32 %v7241, %v7071
      %v7314 = vadd.f32 %v7242, %v7076
      %v7315 = vadd.f32 %v7243, %v7079
      %v7316 = vadd.f32 %v7244, %v7084
      %v7317 = vadd.f32 %v7245, %v7087
      %v7318 = vadd.f32 %v7246, %v7092
      %v7319 = vadd.f32 %v7247, %v7095
      %v7320 = vadd.f32 %v7248, %v7100
      %v7321 = vadd.f32 %v7249, %v7103
      %v7322 = vadd.f32 %v7250, %v7108
      %v7323 = vadd.f32 %v7251, %v7111
      %v7324 = vadd.f32 %v7252, %v7116
      %v7325 = vadd.f32 %v7253, %v7119
      %v7326 = vadd.f32 %v7254, %v7124
      %v7327 = vadd.f32 %v7255, %v7127
      %v7328 = vadd.f32 %v7256, %v7132
      %v7329 = vadd.f32 %v7257, %v7135
      %v7330 = vadd.f32 %v7258, %v7140
      %v7331 = vadd.f32 %v7259, %v7143
      %v7332 = vadd.f32 %v7260, %v7148
      %v7333 = vadd.f32 %v7261, %v7151
      %v7334 = vadd.f32 %v7262, %v7156
      %v7335 = vadd.f32 %v7263, %v7159
      %v7336 = vadd.f32 %v7264, %v7164
      %v7337 = vadd.f32 %v7265, %v7167
      %v7338 = vadd.f32 %v7266, %v7172
      %v7339 = vadd.f32 %v7267, %v7175
      %v7340 = vadd.f32 %v7268, %v7180
      %v7341 = vadd.f32 %v7269, %v7183
      %v7342 = vadd.f32 %v7270, %v7188
      %v7343 = vadd.f32 %v7271, %v7191
      %v7344 = vadd.f32 %v7272, %v7196
      %v7345 = vadd.f32 %v7273, %v7199
      %7346 = vst.msk [vmem:[#allocation2] sm:$0xff] %vm1990, %v7274
      %7347 = vst.msk [vmem:[#allocation2 + $0x8] sm:$0xff] %vm1990, %v7275
      %7348 = vst.msk [vmem:[#allocation2 + $0x10] sm:$0xff] %vm1990, %v7276
      %7349 = vst.msk [vmem:[#allocation2 + $0x18] sm:$0xff] %vm1990, %v7277
      %7350 = vst.msk [vmem:[#allocation2 + $0x20] sm:$0xff] %vm1990, %v7278
      %7351 = vst.msk [vmem:[#allocation2 + $0x28] sm:$0xff] %vm1990, %v7279
      %7352 = vst.msk [vmem:[#allocation2 + $0x30] sm:$0xff] %vm1990, %v7280
      %7353 = vst.msk [vmem:[#allocation2 + $0x38] sm:$0xff] %vm1990, %v7281
      %7354 = vst.msk [vmem:[#allocation2 + $0x40] sm:$0xff] %vm1990, %v7282
      %7355 = vst.msk [vmem:[#allocation2 + $0x48] sm:$0xff] %vm1990, %v7283
      %7356 = vst.msk [vmem:[#allocation2 + $0x50] sm:$0xff] %vm1990, %v7284
      %7357 = vst.msk [vmem:[#allocation2 + $0x58] sm:$0xff] %vm1990, %v7285
      %7358 = vst.msk [vmem:[#allocation2 + $0x60] sm:$0xff] %vm1990, %v7286
      %7359 = vst.msk [vmem:[#allocation2 + $0x68] sm:$0xff] %vm1990, %v7287
      %7360 = vst.msk [vmem:[#allocation2 + $0x70] sm:$0xff] %vm1990, %v7288
      %7361 = vst.msk [vmem:[#allocation2 + $0x78] sm:$0xff] %vm1990, %v7289
      %7362 = vst.msk [vmem:[#allocation2 + $0x80] sm:$0xff] %vm1990, %v7290
      %7363 = vst.msk [vmem:[#allocation2 + $0x88] sm:$0xff] %vm1990, %v7291
      %7364 = vst.msk [vmem:[#allocation2 + $0x90] sm:$0xff] %vm1990, %v7292
      %7365 = vst.msk [vmem:[#allocation2 + $0x98] sm:$0xff] %vm1990, %v7293
      %7366 = vst.msk [vmem:[#allocation2 + $0xa0] sm:$0xff] %vm1990, %v7294
      %7367 = vst.msk [vmem:[#allocation2 + $0xa8] sm:$0xff] %vm1990, %v7295
      %7368 = vst.msk [vmem:[#allocation2 + $0xb0] sm:$0xff] %vm1990, %v7296
      %7369 = vst.msk [vmem:[#allocation2 + $0xb8] sm:$0xff] %vm1990, %v7297
      %7370 = vst.msk [vmem:[#allocation2 + $0xc0] sm:$0xff] %vm1990, %v7298
      %7371 = vst.msk [vmem:[#allocation2 + $0xc8] sm:$0xff] %vm1990, %v7299
      %7372 = vst.msk [vmem:[#allocation2 + $0xd0] sm:$0xff] %vm1990, %v7300
      %7373 = vst.msk [vmem:[#allocation2 + $0xd8] sm:$0xff] %vm1990, %v7301
      %7374 = vst.msk [vmem:[#allocation2 + $0xe0] sm:$0xff] %vm1990, %v7302
      %7375 = vst.msk [vmem:[#allocation2 + $0xe8] sm:$0xff] %vm1990, %v7303
      %7376 = vst.msk [vmem:[#allocation2 + $0xf0] sm:$0xff] %vm1990, %v7304
      %7377 = vst.msk [vmem:[#allocation2 + $0xf8] sm:$0xff] %vm1990, %v7305
      %7378 = vst.msk [vmem:[#allocation2 + $0x100] sm:$0xff] %vm1990, %v7306
      %7379 = vst.msk [vmem:[#allocation2 + $0x108] sm:$0xff] %vm1990, %v7307
      %7380 = vst.msk [vmem:[#allocation2 + $0x110] sm:$0xff] %vm1990, %v7308
      %7381 = vst.msk [vmem:[#allocation2 + $0x118] sm:$0xff] %vm1990, %v7309
      %7382 = vst.msk [vmem:[#allocation2 + $0x120] sm:$0xff] %vm1990, %v7310
      %7383 = vst.msk [vmem:[#allocation2 + $0x128] sm:$0xff] %vm1990, %v7311
      %7384 = vst.msk [vmem:[#allocation2 + $0x130] sm:$0xff] %vm1990, %v7312
      %7385 = vst.msk [vmem:[#allocation2 + $0x138] sm:$0xff] %vm1990, %v7313
      %7386 = vst.msk [vmem:[#allocation2 + $0x140] sm:$0xff] %vm1990, %v7314
      %7387 = vst.msk [vmem:[#allocation2 + $0x148] sm:$0xff] %vm1990, %v7315
      %7388 = vst.msk [vmem:[#allocation2 + $0x150] sm:$0xff] %vm1990, %v7316
      %7389 = vst.msk [vmem:[#allocation2 + $0x158] sm:$0xff] %vm1990, %v7317
      %7390 = vst.msk [vmem:[#allocation2 + $0x160] sm:$0xff] %vm1990, %v7318
      %7391 = vst.msk [vmem:[#allocation2 + $0x168] sm:$0xff] %vm1990, %v7319
      %7392 = vst.msk [vmem:[#allocation2 + $0x170] sm:$0xff] %vm1990, %v7320
      %7393 = vst.msk [vmem:[#allocation2 + $0x178] sm:$0xff] %vm1990, %v7321
      %7394 = vst.msk [vmem:[#allocation2 + $0x180] sm:$0xff] %vm1990, %v7322
      %7395 = vst.msk [vmem:[#allocation2 + $0x188] sm:$0xff] %vm1990, %v7323
      %7396 = vst.msk [vmem:[#allocation2 + $0x190] sm:$0xff] %vm1990, %v7324
      %7397 = vst.msk [vmem:[#allocation2 + $0x198] sm:$0xff] %vm1990, %v7325
      %7398 = vst.msk [vmem:[#allocation2 + $0x1a0] sm:$0xff] %vm1990, %v7326
      %7399 = vst.msk [vmem:[#allocation2 + $0x1a8] sm:$0xff] %vm1990, %v7327
      %7400 = vst.msk [vmem:[#allocation2 + $0x1b0] sm:$0xff] %vm1990, %v7328
      %7401 = vst.msk [vmem:[#allocation2 + $0x1b8] sm:$0xff] %vm1990, %v7329
      %7402 = vst.msk [vmem:[#allocation2 + $0x1c0] sm:$0xff] %vm1990, %v7330
      %7403 = vst.msk [vmem:[#allocation2 + $0x1c8] sm:$0xff] %vm1990, %v7331
      %7404 = vst.msk [vmem:[#allocation2 + $0x1d0] sm:$0xff] %vm1990, %v7332
      %7405 = vst.msk [vmem:[#allocation2 + $0x1d8] sm:$0xff] %vm1990, %v7333
      %7406 = vst.msk [vmem:[#allocation2 + $0x1e0] sm:$0xff] %vm1990, %v7334
      %7407 = vst.msk [vmem:[#allocation2 + $0x1e8] sm:$0xff] %vm1990, %v7335
      %7408 = vst.msk [vmem:[#allocation2 + $0x1f0] sm:$0xff] %vm1990, %v7336
      %7409 = vst.msk [vmem:[#allocation2 + $0x1f8] sm:$0xff] %vm1990, %v7337
      %7410 = vst.msk [vmem:[#allocation2 + $0x200] sm:$0xff] %vm1990, %v7338
      %7411 = vst.msk [vmem:[#allocation2 + $0x208] sm:$0xff] %vm1990, %v7339
      %7412 = vst.msk [vmem:[#allocation2 + $0x210] sm:$0xff] %vm1990, %v7340
      %7413 = vst.msk [vmem:[#allocation2 + $0x218] sm:$0xff] %vm1990, %v7341
      %7414 = vst.msk [vmem:[#allocation2 + $0x220] sm:$0xff] %vm1990, %v7342
      %7415 = vst.msk [vmem:[#allocation2 + $0x228] sm:$0xff] %vm1990, %v7343
      %7416 = vst.msk [vmem:[#allocation2 + $0x230] sm:$0xff] %vm1990, %v7344
      %7417 = vst.msk [vmem:[#allocation2 + $0x238] sm:$0xff] %vm1990, %v7345
      %s7418 = scalar_lea.vmem %s281, 256
      %v7419 = vld [vmem:[%s7418] sm:$0xf]
      %v7420 = vld [vmem:[%s7418 + $0x4] sm:$0xf]
      %v7421 = vld [vmem:[%s7418 + $0x8] sm:$0xf]
      %v7422 = vld [vmem:[%s7418 + $0xc] sm:$0xf]
      %v7423 = vld [vmem:[%s7418 + $0x10] sm:$0xf]
      %v7424 = vld [vmem:[%s7418 + $0x14] sm:$0xf]
      %v7425 = vld [vmem:[%s7418 + $0x18] sm:$0xf]
      %v7426 = vld [vmem:[%s7418 + $0x1c] sm:$0xf]
      %v7427 = vunpack.c.l.b16 %v5908
      %v7428 = vunpack.c.l.b16 %v5911
      %v7429 = vunpack.c.l.b16 %v5914
      %v7430 = vpack.c.b16 %v6711, %v6710
      %v7431 = vpack.c.b16 %v7427, %v6712
      %v7432 = vpack.c.b16 %v7429, %v7428
      %v7441 = vunpack.c.l.b16 %v7419
      %v7442 = vunpack.c.l.b16 %v7420
      %v7443 = vunpack.c.l.b16 %v7421
      %v7444 = vunpack.c.l.b16 %v7422
      %v7445 = vunpack.c.l.b16 %v7423
      %v7446 = vunpack.c.l.b16 %v7424
      %v7447 = vunpack.c.l.b16 %v7425
      %v7448 = vunpack.c.l.b16 %v7426
      %v7449 = vpack.c.b16 %v7442, %v7441
      %v7450 = vpack.c.b16 %v7444, %v7443
      %v7451 = vpack.c.b16 %v7446, %v7445
      %v7452 = vpack.c.b16 %v7448, %v7447
      %v7458 = vsel %vm614, %v7430, 0
      %v7461 = vsel %vm614, %v7431, 0
      %v7464 = vsel %vm614, %v7432, 0
      %7466 = vmatprep.subr.bf16.mxu0 0
      %7467 = vmatpush1.bf16.msra.mxu0 %v7449
      %7468 = vmatprep.subr.bf16.mxu0 0
      %7469 = vmatpush1.bf16.msra.mxu0 %v7450
      %7470 = vmatprep.subr.bf16.mxu0 0
      %7471 = vmatpush1.bf16.msra.mxu0 %v7451
      %7472 = vmatprep.subr.bf16.mxu0 0
      %7473 = vmatpush1.bf16.msra.mxu0 %v7452
      %7474 = vmatprep.subr.bf16.mxu0 0
      %7475 = vmatpush1.bf16.msra.mxu0 0
      %7476 = vmatprep.subr.bf16.mxu0 0
      %7477 = vmatpush1.bf16.msra.mxu0 0
      %7478 = vmatprep.subr.bf16.mxu0 0
      %7479 = vmatpush1.bf16.msra.mxu0 0
      %7480 = vmatprep.subr.bf16.mxu0 0
      %7481 = vmatpush1.bf16.msra.mxu0 0
      %7482 = vmatprep.subr.bf16.mxu0 0
      %7483 = vmatpush1.bf16.msra.mxu0 0
      %7484 = vmatprep.subr.bf16.mxu0 0
      %7485 = vmatpush1.bf16.msra.mxu0 0
      %7486 = vmatprep.subr.bf16.mxu0 0
      %7487 = vmatpush1.bf16.msra.mxu0 0
      %7488 = vmatprep.subr.bf16.mxu0 0
      %7489 = vmatpush1.bf16.msra.mxu0 0
      %7490 = vmatprep.subr.bf16.mxu0 0
      %7491 = vmatpush1.bf16.msra.mxu0 0
      %7492 = vmatprep.subr.bf16.mxu0 0
      %7493 = vmatpush1.bf16.msra.mxu0 0
      %7494 = vmatprep.subr.bf16.mxu0 0
      %7495 = vmatpush1.bf16.msra.mxu0 0
      %7496 = vmatprep.subr.bf16.mxu0 0
      %7497 = vmatpush1.bf16.msra.mxu0 0
      %7498 = vmatprep.mubr.bf16.mxu0 0
      %7499 = vmatmul.mubr.bf16.gmra.mrb[0].mxu0 %v6066
      %v7500 = vpop.f32.mrb[0].mxu0
      %v7501 = vadd.f32 0.0, %v7500
      %v7502 = vpop.f32.mrb[0].mxu0
      %v7503 = vpop.f32.mrb[0].mxu0
      %v7504 = vadd.f32 0.0, %v7503
      %v7505 = vpop.f32.mrb[0].mxu0
      %7506 = vmatprep.mubr.bf16.mxu0 0
      %7507 = vmatmul.mubr.bf16.gmra.mrb[0].mxu0 %v6069
      %v7508 = vpop.f32.mrb[0].mxu0
      %v7509 = vadd.f32 0.0, %v7508
      %v7510 = vpop.f32.mrb[0].mxu0
      %v7511 = vpop.f32.mrb[0].mxu0
      %v7512 = vadd.f32 0.0, %v7511
      %v7513 = vpop.f32.mrb[0].mxu0
      %7514 = vmatprep.mubr.bf16.mxu0 0
      %7515 = vmatmul.mubr.bf16.gmra.mrb[0].mxu0 %v6072
      %v7516 = vpop.f32.mrb[0].mxu0
      %v7517 = vadd.f32 0.0, %v7516
      %v7518 = vpop.f32.mrb[0].mxu0
      %v7519 = vpop.f32.mrb[0].mxu0
      %v7520 = vadd.f32 0.0, %v7519
      %v7521 = vpop.f32.mrb[0].mxu0
      %7522 = vmatprep.mubr.bf16.mxu0 0
      %7523 = vmatmul.mubr.bf16.gmra.mrb[0].mxu0 %v6075
      %v7524 = vpop.f32.mrb[0].mxu0
      %v7525 = vadd.f32 0.0, %v7524
      %v7526 = vpop.f32.mrb[0].mxu0
      %v7527 = vpop.f32.mrb[0].mxu0
      %v7528 = vadd.f32 0.0, %v7527
      %v7529 = vpop.f32.mrb[0].mxu0
      %7530 = vmatprep.mubr.bf16.mxu0 0
      %7531 = vmatmul.mubr.bf16.gmra.mrb[0].mxu0 %v6078
      %v7532 = vpop.f32.mrb[0].mxu0
      %v7533 = vadd.f32 0.0, %v7532
      %v7534 = vpop.f32.mrb[0].mxu0
      %v7535 = vpop.f32.mrb[0].mxu0
      %v7536 = vadd.f32 0.0, %v7535
      %v7537 = vpop.f32.mrb[0].mxu0
      %7538 = vmatprep.mubr.bf16.mxu0 0
      %7539 = vmatmul.mubr.bf16.gmra.mrb[0].mxu0 %v6081
      %v7540 = vpop.f32.mrb[0].mxu0
      %v7541 = vadd.f32 0.0, %v7540
      %v7542 = vpop.f32.mrb[0].mxu0
      %v7543 = vpop.f32.mrb[0].mxu0
      %v7544 = vadd.f32 0.0, %v7543
      %v7545 = vpop.f32.mrb[0].mxu0
      %7546 = vmatprep.mubr.bf16.mxu0 0
      %7547 = vmatmul.mubr.bf16.gmra.mrb[0].mxu0 %v6084
      %v7548 = vpop.f32.mrb[0].mxu0
      %v7549 = vadd.f32 0.0, %v7548
      %v7550 = vpop.f32.mrb[0].mxu0
      %v7551 = vpop.f32.mrb[0].mxu0
      %v7552 = vadd.f32 0.0, %v7551
      %v7553 = vpop.f32.mrb[0].mxu0
      %7554 = vmatprep.mubr.bf16.mxu0 0
      %7555 = vmatmul.mubr.bf16.gmra.mrb[0].mxu0 %v6087
      %v7556 = vpop.f32.mrb[0].mxu0
      %v7557 = vadd.f32 0.0, %v7556
      %v7558 = vpop.f32.mrb[0].mxu0
      %v7559 = vpop.f32.mrb[0].mxu0
      %v7560 = vadd.f32 0.0, %v7559
      %v7561 = vpop.f32.mrb[0].mxu0
      %7562 = vmatprep.mubr.bf16.mxu0 0
      %7563 = vmatmul.mubr.bf16.gmra.mrb[0].mxu0 %v6090
      %v7564 = vpop.f32.mrb[0].mxu0
      %v7565 = vadd.f32 0.0, %v7564
      %v7566 = vpop.f32.mrb[0].mxu0
      %v7567 = vpop.f32.mrb[0].mxu0
      %v7568 = vadd.f32 0.0, %v7567
      %v7569 = vpop.f32.mrb[0].mxu0
      %7570 = vmatprep.mubr.bf16.mxu0 0
      %7571 = vmatmul.mubr.bf16.gmra.mrb[0].mxu0 %v6093
      %v7572 = vpop.f32.mrb[0].mxu0
      %v7573 = vadd.f32 0.0, %v7572
      %v7574 = vpop.f32.mrb[0].mxu0
      %v7575 = vpop.f32.mrb[0].mxu0
      %v7576 = vadd.f32 0.0, %v7575
      %v7577 = vpop.f32.mrb[0].mxu0
      %7578 = vmatprep.mubr.bf16.mxu0 0
      %7579 = vmatmul.mubr.bf16.gmra.mrb[0].mxu0 %v6096
      %v7580 = vpop.f32.mrb[0].mxu0
      %v7581 = vadd.f32 0.0, %v7580
      %v7582 = vpop.f32.mrb[0].mxu0
      %v7583 = vpop.f32.mrb[0].mxu0
      %v7584 = vadd.f32 0.0, %v7583
      %v7585 = vpop.f32.mrb[0].mxu0
      %7586 = vmatprep.mubr.bf16.mxu0 0
      %7587 = vmatmul.mubr.bf16.gmra.mrb[0].mxu0 %v6099
      %v7588 = vpop.f32.mrb[0].mxu0
      %v7589 = vadd.f32 0.0, %v7588
      %v7590 = vpop.f32.mrb[0].mxu0
      %v7591 = vpop.f32.mrb[0].mxu0
      %v7592 = vadd.f32 0.0, %v7591
      %v7593 = vpop.f32.mrb[0].mxu0
      %7594 = vmatprep.mubr.bf16.mxu0 0
      %7595 = vmatmul.mubr.bf16.gmra.mrb[0].mxu0 %v6102
      %v7596 = vpop.f32.mrb[0].mxu0
      %v7597 = vadd.f32 0.0, %v7596
      %v7598 = vpop.f32.mrb[0].mxu0
      %v7599 = vpop.f32.mrb[0].mxu0
      %v7600 = vadd.f32 0.0, %v7599
      %v7601 = vpop.f32.mrb[0].mxu0
      %7602 = vmatprep.mubr.bf16.mxu0 0
      %7603 = vmatmul.mubr.bf16.gmra.mrb[0].mxu0 %v6105
      %v7604 = vpop.f32.mrb[0].mxu0
      %v7605 = vadd.f32 0.0, %v7604
      %v7606 = vpop.f32.mrb[0].mxu0
      %v7607 = vpop.f32.mrb[0].mxu0
      %v7608 = vadd.f32 0.0, %v7607
      %v7609 = vpop.f32.mrb[0].mxu0
      %7610 = vmatprep.mubr.bf16.mxu0 0
      %7611 = vmatmul.mubr.bf16.gmra.mrb[0].mxu0 %v6108
      %v7612 = vpop.f32.mrb[0].mxu0
      %v7613 = vadd.f32 0.0, %v7612
      %v7614 = vpop.f32.mrb[0].mxu0
      %v7615 = vpop.f32.mrb[0].mxu0
      %v7616 = vadd.f32 0.0, %v7615
      %v7617 = vpop.f32.mrb[0].mxu0
      %7618 = vmatprep.mubr.bf16.mxu0 0
      %7619 = vmatmul.mubr.bf16.gmra.mrb[0].mxu0 %v6111
      %v7620 = vpop.f32.mrb[0].mxu0
      %v7621 = vadd.f32 0.0, %v7620
      %v7622 = vpop.f32.mrb[0].mxu0
      %v7623 = vpop.f32.mrb[0].mxu0
      %v7624 = vadd.f32 0.0, %v7623
      %v7625 = vpop.f32.mrb[0].mxu0
      %7626 = vmatprep.mubr.bf16.mxu0 0
      %7627 = vmatmul.mubr.bf16.gmra.mrb[0].mxu0 %v6114
      %v7628 = vpop.f32.mrb[0].mxu0
      %v7629 = vadd.f32 0.0, %v7628
      %v7630 = vpop.f32.mrb[0].mxu0
      %v7631 = vpop.f32.mrb[0].mxu0
      %v7632 = vadd.f32 0.0, %v7631
      %v7633 = vpop.f32.mrb[0].mxu0
      %7634 = vmatprep.mubr.bf16.mxu0 0
      %7635 = vmatmul.mubr.bf16.gmra.mrb[0].mxu0 %v6117
      %v7636 = vpop.f32.mrb[0].mxu0
      %v7637 = vadd.f32 0.0, %v7636
      %v7638 = vpop.f32.mrb[0].mxu0
      %v7639 = vpop.f32.mrb[0].mxu0
      %v7640 = vadd.f32 0.0, %v7639
      %v7641 = vpop.f32.mrb[0].mxu0
      %7642 = vmatprep.mubr.bf16.mxu0 0
      %7643 = vmatmul.mubr.bf16.gmra.mrb[0].mxu0 %v6120
      %v7644 = vpop.f32.mrb[0].mxu0
      %v7645 = vadd.f32 0.0, %v7644
      %v7646 = vpop.f32.mrb[0].mxu0
      %v7647 = vpop.f32.mrb[0].mxu0
      %v7648 = vadd.f32 0.0, %v7647
      %v7649 = vpop.f32.mrb[0].mxu0
      %7650 = vmatprep.mubr.bf16.mxu0 0
      %7651 = vmatmul.mubr.bf16.gmra.mrb[0].mxu0 %v6123
      %v7652 = vpop.f32.mrb[0].mxu0
      %v7653 = vadd.f32 0.0, %v7652
      %v7654 = vpop.f32.mrb[0].mxu0
      %v7655 = vpop.f32.mrb[0].mxu0
      %v7656 = vadd.f32 0.0, %v7655
      %v7657 = vpop.f32.mrb[0].mxu0
      %7658 = vmatprep.mubr.bf16.mxu0 0
      %7659 = vmatmul.mubr.bf16.gmra.mrb[0].mxu0 %v6126
      %v7660 = vpop.f32.mrb[0].mxu0
      %v7661 = vadd.f32 0.0, %v7660
      %v7662 = vpop.f32.mrb[0].mxu0
      %v7663 = vpop.f32.mrb[0].mxu0
      %v7664 = vadd.f32 0.0, %v7663
      %v7665 = vpop.f32.mrb[0].mxu0
      %7666 = vmatprep.mubr.bf16.mxu0 0
      %7667 = vmatmul.mubr.bf16.gmra.mrb[0].mxu0 %v6129
      %v7668 = vpop.f32.mrb[0].mxu0
      %v7669 = vadd.f32 0.0, %v7668
      %v7670 = vpop.f32.mrb[0].mxu0
      %v7671 = vpop.f32.mrb[0].mxu0
      %v7672 = vadd.f32 0.0, %v7671
      %v7673 = vpop.f32.mrb[0].mxu0
      %7674 = vmatprep.mubr.bf16.mxu0 0
      %7675 = vmatmul.mubr.bf16.gmra.mrb[0].mxu0 %v6132
      %v7676 = vpop.f32.mrb[0].mxu0
      %v7677 = vadd.f32 0.0, %v7676
      %v7678 = vpop.f32.mrb[0].mxu0
      %v7679 = vpop.f32.mrb[0].mxu0
      %v7680 = vadd.f32 0.0, %v7679
      %v7681 = vpop.f32.mrb[0].mxu0
      %7682 = vmatprep.mubr.bf16.mxu0 0
      %7683 = vmatmul.mubr.bf16.gmra.mrb[0].mxu0 %v6135
      %v7684 = vpop.f32.mrb[0].mxu0
      %v7685 = vadd.f32 0.0, %v7684
      %v7686 = vpop.f32.mrb[0].mxu0
      %v7687 = vpop.f32.mrb[0].mxu0
      %v7688 = vadd.f32 0.0, %v7687
      %v7689 = vpop.f32.mrb[0].mxu0
      %7690 = vmatprep.mubr.bf16.mxu0 0
      %7691 = vmatmul.mubr.bf16.gmra.mrb[0].mxu0 %v6138
      %v7692 = vpop.f32.mrb[0].mxu0
      %v7693 = vadd.f32 0.0, %v7692
      %v7694 = vpop.f32.mrb[0].mxu0
      %v7695 = vpop.f32.mrb[0].mxu0
      %v7696 = vadd.f32 0.0, %v7695
      %v7697 = vpop.f32.mrb[0].mxu0
      %7698 = vmatprep.mubr.bf16.mxu0 0
      %7699 = vmatmul.mubr.bf16.gmra.mrb[0].mxu0 %v6141
      %v7700 = vpop.f32.mrb[0].mxu0
      %v7701 = vadd.f32 0.0, %v7700
      %v7702 = vpop.f32.mrb[0].mxu0
      %v7703 = vpop.f32.mrb[0].mxu0
      %v7704 = vadd.f32 0.0, %v7703
      %v7705 = vpop.f32.mrb[0].mxu0
      %7706 = vmatprep.mubr.bf16.mxu0 0
      %7707 = vmatmul.mubr.bf16.gmra.mrb[0].mxu0 %v6144
      %v7708 = vpop.f32.mrb[0].mxu0
      %v7709 = vadd.f32 0.0, %v7708
      %v7710 = vpop.f32.mrb[0].mxu0
      %v7711 = vpop.f32.mrb[0].mxu0
      %v7712 = vadd.f32 0.0, %v7711
      %v7713 = vpop.f32.mrb[0].mxu0
      %7714 = vmatprep.mubr.bf16.mxu0 0
      %7715 = vmatmul.mubr.bf16.gmra.mrb[0].mxu0 %v6147
      %v7716 = vpop.f32.mrb[0].mxu0
      %v7717 = vadd.f32 0.0, %v7716
      %v7718 = vpop.f32.mrb[0].mxu0
      %v7719 = vpop.f32.mrb[0].mxu0
      %v7720 = vadd.f32 0.0, %v7719
      %v7721 = vpop.f32.mrb[0].mxu0
      %7722 = vmatprep.mubr.bf16.mxu0 0
      %7723 = vmatmul.mubr.bf16.gmra.mrb[0].mxu0 %v6150
      %v7724 = vpop.f32.mrb[0].mxu0
      %v7725 = vadd.f32 0.0, %v7724
      %v7726 = vpop.f32.mrb[0].mxu0
      %v7727 = vpop.f32.mrb[0].mxu0
      %v7728 = vadd.f32 0.0, %v7727
      %v7729 = vpop.f32.mrb[0].mxu0
      %7730 = vmatprep.mubr.bf16.mxu0 0
      %7731 = vmatmul.mubr.bf16.gmra.mrb[0].mxu0 %v6153
      %v7732 = vpop.f32.mrb[0].mxu0
      %v7733 = vadd.f32 0.0, %v7732
      %v7734 = vpop.f32.mrb[0].mxu0
      %v7735 = vpop.f32.mrb[0].mxu0
      %v7736 = vadd.f32 0.0, %v7735
      %v7737 = vpop.f32.mrb[0].mxu0
      %7738 = vmatprep.mubr.bf16.mxu0 0
      %7739 = vmatmul.mubr.bf16.gmra.mrb[0].mxu0 %v6156
      %v7740 = vpop.f32.mrb[0].mxu0
      %v7741 = vadd.f32 0.0, %v7740
      %v7742 = vpop.f32.mrb[0].mxu0
      %v7743 = vpop.f32.mrb[0].mxu0
      %v7744 = vadd.f32 0.0, %v7743
      %v7745 = vpop.f32.mrb[0].mxu0
      %7746 = vmatprep.mubr.bf16.mxu0 0
      %7747 = vmatmul.mubr.bf16.gmra.mrb[0].mxu0 %v6159
      %v7748 = vpop.f32.mrb[0].mxu0
      %v7749 = vadd.f32 0.0, %v7748
      %v7750 = vpop.f32.mrb[0].mxu0
      %v7751 = vpop.f32.mrb[0].mxu0
      %v7752 = vadd.f32 0.0, %v7751
      %v7753 = vpop.f32.mrb[0].mxu0
      %7754 = vmatprep.mubr.bf16.mxu0 0
      %7755 = vmatmul.mubr.bf16.gmra.mrb[0].mxu0 %v6162
      %v7756 = vpop.f32.mrb[0].mxu0
      %v7757 = vadd.f32 0.0, %v7756
      %v7758 = vpop.f32.mrb[0].mxu0
      %v7759 = vpop.f32.mrb[0].mxu0
      %v7760 = vadd.f32 0.0, %v7759
      %v7761 = vpop.f32.mrb[0].mxu0
      %7762 = vmatprep.mubr.bf16.mxu0 0
      %7763 = vmatmul.mubr.bf16.gmra.mrb[0].mxu0 %v7458
      %v7764 = vpop.f32.mrb[0].mxu0
      %v7765 = vadd.f32 0.0, %v7764
      %v7766 = vpop.f32.mrb[0].mxu0
      %v7767 = vpop.f32.mrb[0].mxu0
      %v7768 = vadd.f32 0.0, %v7767
      %v7769 = vpop.f32.mrb[0].mxu0
      %7770 = vmatprep.mubr.bf16.mxu0 0
      %7771 = vmatmul.mubr.bf16.gmra.mrb[0].mxu0 %v7461
      %v7772 = vpop.f32.mrb[0].mxu0
      %v7773 = vadd.f32 0.0, %v7772
      %v7774 = vpop.f32.mrb[0].mxu0
      %v7775 = vpop.f32.mrb[0].mxu0
      %v7776 = vadd.f32 0.0, %v7775
      %v7777 = vpop.f32.mrb[0].mxu0
      %7778 = vmatprep.mubr.bf16.mxu0 0
      %7779 = vmatmul.mubr.bf16.gmra.mrb[0].mxu0 %v7464
      %v7780 = vpop.f32.mrb[0].mxu0
      %v7781 = vadd.f32 0.0, %v7780
      %v7782 = vpop.f32.mrb[0].mxu0
      %v7783 = vpop.f32.mrb[0].mxu0
      %v7784 = vadd.f32 0.0, %v7783
      %v7785 = vpop.f32.mrb[0].mxu0
      %7786 = vdwg.mxu0
      %v7787 = vld [vmem:[#allocation2] sm:$0xff]
      %v7788 = vld [vmem:[#allocation2 + $0x8] sm:$0xff]
      %v7789 = vld [vmem:[#allocation2 + $0x10] sm:$0xff]
      %v7790 = vld [vmem:[#allocation2 + $0x18] sm:$0xff]
      %v7791 = vld [vmem:[#allocation2 + $0x20] sm:$0xff]
      %v7792 = vld [vmem:[#allocation2 + $0x28] sm:$0xff]
      %v7793 = vld [vmem:[#allocation2 + $0x30] sm:$0xff]
      %v7794 = vld [vmem:[#allocation2 + $0x38] sm:$0xff]
      %v7795 = vld [vmem:[#allocation2 + $0x40] sm:$0xff]
      %v7796 = vld [vmem:[#allocation2 + $0x48] sm:$0xff]
      %v7797 = vld [vmem:[#allocation2 + $0x50] sm:$0xff]
      %v7798 = vld [vmem:[#allocation2 + $0x58] sm:$0xff]
      %v7799 = vld [vmem:[#allocation2 + $0x60] sm:$0xff]
      %v7800 = vld [vmem:[#allocation2 + $0x68] sm:$0xff]
      %v7801 = vld [vmem:[#allocation2 + $0x70] sm:$0xff]
      %v7802 = vld [vmem:[#allocation2 + $0x78] sm:$0xff]
      %v7803 = vld [vmem:[#allocation2 + $0x80] sm:$0xff]
      %v7804 = vld [vmem:[#allocation2 + $0x88] sm:$0xff]
      %v7805 = vld [vmem:[#allocation2 + $0x90] sm:$0xff]
      %v7806 = vld [vmem:[#allocation2 + $0x98] sm:$0xff]
      %v7807 = vld [vmem:[#allocation2 + $0xa0] sm:$0xff]
      %v7808 = vld [vmem:[#allocation2 + $0xa8] sm:$0xff]
      %v7809 = vld [vmem:[#allocation2 + $0xb0] sm:$0xff]
      %v7810 = vld [vmem:[#allocation2 + $0xb8] sm:$0xff]
      %v7811 = vld [vmem:[#allocation2 + $0xc0] sm:$0xff]
      %v7812 = vld [vmem:[#allocation2 + $0xc8] sm:$0xff]
      %v7813 = vld [vmem:[#allocation2 + $0xd0] sm:$0xff]
      %v7814 = vld [vmem:[#allocation2 + $0xd8] sm:$0xff]
      %v7815 = vld [vmem:[#allocation2 + $0xe0] sm:$0xff]
      %v7816 = vld [vmem:[#allocation2 + $0xe8] sm:$0xff]
      %v7817 = vld [vmem:[#allocation2 + $0xf0] sm:$0xff]
      %v7818 = vld [vmem:[#allocation2 + $0xf8] sm:$0xff]
      %v7819 = vld [vmem:[#allocation2 + $0x100] sm:$0xff]
      %v7820 = vld [vmem:[#allocation2 + $0x108] sm:$0xff]
      %v7821 = vld [vmem:[#allocation2 + $0x110] sm:$0xff]
      %v7822 = vld [vmem:[#allocation2 + $0x118] sm:$0xff]
      %v7823 = vld [vmem:[#allocation2 + $0x120] sm:$0xff]
      %v7824 = vld [vmem:[#allocation2 + $0x128] sm:$0xff]
      %v7825 = vld [vmem:[#allocation2 + $0x130] sm:$0xff]
      %v7826 = vld [vmem:[#allocation2 + $0x138] sm:$0xff]
      %v7827 = vld [vmem:[#allocation2 + $0x140] sm:$0xff]
      %v7828 = vld [vmem:[#allocation2 + $0x148] sm:$0xff]
      %v7829 = vld [vmem:[#allocation2 + $0x150] sm:$0xff]
      %v7830 = vld [vmem:[#allocation2 + $0x158] sm:$0xff]
      %v7831 = vld [vmem:[#allocation2 + $0x160] sm:$0xff]
      %v7832 = vld [vmem:[#allocation2 + $0x168] sm:$0xff]
      %v7833 = vld [vmem:[#allocation2 + $0x170] sm:$0xff]
      %v7834 = vld [vmem:[#allocation2 + $0x178] sm:$0xff]
      %v7835 = vld [vmem:[#allocation2 + $0x180] sm:$0xff]
      %v7836 = vld [vmem:[#allocation2 + $0x188] sm:$0xff]
      %v7837 = vld [vmem:[#allocation2 + $0x190] sm:$0xff]
      %v7838 = vld [vmem:[#allocation2 + $0x198] sm:$0xff]
      %v7839 = vld [vmem:[#allocation2 + $0x1a0] sm:$0xff]
      %v7840 = vld [vmem:[#allocation2 + $0x1a8] sm:$0xff]
      %v7841 = vld [vmem:[#allocation2 + $0x1b0] sm:$0xff]
      %v7842 = vld [vmem:[#allocation2 + $0x1b8] sm:$0xff]
      %v7843 = vld [vmem:[#allocation2 + $0x1c0] sm:$0xff]
      %v7844 = vld [vmem:[#allocation2 + $0x1c8] sm:$0xff]
      %v7845 = vld [vmem:[#allocation2 + $0x1d0] sm:$0xff]
      %v7846 = vld [vmem:[#allocation2 + $0x1d8] sm:$0xff]
      %v7847 = vld [vmem:[#allocation2 + $0x1e0] sm:$0xff]
      %v7848 = vld [vmem:[#allocation2 + $0x1e8] sm:$0xff]
      %v7849 = vld [vmem:[#allocation2 + $0x1f0] sm:$0xff]
      %v7850 = vld [vmem:[#allocation2 + $0x1f8] sm:$0xff]
      %v7851 = vld [vmem:[#allocation2 + $0x200] sm:$0xff]
      %v7852 = vld [vmem:[#allocation2 + $0x208] sm:$0xff]
      %v7853 = vld [vmem:[#allocation2 + $0x210] sm:$0xff]
      %v7854 = vld [vmem:[#allocation2 + $0x218] sm:$0xff]
      %v7855 = vld [vmem:[#allocation2 + $0x220] sm:$0xff]
      %v7856 = vld [vmem:[#allocation2 + $0x228] sm:$0xff]
      %v7857 = vld [vmem:[#allocation2 + $0x230] sm:$0xff]
      %v7858 = vld [vmem:[#allocation2 + $0x238] sm:$0xff]
      %v7859 = vadd.f32 %v7787, %v7501
      %v7860 = vadd.f32 %v7788, %v7504
      %v7861 = vadd.f32 %v7789, %v7509
      %v7862 = vadd.f32 %v7790, %v7512
      %v7863 = vadd.f32 %v7791, %v7517
      %v7864 = vadd.f32 %v7792, %v7520
      %v7865 = vadd.f32 %v7793, %v7525
      %v7866 = vadd.f32 %v7794, %v7528
      %v7867 = vadd.f32 %v7795, %v7533
      %v7868 = vadd.f32 %v7796, %v7536
      %v7869 = vadd.f32 %v7797, %v7541
      %v7870 = vadd.f32 %v7798, %v7544
      %v7871 = vadd.f32 %v7799, %v7549
      %v7872 = vadd.f32 %v7800, %v7552
      %v7873 = vadd.f32 %v7801, %v7557
      %v7874 = vadd.f32 %v7802, %v7560
      %v7875 = vadd.f32 %v7803, %v7565
      %v7876 = vadd.f32 %v7804, %v7568
      %v7877 = vadd.f32 %v7805, %v7573
      %v7878 = vadd.f32 %v7806, %v7576
      %v7879 = vadd.f32 %v7807, %v7581
      %v7880 = vadd.f32 %v7808, %v7584
      %v7881 = vadd.f32 %v7809, %v7589
      %v7882 = vadd.f32 %v7810, %v7592
      %v7883 = vadd.f32 %v7811, %v7597
      %v7884 = vadd.f32 %v7812, %v7600
      %v7885 = vadd.f32 %v7813, %v7605
      %v7886 = vadd.f32 %v7814, %v7608
      %v7887 = vadd.f32 %v7815, %v7613
      %v7888 = vadd.f32 %v7816, %v7616
      %v7889 = vadd.f32 %v7817, %v7621
      %v7890 = vadd.f32 %v7818, %v7624
      %v7891 = vadd.f32 %v7819, %v7629
      %v7892 = vadd.f32 %v7820, %v7632
      %v7893 = vadd.f32 %v7821, %v7637
      %v7894 = vadd.f32 %v7822, %v7640
      %v7895 = vadd.f32 %v7823, %v7645
      %v7896 = vadd.f32 %v7824, %v7648
      %v7897 = vadd.f32 %v7825, %v7653
      %v7898 = vadd.f32 %v7826, %v7656
      %v7899 = vadd.f32 %v7827, %v7661
      %v7900 = vadd.f32 %v7828, %v7664
      %v7901 = vadd.f32 %v7829, %v7669
      %v7902 = vadd.f32 %v7830, %v7672
      %v7903 = vadd.f32 %v7831, %v7677
      %v7904 = vadd.f32 %v7832, %v7680
      %v7905 = vadd.f32 %v7833, %v7685
      %v7906 = vadd.f32 %v7834, %v7688
      %v7907 = vadd.f32 %v7835, %v7693
      %v7908 = vadd.f32 %v7836, %v7696
      %v7909 = vadd.f32 %v7837, %v7701
      %v7910 = vadd.f32 %v7838, %v7704
      %v7911 = vadd.f32 %v7839, %v7709
      %v7912 = vadd.f32 %v7840, %v7712
      %v7913 = vadd.f32 %v7841, %v7717
      %v7914 = vadd.f32 %v7842, %v7720
      %v7915 = vadd.f32 %v7843, %v7725
      %v7916 = vadd.f32 %v7844, %v7728
      %v7917 = vadd.f32 %v7845, %v7733
      %v7918 = vadd.f32 %v7846, %v7736
      %v7919 = vadd.f32 %v7847, %v7741
      %v7920 = vadd.f32 %v7848, %v7744
      %v7921 = vadd.f32 %v7849, %v7749
      %v7922 = vadd.f32 %v7850, %v7752
      %v7923 = vadd.f32 %v7851, %v7757
      %v7924 = vadd.f32 %v7852, %v7760
      %v7925 = vadd.f32 %v7853, %v7765
      %v7926 = vadd.f32 %v7854, %v7768
      %v7927 = vadd.f32 %v7855, %v7773
      %v7928 = vadd.f32 %v7856, %v7776
      %v7929 = vadd.f32 %v7857, %v7781
      %v7930 = vadd.f32 %v7858, %v7784
      %7931 = vst.msk [vmem:[#allocation2] sm:$0xff] %vm1990, %v7859
      %7932 = vst.msk [vmem:[#allocation2 + $0x8] sm:$0xff] %vm1990, %v7860
      %7933 = vst.msk [vmem:[#allocation2 + $0x10] sm:$0xff] %vm1990, %v7861
      %7934 = vst.msk [vmem:[#allocation2 + $0x18] sm:$0xff] %vm1990, %v7862
      %7935 = vst.msk [vmem:[#allocation2 + $0x20] sm:$0xff] %vm1990, %v7863
      %7936 = vst.msk [vmem:[#allocation2 + $0x28] sm:$0xff] %vm1990, %v7864
      %7937 = vst.msk [vmem:[#allocation2 + $0x30] sm:$0xff] %vm1990, %v7865
      %7938 = vst.msk [vmem:[#allocation2 + $0x38] sm:$0xff] %vm1990, %v7866
      %7939 = vst.msk [vmem:[#allocation2 + $0x40] sm:$0xff] %vm1990, %v7867
      %7940 = vst.msk [vmem:[#allocation2 + $0x48] sm:$0xff] %vm1990, %v7868
      %7941 = vst.msk [vmem:[#allocation2 + $0x50] sm:$0xff] %vm1990, %v7869
      %7942 = vst.msk [vmem:[#allocation2 + $0x58] sm:$0xff] %vm1990, %v7870
      %7943 = vst.msk [vmem:[#allocation2 + $0x60] sm:$0xff] %vm1990, %v7871
      %7944 = vst.msk [vmem:[#allocation2 + $0x68] sm:$0xff] %vm1990, %v7872
      %7945 = vst.msk [vmem:[#allocation2 + $0x70] sm:$0xff] %vm1990, %v7873
      %7946 = vst.msk [vmem:[#allocation2 + $0x78] sm:$0xff] %vm1990, %v7874
      %7947 = vst.msk [vmem:[#allocation2 + $0x80] sm:$0xff] %vm1990, %v7875
      %7948 = vst.msk [vmem:[#allocation2 + $0x88] sm:$0xff] %vm1990, %v7876
      %7949 = vst.msk [vmem:[#allocation2 + $0x90] sm:$0xff] %vm1990, %v7877
      %7950 = vst.msk [vmem:[#allocation2 + $0x98] sm:$0xff] %vm1990, %v7878
      %7951 = vst.msk [vmem:[#allocation2 + $0xa0] sm:$0xff] %vm1990, %v7879
      %7952 = vst.msk [vmem:[#allocation2 + $0xa8] sm:$0xff] %vm1990, %v7880
      %7953 = vst.msk [vmem:[#allocation2 + $0xb0] sm:$0xff] %vm1990, %v7881
      %7954 = vst.msk [vmem:[#allocation2 + $0xb8] sm:$0xff] %vm1990, %v7882
      %7955 = vst.msk [vmem:[#allocation2 + $0xc0] sm:$0xff] %vm1990, %v7883
      %7956 = vst.msk [vmem:[#allocation2 + $0xc8] sm:$0xff] %vm1990, %v7884
      %7957 = vst.msk [vmem:[#allocation2 + $0xd0] sm:$0xff] %vm1990, %v7885
      %7958 = vst.msk [vmem:[#allocation2 + $0xd8] sm:$0xff] %vm1990, %v7886
      %7959 = vst.msk [vmem:[#allocation2 + $0xe0] sm:$0xff] %vm1990, %v7887
      %7960 = vst.msk [vmem:[#allocation2 + $0xe8] sm:$0xff] %vm1990, %v7888
      %7961 = vst.msk [vmem:[#allocation2 + $0xf0] sm:$0xff] %vm1990, %v7889
      %7962 = vst.msk [vmem:[#allocation2 + $0xf8] sm:$0xff] %vm1990, %v7890
      %7963 = vst.msk [vmem:[#allocation2 + $0x100] sm:$0xff] %vm1990, %v7891
      %7964 = vst.msk [vmem:[#allocation2 + $0x108] sm:$0xff] %vm1990, %v7892
      %7965 = vst.msk [vmem:[#allocation2 + $0x110] sm:$0xff] %vm1990, %v7893
      %7966 = vst.msk [vmem:[#allocation2 + $0x118] sm:$0xff] %vm1990, %v7894
      %7967 = vst.msk [vmem:[#allocation2 + $0x120] sm:$0xff] %vm1990, %v7895
      %7968 = vst.msk [vmem:[#allocation2 + $0x128] sm:$0xff] %vm1990, %v7896
      %7969 = vst.msk [vmem:[#allocation2 + $0x130] sm:$0xff] %vm1990, %v7897
      %7970 = vst.msk [vmem:[#allocation2 + $0x138] sm:$0xff] %vm1990, %v7898
      %7971 = vst.msk [vmem:[#allocation2 + $0x140] sm:$0xff] %vm1990, %v7899
      %7972 = vst.msk [vmem:[#allocation2 + $0x148] sm:$0xff] %vm1990, %v7900
      %7973 = vst.msk [vmem:[#allocation2 + $0x150] sm:$0xff] %vm1990, %v7901
      %7974 = vst.msk [vmem:[#allocation2 + $0x158] sm:$0xff] %vm1990, %v7902
      %7975 = vst.msk [vmem:[#allocation2 + $0x160] sm:$0xff] %vm1990, %v7903
      %7976 = vst.msk [vmem:[#allocation2 + $0x168] sm:$0xff] %vm1990, %v7904
      %7977 = vst.msk [vmem:[#allocation2 + $0x170] sm:$0xff] %vm1990, %v7905
      %7978 = vst.msk [vmem:[#allocation2 + $0x178] sm:$0xff] %vm1990, %v7906
      %7979 = vst.msk [vmem:[#allocation2 + $0x180] sm:$0xff] %vm1990, %v7907
      %7980 = vst.msk [vmem:[#allocation2 + $0x188] sm:$0xff] %vm1990, %v7908
      %7981 = vst.msk [vmem:[#allocation2 + $0x190] sm:$0xff] %vm1990, %v7909
      %7982 = vst.msk [vmem:[#allocation2 + $0x198] sm:$0xff] %vm1990, %v7910
      %7983 = vst.msk [vmem:[#allocation2 + $0x1a0] sm:$0xff] %vm1990, %v7911
      %7984 = vst.msk [vmem:[#allocation2 + $0x1a8] sm:$0xff] %vm1990, %v7912
      %7985 = vst.msk [vmem:[#allocation2 + $0x1b0] sm:$0xff] %vm1990, %v7913
      %7986 = vst.msk [vmem:[#allocation2 + $0x1b8] sm:$0xff] %vm1990, %v7914
      %7987 = vst.msk [vmem:[#allocation2 + $0x1c0] sm:$0xff] %vm1990, %v7915
      %7988 = vst.msk [vmem:[#allocation2 + $0x1c8] sm:$0xff] %vm1990, %v7916
      %7989 = vst.msk [vmem:[#allocation2 + $0x1d0] sm:$0xff] %vm1990, %v7917
      %7990 = vst.msk [vmem:[#allocation2 + $0x1d8] sm:$0xff] %vm1990, %v7918
      %7991 = vst.msk [vmem:[#allocation2 + $0x1e0] sm:$0xff] %vm1990, %v7919
      %7992 = vst.msk [vmem:[#allocation2 + $0x1e8] sm:$0xff] %vm1990, %v7920
      %7993 = vst.msk [vmem:[#allocation2 + $0x1f0] sm:$0xff] %vm1990, %v7921
      %7994 = vst.msk [vmem:[#allocation2 + $0x1f8] sm:$0xff] %vm1990, %v7922
      %7995 = vst.msk [vmem:[#allocation2 + $0x200] sm:$0xff] %vm1990, %v7923
      %7996 = vst.msk [vmem:[#allocation2 + $0x208] sm:$0xff] %vm1990, %v7924
      %7997 = vst.msk [vmem:[#allocation2 + $0x210] sm:$0xff] %vm1990, %v7925
      %7998 = vst.msk [vmem:[#allocation2 + $0x218] sm:$0xff] %vm1990, %v7926
      %7999 = vst.msk [vmem:[#allocation2 + $0x220] sm:$0xff] %vm1990, %v7927
      %8000 = vst.msk [vmem:[#allocation2 + $0x228] sm:$0xff] %vm1990, %v7928
      %8001 = vst.msk [vmem:[#allocation2 + $0x230] sm:$0xff] %vm1990, %v7929
      %8002 = vst.msk [vmem:[#allocation2 + $0x238] sm:$0xff] %vm1990, %v7930
      // Predicated region
      $region45: #{tpu_custom_call.1} parent=35 // pred_check
        %p8003 = pneg %p1044
      $region46: #{tpu_custom_call.1} parent=35 // pred_check_branch
        %8005 = sbr.rel (%p8003) target = $region48
      $region47: #{tpu_custom_call.1} parent=35 // pred_region
        %v8006 = vld [vmem:[#allocation2] sm:$0xff]
        %v8007 = vld [vmem:[#allocation2 + $0x8] sm:$0xff]
        %v8008 = vld [vmem:[#allocation2 + $0x10] sm:$0xff]
        %v8009 = vld [vmem:[#allocation2 + $0x18] sm:$0xff]
        %v8010 = vld [vmem:[#allocation2 + $0x20] sm:$0xff]
        %v8011 = vld [vmem:[#allocation2 + $0x28] sm:$0xff]
        %v8012 = vld [vmem:[#allocation2 + $0x30] sm:$0xff]
        %v8013 = vld [vmem:[#allocation2 + $0x38] sm:$0xff]
        %v8014 = vld [vmem:[#allocation2 + $0x40] sm:$0xff]
        %v8015 = vld [vmem:[#allocation2 + $0x48] sm:$0xff]
        %v8016 = vld [vmem:[#allocation2 + $0x50] sm:$0xff]
        %v8017 = vld [vmem:[#allocation2 + $0x58] sm:$0xff]
        %v8018 = vld [vmem:[#allocation2 + $0x60] sm:$0xff]
        %v8019 = vld [vmem:[#allocation2 + $0x68] sm:$0xff]
        %v8020 = vld [vmem:[#allocation2 + $0x70] sm:$0xff]
        %v8021 = vld [vmem:[#allocation2 + $0x78] sm:$0xff]
        %v8022 = vld [vmem:[#allocation2 + $0x80] sm:$0xff]
        %v8023 = vld [vmem:[#allocation2 + $0x88] sm:$0xff]
        %v8024 = vld [vmem:[#allocation2 + $0x90] sm:$0xff]
        %v8025 = vld [vmem:[#allocation2 + $0x98] sm:$0xff]
        %v8026 = vld [vmem:[#allocation2 + $0xa0] sm:$0xff]
        %v8027 = vld [vmem:[#allocation2 + $0xa8] sm:$0xff]
        %v8028 = vld [vmem:[#allocation2 + $0xb0] sm:$0xff]
        %v8029 = vld [vmem:[#allocation2 + $0xb8] sm:$0xff]
        %v8030 = vld [vmem:[#allocation2 + $0xc0] sm:$0xff]
        %v8031 = vld [vmem:[#allocation2 + $0xc8] sm:$0xff]
        %v8032 = vld [vmem:[#allocation2 + $0xd0] sm:$0xff]
        %v8033 = vld [vmem:[#allocation2 + $0xd8] sm:$0xff]
        %v8034 = vld [vmem:[#allocation2 + $0xe0] sm:$0xff]
        %v8035 = vld [vmem:[#allocation2 + $0xe8] sm:$0xff]
        %v8036 = vld [vmem:[#allocation2 + $0xf0] sm:$0xff]
        %v8037 = vld [vmem:[#allocation2 + $0xf8] sm:$0xff]
        %v8038 = vld [vmem:[#allocation2 + $0x100] sm:$0xff]
        %v8039 = vld [vmem:[#allocation2 + $0x108] sm:$0xff]
        %v8040 = vld [vmem:[#allocation2 + $0x110] sm:$0xff]
        %v8041 = vld [vmem:[#allocation2 + $0x118] sm:$0xff]
        %v8042 = vld [vmem:[#allocation2 + $0x120] sm:$0xff]
        %v8043 = vld [vmem:[#allocation2 + $0x128] sm:$0xff]
        %v8044 = vld [vmem:[#allocation2 + $0x130] sm:$0xff]
        %v8045 = vld [vmem:[#allocation2 + $0x138] sm:$0xff]
        %v8046 = vld [vmem:[#allocation2 + $0x140] sm:$0xff]
        %v8047 = vld [vmem:[#allocation2 + $0x148] sm:$0xff]
        %v8048 = vld [vmem:[#allocation2 + $0x150] sm:$0xff]
        %v8049 = vld [vmem:[#allocation2 + $0x158] sm:$0xff]
        %v8050 = vld [vmem:[#allocation2 + $0x160] sm:$0xff]
        %v8051 = vld [vmem:[#allocation2 + $0x168] sm:$0xff]
        %v8052 = vld [vmem:[#allocation2 + $0x170] sm:$0xff]
        %v8053 = vld [vmem:[#allocation2 + $0x178] sm:$0xff]
        %v8054 = vld [vmem:[#allocation2 + $0x180] sm:$0xff]
        %v8055 = vld [vmem:[#allocation2 + $0x188] sm:$0xff]
        %v8056 = vld [vmem:[#allocation2 + $0x190] sm:$0xff]
        %v8057 = vld [vmem:[#allocation2 + $0x198] sm:$0xff]
        %v8058 = vld [vmem:[#allocation2 + $0x1a0] sm:$0xff]
        %v8059 = vld [vmem:[#allocation2 + $0x1a8] sm:$0xff]
        %v8060 = vld [vmem:[#allocation2 + $0x1b0] sm:$0xff]
        %v8061 = vld [vmem:[#allocation2 + $0x1b8] sm:$0xff]
        %v8062 = vld [vmem:[#allocation2 + $0x1c0] sm:$0xff]
        %v8063 = vld [vmem:[#allocation2 + $0x1c8] sm:$0xff]
        %v8064 = vld [vmem:[#allocation2 + $0x1d0] sm:$0xff]
        %v8065 = vld [vmem:[#allocation2 + $0x1d8] sm:$0xff]
        %v8066 = vld [vmem:[#allocation2 + $0x1e0] sm:$0xff]
        %v8067 = vld [vmem:[#allocation2 + $0x1e8] sm:$0xff]
        %v8068 = vld [vmem:[#allocation2 + $0x1f0] sm:$0xff]
        %v8069 = vld [vmem:[#allocation2 + $0x1f8] sm:$0xff]
        %v8070 = vld [vmem:[#allocation2 + $0x200] sm:$0xff]
        %v8071 = vld [vmem:[#allocation2 + $0x208] sm:$0xff]
        %v8072 = vld [vmem:[#allocation2 + $0x210] sm:$0xff]
        %v8073 = vld [vmem:[#allocation2 + $0x218] sm:$0xff]
        %v8074 = vld [vmem:[#allocation2 + $0x220] sm:$0xff]
        %v8075 = vld [vmem:[#allocation2 + $0x228] sm:$0xff]
        %v8076 = vld [vmem:[#allocation2 + $0x230] sm:$0xff]
        %v8077 = vld [vmem:[#allocation2 + $0x238] sm:$0xff]
        %v8078 = vld [vmem:[%s285] sm:$0x1]
        %v8080 = vlaneseq
        %v8081 = vshrl.u32 %v8080, 7
        %v8082 = vsub.s32 0, %v8081
        %v8083 = vrot.slane %v8078, %v8082
        %v8085 = vmul.f32 %v8006, %v8083
        %v8086 = vmul.f32 %v8007, %v8083
        %v8087 = vmul.f32 %v8008, %v8083
        %v8088 = vmul.f32 %v8009, %v8083
        %v8089 = vmul.f32 %v8010, %v8083
        %v8090 = vmul.f32 %v8011, %v8083
        %v8091 = vmul.f32 %v8012, %v8083
        %v8092 = vmul.f32 %v8013, %v8083
        %v8093 = vmul.f32 %v8014, %v8083
        %v8094 = vmul.f32 %v8015, %v8083
        %v8095 = vmul.f32 %v8016, %v8083
        %v8096 = vmul.f32 %v8017, %v8083
        %v8097 = vmul.f32 %v8018, %v8083
        %v8098 = vmul.f32 %v8019, %v8083
        %v8099 = vmul.f32 %v8020, %v8083
        %v8100 = vmul.f32 %v8021, %v8083
        %v8101 = vmul.f32 %v8022, %v8083
        %v8102 = vmul.f32 %v8023, %v8083
        %v8103 = vmul.f32 %v8024, %v8083
        %v8104 = vmul.f32 %v8025, %v8083
        %v8105 = vmul.f32 %v8026, %v8083
        %v8106 = vmul.f32 %v8027, %v8083
        %v8107 = vmul.f32 %v8028, %v8083
        %v8108 = vmul.f32 %v8029, %v8083
        %v8109 = vmul.f32 %v8030, %v8083
        %v8110 = vmul.f32 %v8031, %v8083
        %v8111 = vmul.f32 %v8032, %v8083
        %v8112 = vmul.f32 %v8033, %v8083
        %v8113 = vmul.f32 %v8034, %v8083
        %v8114 = vmul.f32 %v8035, %v8083
        %v8115 = vmul.f32 %v8036, %v8083
        %v8116 = vmul.f32 %v8037, %v8083
        %v8117 = vmul.f32 %v8038, %v8083
        %v8118 = vmul.f32 %v8039, %v8083
        %v8119 = vmul.f32 %v8040, %v8083
        %v8120 = vmul.f32 %v8041, %v8083
        %v8121 = vmul.f32 %v8042, %v8083
        %v8122 = vmul.f32 %v8043, %v8083
        %v8123 = vmul.f32 %v8044, %v8083
        %v8124 = vmul.f32 %v8045, %v8083
        %v8125 = vmul.f32 %v8046, %v8083
        %v8126 = vmul.f32 %v8047, %v8083
        %v8127 = vmul.f32 %v8048, %v8083
        %v8128 = vmul.f32 %v8049, %v8083
        %v8129 = vmul.f32 %v8050, %v8083
        %v8130 = vmul.f32 %v8051, %v8083
        %v8131 = vmul.f32 %v8052, %v8083
        %v8132 = vmul.f32 %v8053, %v8083
        %v8133 = vmul.f32 %v8054, %v8083
        %v8134 = vmul.f32 %v8055, %v8083
        %v8135 = vmul.f32 %v8056, %v8083
        %v8136 = vmul.f32 %v8057, %v8083
        %v8137 = vmul.f32 %v8058, %v8083
        %v8138 = vmul.f32 %v8059, %v8083
        %v8139 = vmul.f32 %v8060, %v8083
        %v8140 = vmul.f32 %v8061, %v8083
        %v8141 = vmul.f32 %v8062, %v8083
        %v8142 = vmul.f32 %v8063, %v8083
        %v8143 = vmul.f32 %v8064, %v8083
        %v8144 = vmul.f32 %v8065, %v8083
        %v8145 = vmul.f32 %v8066, %v8083
        %v8146 = vmul.f32 %v8067, %v8083
        %v8147 = vmul.f32 %v8068, %v8083
        %v8148 = vmul.f32 %v8069, %v8083
        %v8149 = vmul.f32 %v8070, %v8083
        %v8150 = vmul.f32 %v8071, %v8083
        %v8151 = vmul.f32 %v8072, %v8083
        %v8152 = vmul.f32 %v8073, %v8083
        %v8153 = vmul.f32 %v8074, %v8083
        %v8154 = vmul.f32 %v8075, %v8083
        %v8155 = vmul.f32 %v8076, %v8083
        %v8156 = vmul.f32 %v8077, %v8083
        %v8157 = vld [vmem:[%s288] sm:$0x1]
        %v8159 = vlaneseq
        %v8160 = vshrl.u32 %v8159, 7
        %v8161 = vsub.s32 0, %v8160
        %v8162 = vrot.slane %v8157, %v8161
        %v8164 = vadd.f32 %v8085, %v8162
        %v8165 = vadd.f32 %v8086, %v8162
        %v8166 = vadd.f32 %v8087, %v8162
        %v8167 = vadd.f32 %v8088, %v8162
        %v8168 = vadd.f32 %v8089, %v8162
        %v8169 = vadd.f32 %v8090, %v8162
        %v8170 = vadd.f32 %v8091, %v8162
        %v8171 = vadd.f32 %v8092, %v8162
        %v8172 = vadd.f32 %v8093, %v8162
        %v8173 = vadd.f32 %v8094, %v8162
        %v8174 = vadd.f32 %v8095, %v8162
        %v8175 = vadd.f32 %v8096, %v8162
        %v8176 = vadd.f32 %v8097, %v8162
        %v8177 = vadd.f32 %v8098, %v8162
        %v8178 = vadd.f32 %v8099, %v8162
        %v8179 = vadd.f32 %v8100, %v8162
        %v8180 = vadd.f32 %v8101, %v8162
        %v8181 = vadd.f32 %v8102, %v8162
        %v8182 = vadd.f32 %v8103, %v8162
        %v8183 = vadd.f32 %v8104, %v8162
        %v8184 = vadd.f32 %v8105, %v8162
        %v8185 = vadd.f32 %v8106, %v8162
        %v8186 = vadd.f32 %v8107, %v8162
        %v8187 = vadd.f32 %v8108, %v8162
        %v8188 = vadd.f32 %v8109, %v8162
        %v8189 = vadd.f32 %v8110, %v8162
        %v8190 = vadd.f32 %v8111, %v8162
        %v8191 = vadd.f32 %v8112, %v8162
        %v8192 = vadd.f32 %v8113, %v8162
        %v8193 = vadd.f32 %v8114, %v8162
        %v8194 = vadd.f32 %v8115, %v8162
        %v8195 = vadd.f32 %v8116, %v8162
        %v8196 = vadd.f32 %v8117, %v8162
        %v8197 = vadd.f32 %v8118, %v8162
        %v8198 = vadd.f32 %v8119, %v8162
        %v8199 = vadd.f32 %v8120, %v8162
        %v8200 = vadd.f32 %v8121, %v8162
        %v8201 = vadd.f32 %v8122, %v8162
        %v8202 = vadd.f32 %v8123, %v8162
        %v8203 = vadd.f32 %v8124, %v8162
        %v8204 = vadd.f32 %v8125, %v8162
        %v8205 = vadd.f32 %v8126, %v8162
        %v8206 = vadd.f32 %v8127, %v8162
        %v8207 = vadd.f32 %v8128, %v8162
        %v8208 = vadd.f32 %v8129, %v8162
        %v8209 = vadd.f32 %v8130, %v8162
        %v8210 = vadd.f32 %v8131, %v8162
        %v8211 = vadd.f32 %v8132, %v8162
        %v8212 = vadd.f32 %v8133, %v8162
        %v8213 = vadd.f32 %v8134, %v8162
        %v8214 = vadd.f32 %v8135, %v8162
        %v8215 = vadd.f32 %v8136, %v8162
        %v8216 = vadd.f32 %v8137, %v8162
        %v8217 = vadd.f32 %v8138, %v8162
        %v8218 = vadd.f32 %v8139, %v8162
        %v8219 = vadd.f32 %v8140, %v8162
        %v8220 = vadd.f32 %v8141, %v8162
        %v8221 = vadd.f32 %v8142, %v8162
        %v8222 = vadd.f32 %v8143, %v8162
        %v8223 = vadd.f32 %v8144, %v8162
        %v8224 = vadd.f32 %v8145, %v8162
        %v8225 = vadd.f32 %v8146, %v8162
        %v8226 = vadd.f32 %v8147, %v8162
        %v8227 = vadd.f32 %v8148, %v8162
        %v8228 = vadd.f32 %v8149, %v8162
        %v8229 = vadd.f32 %v8150, %v8162
        %v8230 = vadd.f32 %v8151, %v8162
        %v8231 = vadd.f32 %v8152, %v8162
        %v8232 = vadd.f32 %v8153, %v8162
        %v8233 = vadd.f32 %v8154, %v8162
        %v8234 = vadd.f32 %v8155, %v8162
        %v8235 = vadd.f32 %v8156, %v8162
        %v8236 = vmax.f32 %v8164, 0.0
        %v8237 = vmax.f32 %v8165, 0.0
        %v8238 = vmax.f32 %v8166, 0.0
        %v8239 = vmax.f32 %v8167, 0.0
        %v8240 = vmax.f32 %v8168, 0.0
        %v8241 = vmax.f32 %v8169, 0.0
        %v8242 = vmax.f32 %v8170, 0.0
        %v8243 = vmax.f32 %v8171, 0.0
        %v8244 = vmax.f32 %v8172, 0.0
        %v8245 = vmax.f32 %v8173, 0.0
        %v8246 = vmax.f32 %v8174, 0.0
        %v8247 = vmax.f32 %v8175, 0.0
        %v8248 = vmax.f32 %v8176, 0.0
        %v8249 = vmax.f32 %v8177, 0.0
        %v8250 = vmax.f32 %v8178, 0.0
        %v8251 = vmax.f32 %v8179, 0.0
        %v8252 = vmax.f32 %v8180, 0.0
        %v8253 = vmax.f32 %v8181, 0.0
        %v8254 = vmax.f32 %v8182, 0.0
        %v8255 = vmax.f32 %v8183, 0.0
        %v8256 = vmax.f32 %v8184, 0.0
        %v8257 = vmax.f32 %v8185, 0.0
        %v8258 = vmax.f32 %v8186, 0.0
        %v8259 = vmax.f32 %v8187, 0.0
        %v8260 = vmax.f32 %v8188, 0.0
        %v8261 = vmax.f32 %v8189, 0.0
        %v8262 = vmax.f32 %v8190, 0.0
        %v8263 = vmax.f32 %v8191, 0.0
        %v8264 = vmax.f32 %v8192, 0.0
        %v8265 = vmax.f32 %v8193, 0.0
        %v8266 = vmax.f32 %v8194, 0.0
        %v8267 = vmax.f32 %v8195, 0.0
        %v8268 = vmax.f32 %v8196, 0.0
        %v8269 = vmax.f32 %v8197, 0.0
        %v8270 = vmax.f32 %v8198, 0.0
        %v8271 = vmax.f32 %v8199, 0.0
        %v8272 = vmax.f32 %v8200, 0.0
        %v8273 = vmax.f32 %v8201, 0.0
        %v8274 = vmax.f32 %v8202, 0.0
        %v8275 = vmax.f32 %v8203, 0.0
        %v8276 = vmax.f32 %v8204, 0.0
        %v8277 = vmax.f32 %v8205, 0.0
        %v8278 = vmax.f32 %v8206, 0.0
        %v8279 = vmax.f32 %v8207, 0.0
        %v8280 = vmax.f32 %v8208, 0.0
        %v8281 = vmax.f32 %v8209, 0.0
        %v8282 = vmax.f32 %v8210, 0.0
        %v8283 = vmax.f32 %v8211, 0.0
        %v8284 = vmax.f32 %v8212, 0.0
        %v8285 = vmax.f32 %v8213, 0.0
        %v8286 = vmax.f32 %v8214, 0.0
        %v8287 = vmax.f32 %v8215, 0.0
        %v8288 = vmax.f32 %v8216, 0.0
        %v8289 = vmax.f32 %v8217, 0.0
        %v8290 = vmax.f32 %v8218, 0.0
        %v8291 = vmax.f32 %v8219, 0.0
        %v8292 = vmax.f32 %v8220, 0.0
        %v8293 = vmax.f32 %v8221, 0.0
        %v8294 = vmax.f32 %v8222, 0.0
        %v8295 = vmax.f32 %v8223, 0.0
        %v8296 = vmax.f32 %v8224, 0.0
        %v8297 = vmax.f32 %v8225, 0.0
        %v8298 = vmax.f32 %v8226, 0.0
        %v8299 = vmax.f32 %v8227, 0.0
        %v8300 = vmax.f32 %v8228, 0.0
        %v8301 = vmax.f32 %v8229, 0.0
        %v8302 = vmax.f32 %v8230, 0.0
        %v8303 = vmax.f32 %v8231, 0.0
        %v8304 = vmax.f32 %v8232, 0.0
        %v8305 = vmax.f32 %v8233, 0.0
        %v8306 = vmax.f32 %v8234, 0.0
        %v8307 = vmax.f32 %v8235, 0.0
        %v8308 = vpack.c.bf16 %v8237, %v8236
        %v8309 = vpack.c.bf16 %v8239, %v8238
        %v8310 = vpack.c.bf16 %v8241, %v8240
        %v8311 = vpack.c.bf16 %v8243, %v8242
        %v8312 = vpack.c.bf16 %v8245, %v8244
        %v8313 = vpack.c.bf16 %v8247, %v8246
        %v8314 = vpack.c.bf16 %v8249, %v8248
        %v8315 = vpack.c.bf16 %v8251, %v8250
        %v8316 = vpack.c.bf16 %v8253, %v8252
        %v8317 = vpack.c.bf16 %v8255, %v8254
        %v8318 = vpack.c.bf16 %v8257, %v8256
        %v8319 = vpack.c.bf16 %v8259, %v8258
        %v8320 = vpack.c.bf16 %v8261, %v8260
        %v8321 = vpack.c.bf16 %v8263, %v8262
        %v8322 = vpack.c.bf16 %v8265, %v8264
        %v8323 = vpack.c.bf16 %v8267, %v8266
        %v8324 = vpack.c.bf16 %v8269, %v8268
        %v8325 = vpack.c.bf16 %v8271, %v8270
        %v8326 = vpack.c.bf16 %v8273, %v8272
        %v8327 = vpack.c.bf16 %v8275, %v8274
        %v8328 = vpack.c.bf16 %v8277, %v8276
        %v8329 = vpack.c.bf16 %v8279, %v8278
        %v8330 = vpack.c.bf16 %v8281, %v8280
        %v8331 = vpack.c.bf16 %v8283, %v8282
        %v8332 = vpack.c.bf16 %v8285, %v8284
        %v8333 = vpack.c.bf16 %v8287, %v8286
        %v8334 = vpack.c.bf16 %v8289, %v8288
        %v8335 = vpack.c.bf16 %v8291, %v8290
        %v8336 = vpack.c.bf16 %v8293, %v8292
        %v8337 = vpack.c.bf16 %v8295, %v8294
        %v8338 = vpack.c.bf16 %v8297, %v8296
        %v8339 = vpack.c.bf16 %v8299, %v8298
        %v8340 = vpack.c.bf16 %v8301, %v8300
        %v8341 = vpack.c.bf16 %v8303, %v8302
        %v8342 = vpack.c.bf16 %v8305, %v8304
        %v8343 = vpack.c.bf16 %v8307, %v8306
        %v8381 = vunpack.c.l.b16 %v8308
        %v8382 = vunpack.c.h.b16 %v8308
        %v8383 = vunpack.c.l.b16 %v8309
        %v8384 = vunpack.c.h.b16 %v8309
        %v8385 = vunpack.c.l.b16 %v8310
        %v8386 = vunpack.c.h.b16 %v8310
        %v8387 = vunpack.c.l.b16 %v8311
        %v8388 = vunpack.c.h.b16 %v8311
        %v8389 = vunpack.c.l.b16 %v8312
        %v8390 = vunpack.c.h.b16 %v8312
        %v8391 = vunpack.c.l.b16 %v8313
        %v8392 = vunpack.c.h.b16 %v8313
        %v8393 = vunpack.c.l.b16 %v8314
        %v8394 = vunpack.c.h.b16 %v8314
        %v8395 = vunpack.c.l.b16 %v8315
        %v8396 = vunpack.c.h.b16 %v8315
        %v8397 = vunpack.c.l.b16 %v8316
        %v8398 = vunpack.c.h.b16 %v8316
        %v8399 = vunpack.c.l.b16 %v8317
        %v8400 = vunpack.c.h.b16 %v8317
        %v8401 = vunpack.c.l.b16 %v8318
        %v8402 = vunpack.c.h.b16 %v8318
        %v8403 = vunpack.c.l.b16 %v8319
        %v8404 = vunpack.c.h.b16 %v8319
        %v8405 = vunpack.c.l.b16 %v8320
        %v8406 = vunpack.c.h.b16 %v8320
        %v8407 = vunpack.c.l.b16 %v8321
        %v8408 = vunpack.c.h.b16 %v8321
        %v8409 = vunpack.c.l.b16 %v8322
        %v8410 = vunpack.c.h.b16 %v8322
        %v8411 = vunpack.c.l.b16 %v8323
        %v8412 = vunpack.c.h.b16 %v8323
        %v8413 = vunpack.c.l.b16 %v8324
        %v8414 = vunpack.c.h.b16 %v8324
        %v8415 = vunpack.c.l.b16 %v8325
        %v8416 = vunpack.c.h.b16 %v8325
        %v8417 = vunpack.c.l.b16 %v8326
        %v8418 = vunpack.c.h.b16 %v8326
        %v8419 = vunpack.c.l.b16 %v8327
        %v8420 = vunpack.c.h.b16 %v8327
        %v8421 = vunpack.c.l.b16 %v8328
        %v8422 = vunpack.c.h.b16 %v8328
        %v8423 = vunpack.c.l.b16 %v8329
        %v8424 = vunpack.c.h.b16 %v8329
        %v8425 = vunpack.c.l.b16 %v8330
        %v8426 = vunpack.c.h.b16 %v8330
        %v8427 = vunpack.c.l.b16 %v8331
        %v8428 = vunpack.c.h.b16 %v8331
        %v8429 = vunpack.c.l.b16 %v8332
        %v8430 = vunpack.c.h.b16 %v8332
        %v8431 = vunpack.c.l.b16 %v8333
        %v8432 = vunpack.c.h.b16 %v8333
        %v8433 = vunpack.c.l.b16 %v8334
        %v8434 = vunpack.c.h.b16 %v8334
        %v8435 = vunpack.c.l.b16 %v8335
        %v8436 = vunpack.c.h.b16 %v8335
        %v8437 = vunpack.c.l.b16 %v8336
        %v8438 = vunpack.c.h.b16 %v8336
        %v8439 = vunpack.c.l.b16 %v8337
        %v8440 = vunpack.c.h.b16 %v8337
        %v8441 = vunpack.c.l.b16 %v8338
        %v8442 = vunpack.c.h.b16 %v8338
        %v8443 = vunpack.c.l.b16 %v8339
        %v8444 = vunpack.c.h.b16 %v8339
        %v8445 = vunpack.c.l.b16 %v8340
        %v8446 = vunpack.c.h.b16 %v8340
        %v8447 = vunpack.c.l.b16 %v8341
        %v8448 = vunpack.c.h.b16 %v8341
        %v8449 = vunpack.c.l.b16 %v8342
        %v8450 = vunpack.c.h.b16 %v8342
        %v8451 = vunpack.c.l.b16 %v8343
        %v8452 = vunpack.c.h.b16 %v8343
        %v8453 = vunpack.c.l.b16 0
        %v8454 = vunpack.c.h.b16 0
        %v8455 = vpack.c.b16 %v8381, %v8381
        %v8456 = vpack.c.b16 %v8382, %v8382
        %v8457 = vpack.c.b16 %v8383, %v8383
        %v8458 = vpack.c.b16 %v8384, %v8384
        %v8459 = vpack.c.b16 %v8385, %v8385
        %v8460 = vpack.c.b16 %v8386, %v8386
        %v8461 = vpack.c.b16 %v8387, %v8387
        %v8462 = vpack.c.b16 %v8388, %v8388
        %v8463 = vpack.c.b16 %v8389, %v8389
        %v8464 = vpack.c.b16 %v8390, %v8390
        %v8465 = vpack.c.b16 %v8391, %v8391
        %v8466 = vpack.c.b16 %v8392, %v8392
        %v8467 = vpack.c.b16 %v8393, %v8393
        %v8468 = vpack.c.b16 %v8394, %v8394
        %v8469 = vpack.c.b16 %v8395, %v8395
        %v8470 = vpack.c.b16 %v8396, %v8396
        %v8471 = vpack.c.b16 %v8397, %v8397
        %v8472 = vpack.c.b16 %v8398, %v8398
        %v8473 = vpack.c.b16 %v8399, %v8399
        %v8474 = vpack.c.b16 %v8400, %v8400
        %v8475 = vpack.c.b16 %v8401, %v8401
        %v8476 = vpack.c.b16 %v8402, %v8402
        %v8477 = vpack.c.b16 %v8403, %v8403
        %v8478 = vpack.c.b16 %v8404, %v8404
        %v8479 = vpack.c.b16 %v8405, %v8405
        %v8480 = vpack.c.b16 %v8406, %v8406
        %v8481 = vpack.c.b16 %v8407, %v8407
        %v8482 = vpack.c.b16 %v8408, %v8408
        %v8483 = vpack.c.b16 %v8409, %v8409
        %v8484 = vpack.c.b16 %v8410, %v8410
        %v8485 = vpack.c.b16 %v8411, %v8411
        %v8486 = vpack.c.b16 %v8412, %v8412
        %v8487 = vpack.c.b16 %v8413, %v8413
        %v8488 = vpack.c.b16 %v8414, %v8414
        %v8489 = vpack.c.b16 %v8415, %v8415
        %v8490 = vpack.c.b16 %v8416, %v8416
        %v8491 = vpack.c.b16 %v8417, %v8417
        %v8492 = vpack.c.b16 %v8418, %v8418
        %v8493 = vpack.c.b16 %v8419, %v8419
        %v8494 = vpack.c.b16 %v8420, %v8420
        %v8495 = vpack.c.b16 %v8421, %v8421
        %v8496 = vpack.c.b16 %v8422, %v8422
        %v8497 = vpack.c.b16 %v8423, %v8423
        %v8498 = vpack.c.b16 %v8424, %v8424
        %v8499 = vpack.c.b16 %v8425, %v8425
        %v8500 = vpack.c.b16 %v8426, %v8426
        %v8501 = vpack.c.b16 %v8427, %v8427
        %v8502 = vpack.c.b16 %v8428, %v8428
        %v8503 = vpack.c.b16 %v8429, %v8429
        %v8504 = vpack.c.b16 %v8430, %v8430
        %v8505 = vpack.c.b16 %v8431, %v8431
        %v8506 = vpack.c.b16 %v8432, %v8432
        %v8507 = vpack.c.b16 %v8433, %v8433
        %v8508 = vpack.c.b16 %v8434, %v8434
        %v8509 = vpack.c.b16 %v8435, %v8435
        %v8510 = vpack.c.b16 %v8436, %v8436
        %v8511 = vpack.c.b16 %v8437, %v8437
        %v8512 = vpack.c.b16 %v8438, %v8438
        %v8513 = vpack.c.b16 %v8439, %v8439
        %v8514 = vpack.c.b16 %v8440, %v8440
        %v8515 = vpack.c.b16 %v8441, %v8441
        %v8516 = vpack.c.b16 %v8442, %v8442
        %v8517 = vpack.c.b16 %v8443, %v8443
        %v8518 = vpack.c.b16 %v8444, %v8444
        %v8519 = vpack.c.b16 %v8445, %v8445
        %v8520 = vpack.c.b16 %v8446, %v8446
        %v8521 = vpack.c.b16 %v8447, %v8447
        %v8522 = vpack.c.b16 %v8448, %v8448
        %v8523 = vpack.c.b16 %v8449, %v8449
        %v8524 = vpack.c.b16 %v8450, %v8450
        %v8525 = vpack.c.b16 %v8451, %v8451
        %v8526 = vpack.c.b16 %v8452, %v8452
        %v8527 = vpack.c.b16 %v8453, %v8453
        %v8528 = vpack.c.b16 %v8454, %v8454
        %vm8603 = vcmask 125952
        %8604 = vst.msk [vmem:[%s296] sm:$0xf] %vm8603, %v8455
        %8605 = vst.msk [vmem:[%s296 + $0x4] sm:$0xf] %vm8603, %v8456
        %8606 = vst.msk [vmem:[%s296 + $0x8] sm:$0xf] %vm8603, %v8457
        %8607 = vst.msk [vmem:[%s296 + $0xc] sm:$0xf] %vm8603, %v8458
        %8608 = vst.msk [vmem:[%s296 + $0x10] sm:$0xf] %vm8603, %v8459
        %8609 = vst.msk [vmem:[%s296 + $0x14] sm:$0xf] %vm8603, %v8460
        %8610 = vst.msk [vmem:[%s296 + $0x18] sm:$0xf] %vm8603, %v8461
        %8611 = vst.msk [vmem:[%s296 + $0x1c] sm:$0xf] %vm8603, %v8462
        %8612 = vst.msk [vmem:[%s296 + $0x20] sm:$0xf] %vm8603, %v8463
        %8613 = vst.msk [vmem:[%s296 + $0x24] sm:$0xf] %vm8603, %v8464
        %8614 = vst.msk [vmem:[%s296 + $0x28] sm:$0xf] %vm8603, %v8465
        %8615 = vst.msk [vmem:[%s296 + $0x2c] sm:$0xf] %vm8603, %v8466
        %8616 = vst.msk [vmem:[%s296 + $0x30] sm:$0xf] %vm8603, %v8467
        %8617 = vst.msk [vmem:[%s296 + $0x34] sm:$0xf] %vm8603, %v8468
        %8618 = vst.msk [vmem:[%s296 + $0x38] sm:$0xf] %vm8603, %v8469
        %8619 = vst.msk [vmem:[%s296 + $0x3c] sm:$0xf] %vm8603, %v8470
        %8620 = vst.msk [vmem:[%s296 + $0x40] sm:$0xf] %vm8603, %v8471
        %8621 = vst.msk [vmem:[%s296 + $0x44] sm:$0xf] %vm8603, %v8472
        %8622 = vst.msk [vmem:[%s296 + $0x48] sm:$0xf] %vm8603, %v8473
        %8623 = vst.msk [vmem:[%s296 + $0x4c] sm:$0xf] %vm8603, %v8474
        %8624 = vst.msk [vmem:[%s296 + $0x50] sm:$0xf] %vm8603, %v8475
        %8625 = vst.msk [vmem:[%s296 + $0x54] sm:$0xf] %vm8603, %v8476
        %8626 = vst.msk [vmem:[%s296 + $0x58] sm:$0xf] %vm8603, %v8477
        %8627 = vst.msk [vmem:[%s296 + $0x5c] sm:$0xf] %vm8603, %v8478
        %8628 = vst.msk [vmem:[%s296 + $0x60] sm:$0xf] %vm8603, %v8479
        %8629 = vst.msk [vmem:[%s296 + $0x64] sm:$0xf] %vm8603, %v8480
        %8630 = vst.msk [vmem:[%s296 + $0x68] sm:$0xf] %vm8603, %v8481
        %8631 = vst.msk [vmem:[%s296 + $0x6c] sm:$0xf] %vm8603, %v8482
        %8632 = vst.msk [vmem:[%s296 + $0x70] sm:$0xf] %vm8603, %v8483
        %8633 = vst.msk [vmem:[%s296 + $0x74] sm:$0xf] %vm8603, %v8484
        %8634 = vst.msk [vmem:[%s296 + $0x78] sm:$0xf] %vm8603, %v8485
        %8635 = vst.msk [vmem:[%s296 + $0x7c] sm:$0xf] %vm8603, %v8486
        %8636 = vst.msk [vmem:[%s296 + $0x80] sm:$0xf] %vm8603, %v8487
        %8637 = vst.msk [vmem:[%s296 + $0x84] sm:$0xf] %vm8603, %v8488
        %8638 = vst.msk [vmem:[%s296 + $0x88] sm:$0xf] %vm8603, %v8489
        %8639 = vst.msk [vmem:[%s296 + $0x8c] sm:$0xf] %vm8603, %v8490
        %8640 = vst.msk [vmem:[%s296 + $0x90] sm:$0xf] %vm8603, %v8491
        %8641 = vst.msk [vmem:[%s296 + $0x94] sm:$0xf] %vm8603, %v8492
        %8642 = vst.msk [vmem:[%s296 + $0x98] sm:$0xf] %vm8603, %v8493
        %8643 = vst.msk [vmem:[%s296 + $0x9c] sm:$0xf] %vm8603, %v8494
        %8644 = vst.msk [vmem:[%s296 + $0xa0] sm:$0xf] %vm8603, %v8495
        %8645 = vst.msk [vmem:[%s296 + $0xa4] sm:$0xf] %vm8603, %v8496
        %8646 = vst.msk [vmem:[%s296 + $0xa8] sm:$0xf] %vm8603, %v8497
        %8647 = vst.msk [vmem:[%s296 + $0xac] sm:$0xf] %vm8603, %v8498
        %8648 = vst.msk [vmem:[%s296 + $0xb0] sm:$0xf] %vm8603, %v8499
        %8649 = vst.msk [vmem:[%s296 + $0xb4] sm:$0xf] %vm8603, %v8500
        %8650 = vst.msk [vmem:[%s296 + $0xb8] sm:$0xf] %vm8603, %v8501
        %8651 = vst.msk [vmem:[%s296 + $0xbc] sm:$0xf] %vm8603, %v8502
        %8652 = vst.msk [vmem:[%s296 + $0xc0] sm:$0xf] %vm8603, %v8503
        %8653 = vst.msk [vmem:[%s296 + $0xc4] sm:$0xf] %vm8603, %v8504
        %8654 = vst.msk [vmem:[%s296 + $0xc8] sm:$0xf] %vm8603, %v8505
        %8655 = vst.msk [vmem:[%s296 + $0xcc] sm:$0xf] %vm8603, %v8506
        %8656 = vst.msk [vmem:[%s296 + $0xd0] sm:$0xf] %vm8603, %v8507
        %8657 = vst.msk [vmem:[%s296 + $0xd4] sm:$0xf] %vm8603, %v8508
        %8658 = vst.msk [vmem:[%s296 + $0xd8] sm:$0xf] %vm8603, %v8509
        %8659 = vst.msk [vmem:[%s296 + $0xdc] sm:$0xf] %vm8603, %v8510
        %8660 = vst.msk [vmem:[%s296 + $0xe0] sm:$0xf] %vm8603, %v8511
        %8661 = vst.msk [vmem:[%s296 + $0xe4] sm:$0xf] %vm8603, %v8512
        %8662 = vst.msk [vmem:[%s296 + $0xe8] sm:$0xf] %vm8603, %v8513
        %8663 = vst.msk [vmem:[%s296 + $0xec] sm:$0xf] %vm8603, %v8514
        %8664 = vst.msk [vmem:[%s296 + $0xf0] sm:$0xf] %vm8603, %v8515
        %8665 = vst.msk [vmem:[%s296 + $0xf4] sm:$0xf] %vm8603, %v8516
        %8666 = vst.msk [vmem:[%s296 + $0xf8] sm:$0xf] %vm8603, %v8517
        %8667 = vst.msk [vmem:[%s296 + $0xfc] sm:$0xf] %vm8603, %v8518
        %8668 = vst.msk [vmem:[%s296 + $0x100] sm:$0xf] %vm8603, %v8519
        %8669 = vst.msk [vmem:[%s296 + $0x104] sm:$0xf] %vm8603, %v8520
        %8670 = vst.msk [vmem:[%s296 + $0x108] sm:$0xf] %vm8603, %v8521
        %8671 = vst.msk [vmem:[%s296 + $0x10c] sm:$0xf] %vm8603, %v8522
        %8672 = vst.msk [vmem:[%s296 + $0x110] sm:$0xf] %vm8603, %v8523
        %8673 = vst.msk [vmem:[%s296 + $0x114] sm:$0xf] %vm8603, %v8524
        %8674 = vst.msk [vmem:[%s296 + $0x118] sm:$0xf] %vm8603, %v8525
        %8675 = vst.msk [vmem:[%s296 + $0x11c] sm:$0xf] %vm8603, %v8526
        %8676 = vst.msk [vmem:[%s296 + $0x120] sm:$0xf] %vm8603, %v8527
        %8677 = vst.msk [vmem:[%s296 + $0x124] sm:$0xf] %vm8603, %v8528
        %8678 = vst.msk [vmem:[%s296 + $0x128] sm:$0xf] %vm8603, %v8527
        %8679 = vst.msk [vmem:[%s296 + $0x12c] sm:$0xf] %vm8603, %v8528
        %8680 = vst.msk [vmem:[%s296 + $0x130] sm:$0xf] %vm8603, %v8527
        %8681 = vst.msk [vmem:[%s296 + $0x134] sm:$0xf] %vm8603, %v8528
        %8682 = vst.msk [vmem:[%s296 + $0x138] sm:$0xf] %vm8603, %v8527
        %8683 = vst.msk [vmem:[%s296 + $0x13c] sm:$0xf] %vm8603, %v8528
        %8684 = vst.msk [vmem:[%s296 + $0x140] sm:$0xf] %vm8603, %v8527
        %8685 = vst.msk [vmem:[%s296 + $0x144] sm:$0xf] %vm8603, %v8528
        %8686 = vst.msk [vmem:[%s296 + $0x148] sm:$0xf] %vm8603, %v8527
        %8687 = vst.msk [vmem:[%s296 + $0x14c] sm:$0xf] %vm8603, %v8528
        %8688 = vst.msk [vmem:[%s296 + $0x150] sm:$0xf] %vm8603, %v8527
        %8689 = vst.msk [vmem:[%s296 + $0x154] sm:$0xf] %vm8603, %v8528
        %8690 = vst.msk [vmem:[%s296 + $0x158] sm:$0xf] %vm8603, %v8527
        %8691 = vst.msk [vmem:[%s296 + $0x15c] sm:$0xf] %vm8603, %v8528
        %8692 = vst.msk [vmem:[%s296 + $0x160] sm:$0xf] %vm8603, %v8527
        %8693 = vst.msk [vmem:[%s296 + $0x164] sm:$0xf] %vm8603, %v8528
        %8694 = vst.msk [vmem:[%s296 + $0x168] sm:$0xf] %vm8603, %v8527
        %8695 = vst.msk [vmem:[%s296 + $0x16c] sm:$0xf] %vm8603, %v8528
        %8696 = vst.msk [vmem:[%s296 + $0x170] sm:$0xf] %vm8603, %v8527
        %8697 = vst.msk [vmem:[%s296 + $0x174] sm:$0xf] %vm8603, %v8528
        %8698 = vst.msk [vmem:[%s296 + $0x178] sm:$0xf] %vm8603, %v8527
        %8699 = vst.msk [vmem:[%s296 + $0x17c] sm:$0xf] %vm8603, %v8528
        %8700 = vst.msk [vmem:[%s296 + $0x180] sm:$0xf] %vm8603, %v8527
        %8701 = vst.msk [vmem:[%s296 + $0x184] sm:$0xf] %vm8603, %v8528
        %8702 = vst.msk [vmem:[%s296 + $0x188] sm:$0xf] %vm8603, %v8527
        %8703 = vst.msk [vmem:[%s296 + $0x18c] sm:$0xf] %vm8603, %v8528
        %8704 = vst.msk [vmem:[%s296 + $0x190] sm:$0xf] %vm8603, %v8527
        %8705 = vst.msk [vmem:[%s296 + $0x194] sm:$0xf] %vm8603, %v8528
        %8706 = vst.msk [vmem:[%s296 + $0x198] sm:$0xf] %vm8603, %v8527
        %8707 = vst.msk [vmem:[%s296 + $0x19c] sm:$0xf] %vm8603, %v8528
        %8708 = vst.msk [vmem:[%s296 + $0x1a0] sm:$0xf] %vm8603, %v8527
        %8709 = vst.msk [vmem:[%s296 + $0x1a4] sm:$0xf] %vm8603, %v8528
        %8710 = vst.msk [vmem:[%s296 + $0x1a8] sm:$0xf] %vm8603, %v8527
        %8711 = vst.msk [vmem:[%s296 + $0x1ac] sm:$0xf] %vm8603, %v8528
        %8712 = vst.msk [vmem:[%s296 + $0x1b0] sm:$0xf] %vm8603, %v8527
        %8713 = vst.msk [vmem:[%s296 + $0x1b4] sm:$0xf] %vm8603, %v8528
        %8714 = vst.msk [vmem:[%s296 + $0x1b8] sm:$0xf] %vm8603, %v8527
        %8715 = vst.msk [vmem:[%s296 + $0x1bc] sm:$0xf] %vm8603, %v8528
        %8716 = vst.msk [vmem:[%s296 + $0x1c0] sm:$0xf] %vm8603, %v8527
        %8717 = vst.msk [vmem:[%s296 + $0x1c4] sm:$0xf] %vm8603, %v8528
        %8718 = vst.msk [vmem:[%s296 + $0x1c8] sm:$0xf] %vm8603, %v8527
        %8719 = vst.msk [vmem:[%s296 + $0x1cc] sm:$0xf] %vm8603, %v8528
        %8720 = vst.msk [vmem:[%s296 + $0x1d0] sm:$0xf] %vm8603, %v8527
        %8721 = vst.msk [vmem:[%s296 + $0x1d4] sm:$0xf] %vm8603, %v8528
        %8722 = vst.msk [vmem:[%s296 + $0x1d8] sm:$0xf] %vm8603, %v8527
        %8723 = vst.msk [vmem:[%s296 + $0x1dc] sm:$0xf] %vm8603, %v8528
        %8724 = vst.msk [vmem:[%s296 + $0x1e0] sm:$0xf] %vm8603, %v8527
        %8725 = vst.msk [vmem:[%s296 + $0x1e4] sm:$0xf] %vm8603, %v8528
        %8726 = vst.msk [vmem:[%s296 + $0x1e8] sm:$0xf] %vm8603, %v8527
        %8727 = vst.msk [vmem:[%s296 + $0x1ec] sm:$0xf] %vm8603, %v8528
        %8728 = vst.msk [vmem:[%s296 + $0x1f0] sm:$0xf] %vm8603, %v8527
        %8729 = vst.msk [vmem:[%s296 + $0x1f4] sm:$0xf] %vm8603, %v8528
        %8730 = vst.msk [vmem:[%s296 + $0x1f8] sm:$0xf] %vm8603, %v8527
        %8731 = vst.msk [vmem:[%s296 + $0x1fc] sm:$0xf] %vm8603, %v8528
      $region48: #{tpu_custom_call.1} parent=35 // pred_fallthru
        _
      %p8732 = scmp.lt.s32.totalorder %s20, 1
      %s8733 = scalar_select %p8732, %s20, 1
      %p8734 = scmp.lt.s32.totalorder %s21, 0
      %s8735 = scalar_select %p8734, %s21, 0
      %s8736 = smul.addr %s8733, 128
      %s8737 = sadd.s32 %s8735, %s8736
      %s8738 = smul.addr %s8737, 4
      %s8739 = scalar_lea.vmem %s4, %s8738
      // Predicated region
      $region49: #{tpu_custom_call.1} parent=35 // pred_check
        %p8740 = pneg %p162
      $region50: #{tpu_custom_call.1} parent=35 // pred_check_branch
        %8742 = sbr.rel (%p8740) target = $region52
      $region51: #{tpu_custom_call.1} parent=35 // pred_region
        _
      $region52: #{tpu_custom_call.1} parent=35 // pred_fallthru
        _
    $region36: #{tpu_custom_call.1} parent=5 // pred_fallthru
      _
    %p8743 = scmp.le.s32.totalorder 2, %s10
    // Predicated region
    $region53: #{tpu_custom_call.1} parent=5 // pred_check
      %p8744 = pneg %p8743
    $region54: #{tpu_custom_call.1} parent=5 // pred_check_branch
      %8746 = sbr.rel (%p8744) target = $region56
    $region55: #{tpu_custom_call.1} parent=5 // pred_region
      %s8747 = ssub.s32 %s10, 2
      // Predicated region
      $region57: #{tpu_custom_call.1} parent=55 // pred_check
        %p8748 = pneg %p168
      $region58: #{tpu_custom_call.1} parent=55 // pred_check_branch
        %8750 = sbr.rel (%p8748) target = $region60
      $region59: #{tpu_custom_call.1} parent=55 // pred_region
        %p8751 = scmp.lt.s32.totalorder %s23, 1
        %s8752 = scalar_select %p8751, %s23, 1
        %p8753 = scmp.lt.s32.totalorder %s24, 0
        %s8754 = scalar_select %p8753, %s24, 0
        %s8755 = smul.addr %s8752, 128
        %s8756 = sadd.s32 %s8754, %s8755
        %s8757 = smul.addr %s8756, 4
        %s8758 = scalar_lea.vmem %s4, %s8757
      $region60: #{tpu_custom_call.1} parent=55 // pred_fallthru
        _
    $region56: #{tpu_custom_call.1} parent=5 // pred_fallthru
      _
  $region6: #{tpu_custom_call.1} parent=0 // loop_footer
    %s14 = sadd.s32 1, %s10
  $region7: #{tpu_custom_call.1} parent=0 // loop_footer_branch
    %9 = sbr.rel target = $region3
  $region8: #{tpu_custom_call.1} parent=0 // loop_exit
    _

</llo_original>
